<compile_context>
chip_gen: v6e
topology: v6e:2x2x1
jax: 0.10.0
libtpu: 0.0.40
codegen_flags: <defaults>
</compile_context>

<pallas_src>
import functools

import jax
import jax.numpy as jnp
from jax.experimental import pallas as pl
from jax.experimental.pallas import tpu as pltpu


# ----------------------------- helpers ---------------------------------------

def _round_up(v, m):
    return ((v + m - 1) // m) * m


# ----------------------------- Pallas kernels --------------------------------

def _conv3x3_stats_kernel(x_ref, scale_ref, shift_ref, w_ref,
                          y_ref, ssum_ref, ssq_ref,
                          xpad_ref,
                          *, h, w, cin, cout, apply_act):
    """3x3 / stride-1 / pad-1 conv over one NHWC image tile.

    - Optionally applies the previous layer's folded BN (scale/shift) + ReLU
      to the input tile right after it lands in VMEM (layer-boundary fusion).
    - Builds the zero-padded halo tile in VMEM scratch (no HBM im2col).
    - Accumulates 9 shifted bf16 matmuls into an f32 accumulator.
    - Emits the raw conv output plus per-channel sum / sum-of-squares
      (accumulated across the grid) for the batch-norm statistics.
    """
    step = pl.program_id(0)

    a = x_ref[0]                                      # (h, w, cin) f32
    if apply_act:
        sc = scale_ref[...].reshape(1, 1, cin)
        sh = shift_ref[...].reshape(1, 1, cin)
        a = jnp.maximum(a * sc + sh, 0.0)

    # Zero-padded halo tile (spatial pad=1), built entirely in VMEM.
    xpad_ref[...] = jnp.zeros((h + 2, w + 2, cin), jnp.float32)
    xpad_ref[1:h + 1, 1:w + 1, :] = a

    # 9 shifted taps -> one (h*w, cout) f32 accumulator (MXU, bf16 operands).
    acc = jnp.zeros((h * w, cout), jnp.float32)
    for dh in range(3):
        for dw in range(3):
            lhs = xpad_ref[dh:dh + h, dw:dw + w, :]
            lhs = lhs.reshape(h * w, cin).astype(jnp.bfloat16)
            acc = acc + jnp.dot(lhs, w_ref[dh * 3 + dw],
                                preferred_element_type=jnp.float32)

    # Raw conv output (bias omitted: exactly cancelled by train-mode BN).
    y_ref[...] = acc.reshape(1, h, w, cout)

    # BatchNorm batch statistics, accumulated while the tile is in VMEM.
    @pl.when(step == 0)
    def _():
        ssum_ref[...] = jnp.zeros_like(ssum_ref)
        ssq_ref[...] = jnp.zeros_like(ssq_ref)

    ssum_ref[...] += jnp.sum(acc, axis=0, keepdims=True)
    ssq_ref[...] += jnp.sum(acc * acc, axis=0, keepdims=True)


def _bn_relu_kernel(y_ref, scale_ref, shift_ref, o_ref):
    """Fused folded-BN affine + ReLU over a lane-dense NHWC tile."""
    c = y_ref.shape[-1]
    sc = scale_ref[...].reshape(1, 1, 1, c)
    sh = shift_ref[...].reshape(1, 1, 1, c)
    o_ref[...] = jnp.maximum(y_ref[...] * sc + sh, 0.0)


# ----------------------------- wrappers ---------------------------------------

def _conv3x3_stats(x_nhwc, w9, scale_in, shift_in, cout, *, apply_act):
    """x_nhwc: (N, H, W, Cin_p) f32, w9: (9, Cin_p, Cout_p) bf16."""
    n, h, w, cin = x_nhwc.shape
    kernel = functools.partial(_conv3x3_stats_kernel, h=h, w=w, cin=cin,
                               cout=cout, apply_act=apply_act)
    y, ssum, ssq = pl.pallas_call(
        kernel,
        out_shape=(
            jax.ShapeDtypeStruct((n, h, w, cout), jnp.float32),
            jax.ShapeDtypeStruct((1, cout), jnp.float32),
            jax.ShapeDtypeStruct((1, cout), jnp.float32),
        ),
        grid_spec=pltpu.PrefetchScalarGridSpec(
            num_scalar_prefetch=0,
            grid=(n,),
            in_specs=[
                pl.BlockSpec((1, h, w, cin), lambda i: (i, 0, 0, 0)),
                pl.BlockSpec((1, cin), lambda i: (0, 0)),
                pl.BlockSpec((1, cin), lambda i: (0, 0)),
                pl.BlockSpec((9, cin, cout), lambda i: (0, 0, 0)),
            ],
            out_specs=(
                pl.BlockSpec((1, h, w, cout), lambda i: (i, 0, 0, 0)),
                pl.BlockSpec((1, cout), lambda i: (0, 0)),
                pl.BlockSpec((1, cout), lambda i: (0, 0)),
            ),
            scratch_shapes=[pltpu.VMEM((h + 2, w + 2, cin), jnp.float32)],
        ),
        # The stats outputs accumulate across the grid axis -> sequential.
        compiler_params=pltpu.CompilerParams(
            dimension_semantics=("arbitrary",)),
    )(x_nhwc, scale_in, shift_in, w9)
    return y, ssum, ssq


def _bn_relu(y, scale, shift):
    n, h, w, c = y.shape
    return pl.pallas_call(
        _bn_relu_kernel,
        out_shape=jax.ShapeDtypeStruct((n, h, w, c), jnp.float32),
        grid_spec=pltpu.PrefetchScalarGridSpec(
            num_scalar_prefetch=0,
            grid=(n,),
            in_specs=[
                pl.BlockSpec((1, h, w, c), lambda i: (i, 0, 0, 0)),
                pl.BlockSpec((1, c), lambda i: (0, 0)),
                pl.BlockSpec((1, c), lambda i: (0, 0)),
            ],
            out_specs=pl.BlockSpec((1, h, w, c), lambda i: (i, 0, 0, 0)),
        ),
        compiler_params=pltpu.CompilerParams(
            dimension_semantics=("parallel",)),
    )(y, scale, shift)


def _bn_fold(ssum, ssq, count, gamma_p, beta_p, eps=1e-5):
    """Per-channel folded-BN coefficients from sum / sum-of-squares."""
    mean = ssum[0] / count
    var = jnp.maximum(ssq[0] / count - mean * mean, 0.0)   # biased (train mode)
    scale = gamma_p * jax.lax.rsqrt(var + eps)
    shift = beta_p - mean * scale
    return scale.reshape(1, -1), shift.reshape(1, -1)


def _prep_weight(w_oihw, cin_p, cout_p):
    """torch (Cout, Cin, 3, 3) -> (9, cin_p, cout_p) bf16, zero-padded."""
    cout, cin = w_oihw.shape[0], w_oihw.shape[1]
    w9 = jnp.transpose(w_oihw, (2, 3, 1, 0)).reshape(9, cin, cout)
    w9 = jnp.pad(w9, ((0, 0), (0, cin_p - cin), (0, cout_p - cout)))
    return w9.astype(jnp.bfloat16)


def _pad_vec(v, target):
    return jnp.pad(v, (0, target - v.shape[0]))


@jax.jit
def unet_conv2_forward(x, params):
    """unetConv2.forward with is_batchnorm=True. x: NCHW float32."""
    n, cin, h, w = x.shape
    cout = params["w1"].shape[0]
    cin_p = _round_up(cin, 128)   # lane-align the (tiny) first-layer input
    cp = _round_up(cout, 128)     # lane-dense intermediate / output channels
    count = n * h * w             # BN statistics population (N*H*W)

    # Layout glue (XLA): NCHW -> NHWC + channel zero-pad to lane width.
    x_nhwc = jnp.pad(jnp.transpose(x, (0, 2, 3, 1)),
                     ((0, 0), (0, 0), (0, 0), (0, cin_p - cin)))

    w1 = _prep_weight(params["w1"], cin_p, cp)
    w2 = _prep_weight(params["w2"], cp, cp)
    g1, be1 = _pad_vec(params["g1"], cp), _pad_vec(params["be1"], cp)
    g2, be2 = _pad_vec(params["g2"], cp), _pad_vec(params["be2"], cp)
    # Conv biases b1/b2 are intentionally NOT used: cancelled by train-mode BN.

    # conv1 (raw output + its BN statistics, computed in the same kernel).
    ident_s = jnp.ones((1, cin_p), jnp.float32)
    ident_b = jnp.zeros((1, cin_p), jnp.float32)
    y1, s1, q1 = _conv3x3_stats(x_nhwc, w1, ident_s, ident_b, cp,
                                apply_act=False)
    sc1, sh1 = _bn_fold(s1, q1, count, g1, be1)

    # conv2 with layer-1's BN-normalize + ReLU fused into its input path.
    y2, s2, q2 = _conv3x3_stats(y1, w2, sc1, sh1, cp, apply_act=True)
    sc2, sh2 = _bn_fold(s2, q2, count, g2, be2)

    # Final fused BN + ReLU (lane-dense), then layout glue back to NCHW.
    z = _bn_relu(y2, sc2, sh2)
    return jnp.transpose(z[..., :cout], (0, 3, 1, 2))


# ----------------------------- reference (pure JAX) ---------------------------

def _reference_forward(x, params, eps=1e-5):
    def layer(x, w, b, g, be):
        y = jax.lax.conv_general_dilated(
            x, w, window_strides=(1, 1), padding=((1, 1), (1, 1)),
            dimension_numbers=("NCHW", "OIHW", "NCHW"))
        y = y + b[None, :, None, None]
        mean = jnp.mean(y, axis=(0, 2, 3))
        var = jnp.mean((y - mean[None, :, None, None]) ** 2, axis=(0, 2, 3))
        y = (y - mean[None, :, None, None]) / jnp.sqrt(var + eps)[None, :, None, None]
        y = y * g[None, :, None, None] + be[None, :, None, None]
        return jnp.maximum(y, 0.0)

    y = layer(x, params["w1"], params["b1"], params["g1"], params["be1"])
    return layer(y, params["w2"], params["b2"], params["g2"], params["be2"])


# ----------------------------- main -------------------------------------------

if __name__ == "__main__":
    # Small shapes consistent with the module: batch=2, in_size=4, out_size=8,
    # spatial 16x16.
    N, C_IN, C_OUT, H, W = 2, 4, 8, 16, 16

    key = jax.random.PRNGKey(0)
    k1, k2, k3, k4, kx = jax.random.split(key, 5)

    fan1 = C_IN * 3 * 3
    fan2 = C_OUT * 3 * 3
    params = {
        "w1": jax.random.uniform(k1, (C_OUT, C_IN, 3, 3), jnp.float32,
                                 -1.0 / fan1 ** 0.5, 1.0 / fan1 ** 0.5),
        "b1": jax.random.uniform(k2, (C_OUT,), jnp.float32,
                                 -1.0 / fan1 ** 0.5, 1.0 / fan1 ** 0.5),
        "g1": jnp.ones((C_OUT,), jnp.float32),
        "be1": jnp.zeros((C_OUT,), jnp.float32),
        "w2": jax.random.uniform(k3, (C_OUT, C_OUT, 3, 3), jnp.float32,
                                 -1.0 / fan2 ** 0.5, 1.0 / fan2 ** 0.5),
        "b2": jax.random.uniform(k4, (C_OUT,), jnp.float32,
                                 -1.0 / fan2 ** 0.5, 1.0 / fan2 ** 0.5),
        "g2": jnp.ones((C_OUT,), jnp.float32),
        "be2": jnp.zeros((C_OUT,), jnp.float32),
    }

    x = jax.random.normal(kx, (N, C_IN, H, W), jnp.float32)

    out = jax.block_until_ready(unet_conv2_forward(x, params))
    assert out.shape == (N, C_OUT, H, W), out.shape
    assert out.dtype == jnp.float32

    ref = jax.block_until_ready(_reference_forward(x, params))
    # Tolerance accounts for bf16 MXU operands (f32 accumulation).
    if not jnp.allclose(out, ref, atol=2e-2, rtol=2e-2):
        raise AssertionError("Pallas output mismatch vs JAX reference")

    print("KERNEL_OK")
</pallas_src>

<mosaic_0001>
module attributes {stable_mosaic.version = 11 : i64} {
  func.func @_conv3x3_stats_kernel(%arg0: i32, %arg1: memref<1x16x16x128xf32, #tpu.memory_space<vmem>>, %arg2: memref<1x128xf32, #tpu.memory_space<vmem>>, %arg3: memref<1x128xf32, #tpu.memory_space<vmem>>, %arg4: memref<9x128x128xbf16, #tpu.memory_space<vmem>>, %arg5: memref<1x16x16x128xf32, #tpu.memory_space<vmem>>, %arg6: memref<1x128xf32, #tpu.memory_space<vmem>>, %arg7: memref<1x128xf32, #tpu.memory_space<vmem>>, %arg8: memref<18x18x128xf32, #tpu.memory_space<vmem>>) attributes {dimension_semantics = [#tpu.dimension_semantics<arbitrary>], iteration_bounds = array<i64: 2>, scalar_prefetch = 0 : i64, scratch_operands = 1 : i64, tpu.core_type = #tpu.core_type<tc>, window_params = [{transform_indices = @transform_0, window_bounds = array<i64: 1, 16, 16, 128>}, {pipeline_mode = #tpu.pipeline_mode<synchronous>, transform_indices = @transform_1, window_bounds = array<i64: 1, 128>}, {pipeline_mode = #tpu.pipeline_mode<synchronous>, transform_indices = @transform_2, window_bounds = array<i64: 1, 128>}, {pipeline_mode = #tpu.pipeline_mode<synchronous>, transform_indices = @transform_3, window_bounds = array<i64: 9, 128, 128>}, {transform_indices = @transform_4, window_bounds = array<i64: 1, 16, 16, 128>}, {pipeline_mode = #tpu.pipeline_mode<synchronous>, transform_indices = @transform_5, window_bounds = array<i64: 1, 128>}, {pipeline_mode = #tpu.pipeline_mode<synchronous>, transform_indices = @transform_6, window_bounds = array<i64: 1, 128>}]} {
    %c0 = arith.constant 0 : index
    %c0_0 = arith.constant 0 : index
    %c0_1 = arith.constant 0 : index
    %c0_2 = arith.constant 0 : index
    %0 = vector.load %arg1[%c0, %c0_0, %c0_1, %c0_2] : memref<1x16x16x128xf32, #tpu.memory_space<vmem>>, vector<1x16x16x128xf32>
    %1 = vector.shape_cast %0 : vector<1x16x16x128xf32> to vector<16x16x128xf32>
    %cst = arith.constant 0.000000e+00 : f32
    %2 = vector.broadcast %cst : f32 to vector<18x18x128xf32>
    %c0_3 = arith.constant 0 : index
    %c0_4 = arith.constant 0 : index
    %c0_5 = arith.constant 0 : index
    %3 = vector.load %arg8[%c0_3, %c0_4, %c0_5] : memref<18x18x128xf32, #tpu.memory_space<vmem>>, vector<18x18x128xf32>
    tpu.vector_store %arg8[%c0_3, %c0_4, %c0_5], %2 {strides = array<i32>} : memref<18x18x128xf32, #tpu.memory_space<vmem>>, vector<18x18x128xf32>,
    %c1 = arith.constant 1 : index
    %c1_6 = arith.constant 1 : index
    %c0_7 = arith.constant 0 : index
    %4 = vector.load %arg8[%c1, %c1_6, %c0_7] : memref<18x18x128xf32, #tpu.memory_space<vmem>>, vector<16x16x128xf32>
    tpu.vector_store %arg8[%c1, %c1_6, %c0_7], %1 {strides = array<i32>} : memref<18x18x128xf32, #tpu.memory_space<vmem>>, vector<16x16x128xf32>,
    %cst_8 = arith.constant 0.000000e+00 : f32
    %5 = vector.broadcast %cst_8 : f32 to vector<256x128xf32>
    %c0_9 = arith.constant 0 : index
    %c0_10 = arith.constant 0 : index
    %c0_11 = arith.constant 0 : index
    %6 = vector.load %arg8[%c0_9, %c0_10, %c0_11] : memref<18x18x128xf32, #tpu.memory_space<vmem>>, vector<16x16x128xf32>
    %7 = vector.shape_cast %6 : vector<16x16x128xf32> to vector<256x128xf32>
    %8 = arith.truncf %7 : vector<256x128xf32> to vector<256x128xbf16>
    %c0_12 = arith.constant 0 : index
    %c0_13 = arith.constant 0 : index
    %c0_14 = arith.constant 0 : index
    %9 = vector.load %arg4[%c0_12, %c0_13, %c0_14] : memref<9x128x128xbf16, #tpu.memory_space<vmem>>, vector<1x128x128xbf16>
    %10 = vector.shape_cast %9 : vector<1x128x128xbf16> to vector<128x128xbf16>
    %cst_15 = arith.constant dense<0.000000e+00> : vector<256x128xf32>
    %11 = tpu.matmul %8, %10, %cst_15 {dimension_numbers = #tpu.dot_dimension_numbers<[1], [0], [0], [1], [0, 0, 1, 1], [], []>} : vector<256x128xbf16>, vector<128x128xbf16>, vector<256x128xf32> -> vector<256x128xf32>
    %12 = arith.addf %5, %11 : vector<256x128xf32>
    %c0_16 = arith.constant 0 : index
    %c1_17 = arith.constant 1 : index
    %c0_18 = arith.constant 0 : index
    %13 = vector.load %arg8[%c0_16, %c1_17, %c0_18] : memref<18x18x128xf32, #tpu.memory_space<vmem>>, vector<16x16x128xf32>
    %14 = vector.shape_cast %13 : vector<16x16x128xf32> to vector<256x128xf32>
    %15 = arith.truncf %14 : vector<256x128xf32> to vector<256x128xbf16>
    %c1_19 = arith.constant 1 : index
    %c0_20 = arith.constant 0 : index
    %c0_21 = arith.constant 0 : index
    %16 = vector.load %arg4[%c1_19, %c0_20, %c0_21] : memref<9x128x128xbf16, #tpu.memory_space<vmem>>, vector<1x128x128xbf16>
    %17 = vector.shape_cast %16 : vector<1x128x128xbf16> to vector<128x128xbf16>
    %cst_22 = arith.constant dense<0.000000e+00> : vector<256x128xf32>
    %18 = tpu.matmul %15, %17, %cst_22 {dimension_numbers = #tpu.dot_dimension_numbers<[1], [0], [0], [1], [0, 0, 1, 1], [], []>} : vector<256x128xbf16>, vector<128x128xbf16>, vector<256x128xf32> -> vector<256x128xf32>
    %19 = arith.addf %12, %18 : vector<256x128xf32>
    %c0_23 = arith.constant 0 : index
    %c2 = arith.constant 2 : index
    %c0_24 = arith.constant 0 : index
    %20 = vector.load %arg8[%c0_23, %c2, %c0_24] : memref<18x18x128xf32, #tpu.memory_space<vmem>>, vector<16x16x128xf32>
    %21 = vector.shape_cast %20 : vector<16x16x128xf32> to vector<256x128xf32>
    %22 = arith.truncf %21 : vector<256x128xf32> to vector<256x128xbf16>
    %c2_25 = arith.constant 2 : index
    %c0_26 = arith.constant 0 : index
    %c0_27 = arith.constant 0 : index
    %23 = vector.load %arg4[%c2_25, %c0_26, %c0_27] : memref<9x128x128xbf16, #tpu.memory_space<vmem>>, vector<1x128x128xbf16>
    %24 = vector.shape_cast %23 : vector<1x128x128xbf16> to vector<128x128xbf16>
    %cst_28 = arith.constant dense<0.000000e+00> : vector<256x128xf32>
    %25 = tpu.matmul %22, %24, %cst_28 {dimension_numbers = #tpu.dot_dimension_numbers<[1], [0], [0], [1], [0, 0, 1, 1], [], []>} : vector<256x128xbf16>, vector<128x128xbf16>, vector<256x128xf32> -> vector<256x128xf32>
    %26 = arith.addf %19, %25 : vector<256x128xf32>
    %c1_29 = arith.constant 1 : index
    %c0_30 = arith.constant 0 : index
    %c0_31 = arith.constant 0 : index
    %27 = vector.load %arg8[%c1_29, %c0_30, %c0_31] : memref<18x18x128xf32, #tpu.memory_space<vmem>>, vector<16x16x128xf32>
    %28 = vector.shape_cast %27 : vector<16x16x128xf32> to vector<256x128xf32>
    %29 = arith.truncf %28 : vector<256x128xf32> to vector<256x128xbf16>
    %c3 = arith.constant 3 : index
    %c0_32 = arith.constant 0 : index
    %c0_33 = arith.constant 0 : index
    %30 = vector.load %arg4[%c3, %c0_32, %c0_33] : memref<9x128x128xbf16, #tpu.memory_space<vmem>>, vector<1x128x128xbf16>
    %31 = vector.shape_cast %30 : vector<1x128x128xbf16> to vector<128x128xbf16>
    %cst_34 = arith.constant dense<0.000000e+00> : vector<256x128xf32>
    %32 = tpu.matmul %29, %31, %cst_34 {dimension_numbers = #tpu.dot_dimension_numbers<[1], [0], [0], [1], [0, 0, 1, 1], [], []>} : vector<256x128xbf16>, vector<128x128xbf16>, vector<256x128xf32> -> vector<256x128xf32>
    %33 = arith.addf %26, %32 : vector<256x128xf32>
    %c1_35 = arith.constant 1 : index
    %c1_36 = arith.constant 1 : index
    %c0_37 = arith.constant 0 : index
    %34 = vector.load %arg8[%c1_35, %c1_36, %c0_37] : memref<18x18x128xf32, #tpu.memory_space<vmem>>, vector<16x16x128xf32>
    %35 = vector.shape_cast %34 : vector<16x16x128xf32> to vector<256x128xf32>
    %36 = arith.truncf %35 : vector<256x128xf32> to vector<256x128xbf16>
    %c4 = arith.constant 4 : index
    %c0_38 = arith.constant 0 : index
    %c0_39 = arith.constant 0 : index
    %37 = vector.load %arg4[%c4, %c0_38, %c0_39] : memref<9x128x128xbf16, #tpu.memory_space<vmem>>, vector<1x128x128xbf16>
    %38 = vector.shape_cast %37 : vector<1x128x128xbf16> to vector<128x128xbf16>
    %cst_40 = arith.constant dense<0.000000e+00> : vector<256x128xf32>
    %39 = tpu.matmul %36, %38, %cst_40 {dimension_numbers = #tpu.dot_dimension_numbers<[1], [0], [0], [1], [0, 0, 1, 1], [], []>} : vector<256x128xbf16>, vector<128x128xbf16>, vector<256x128xf32> -> vector<256x128xf32>
    %40 = arith.addf %33, %39 : vector<256x128xf32>
    %c1_41 = arith.constant 1 : index
    %c2_42 = arith.constant 2 : index
    %c0_43 = arith.constant 0 : index
    %41 = vector.load %arg8[%c1_41, %c2_42, %c0_43] : memref<18x18x128xf32, #tpu.memory_space<vmem>>, vector<16x16x128xf32>
    %42 = vector.shape_cast %41 : vector<16x16x128xf32> to vector<256x128xf32>
    %43 = arith.truncf %42 : vector<256x128xf32> to vector<256x128xbf16>
    %c5 = arith.constant 5 : index
    %c0_44 = arith.constant 0 : index
    %c0_45 = arith.constant 0 : index
    %44 = vector.load %arg4[%c5, %c0_44, %c0_45] : memref<9x128x128xbf16, #tpu.memory_space<vmem>>, vector<1x128x128xbf16>
    %45 = vector.shape_cast %44 : vector<1x128x128xbf16> to vector<128x128xbf16>
    %cst_46 = arith.constant dense<0.000000e+00> : vector<256x128xf32>
    %46 = tpu.matmul %43, %45, %cst_46 {dimension_numbers = #tpu.dot_dimension_numbers<[1], [0], [0], [1], [0, 0, 1, 1], [], []>} : vector<256x128xbf16>, vector<128x128xbf16>, vector<256x128xf32> -> vector<256x128xf32>
    %47 = arith.addf %40, %46 : vector<256x128xf32>
    %c2_47 = arith.constant 2 : index
    %c0_48 = arith.constant 0 : index
    %c0_49 = arith.constant 0 : index
    %48 = vector.load %arg8[%c2_47, %c0_48, %c0_49] : memref<18x18x128xf32, #tpu.memory_space<vmem>>, vector<16x16x128xf32>
    %49 = vector.shape_cast %48 : vector<16x16x128xf32> to vector<256x128xf32>
    %50 = arith.truncf %49 : vector<256x128xf32> to vector<256x128xbf16>
    %c6 = arith.constant 6 : index
    %c0_50 = arith.constant 0 : index
    %c0_51 = arith.constant 0 : index
    %51 = vector.load %arg4[%c6, %c0_50, %c0_51] : memref<9x128x128xbf16, #tpu.memory_space<vmem>>, vector<1x128x128xbf16>
    %52 = vector.shape_cast %51 : vector<1x128x128xbf16> to vector<128x128xbf16>
    %cst_52 = arith.constant dense<0.000000e+00> : vector<256x128xf32>
    %53 = tpu.matmul %50, %52, %cst_52 {dimension_numbers = #tpu.dot_dimension_numbers<[1], [0], [0], [1], [0, 0, 1, 1], [], []>} : vector<256x128xbf16>, vector<128x128xbf16>, vector<256x128xf32> -> vector<256x128xf32>
    %54 = arith.addf %47, %53 : vector<256x128xf32>
    %c2_53 = arith.constant 2 : index
    %c1_54 = arith.constant 1 : index
    %c0_55 = arith.constant 0 : index
    %55 = vector.load %arg8[%c2_53, %c1_54, %c0_55] : memref<18x18x128xf32, #tpu.memory_space<vmem>>, vector<16x16x128xf32>
    %56 = vector.shape_cast %55 : vector<16x16x128xf32> to vector<256x128xf32>
    %57 = arith.truncf %56 : vector<256x128xf32> to vector<256x128xbf16>
    %c7 = arith.constant 7 : index
    %c0_56 = arith.constant 0 : index
    %c0_57 = arith.constant 0 : index
    %58 = vector.load %arg4[%c7, %c0_56, %c0_57] : memref<9x128x128xbf16, #tpu.memory_space<vmem>>, vector<1x128x128xbf16>
    %59 = vector.shape_cast %58 : vector<1x128x128xbf16> to vector<128x128xbf16>
    %cst_58 = arith.constant dense<0.000000e+00> : vector<256x128xf32>
    %60 = tpu.matmul %57, %59, %cst_58 {dimension_numbers = #tpu.dot_dimension_numbers<[1], [0], [0], [1], [0, 0, 1, 1], [], []>} : vector<256x128xbf16>, vector<128x128xbf16>, vector<256x128xf32> -> vector<256x128xf32>
    %61 = arith.addf %54, %60 : vector<256x128xf32>
    %c2_59 = arith.constant 2 : index
    %c2_60 = arith.constant 2 : index
    %c0_61 = arith.constant 0 : index
    %62 = vector.load %arg8[%c2_59, %c2_60, %c0_61] : memref<18x18x128xf32, #tpu.memory_space<vmem>>, vector<16x16x128xf32>
    %63 = vector.shape_cast %62 : vector<16x16x128xf32> to vector<256x128xf32>
    %64 = arith.truncf %63 : vector<256x128xf32> to vector<256x128xbf16>
    %c8 = arith.constant 8 : index
    %c0_62 = arith.constant 0 : index
    %c0_63 = arith.constant 0 : index
    %65 = vector.load %arg4[%c8, %c0_62, %c0_63] : memref<9x128x128xbf16, #tpu.memory_space<vmem>>, vector<1x128x128xbf16>
    %66 = vector.shape_cast %65 : vector<1x128x128xbf16> to vector<128x128xbf16>
    %cst_64 = arith.constant dense<0.000000e+00> : vector<256x128xf32>
    %67 = tpu.matmul %64, %66, %cst_64 {dimension_numbers = #tpu.dot_dimension_numbers<[1], [0], [0], [1], [0, 0, 1, 1], [], []>} : vector<256x128xbf16>, vector<128x128xbf16>, vector<256x128xf32> -> vector<256x128xf32>
    %68 = arith.addf %61, %67 : vector<256x128xf32>
    %69 = vector.shape_cast %68 : vector<256x128xf32> to vector<1x16x16x128xf32>
    %c0_65 = arith.constant 0 : index
    %c0_66 = arith.constant 0 : index
    %c0_67 = arith.constant 0 : index
    %c0_68 = arith.constant 0 : index
    %70 = vector.load %arg5[%c0_65, %c0_66, %c0_67, %c0_68] : memref<1x16x16x128xf32, #tpu.memory_space<vmem>>, vector<1x16x16x128xf32>
    tpu.vector_store %arg5[%c0_65, %c0_66, %c0_67, %c0_68], %69 {strides = array<i32>} : memref<1x16x16x128xf32, #tpu.memory_space<vmem>>, vector<1x16x16x128xf32>,
    %c0_i32 = arith.constant 0 : i32
    %71 = arith.cmpi eq, %arg0, %c0_i32 : i32
    %72 = arith.extui %71 : i1 to i32
    %c0_i32_69 = arith.constant 0 : i32
    %73 = arith.cmpi ne, %72, %c0_i32_69 : i32
    scf.if %73 {
      %cst_80 = arith.constant 0.000000e+00 : f32
      %85 = vector.broadcast %cst_80 : f32 to vector<1x128xf32>
      %c0_81 = arith.constant 0 : index
      %c0_82 = arith.constant 0 : index
      %86 = vector.load %arg6[%c0_81, %c0_82] : memref<1x128xf32, #tpu.memory_space<vmem>>, vector<1x128xf32>
      tpu.vector_store %arg6[%c0_81, %c0_82], %85 {strides = array<i32>} : memref<1x128xf32, #tpu.memory_space<vmem>>, vector<1x128xf32>,
      %cst_83 = arith.constant 0.000000e+00 : f32
      %87 = vector.broadcast %cst_83 : f32 to vector<1x128xf32>
      %c0_84 = arith.constant 0 : index
      %c0_85 = arith.constant 0 : index
      %88 = vector.load %arg7[%c0_84, %c0_85] : memref<1x128xf32, #tpu.memory_space<vmem>>, vector<1x128xf32>
      tpu.vector_store %arg7[%c0_84, %c0_85], %87 {strides = array<i32>} : memref<1x128xf32, #tpu.memory_space<vmem>>, vector<1x128xf32>,
    } else {
    }
    %c0_70 = arith.constant 0 : index
    %c0_71 = arith.constant 0 : index
    %74 = vector.load %arg6[%c0_70, %c0_71] : memref<1x128xf32, #tpu.memory_space<vmem>>, vector<1x128xf32>
    %cst_72 = arith.constant dense<0.000000e+00> : vector<128xf32>
    %75 = vector.multi_reduction <add>, %68, %cst_72 [0] : vector<256x128xf32> to vector<128xf32>
    %76 = vector.shape_cast %75 : vector<128xf32> to vector<1x128xf32>
    %77 = arith.addf %74, %76 : vector<1x128xf32>
    %c0_73 = arith.constant 0 : index
    %c0_74 = arith.constant 0 : index
    %78 = vector.load %arg6[%c0_73, %c0_74] : memref<1x128xf32, #tpu.memory_space<vmem>>, vector<1x128xf32>
    tpu.vector_store %arg6[%c0_73, %c0_74], %77 {strides = array<i32>} : memref<1x128xf32, #tpu.memory_space<vmem>>, vector<1x128xf32>,
    %c0_75 = arith.constant 0 : index
    %c0_76 = arith.constant 0 : index
    %79 = vector.load %arg7[%c0_75, %c0_76] : memref<1x128xf32, #tpu.memory_space<vmem>>, vector<1x128xf32>
    %80 = arith.mulf %68, %68 : vector<256x128xf32>
    %cst_77 = arith.constant dense<0.000000e+00> : vector<128xf32>
    %81 = vector.multi_reduction <add>, %80, %cst_77 [0] : vector<256x128xf32> to vector<128xf32>
    %82 = vector.shape_cast %81 : vector<128xf32> to vector<1x128xf32>
    %83 = arith.addf %79, %82 : vector<1x128xf32>
    %c0_78 = arith.constant 0 : index
    %c0_79 = arith.constant 0 : index
    %84 = vector.load %arg7[%c0_78, %c0_79] : memref<1x128xf32, #tpu.memory_space<vmem>>, vector<1x128xf32>
    tpu.vector_store %arg7[%c0_78, %c0_79], %83 {strides = array<i32>} : memref<1x128xf32, #tpu.memory_space<vmem>>, vector<1x128xf32>,
    return
  }
  func.func @transform_0(%arg0: i32) -> (i32, i32, i32, i32) {
    %c0_i32 = arith.constant 0 : i32
    %c0_i32_0 = arith.constant 0 : i32
    %c0_i32_1 = arith.constant 0 : i32
    %c0_i32_2 = arith.constant 0 : i32
    return %arg0, %c0_i32, %c0_i32_0, %c0_i32_1 : i32, i32, i32, i32
  }
  func.func @transform_1(%arg0: i32) -> (i32, i32) {
    %c0_i32 = arith.constant 0 : i32
    %c0_i32_0 = arith.constant 0 : i32
    %c0_i32_1 = arith.constant 0 : i32
    return %c0_i32, %c0_i32_0 : i32, i32
  }
  func.func @transform_2(%arg0: i32) -> (i32, i32) {
    %c0_i32 = arith.constant 0 : i32
    %c0_i32_0 = arith.constant 0 : i32
    %c0_i32_1 = arith.constant 0 : i32
    return %c0_i32, %c0_i32_0 : i32, i32
  }
  func.func @transform_3(%arg0: i32) -> (i32, i32, i32) {
    %c0_i32 = arith.constant 0 : i32
    %c0_i32_0 = arith.constant 0 : i32
    %c0_i32_1 = arith.constant 0 : i32
    %c0_i32_2 = arith.constant 0 : i32
    return %c0_i32, %c0_i32_0, %c0_i32_1 : i32, i32, i32
  }
  func.func @transform_4(%arg0: i32) -> (i32, i32, i32, i32) {
    %c0_i32 = arith.constant 0 : i32
    %c0_i32_0 = arith.constant 0 : i32
    %c0_i32_1 = arith.constant 0 : i32
    %c0_i32_2 = arith.constant 0 : i32
    return %arg0, %c0_i32, %c0_i32_0, %c0_i32_1 : i32, i32, i32, i32
  }
  func.func @transform_5(%arg0: i32) -> (i32, i32) {
    %c0_i32 = arith.constant 0 : i32
    %c0_i32_0 = arith.constant 0 : i32
    %c0_i32_1 = arith.constant 0 : i32
    return %c0_i32, %c0_i32_0 : i32, i32
  }
  func.func @transform_6(%arg0: i32) -> (i32, i32) {
    %c0_i32 = arith.constant 0 : i32
    %c0_i32_0 = arith.constant 0 : i32
    %c0_i32_1 = arith.constant 0 : i32
    return %c0_i32, %c0_i32_0 : i32, i32
  }
}

module attributes {stable_mosaic.version = 11 : i64} {
  func.func @_conv3x3_stats_kernel(%arg0: i32, %arg1: memref<1x16x16x128xf32, #tpu.memory_space<vmem>>, %arg2: memref<1x128xf32, #tpu.memory_space<vmem>>, %arg3: memref<1x128xf32, #tpu.memory_space<vmem>>, %arg4: memref<9x128x128xbf16, #tpu.memory_space<vmem>>, %arg5: memref<1x16x16x128xf32, #tpu.memory_space<vmem>>, %arg6: memref<1x128xf32, #tpu.memory_space<vmem>>, %arg7: memref<1x128xf32, #tpu.memory_space<vmem>>, %arg8: memref<18x18x128xf32, #tpu.memory_space<vmem>>) attributes {dimension_semantics = [#tpu.dimension_semantics<arbitrary>], iteration_bounds = array<i64: 2>, scalar_prefetch = 0 : i64, scratch_operands = 1 : i64, tpu.core_type = #tpu.core_type<tc>, window_params = [{transform_indices = @transform_0, window_bounds = array<i64: 1, 16, 16, 128>}, {pipeline_mode = #tpu.pipeline_mode<synchronous>, transform_indices = @transform_1, window_bounds = array<i64: 1, 128>}, {pipeline_mode = #tpu.pipeline_mode<synchronous>, transform_indices = @transform_2, window_bounds = array<i64: 1, 128>}, {pipeline_mode = #tpu.pipeline_mode<synchronous>, transform_indices = @transform_3, window_bounds = array<i64: 9, 128, 128>}, {transform_indices = @transform_4, window_bounds = array<i64: 1, 16, 16, 128>}, {pipeline_mode = #tpu.pipeline_mode<synchronous>, transform_indices = @transform_5, window_bounds = array<i64: 1, 128>}, {pipeline_mode = #tpu.pipeline_mode<synchronous>, transform_indices = @transform_6, window_bounds = array<i64: 1, 128>}]} {
    %c0 = arith.constant 0 : index
    %c0_0 = arith.constant 0 : index
    %c0_1 = arith.constant 0 : index
    %c0_2 = arith.constant 0 : index
    %0 = vector.load %arg1[%c0, %c0_0, %c0_1, %c0_2] : memref<1x16x16x128xf32, #tpu.memory_space<vmem>>, vector<1x16x16x128xf32>
    %1 = vector.shape_cast %0 : vector<1x16x16x128xf32> to vector<16x16x128xf32>
    %c0_3 = arith.constant 0 : index
    %c0_4 = arith.constant 0 : index
    %2 = vector.load %arg2[%c0_3, %c0_4] : memref<1x128xf32, #tpu.memory_space<vmem>>, vector<1x128xf32>
    %3 = vector.shape_cast %2 : vector<1x128xf32> to vector<1x1x128xf32>
    %c0_5 = arith.constant 0 : index
    %c0_6 = arith.constant 0 : index
    %4 = vector.load %arg3[%c0_5, %c0_6] : memref<1x128xf32, #tpu.memory_space<vmem>>, vector<1x128xf32>
    %5 = vector.shape_cast %4 : vector<1x128xf32> to vector<1x1x128xf32>
    %6 = vector.broadcast %3 : vector<1x1x128xf32> to vector<16x16x128xf32>
    %7 = arith.mulf %1, %6 : vector<16x16x128xf32>
    %8 = vector.broadcast %5 : vector<1x1x128xf32> to vector<16x16x128xf32>
    %9 = arith.addf %7, %8 : vector<16x16x128xf32>
    %cst = arith.constant 0.000000e+00 : f32
    %10 = vector.broadcast %cst : f32 to vector<16x16x128xf32>
    %11 = arith.maximumf %9, %10 : vector<16x16x128xf32>
    %cst_7 = arith.constant 0.000000e+00 : f32
    %12 = vector.broadcast %cst_7 : f32 to vector<18x18x128xf32>
    %c0_8 = arith.constant 0 : index
    %c0_9 = arith.constant 0 : index
    %c0_10 = arith.constant 0 : index
    %13 = vector.load %arg8[%c0_8, %c0_9, %c0_10] : memref<18x18x128xf32, #tpu.memory_space<vmem>>, vector<18x18x128xf32>
    tpu.vector_store %arg8[%c0_8, %c0_9, %c0_10], %12 {strides = array<i32>} : memref<18x18x128xf32, #tpu.memory_space<vmem>>, vector<18x18x128xf32>,
    %c1 = arith.constant 1 : index
    %c1_11 = arith.constant 1 : index
    %c0_12 = arith.constant 0 : index
    %14 = vector.load %arg8[%c1, %c1_11, %c0_12] : memref<18x18x128xf32, #tpu.memory_space<vmem>>, vector<16x16x128xf32>
    tpu.vector_store %arg8[%c1, %c1_11, %c0_12], %11 {strides = array<i32>} : memref<18x18x128xf32, #tpu.memory_space<vmem>>, vector<16x16x128xf32>,
    %cst_13 = arith.constant 0.000000e+00 : f32
    %15 = vector.broadcast %cst_13 : f32 to vector<256x128xf32>
    %c0_14 = arith.constant 0 : index
    %c0_15 = arith.constant 0 : index
    %c0_16 = arith.constant 0 : index
    %16 = vector.load %arg8[%c0_14, %c0_15, %c0_16] : memref<18x18x128xf32, #tpu.memory_space<vmem>>, vector<16x16x128xf32>
    %17 = vector.shape_cast %16 : vector<16x16x128xf32> to vector<256x128xf32>
    %18 = arith.truncf %17 : vector<256x128xf32> to vector<256x128xbf16>
    %c0_17 = arith.constant 0 : index
    %c0_18 = arith.constant 0 : index
    %c0_19 = arith.constant 0 : index
    %19 = vector.load %arg4[%c0_17, %c0_18, %c0_19] : memref<9x128x128xbf16, #tpu.memory_space<vmem>>, vector<1x128x128xbf16>
    %20 = vector.shape_cast %19 : vector<1x128x128xbf16> to vector<128x128xbf16>
    %cst_20 = arith.constant dense<0.000000e+00> : vector<256x128xf32>
    %21 = tpu.matmul %18, %20, %cst_20 {dimension_numbers = #tpu.dot_dimension_numbers<[1], [0], [0], [1], [0, 0, 1, 1], [], []>} : vector<256x128xbf16>, vector<128x128xbf16>, vector<256x128xf32> -> vector<256x128xf32>
    %22 = arith.addf %15, %21 : vector<256x128xf32>
    %c0_21 = arith.constant 0 : index
    %c1_22 = arith.constant 1 : index
    %c0_23 = arith.constant 0 : index
    %23 = vector.load %arg8[%c0_21, %c1_22, %c0_23] : memref<18x18x128xf32, #tpu.memory_space<vmem>>, vector<16x16x128xf32>
    %24 = vector.shape_cast %23 : vector<16x16x128xf32> to vector<256x128xf32>
    %25 = arith.truncf %24 : vector<256x128xf32> to vector<256x128xbf16>
    %c1_24 = arith.constant 1 : index
    %c0_25 = arith.constant 0 : index
    %c0_26 = arith.constant 0 : index
    %26 = vector.load %arg4[%c1_24, %c0_25, %c0_26] : memref<9x128x128xbf16, #tpu.memory_space<vmem>>, vector<1x128x128xbf16>
    %27 = vector.shape_cast %26 : vector<1x128x128xbf16> to vector<128x128xbf16>
    %cst_27 = arith.constant dense<0.000000e+00> : vector<256x128xf32>
    %28 = tpu.matmul %25, %27, %cst_27 {dimension_numbers = #tpu.dot_dimension_numbers<[1], [0], [0], [1], [0, 0, 1, 1], [], []>} : vector<256x128xbf16>, vector<128x128xbf16>, vector<256x128xf32> -> vector<256x128xf32>
    %29 = arith.addf %22, %28 : vector<256x128xf32>
    %c0_28 = arith.constant 0 : index
    %c2 = arith.constant 2 : index
    %c0_29 = arith.constant 0 : index
    %30 = vector.load %arg8[%c0_28, %c2, %c0_29] : memref<18x18x128xf32, #tpu.memory_space<vmem>>, vector<16x16x128xf32>
    %31 = vector.shape_cast %30 : vector<16x16x128xf32> to vector<256x128xf32>
    %32 = arith.truncf %31 : vector<256x128xf32> to vector<256x128xbf16>
    %c2_30 = arith.constant 2 : index
    %c0_31 = arith.constant 0 : index
    %c0_32 = arith.constant 0 : index
    %33 = vector.load %arg4[%c2_30, %c0_31, %c0_32] : memref<9x128x128xbf16, #tpu.memory_space<vmem>>, vector<1x128x128xbf16>
    %34 = vector.shape_cast %33 : vector<1x128x128xbf16> to vector<128x128xbf16>
    %cst_33 = arith.constant dense<0.000000e+00> : vector<256x128xf32>
    %35 = tpu.matmul %32, %34, %cst_33 {dimension_numbers = #tpu.dot_dimension_numbers<[1], [0], [0], [1], [0, 0, 1, 1], [], []>} : vector<256x128xbf16>, vector<128x128xbf16>, vector<256x128xf32> -> vector<256x128xf32>
    %36 = arith.addf %29, %35 : vector<256x128xf32>
    %c1_34 = arith.constant 1 : index
    %c0_35 = arith.constant 0 : index
    %c0_36 = arith.constant 0 : index
    %37 = vector.load %arg8[%c1_34, %c0_35, %c0_36] : memref<18x18x128xf32, #tpu.memory_space<vmem>>, vector<16x16x128xf32>
    %38 = vector.shape_cast %37 : vector<16x16x128xf32> to vector<256x128xf32>
    %39 = arith.truncf %38 : vector<256x128xf32> to vector<256x128xbf16>
    %c3 = arith.constant 3 : index
    %c0_37 = arith.constant 0 : index
    %c0_38 = arith.constant 0 : index
    %40 = vector.load %arg4[%c3, %c0_37, %c0_38] : memref<9x128x128xbf16, #tpu.memory_space<vmem>>, vector<1x128x128xbf16>
    %41 = vector.shape_cast %40 : vector<1x128x128xbf16> to vector<128x128xbf16>
    %cst_39 = arith.constant dense<0.000000e+00> : vector<256x128xf32>
    %42 = tpu.matmul %39, %41, %cst_39 {dimension_numbers = #tpu.dot_dimension_numbers<[1], [0], [0], [1], [0, 0, 1, 1], [], []>} : vector<256x128xbf16>, vector<128x128xbf16>, vector<256x128xf32> -> vector<256x128xf32>
    %43 = arith.addf %36, %42 : vector<256x128xf32>
    %c1_40 = arith.constant 1 : index
    %c1_41 = arith.constant 1 : index
    %c0_42 = arith.constant 0 : index
    %44 = vector.load %arg8[%c1_40, %c1_41, %c0_42] : memref<18x18x128xf32, #tpu.memory_space<vmem>>, vector<16x16x128xf32>
    %45 = vector.shape_cast %44 : vector<16x16x128xf32> to vector<256x128xf32>
    %46 = arith.truncf %45 : vector<256x128xf32> to vector<256x128xbf16>
    %c4 = arith.constant 4 : index
    %c0_43 = arith.constant 0 : index
    %c0_44 = arith.constant 0 : index
    %47 = vector.load %arg4[%c4, %c0_43, %c0_44] : memref<9x128x128xbf16, #tpu.memory_space<vmem>>, vector<1x128x128xbf16>
    %48 = vector.shape_cast %47 : vector<1x128x128xbf16> to vector<128x128xbf16>
    %cst_45 = arith.constant dense<0.000000e+00> : vector<256x128xf32>
    %49 = tpu.matmul %46, %48, %cst_45 {dimension_numbers = #tpu.dot_dimension_numbers<[1], [0], [0], [1], [0, 0, 1, 1], [], []>} : vector<256x128xbf16>, vector<128x128xbf16>, vector<256x128xf32> -> vector<256x128xf32>
    %50 = arith.addf %43, %49 : vector<256x128xf32>
    %c1_46 = arith.constant 1 : index
    %c2_47 = arith.constant 2 : index
    %c0_48 = arith.constant 0 : index
    %51 = vector.load %arg8[%c1_46, %c2_47, %c0_48] : memref<18x18x128xf32, #tpu.memory_space<vmem>>, vector<16x16x128xf32>
    %52 = vector.shape_cast %51 : vector<16x16x128xf32> to vector<256x128xf32>
    %53 = arith.truncf %52 : vector<256x128xf32> to vector<256x128xbf16>
    %c5 = arith.constant 5 : index
    %c0_49 = arith.constant 0 : index
    %c0_50 = arith.constant 0 : index
    %54 = vector.load %arg4[%c5, %c0_49, %c0_50] : memref<9x128x128xbf16, #tpu.memory_space<vmem>>, vector<1x128x128xbf16>
    %55 = vector.shape_cast %54 : vector<1x128x128xbf16> to vector<128x128xbf16>
    %cst_51 = arith.constant dense<0.000000e+00> : vector<256x128xf32>
    %56 = tpu.matmul %53, %55, %cst_51 {dimension_numbers = #tpu.dot_dimension_numbers<[1], [0], [0], [1], [0, 0, 1, 1], [], []>} : vector<256x128xbf16>, vector<128x128xbf16>, vector<256x128xf32> -> vector<256x128xf32>
    %57 = arith.addf %50, %56 : vector<256x128xf32>
    %c2_52 = arith.constant 2 : index
    %c0_53 = arith.constant 0 : index
    %c0_54 = arith.constant 0 : index
    %58 = vector.load %arg8[%c2_52, %c0_53, %c0_54] : memref<18x18x128xf32, #tpu.memory_space<vmem>>, vector<16x16x128xf32>
    %59 = vector.shape_cast %58 : vector<16x16x128xf32> to vector<256x128xf32>
    %60 = arith.truncf %59 : vector<256x128xf32> to vector<256x128xbf16>
    %c6 = arith.constant 6 : index
    %c0_55 = arith.constant 0 : index
    %c0_56 = arith.constant 0 : index
    %61 = vector.load %arg4[%c6, %c0_55, %c0_56] : memref<9x128x128xbf16, #tpu.memory_space<vmem>>, vector<1x128x128xbf16>
    %62 = vector.shape_cast %61 : vector<1x128x128xbf16> to vector<128x128xbf16>
    %cst_57 = arith.constant dense<0.000000e+00> : vector<256x128xf32>
    %63 = tpu.matmul %60, %62, %cst_57 {dimension_numbers = #tpu.dot_dimension_numbers<[1], [0], [0], [1], [0, 0, 1, 1], [], []>} : vector<256x128xbf16>, vector<128x128xbf16>, vector<256x128xf32> -> vector<256x128xf32>
    %64 = arith.addf %57, %63 : vector<256x128xf32>
    %c2_58 = arith.constant 2 : index
    %c1_59 = arith.constant 1 : index
    %c0_60 = arith.constant 0 : index
    %65 = vector.load %arg8[%c2_58, %c1_59, %c0_60] : memref<18x18x128xf32, #tpu.memory_space<vmem>>, vector<16x16x128xf32>
    %66 = vector.shape_cast %65 : vector<16x16x128xf32> to vector<256x128xf32>
    %67 = arith.truncf %66 : vector<256x128xf32> to vector<256x128xbf16>
    %c7 = arith.constant 7 : index
    %c0_61 = arith.constant 0 : index
    %c0_62 = arith.constant 0 : index
    %68 = vector.load %arg4[%c7, %c0_61, %c0_62] : memref<9x128x128xbf16, #tpu.memory_space<vmem>>, vector<1x128x128xbf16>
    %69 = vector.shape_cast %68 : vector<1x128x128xbf16> to vector<128x128xbf16>
    %cst_63 = arith.constant dense<0.000000e+00> : vector<256x128xf32>
    %70 = tpu.matmul %67, %69, %cst_63 {dimension_numbers = #tpu.dot_dimension_numbers<[1], [0], [0], [1], [0, 0, 1, 1], [], []>} : vector<256x128xbf16>, vector<128x128xbf16>, vector<256x128xf32> -> vector<256x128xf32>
    %71 = arith.addf %64, %70 : vector<256x128xf32>
    %c2_64 = arith.constant 2 : index
    %c2_65 = arith.constant 2 : index
    %c0_66 = arith.constant 0 : index
    %72 = vector.load %arg8[%c2_64, %c2_65, %c0_66] : memref<18x18x128xf32, #tpu.memory_space<vmem>>, vector<16x16x128xf32>
    %73 = vector.shape_cast %72 : vector<16x16x128xf32> to vector<256x128xf32>
    %74 = arith.truncf %73 : vector<256x128xf32> to vector<256x128xbf16>
    %c8 = arith.constant 8 : index
    %c0_67 = arith.constant 0 : index
    %c0_68 = arith.constant 0 : index
    %75 = vector.load %arg4[%c8, %c0_67, %c0_68] : memref<9x128x128xbf16, #tpu.memory_space<vmem>>, vector<1x128x128xbf16>
    %76 = vector.shape_cast %75 : vector<1x128x128xbf16> to vector<128x128xbf16>
    %cst_69 = arith.constant dense<0.000000e+00> : vector<256x128xf32>
    %77 = tpu.matmul %74, %76, %cst_69 {dimension_numbers = #tpu.dot_dimension_numbers<[1], [0], [0], [1], [0, 0, 1, 1], [], []>} : vector<256x128xbf16>, vector<128x128xbf16>, vector<256x128xf32> -> vector<256x128xf32>
    %78 = arith.addf %71, %77 : vector<256x128xf32>
    %79 = vector.shape_cast %78 : vector<256x128xf32> to vector<1x16x16x128xf32>
    %c0_70 = arith.constant 0 : index
    %c0_71 = arith.constant 0 : index
    %c0_72 = arith.constant 0 : index
    %c0_73 = arith.constant 0 : index
    %80 = vector.load %arg5[%c0_70, %c0_71, %c0_72, %c0_73] : memref<1x16x16x128xf32, #tpu.memory_space<vmem>>, vector<1x16x16x128xf32>
    tpu.vector_store %arg5[%c0_70, %c0_71, %c0_72, %c0_73], %79 {strides = array<i32>} : memref<1x16x16x128xf32, #tpu.memory_space<vmem>>, vector<1x16x16x128xf32>,
    %c0_i32 = arith.constant 0 : i32
    %81 = arith.cmpi eq, %arg0, %c0_i32 : i32
    %82 = arith.extui %81 : i1 to i32
    %c0_i32_74 = arith.constant 0 : i32
    %83 = arith.cmpi ne, %82, %c0_i32_74 : i32
    scf.if %83 {
      %cst_85 = arith.constant 0.000000e+00 : f32
      %95 = vector.broadcast %cst_85 : f32 to vector<1x128xf32>
      %c0_86 = arith.constant 0 : index
      %c0_87 = arith.constant 0 : index
      %96 = vector.load %arg6[%c0_86, %c0_87] : memref<1x128xf32, #tpu.memory_space<vmem>>, vector<1x128xf32>
      tpu.vector_store %arg6[%c0_86, %c0_87], %95 {strides = array<i32>} : memref<1x128xf32, #tpu.memory_space<vmem>>, vector<1x128xf32>,
      %cst_88 = arith.constant 0.000000e+00 : f32
      %97 = vector.broadcast %cst_88 : f32 to vector<1x128xf32>
      %c0_89 = arith.constant 0 : index
      %c0_90 = arith.constant 0 : index
      %98 = vector.load %arg7[%c0_89, %c0_90] : memref<1x128xf32, #tpu.memory_space<vmem>>, vector<1x128xf32>
      tpu.vector_store %arg7[%c0_89, %c0_90], %97 {strides = array<i32>} : memref<1x128xf32, #tpu.memory_space<vmem>>, vector<1x128xf32>,
    } else {
    }
    %c0_75 = arith.constant 0 : index
    %c0_76 = arith.constant 0 : index
    %84 = vector.load %arg6[%c0_75, %c0_76] : memref<1x128xf32, #tpu.memory_space<vmem>>, vector<1x128xf32>
    %cst_77 = arith.constant dense<0.000000e+00> : vector<128xf32>
    %85 = vector.multi_reduction <add>, %78, %cst_77 [0] : vector<256x128xf32> to vector<128xf32>
    %86 = vector.shape_cast %85 : vector<128xf32> to vector<1x128xf32>
    %87 = arith.addf %84, %86 : vector<1x128xf32>
    %c0_78 = arith.constant 0 : index
    %c0_79 = arith.constant 0 : index
    %88 = vector.load %arg6[%c0_78, %c0_79] : memref<1x128xf32, #tpu.memory_space<vmem>>, vector<1x128xf32>
    tpu.vector_store %arg6[%c0_78, %c0_79], %87 {strides = array<i32>} : memref<1x128xf32, #tpu.memory_space<vmem>>, vector<1x128xf32>,
    %c0_80 = arith.constant 0 : index
    %c0_81 = arith.constant 0 : index
    %89 = vector.load %arg7[%c0_80, %c0_81] : memref<1x128xf32, #tpu.memory_space<vmem>>, vector<1x128xf32>
    %90 = arith.mulf %78, %78 : vector<256x128xf32>
    %cst_82 = arith.constant dense<0.000000e+00> : vector<128xf32>
    %91 = vector.multi_reduction <add>, %90, %cst_82 [0] : vector<256x128xf32> to vector<128xf32>
    %92 = vector.shape_cast %91 : vector<128xf32> to vector<1x128xf32>
    %93 = arith.addf %89, %92 : vector<1x128xf32>
    %c0_83 = arith.constant 0 : index
    %c0_84 = arith.constant 0 : index
    %94 = vector.load %arg7[%c0_83, %c0_84] : memref<1x128xf32, #tpu.memory_space<vmem>>, vector<1x128xf32>
    tpu.vector_store %arg7[%c0_83, %c0_84], %93 {strides = array<i32>} : memref<1x128xf32, #tpu.memory_space<vmem>>, vector<1x128xf32>,
    return
  }
  func.func @transform_0(%arg0: i32) -> (i32, i32, i32, i32) {
    %c0_i32 = arith.constant 0 : i32
    %c0_i32_0 = arith.constant 0 : i32
    %c0_i32_1 = arith.constant 0 : i32
    %c0_i32_2 = arith.constant 0 : i32
    return %arg0, %c0_i32, %c0_i32_0, %c0_i32_1 : i32, i32, i32, i32
  }
  func.func @transform_1(%arg0: i32) -> (i32, i32) {
    %c0_i32 = arith.constant 0 : i32
    %c0_i32_0 = arith.constant 0 : i32
    %c0_i32_1 = arith.constant 0 : i32
    return %c0_i32, %c0_i32_0 : i32, i32
  }
  func.func @transform_2(%arg0: i32) -> (i32, i32) {
    %c0_i32 = arith.constant 0 : i32
    %c0_i32_0 = arith.constant 0 : i32
    %c0_i32_1 = arith.constant 0 : i32
    return %c0_i32, %c0_i32_0 : i32, i32
  }
  func.func @transform_3(%arg0: i32) -> (i32, i32, i32) {
    %c0_i32 = arith.constant 0 : i32
    %c0_i32_0 = arith.constant 0 : i32
    %c0_i32_1 = arith.constant 0 : i32
    %c0_i32_2 = arith.constant 0 : i32
    return %c0_i32, %c0_i32_0, %c0_i32_1 : i32, i32, i32
  }
  func.func @transform_4(%arg0: i32) -> (i32, i32, i32, i32) {
    %c0_i32 = arith.constant 0 : i32
    %c0_i32_0 = arith.constant 0 : i32
    %c0_i32_1 = arith.constant 0 : i32
    %c0_i32_2 = arith.constant 0 : i32
    return %arg0, %c0_i32, %c0_i32_0, %c0_i32_1 : i32, i32, i32, i32
  }
  func.func @transform_5(%arg0: i32) -> (i32, i32) {
    %c0_i32 = arith.constant 0 : i32
    %c0_i32_0 = arith.constant 0 : i32
    %c0_i32_1 = arith.constant 0 : i32
    return %c0_i32, %c0_i32_0 : i32, i32
  }
  func.func @transform_6(%arg0: i32) -> (i32, i32) {
    %c0_i32 = arith.constant 0 : i32
    %c0_i32_0 = arith.constant 0 : i32
    %c0_i32_1 = arith.constant 0 : i32
    return %c0_i32, %c0_i32_0 : i32, i32
  }
}

module attributes {stable_mosaic.version = 11 : i64} {
  func.func @_bn_relu_kernel(%arg0: i32, %arg1: memref<1x16x16x128xf32, #tpu.memory_space<vmem>>, %arg2: memref<1x128xf32, #tpu.memory_space<vmem>>, %arg3: memref<1x128xf32, #tpu.memory_space<vmem>>, %arg4: memref<1x16x16x128xf32, #tpu.memory_space<vmem>>) attributes {dimension_semantics = [#tpu.dimension_semantics<parallel>], iteration_bounds = array<i64: 2>, scalar_prefetch = 0 : i64, scratch_operands = 0 : i64, tpu.core_type = #tpu.core_type<tc>, window_params = [{transform_indices = @transform_0, window_bounds = array<i64: 1, 16, 16, 128>}, {pipeline_mode = #tpu.pipeline_mode<synchronous>, transform_indices = @transform_1, window_bounds = array<i64: 1, 128>}, {pipeline_mode = #tpu.pipeline_mode<synchronous>, transform_indices = @transform_2, window_bounds = array<i64: 1, 128>}, {transform_indices = @transform_3, window_bounds = array<i64: 1, 16, 16, 128>}]} {
    %c0 = arith.constant 0 : index
    %c0_0 = arith.constant 0 : index
    %0 = vector.load %arg2[%c0, %c0_0] : memref<1x128xf32, #tpu.memory_space<vmem>>, vector<1x128xf32>
    %1 = vector.shape_cast %0 : vector<1x128xf32> to vector<1x1x1x128xf32>
    %c0_1 = arith.constant 0 : index
    %c0_2 = arith.constant 0 : index
    %2 = vector.load %arg3[%c0_1, %c0_2] : memref<1x128xf32, #tpu.memory_space<vmem>>, vector<1x128xf32>
    %3 = vector.shape_cast %2 : vector<1x128xf32> to vector<1x1x1x128xf32>
    %c0_3 = arith.constant 0 : index
    %c0_4 = arith.constant 0 : index
    %c0_5 = arith.constant 0 : index
    %c0_6 = arith.constant 0 : index
    %4 = vector.load %arg1[%c0_3, %c0_4, %c0_5, %c0_6] : memref<1x16x16x128xf32, #tpu.memory_space<vmem>>, vector<1x16x16x128xf32>
    %5 = vector.broadcast %1 : vector<1x1x1x128xf32> to vector<1x16x16x128xf32>
    %6 = arith.mulf %4, %5 : vector<1x16x16x128xf32>
    %7 = vector.broadcast %3 : vector<1x1x1x128xf32> to vector<1x16x16x128xf32>
    %8 = arith.addf %6, %7 : vector<1x16x16x128xf32>
    %cst = arith.constant 0.000000e+00 : f32
    %9 = vector.broadcast %cst : f32 to vector<1x16x16x128xf32>
    %10 = arith.maximumf %8, %9 : vector<1x16x16x128xf32>
    %c0_7 = arith.constant 0 : index
    %c0_8 = arith.constant 0 : index
    %c0_9 = arith.constant 0 : index
    %c0_10 = arith.constant 0 : index
    %11 = vector.load %arg4[%c0_7, %c0_8, %c0_9, %c0_10] : memref<1x16x16x128xf32, #tpu.memory_space<vmem>>, vector<1x16x16x128xf32>
    tpu.vector_store %arg4[%c0_7, %c0_8, %c0_9, %c0_10], %10 {strides = array<i32>} : memref<1x16x16x128xf32, #tpu.memory_space<vmem>>, vector<1x16x16x128xf32>,
    return
  }
  func.func @transform_0(%arg0: i32) -> (i32, i32, i32, i32) {
    %c0_i32 = arith.constant 0 : i32
    %c0_i32_0 = arith.constant 0 : i32
    %c0_i32_1 = arith.constant 0 : i32
    %c0_i32_2 = arith.constant 0 : i32
    return %arg0, %c0_i32, %c0_i32_0, %c0_i32_1 : i32, i32, i32, i32
  }
  func.func @transform_1(%arg0: i32) -> (i32, i32) {
    %c0_i32 = arith.constant 0 : i32
    %c0_i32_0 = arith.constant 0 : i32
    %c0_i32_1 = arith.constant 0 : i32
    return %c0_i32, %c0_i32_0 : i32, i32
  }
  func.func @transform_2(%arg0: i32) -> (i32, i32) {
    %c0_i32 = arith.constant 0 : i32
    %c0_i32_0 = arith.constant 0 : i32
    %c0_i32_1 = arith.constant 0 : i32
    return %c0_i32, %c0_i32_0 : i32, i32
  }
  func.func @transform_3(%arg0: i32) -> (i32, i32, i32, i32) {
    %c0_i32 = arith.constant 0 : i32
    %c0_i32_0 = arith.constant 0 : i32
    %c0_i32_1 = arith.constant 0 : i32
    %c0_i32_2 = arith.constant 0 : i32
    return %arg0, %c0_i32, %c0_i32_0, %c0_i32_1 : i32, i32, i32, i32
  }
}

</mosaic_0001>

<llo_original>
// kernel: unet_conv2_forward.5
$region0: #{unet_conv2_forward.5}
  #allocation0 [shape = 'u32[]', space=smem, size = 0x4, offset = 0x4, fixed_abs, tag = 'smem constant byte address 0x4 - core index']
  #allocation1 [shape = 'u32[144,128]{1,0:T(1,128)}', space=vmem, size = 0x12000, scoped, tag = 'internal scratch']
  %s0 = inlined_call_operand.vmem [shape: f32[2,16,16,128], index: 0, kind: input, shape index: {}]
  %s1 = inlined_call_operand.vmem [shape: f32[1,128], index: 1, kind: input, shape index: {}]
  %s2 = inlined_call_operand.vmem [shape: f32[1,128], index: 2, kind: input, shape index: {}]
  %s3 = inlined_call_operand.vmem [shape: f32[2,16,16,128], index: 3, kind: output, shape index: {}]
  %s4 = sld [smem:[#allocation0]]
  $region45: #{unet_conv2_forward.5} parent=0
    _
  %s6 = ssub.s32 1, %s4
  %s7 = scalar_select 0, %s6, %s4
  loop: start=0, step=1, limit=4
  $region2: #{unet_conv2_forward.5} parent=0 // loop_pre_header
    _
  $region3: #{unet_conv2_forward.5} parent=0 // loop_header
    %s9 = sphi 0, %s13
    %p10 = scmp.ge.s32.totalorder %s9, 4
    %s19 = sphi 0, %s21
    %s22 = sphi 0, %s19
    %s23 = sphi 0, %s22
    %s39 = sphi 0, %s23
    %s43 = sphi 0, %s43
    %s45 = sphi 0, %s43
    %s46 = sphi 0, %s45
    %s60 = sphi 0, %s46
    %s64 = sphi 0, %s64
    %s66 = sphi 0, %s64
    %s67 = sphi 0, %s66
    %s81 = sphi 0, %s67
    %s87 = sphi 0, %s89
    %s90 = sphi 0, %s87
    %s91 = sphi 0, %s90
    %s107 = sphi 0, %s91
  $region4: #{unet_conv2_forward.5} parent=0 // loop_header_branch
    %12 = sbr.rel (%p10) target = $region8
  $region5: #{unet_conv2_forward.5} parent=0 // loop_body
    %s14 = ssub.s32 %s9, 1
    %s15 = ssub.s32 %s9, 2
    %s16 = sadd.s32 %s9, 1
    %s17 = ssub.s32 %s9, %s16
    %p18 = scmp.eq.s32.totalorder %s17, 0
    %s20 = sadd.s32 %s19, 1
    %s21 = scalar_select %p18, %s19, %s20
    %p24 = pneg %p18
    %p25 = scmp.eq.s32.totalorder %s9, 1
    %p26 = por %p24, %p25
    %p27 = scmp.ne.s32.totalorder %s19, %s22
    %p28 = scmp.eq.s32.totalorder %s9, 0
    %p29 = por %p27, %p28
    %p30 = scmp.ne.s32.totalorder %s19, %s22
    %p31 = scmp.eq.s32.totalorder %s14, 1
    %p32 = por %p30, %p31
    %p33 = scmp.ne.s32.totalorder %s22, %s23
    %p34 = scmp.eq.s32.totalorder %s14, 0
    %p35 = por %p33, %p34
    %p36 = scmp.ne.s32.totalorder %s22, %s23
    %p37 = scmp.eq.s32.totalorder %s15, 1
    %p38 = por %p36, %p37
    %p40 = scmp.ne.s32.totalorder %s23, %s39
    %p41 = scmp.eq.s32.totalorder %s15, 0
    %p42 = por %p40, %p41
    %s44 = sadd.s32 %s43, 1
    %p47 = scmp.eq.s32.totalorder %s9, 1
    %p48 = scmp.ne.s32.totalorder %s43, %s45
    %p49 = scmp.eq.s32.totalorder %s9, 0
    %p50 = por %p48, %p49
    %p51 = scmp.ne.s32.totalorder %s43, %s45
    %p52 = scmp.eq.s32.totalorder %s14, 1
    %p53 = por %p51, %p52
    %p54 = scmp.ne.s32.totalorder %s45, %s46
    %p55 = scmp.eq.s32.totalorder %s14, 0
    %p56 = por %p54, %p55
    %p57 = scmp.ne.s32.totalorder %s45, %s46
    %p58 = scmp.eq.s32.totalorder %s15, 1
    %p59 = por %p57, %p58
    %p61 = scmp.ne.s32.totalorder %s46, %s60
    %p62 = scmp.eq.s32.totalorder %s15, 0
    %p63 = por %p61, %p62
    %s65 = sadd.s32 %s64, 1
    %p68 = scmp.eq.s32.totalorder %s9, 1
    %p69 = scmp.ne.s32.totalorder %s64, %s66
    %p70 = scmp.eq.s32.totalorder %s9, 0
    %p71 = por %p69, %p70
    %p72 = scmp.ne.s32.totalorder %s64, %s66
    %p73 = scmp.eq.s32.totalorder %s14, 1
    %p74 = por %p72, %p73
    %p75 = scmp.ne.s32.totalorder %s66, %s67
    %p76 = scmp.eq.s32.totalorder %s14, 0
    %p77 = por %p75, %p76
    %p78 = scmp.ne.s32.totalorder %s66, %s67
    %p79 = scmp.eq.s32.totalorder %s15, 1
    %p80 = por %p78, %p79
    %p82 = scmp.ne.s32.totalorder %s67, %s81
    %p83 = scmp.eq.s32.totalorder %s15, 0
    %p84 = por %p82, %p83
    %s85 = ssub.s32 %s9, %s16
    %p86 = scmp.eq.s32.totalorder %s85, 0
    %s88 = sadd.s32 %s87, 1
    %s89 = scalar_select %p86, %s87, %s88
    %p92 = pneg %p86
    %p93 = scmp.eq.s32.totalorder %s9, 1
    %p94 = por %p92, %p93
    %p95 = scmp.ne.s32.totalorder %s87, %s90
    %p96 = scmp.eq.s32.totalorder %s9, 0
    %p97 = por %p95, %p96
    %p98 = scmp.ne.s32.totalorder %s87, %s90
    %p99 = scmp.eq.s32.totalorder %s14, 1
    %p100 = por %p98, %p99
    %p101 = scmp.ne.s32.totalorder %s90, %s91
    %p102 = scmp.eq.s32.totalorder %s14, 0
    %p103 = por %p101, %p102
    %p104 = scmp.ne.s32.totalorder %s90, %s91
    %p105 = scmp.eq.s32.totalorder %s15, 1
    %p106 = por %p104, %p105
    %p108 = scmp.ne.s32.totalorder %s91, %s107
    %p109 = scmp.eq.s32.totalorder %s15, 0
    %p110 = por %p108, %p109
    %p111 = scmp.le.s32.totalorder 1, %s9
    %p112 = scmp.lt.s32.totalorder %s9, 3
    %p113 = pnand %p111, %p112
    %p114 = pneg %p113
    // Predicated region
    $region9: #{unet_conv2_forward.5} parent=5 // pred_check
      _
    $region10: #{unet_conv2_forward.5} parent=5 // pred_check_branch
      %116 = sbr.rel (%p113) target = $region12
    $region11: #{unet_conv2_forward.5} parent=5 // pred_region
      %s117 = ssub.s32 %s9, 1
      // Predicated region
      $region13: #{unet_conv2_forward.5} parent=11 // pred_check
        %p118 = pneg %p56
      $region14: #{unet_conv2_forward.5} parent=11 // pred_check_branch
        %120 = sbr.rel (%p118) target = $region16
      $region15: #{unet_conv2_forward.5} parent=11 // pred_region
        _
      $region16: #{unet_conv2_forward.5} parent=11 // pred_fallthru
        _
      // Predicated region
      $region17: #{unet_conv2_forward.5} parent=11 // pred_check
        %p121 = pneg %p77
      $region18: #{unet_conv2_forward.5} parent=11 // pred_check_branch
        %123 = sbr.rel (%p121) target = $region20
      $region19: #{unet_conv2_forward.5} parent=11 // pred_region
        _
      $region20: #{unet_conv2_forward.5} parent=11 // pred_fallthru
        _
    $region12: #{unet_conv2_forward.5} parent=5 // pred_fallthru
      _
    %p124 = scmp.lt.s32.totalorder %s9, 2
    // Predicated region
    $region21: #{unet_conv2_forward.5} parent=5 // pred_check
      %p125 = pneg %p124
    $region22: #{unet_conv2_forward.5} parent=5 // pred_check_branch
      %127 = sbr.rel (%p125) target = $region24
    $region23: #{unet_conv2_forward.5} parent=5 // pred_region
      // Predicated region
      $region25: #{unet_conv2_forward.5} parent=23 // pred_check
        %p128 = pneg %p29
      $region26: #{unet_conv2_forward.5} parent=23 // pred_check_branch
        %130 = sbr.rel (%p128) target = $region28
      $region27: #{unet_conv2_forward.5} parent=23 // pred_region
        %p131 = scmp.lt.s32.totalorder %s9, 1
        %s132 = scalar_select %p131, %s9, 1
        %s133 = smul.addr %s132, 32
        %s134 = smul.addr %s133, 8
        %s135 = scalar_lea.vmem %s0, %s134
      $region28: #{unet_conv2_forward.5} parent=23 // pred_fallthru
        _
    $region24: #{unet_conv2_forward.5} parent=5 // pred_fallthru
      _
    %p136 = scmp.le.s32.totalorder 1, %s9
    %p137 = scmp.lt.s32.totalorder %s9, 3
    %p138 = pnand %p136, %p137
    %p139 = pneg %p138
    // Predicated region
    $region29: #{unet_conv2_forward.5} parent=5 // pred_check
      _
    $region30: #{unet_conv2_forward.5} parent=5 // pred_check_branch
      %141 = sbr.rel (%p138) target = $region32
    $region31: #{unet_conv2_forward.5} parent=5 // pred_region
      %s142 = ssub.s32 %s9, 1
      %p143 = scmp.lt.s32.totalorder %s14, 1
      %s144 = scalar_select %p143, %s14, 1
      %s145 = smul.addr %s144, 32
      %s146 = smul.addr %s145, 8
      %s147 = scalar_lea.vmem %s0, %s146
      %p148 = pneg %p35
      %p149 = pneg %p32
      %p150 = pneg %p56
      %p151 = pneg %p53
      %p152 = pneg %p77
      %p153 = pneg %p74
      %p154 = pneg %p103
      %p155 = pneg %p100
      %p156 = scmp.lt.s32.totalorder %s14, 1
      %s157 = scalar_select %p156, %s14, 1
      %s158 = smul.addr %s157, 32
      %s159 = smul.addr %s158, 8
      %s160 = scalar_lea.vmem %s3, %s159
      %p161 = scmp.lt.s32.totalorder %s14, 1
      %s162 = scalar_select %p161, %s14, 1
      %s163 = smul.addr %s162, 32
      %s164 = smul.addr %s163, 8
      %s165 = scalar_lea.vmem %s0, %s164
      %p166 = scmp.lt.s32.totalorder %s14, 1
      %s167 = scalar_select %p166, %s14, 1
      %s168 = smul.addr %s167, 32
      %s169 = smul.addr %s168, 8
      %s170 = scalar_lea.vmem %s3, %s169
      %v171 = vld [vmem:[%s1] sm:$0x1]
      %v172 = vld [vmem:[%s2] sm:$0x1]
      %v173 = vld [vmem:[%s165] sm:$0xff]
      %v174 = vld [vmem:[%s165 + $0x8] sm:$0xff]
      %v175 = vld [vmem:[%s165 + $0x10] sm:$0xff]
      %v176 = vld [vmem:[%s165 + $0x18] sm:$0xff]
      %v177 = vld [vmem:[%s165 + $0x20] sm:$0xff]
      %v178 = vld [vmem:[%s165 + $0x28] sm:$0xff]
      %v179 = vld [vmem:[%s165 + $0x30] sm:$0xff]
      %v180 = vld [vmem:[%s165 + $0x38] sm:$0xff]
      %v181 = vld [vmem:[%s165 + $0x40] sm:$0xff]
      %v182 = vld [vmem:[%s165 + $0x48] sm:$0xff]
      %v183 = vld [vmem:[%s165 + $0x50] sm:$0xff]
      %v184 = vld [vmem:[%s165 + $0x58] sm:$0xff]
      %v185 = vld [vmem:[%s165 + $0x60] sm:$0xff]
      %v186 = vld [vmem:[%s165 + $0x68] sm:$0xff]
      %v187 = vld [vmem:[%s165 + $0x70] sm:$0xff]
      %v188 = vld [vmem:[%s165 + $0x78] sm:$0xff]
      %v189 = vld [vmem:[%s165 + $0x80] sm:$0xff]
      %v190 = vld [vmem:[%s165 + $0x88] sm:$0xff]
      %v191 = vld [vmem:[%s165 + $0x90] sm:$0xff]
      %v192 = vld [vmem:[%s165 + $0x98] sm:$0xff]
      %v193 = vld [vmem:[%s165 + $0xa0] sm:$0xff]
      %v194 = vld [vmem:[%s165 + $0xa8] sm:$0xff]
      %v195 = vld [vmem:[%s165 + $0xb0] sm:$0xff]
      %v196 = vld [vmem:[%s165 + $0xb8] sm:$0xff]
      %v197 = vld [vmem:[%s165 + $0xc0] sm:$0xff]
      %v198 = vld [vmem:[%s165 + $0xc8] sm:$0xff]
      %v199 = vld [vmem:[%s165 + $0xd0] sm:$0xff]
      %v200 = vld [vmem:[%s165 + $0xd8] sm:$0xff]
      %v201 = vld [vmem:[%s165 + $0xe0] sm:$0xff]
      %v202 = vld [vmem:[%s165 + $0xe8] sm:$0xff]
      %v203 = vld [vmem:[%s165 + $0xf0] sm:$0xff]
      %v204 = vld [vmem:[%s165 + $0xf8] sm:$0xff]
      %v206 = vlaneseq
      %v207 = vshrl.u32 %v206, 7
      %v208 = vsub.s32 0, %v207
      %v209 = vrot.slane %v171, %v208
      %v211 = vmul.f32 %v173, %v209
      %v212 = vmul.f32 %v174, %v209
      %v213 = vmul.f32 %v175, %v209
      %v214 = vmul.f32 %v176, %v209
      %v215 = vmul.f32 %v177, %v209
      %v216 = vmul.f32 %v178, %v209
      %v217 = vmul.f32 %v179, %v209
      %v218 = vmul.f32 %v180, %v209
      %v219 = vmul.f32 %v181, %v209
      %v220 = vmul.f32 %v182, %v209
      %v221 = vmul.f32 %v183, %v209
      %v222 = vmul.f32 %v184, %v209
      %v223 = vmul.f32 %v185, %v209
      %v224 = vmul.f32 %v186, %v209
      %v225 = vmul.f32 %v187, %v209
      %v226 = vmul.f32 %v188, %v209
      %v227 = vmul.f32 %v189, %v209
      %v228 = vmul.f32 %v190, %v209
      %v229 = vmul.f32 %v191, %v209
      %v230 = vmul.f32 %v192, %v209
      %v231 = vmul.f32 %v193, %v209
      %v232 = vmul.f32 %v194, %v209
      %v233 = vmul.f32 %v195, %v209
      %v234 = vmul.f32 %v196, %v209
      %v235 = vmul.f32 %v197, %v209
      %v236 = vmul.f32 %v198, %v209
      %v237 = vmul.f32 %v199, %v209
      %v238 = vmul.f32 %v200, %v209
      %v239 = vmul.f32 %v201, %v209
      %v240 = vmul.f32 %v202, %v209
      %v241 = vmul.f32 %v203, %v209
      %v242 = vmul.f32 %v204, %v209
      %v244 = vlaneseq
      %v245 = vshrl.u32 %v244, 7
      %v246 = vsub.s32 0, %v245
      %v247 = vrot.slane %v172, %v246
      %v249 = vadd.f32 %v211, %v247
      %v250 = vadd.f32 %v212, %v247
      %v251 = vadd.f32 %v213, %v247
      %v252 = vadd.f32 %v214, %v247
      %v253 = vadd.f32 %v215, %v247
      %v254 = vadd.f32 %v216, %v247
      %v255 = vadd.f32 %v217, %v247
      %v256 = vadd.f32 %v218, %v247
      %v257 = vadd.f32 %v219, %v247
      %v258 = vadd.f32 %v220, %v247
      %v259 = vadd.f32 %v221, %v247
      %v260 = vadd.f32 %v222, %v247
      %v261 = vadd.f32 %v223, %v247
      %v262 = vadd.f32 %v224, %v247
      %v263 = vadd.f32 %v225, %v247
      %v264 = vadd.f32 %v226, %v247
      %v265 = vadd.f32 %v227, %v247
      %v266 = vadd.f32 %v228, %v247
      %v267 = vadd.f32 %v229, %v247
      %v268 = vadd.f32 %v230, %v247
      %v269 = vadd.f32 %v231, %v247
      %v270 = vadd.f32 %v232, %v247
      %v271 = vadd.f32 %v233, %v247
      %v272 = vadd.f32 %v234, %v247
      %v273 = vadd.f32 %v235, %v247
      %v274 = vadd.f32 %v236, %v247
      %v275 = vadd.f32 %v237, %v247
      %v276 = vadd.f32 %v238, %v247
      %v277 = vadd.f32 %v239, %v247
      %v278 = vadd.f32 %v240, %v247
      %v279 = vadd.f32 %v241, %v247
      %v280 = vadd.f32 %v242, %v247
      %v281 = vmax.f32 %v249, 0.0
      %v282 = vmax.f32 %v250, 0.0
      %v283 = vmax.f32 %v251, 0.0
      %v284 = vmax.f32 %v252, 0.0
      %v285 = vmax.f32 %v253, 0.0
      %v286 = vmax.f32 %v254, 0.0
      %v287 = vmax.f32 %v255, 0.0
      %v288 = vmax.f32 %v256, 0.0
      %v289 = vmax.f32 %v257, 0.0
      %v290 = vmax.f32 %v258, 0.0
      %v291 = vmax.f32 %v259, 0.0
      %v292 = vmax.f32 %v260, 0.0
      %v293 = vmax.f32 %v261, 0.0
      %v294 = vmax.f32 %v262, 0.0
      %v295 = vmax.f32 %v263, 0.0
      %v296 = vmax.f32 %v264, 0.0
      %v297 = vmax.f32 %v265, 0.0
      %v298 = vmax.f32 %v266, 0.0
      %v299 = vmax.f32 %v267, 0.0
      %v300 = vmax.f32 %v268, 0.0
      %v301 = vmax.f32 %v269, 0.0
      %v302 = vmax.f32 %v270, 0.0
      %v303 = vmax.f32 %v271, 0.0
      %v304 = vmax.f32 %v272, 0.0
      %v305 = vmax.f32 %v273, 0.0
      %v306 = vmax.f32 %v274, 0.0
      %v307 = vmax.f32 %v275, 0.0
      %v308 = vmax.f32 %v276, 0.0
      %v309 = vmax.f32 %v277, 0.0
      %v310 = vmax.f32 %v278, 0.0
      %v311 = vmax.f32 %v279, 0.0
      %v312 = vmax.f32 %v280, 0.0
      %313 = vst [vmem:[%s170] sm:$0xff] %v281
      %314 = vst [vmem:[%s170 + $0x8] sm:$0xff] %v282
      %315 = vst [vmem:[%s170 + $0x10] sm:$0xff] %v283
      %316 = vst [vmem:[%s170 + $0x18] sm:$0xff] %v284
      %317 = vst [vmem:[%s170 + $0x20] sm:$0xff] %v285
      %318 = vst [vmem:[%s170 + $0x28] sm:$0xff] %v286
      %319 = vst [vmem:[%s170 + $0x30] sm:$0xff] %v287
      %320 = vst [vmem:[%s170 + $0x38] sm:$0xff] %v288
      %321 = vst [vmem:[%s170 + $0x40] sm:$0xff] %v289
      %322 = vst [vmem:[%s170 + $0x48] sm:$0xff] %v290
      %323 = vst [vmem:[%s170 + $0x50] sm:$0xff] %v291
      %324 = vst [vmem:[%s170 + $0x58] sm:$0xff] %v292
      %325 = vst [vmem:[%s170 + $0x60] sm:$0xff] %v293
      %326 = vst [vmem:[%s170 + $0x68] sm:$0xff] %v294
      %327 = vst [vmem:[%s170 + $0x70] sm:$0xff] %v295
      %328 = vst [vmem:[%s170 + $0x78] sm:$0xff] %v296
      %329 = vst [vmem:[%s170 + $0x80] sm:$0xff] %v297
      %330 = vst [vmem:[%s170 + $0x88] sm:$0xff] %v298
      %331 = vst [vmem:[%s170 + $0x90] sm:$0xff] %v299
      %332 = vst [vmem:[%s170 + $0x98] sm:$0xff] %v300
      %333 = vst [vmem:[%s170 + $0xa0] sm:$0xff] %v301
      %334 = vst [vmem:[%s170 + $0xa8] sm:$0xff] %v302
      %335 = vst [vmem:[%s170 + $0xb0] sm:$0xff] %v303
      %336 = vst [vmem:[%s170 + $0xb8] sm:$0xff] %v304
      %337 = vst [vmem:[%s170 + $0xc0] sm:$0xff] %v305
      %338 = vst [vmem:[%s170 + $0xc8] sm:$0xff] %v306
      %339 = vst [vmem:[%s170 + $0xd0] sm:$0xff] %v307
      %340 = vst [vmem:[%s170 + $0xd8] sm:$0xff] %v308
      %341 = vst [vmem:[%s170 + $0xe0] sm:$0xff] %v309
      %342 = vst [vmem:[%s170 + $0xe8] sm:$0xff] %v310
      %343 = vst [vmem:[%s170 + $0xf0] sm:$0xff] %v311
      %344 = vst [vmem:[%s170 + $0xf8] sm:$0xff] %v312
      %p345 = scmp.lt.s32.totalorder %s14, 1
      %s346 = scalar_select %p345, %s14, 1
      %s347 = smul.addr %s346, 32
      %s348 = smul.addr %s347, 8
      %s349 = scalar_lea.vmem %s3, %s348
      // Predicated region
      $region33: #{unet_conv2_forward.5} parent=31 // pred_check
        %p350 = pneg %p100
      $region34: #{unet_conv2_forward.5} parent=31 // pred_check_branch
        %352 = sbr.rel (%p350) target = $region36
      $region35: #{unet_conv2_forward.5} parent=31 // pred_region
        _
      $region36: #{unet_conv2_forward.5} parent=31 // pred_fallthru
        _
    $region32: #{unet_conv2_forward.5} parent=5 // pred_fallthru
      _
    %p353 = scmp.le.s32.totalorder 2, %s9
    // Predicated region
    $region37: #{unet_conv2_forward.5} parent=5 // pred_check
      %p354 = pneg %p353
    $region38: #{unet_conv2_forward.5} parent=5 // pred_check_branch
      %356 = sbr.rel (%p354) target = $region40
    $region39: #{unet_conv2_forward.5} parent=5 // pred_region
      %s357 = ssub.s32 %s9, 2
      // Predicated region
      $region41: #{unet_conv2_forward.5} parent=39 // pred_check
        %p358 = pneg %p106
      $region42: #{unet_conv2_forward.5} parent=39 // pred_check_branch
        %360 = sbr.rel (%p358) target = $region44
      $region43: #{unet_conv2_forward.5} parent=39 // pred_region
        %p361 = scmp.lt.s32.totalorder %s15, 1
        %s362 = scalar_select %p361, %s15, 1
        %s363 = smul.addr %s362, 32
        %s364 = smul.addr %s363, 8
        %s365 = scalar_lea.vmem %s3, %s364
      $region44: #{unet_conv2_forward.5} parent=39 // pred_fallthru
        _
    $region40: #{unet_conv2_forward.5} parent=5 // pred_fallthru
      _
  $region6: #{unet_conv2_forward.5} parent=0 // loop_footer
    %s13 = sadd.s32 1, %s9
  $region7: #{unet_conv2_forward.5} parent=0 // loop_footer_branch
    %8 = sbr.rel target = $region3
  $region8: #{unet_conv2_forward.5} parent=0 // loop_exit
    _

// kernel: unet_conv2_forward.3
$region0: #{unet_conv2_forward.3}
  #allocation0 [shape = 'u32[]', space=smem, size = 0x4, offset = 0x4, fixed_abs, tag = 'smem constant byte address 0x4 - core index']
  #allocation1 [shape = 'u32[144,128]{1,0:T(1,128)}', space=vmem, size = 0x12000, scoped, tag = 'internal scratch']
  #allocation2 [shape = 'f32[18,18,128]{2,1,0:T(8,128)}', space=vmem, size = 0x36000, scoped, tag = 'scratch operand']
  %s0 = inlined_call_operand.vmem [shape: f32[2,16,16,128], index: 0, kind: input, shape index: {}]
  %s1 = inlined_call_operand.vmem [shape: f32[1,128], index: 1, kind: input, shape index: {}]
  %s2 = inlined_call_operand.vmem [shape: f32[1,128], index: 2, kind: input, shape index: {}]
  %s3 = inlined_call_operand.vmem [shape: bf16[9,128,128], index: 3, kind: input, shape index: {}]
  %s4 = inlined_call_operand.vmem [shape: f32[2,16,16,128], index: 4, kind: output, shape index: {0}]
  %s5 = inlined_call_operand.vmem [shape: f32[1,128], index: 5, kind: output, shape index: {1}]
  %s6 = inlined_call_operand.vmem [shape: f32[1,128], index: 6, kind: output, shape index: {2}]
  %7 = xla_tuple %s4, %s5, %s6
  %s8 = sld [smem:[#allocation0]]
  $region69: #{unet_conv2_forward.3} parent=0
    _
  %s10 = ssub.s32 1, %s8
  %s11 = scalar_select 0, %s10, %s8
  loop: start=0, step=1, limit=4
  $region2: #{unet_conv2_forward.3} parent=0 // loop_pre_header
    _
  $region3: #{unet_conv2_forward.3} parent=0 // loop_header
    %s13 = sphi 0, %s17
    %p14 = scmp.ge.s32.totalorder %s13, 4
    %s23 = sphi 0, %s25
    %s26 = sphi 0, %s23
    %s27 = sphi 0, %s26
    %s43 = sphi 0, %s27
    %s47 = sphi 0, %s47
    %s49 = sphi 0, %s47
    %s50 = sphi 0, %s49
    %s64 = sphi 0, %s50
    %s68 = sphi 0, %s68
    %s70 = sphi 0, %s68
    %s71 = sphi 0, %s70
    %s85 = sphi 0, %s71
    %s89 = sphi 0, %s89
    %s91 = sphi 0, %s89
    %s92 = sphi 0, %s91
    %s106 = sphi 0, %s92
    %s112 = sphi 0, %s114
    %s115 = sphi 0, %s112
    %s116 = sphi 0, %s115
    %s132 = sphi 0, %s116
    %s136 = sphi 0, %s136
    %s138 = sphi 0, %s136
    %s139 = sphi 0, %s138
    %s153 = sphi 0, %s139
    %s157 = sphi 0, %s157
    %s159 = sphi 0, %s157
    %s160 = sphi 0, %s159
    %s174 = sphi 0, %s160
  $region4: #{unet_conv2_forward.3} parent=0 // loop_header_branch
    %16 = sbr.rel (%p14) target = $region8
  $region5: #{unet_conv2_forward.3} parent=0 // loop_body
    %s18 = ssub.s32 %s13, 1
    %s19 = ssub.s32 %s13, 2
    %s20 = sadd.s32 %s13, 1
    %s21 = ssub.s32 %s13, %s20
    %p22 = scmp.eq.s32.totalorder %s21, 0
    %s24 = sadd.s32 %s23, 1
    %s25 = scalar_select %p22, %s23, %s24
    %p28 = pneg %p22
    %p29 = scmp.eq.s32.totalorder %s13, 1
    %p30 = por %p28, %p29
    %p31 = scmp.ne.s32.totalorder %s23, %s26
    %p32 = scmp.eq.s32.totalorder %s13, 0
    %p33 = por %p31, %p32
    %p34 = scmp.ne.s32.totalorder %s23, %s26
    %p35 = scmp.eq.s32.totalorder %s18, 1
    %p36 = por %p34, %p35
    %p37 = scmp.ne.s32.totalorder %s26, %s27
    %p38 = scmp.eq.s32.totalorder %s18, 0
    %p39 = por %p37, %p38
    %p40 = scmp.ne.s32.totalorder %s26, %s27
    %p41 = scmp.eq.s32.totalorder %s19, 1
    %p42 = por %p40, %p41
    %p44 = scmp.ne.s32.totalorder %s27, %s43
    %p45 = scmp.eq.s32.totalorder %s19, 0
    %p46 = por %p44, %p45
    %s48 = sadd.s32 %s47, 1
    %p51 = scmp.eq.s32.totalorder %s13, 1
    %p52 = scmp.ne.s32.totalorder %s47, %s49
    %p53 = scmp.eq.s32.totalorder %s13, 0
    %p54 = por %p52, %p53
    %p55 = scmp.ne.s32.totalorder %s47, %s49
    %p56 = scmp.eq.s32.totalorder %s18, 1
    %p57 = por %p55, %p56
    %p58 = scmp.ne.s32.totalorder %s49, %s50
    %p59 = scmp.eq.s32.totalorder %s18, 0
    %p60 = por %p58, %p59
    %p61 = scmp.ne.s32.totalorder %s49, %s50
    %p62 = scmp.eq.s32.totalorder %s19, 1
    %p63 = por %p61, %p62
    %p65 = scmp.ne.s32.totalorder %s50, %s64
    %p66 = scmp.eq.s32.totalorder %s19, 0
    %p67 = por %p65, %p66
    %s69 = sadd.s32 %s68, 1
    %p72 = scmp.eq.s32.totalorder %s13, 1
    %p73 = scmp.ne.s32.totalorder %s68, %s70
    %p74 = scmp.eq.s32.totalorder %s13, 0
    %p75 = por %p73, %p74
    %p76 = scmp.ne.s32.totalorder %s68, %s70
    %p77 = scmp.eq.s32.totalorder %s18, 1
    %p78 = por %p76, %p77
    %p79 = scmp.ne.s32.totalorder %s70, %s71
    %p80 = scmp.eq.s32.totalorder %s18, 0
    %p81 = por %p79, %p80
    %p82 = scmp.ne.s32.totalorder %s70, %s71
    %p83 = scmp.eq.s32.totalorder %s19, 1
    %p84 = por %p82, %p83
    %p86 = scmp.ne.s32.totalorder %s71, %s85
    %p87 = scmp.eq.s32.totalorder %s19, 0
    %p88 = por %p86, %p87
    %s90 = sadd.s32 %s89, 1
    %p93 = scmp.eq.s32.totalorder %s13, 1
    %p94 = scmp.ne.s32.totalorder %s89, %s91
    %p95 = scmp.eq.s32.totalorder %s13, 0
    %p96 = por %p94, %p95
    %p97 = scmp.ne.s32.totalorder %s89, %s91
    %p98 = scmp.eq.s32.totalorder %s18, 1
    %p99 = por %p97, %p98
    %p100 = scmp.ne.s32.totalorder %s91, %s92
    %p101 = scmp.eq.s32.totalorder %s18, 0
    %p102 = por %p100, %p101
    %p103 = scmp.ne.s32.totalorder %s91, %s92
    %p104 = scmp.eq.s32.totalorder %s19, 1
    %p105 = por %p103, %p104
    %p107 = scmp.ne.s32.totalorder %s92, %s106
    %p108 = scmp.eq.s32.totalorder %s19, 0
    %p109 = por %p107, %p108
    %s110 = ssub.s32 %s13, %s20
    %p111 = scmp.eq.s32.totalorder %s110, 0
    %s113 = sadd.s32 %s112, 1
    %s114 = scalar_select %p111, %s112, %s113
    %p117 = pneg %p111
    %p118 = scmp.eq.s32.totalorder %s13, 1
    %p119 = por %p117, %p118
    %p120 = scmp.ne.s32.totalorder %s112, %s115
    %p121 = scmp.eq.s32.totalorder %s13, 0
    %p122 = por %p120, %p121
    %p123 = scmp.ne.s32.totalorder %s112, %s115
    %p124 = scmp.eq.s32.totalorder %s18, 1
    %p125 = por %p123, %p124
    %p126 = scmp.ne.s32.totalorder %s115, %s116
    %p127 = scmp.eq.s32.totalorder %s18, 0
    %p128 = por %p126, %p127
    %p129 = scmp.ne.s32.totalorder %s115, %s116
    %p130 = scmp.eq.s32.totalorder %s19, 1
    %p131 = por %p129, %p130
    %p133 = scmp.ne.s32.totalorder %s116, %s132
    %p134 = scmp.eq.s32.totalorder %s19, 0
    %p135 = por %p133, %p134
    %s137 = sadd.s32 %s136, 1
    %p140 = scmp.eq.s32.totalorder %s13, 1
    %p141 = scmp.ne.s32.totalorder %s136, %s138
    %p142 = scmp.eq.s32.totalorder %s13, 0
    %p143 = por %p141, %p142
    %p144 = scmp.ne.s32.totalorder %s136, %s138
    %p145 = scmp.eq.s32.totalorder %s18, 1
    %p146 = por %p144, %p145
    %p147 = scmp.ne.s32.totalorder %s138, %s139
    %p148 = scmp.eq.s32.totalorder %s18, 0
    %p149 = por %p147, %p148
    %p150 = scmp.ne.s32.totalorder %s138, %s139
    %p151 = scmp.eq.s32.totalorder %s19, 1
    %p152 = por %p150, %p151
    %p154 = scmp.ne.s32.totalorder %s139, %s153
    %p155 = scmp.eq.s32.totalorder %s19, 0
    %p156 = por %p154, %p155
    %s158 = sadd.s32 %s157, 1
    %p161 = scmp.eq.s32.totalorder %s13, 1
    %p162 = scmp.ne.s32.totalorder %s157, %s159
    %p163 = scmp.eq.s32.totalorder %s13, 0
    %p164 = por %p162, %p163
    %p165 = scmp.ne.s32.totalorder %s157, %s159
    %p166 = scmp.eq.s32.totalorder %s18, 1
    %p167 = por %p165, %p166
    %p168 = scmp.ne.s32.totalorder %s159, %s160
    %p169 = scmp.eq.s32.totalorder %s18, 0
    %p170 = por %p168, %p169
    %p171 = scmp.ne.s32.totalorder %s159, %s160
    %p172 = scmp.eq.s32.totalorder %s19, 1
    %p173 = por %p171, %p172
    %p175 = scmp.ne.s32.totalorder %s160, %s174
    %p176 = scmp.eq.s32.totalorder %s19, 0
    %p177 = por %p175, %p176
    %p178 = scmp.le.s32.totalorder 1, %s13
    %p179 = scmp.lt.s32.totalorder %s13, 3
    %p180 = pnand %p178, %p179
    %p181 = pneg %p180
    // Predicated region
    $region9: #{unet_conv2_forward.3} parent=5 // pred_check
      _
    $region10: #{unet_conv2_forward.3} parent=5 // pred_check_branch
      %183 = sbr.rel (%p180) target = $region12
    $region11: #{unet_conv2_forward.3} parent=5 // pred_region
      %s184 = ssub.s32 %s13, 1
      // Predicated region
      $region13: #{unet_conv2_forward.3} parent=11 // pred_check
        %p185 = pneg %p60
      $region14: #{unet_conv2_forward.3} parent=11 // pred_check_branch
        %187 = sbr.rel (%p185) target = $region16
      $region15: #{unet_conv2_forward.3} parent=11 // pred_region
        _
      $region16: #{unet_conv2_forward.3} parent=11 // pred_fallthru
        _
      // Predicated region
      $region17: #{unet_conv2_forward.3} parent=11 // pred_check
        %p188 = pneg %p81
      $region18: #{unet_conv2_forward.3} parent=11 // pred_check_branch
        %190 = sbr.rel (%p188) target = $region20
      $region19: #{unet_conv2_forward.3} parent=11 // pred_region
        _
      $region20: #{unet_conv2_forward.3} parent=11 // pred_fallthru
        _
      // Predicated region
      $region21: #{unet_conv2_forward.3} parent=11 // pred_check
        %p191 = pneg %p102
      $region22: #{unet_conv2_forward.3} parent=11 // pred_check_branch
        %193 = sbr.rel (%p191) target = $region24
      $region23: #{unet_conv2_forward.3} parent=11 // pred_region
        _
      $region24: #{unet_conv2_forward.3} parent=11 // pred_fallthru
        _
    $region12: #{unet_conv2_forward.3} parent=5 // pred_fallthru
      _
    %p194 = scmp.lt.s32.totalorder %s13, 2
    // Predicated region
    $region25: #{unet_conv2_forward.3} parent=5 // pred_check
      %p195 = pneg %p194
    $region26: #{unet_conv2_forward.3} parent=5 // pred_check_branch
      %197 = sbr.rel (%p195) target = $region28
    $region27: #{unet_conv2_forward.3} parent=5 // pred_region
      // Predicated region
      $region29: #{unet_conv2_forward.3} parent=27 // pred_check
        %p198 = pneg %p33
      $region30: #{unet_conv2_forward.3} parent=27 // pred_check_branch
        %200 = sbr.rel (%p198) target = $region32
      $region31: #{unet_conv2_forward.3} parent=27 // pred_region
        %p201 = scmp.lt.s32.totalorder %s13, 1
        %s202 = scalar_select %p201, %s13, 1
        %s203 = smul.addr %s202, 32
        %s204 = smul.addr %s203, 8
        %s205 = scalar_lea.vmem %s0, %s204
      $region32: #{unet_conv2_forward.3} parent=27 // pred_fallthru
        _
    $region28: #{unet_conv2_forward.3} parent=5 // pred_fallthru
      _
    %p206 = scmp.le.s32.totalorder 1, %s13
    %p207 = scmp.lt.s32.totalorder %s13, 3
    %p208 = pnand %p206, %p207
    %p209 = pneg %p208
    // Predicated region
    $region33: #{unet_conv2_forward.3} parent=5 // pred_check
      _
    $region34: #{unet_conv2_forward.3} parent=5 // pred_check_branch
      %211 = sbr.rel (%p208) target = $region36
    $region35: #{unet_conv2_forward.3} parent=5 // pred_region
      %s212 = ssub.s32 %s13, 1
      %p213 = scmp.lt.s32.totalorder %s18, 1
      %s214 = scalar_select %p213, %s18, 1
      %s215 = smul.addr %s214, 32
      %s216 = smul.addr %s215, 8
      %s217 = scalar_lea.vmem %s0, %s216
      %p218 = pneg %p39
      %p219 = pneg %p36
      %p220 = pneg %p60
      %p221 = pneg %p57
      %p222 = pneg %p81
      %p223 = pneg %p78
      %p224 = pneg %p102
      %p225 = pneg %p99
      %p226 = pneg %p128
      %p227 = pneg %p125
      %p228 = scmp.lt.s32.totalorder %s18, 1
      %s229 = scalar_select %p228, %s18, 1
      %s230 = smul.addr %s229, 32
      %s231 = smul.addr %s230, 8
      %s232 = scalar_lea.vmem %s4, %s231
      %p233 = pneg %p149
      %p234 = pneg %p146
      %p235 = pneg %p170
      %p236 = pneg %p167
      %p237 = scmp.lt.s32.totalorder %s18, 1
      %s238 = scalar_select %p237, %s18, 1
      %s239 = smul.addr %s238, 32
      %s240 = smul.addr %s239, 8
      %s241 = scalar_lea.vmem %s0, %s240
      %p242 = scmp.lt.s32.totalorder %s18, 1
      %s243 = scalar_select %p242, %s18, 1
      %s244 = smul.addr %s243, 32
      %s245 = smul.addr %s244, 8
      %s246 = scalar_lea.vmem %s4, %s245
      %v248 = vld [vmem:[%s241] sm:$0xff]
      %v249 = vld [vmem:[%s241 + $0x8] sm:$0xff]
      %v250 = vld [vmem:[%s241 + $0x10] sm:$0xff]
      %v251 = vld [vmem:[%s241 + $0x18] sm:$0xff]
      %v252 = vld [vmem:[%s241 + $0x20] sm:$0xff]
      %v253 = vld [vmem:[%s241 + $0x28] sm:$0xff]
      %v254 = vld [vmem:[%s241 + $0x30] sm:$0xff]
      %v255 = vld [vmem:[%s241 + $0x38] sm:$0xff]
      %v256 = vld [vmem:[%s241 + $0x40] sm:$0xff]
      %v257 = vld [vmem:[%s241 + $0x48] sm:$0xff]
      %v258 = vld [vmem:[%s241 + $0x50] sm:$0xff]
      %v259 = vld [vmem:[%s241 + $0x58] sm:$0xff]
      %v260 = vld [vmem:[%s241 + $0x60] sm:$0xff]
      %v261 = vld [vmem:[%s241 + $0x68] sm:$0xff]
      %v262 = vld [vmem:[%s241 + $0x70] sm:$0xff]
      %v263 = vld [vmem:[%s241 + $0x78] sm:$0xff]
      %v264 = vld [vmem:[%s241 + $0x80] sm:$0xff]
      %v265 = vld [vmem:[%s241 + $0x88] sm:$0xff]
      %v266 = vld [vmem:[%s241 + $0x90] sm:$0xff]
      %v267 = vld [vmem:[%s241 + $0x98] sm:$0xff]
      %v268 = vld [vmem:[%s241 + $0xa0] sm:$0xff]
      %v269 = vld [vmem:[%s241 + $0xa8] sm:$0xff]
      %v270 = vld [vmem:[%s241 + $0xb0] sm:$0xff]
      %v271 = vld [vmem:[%s241 + $0xb8] sm:$0xff]
      %v272 = vld [vmem:[%s241 + $0xc0] sm:$0xff]
      %v273 = vld [vmem:[%s241 + $0xc8] sm:$0xff]
      %v274 = vld [vmem:[%s241 + $0xd0] sm:$0xff]
      %v275 = vld [vmem:[%s241 + $0xd8] sm:$0xff]
      %v276 = vld [vmem:[%s241 + $0xe0] sm:$0xff]
      %v277 = vld [vmem:[%s241 + $0xe8] sm:$0xff]
      %v278 = vld [vmem:[%s241 + $0xf0] sm:$0xff]
      %v279 = vld [vmem:[%s241 + $0xf8] sm:$0xff]
      %280 = vst [vmem:[#allocation2] sm:$0xff] 0.0
      %281 = vst [vmem:[#allocation2 + $0x8] sm:$0xff] 0.0
      %282 = vst [vmem:[#allocation2 + $0x10] sm:$0x3] 0.0
      %283 = vst [vmem:[#allocation2 + $0x18] sm:$0xff] 0.0
      %284 = vst [vmem:[#allocation2 + $0x20] sm:$0xff] 0.0
      %285 = vst [vmem:[#allocation2 + $0x28] sm:$0x3] 0.0
      %286 = vst [vmem:[#allocation2 + $0x30] sm:$0xff] 0.0
      %287 = vst [vmem:[#allocation2 + $0x38] sm:$0xff] 0.0
      %288 = vst [vmem:[#allocation2 + $0x40] sm:$0x3] 0.0
      %289 = vst [vmem:[#allocation2 + $0x48] sm:$0xff] 0.0
      %290 = vst [vmem:[#allocation2 + $0x50] sm:$0xff] 0.0
      %291 = vst [vmem:[#allocation2 + $0x58] sm:$0x3] 0.0
      %292 = vst [vmem:[#allocation2 + $0x60] sm:$0xff] 0.0
      %293 = vst [vmem:[#allocation2 + $0x68] sm:$0xff] 0.0
      %294 = vst [vmem:[#allocation2 + $0x70] sm:$0x3] 0.0
      %295 = vst [vmem:[#allocation2 + $0x78] sm:$0xff] 0.0
      %296 = vst [vmem:[#allocation2 + $0x80] sm:$0xff] 0.0
      %297 = vst [vmem:[#allocation2 + $0x88] sm:$0x3] 0.0
      %298 = vst [vmem:[#allocation2 + $0x90] sm:$0xff] 0.0
      %299 = vst [vmem:[#allocation2 + $0x98] sm:$0xff] 0.0
      %300 = vst [vmem:[#allocation2 + $0xa0] sm:$0x3] 0.0
      %301 = vst [vmem:[#allocation2 + $0xa8] sm:$0xff] 0.0
      %302 = vst [vmem:[#allocation2 + $0xb0] sm:$0xff] 0.0
      %303 = vst [vmem:[#allocation2 + $0xb8] sm:$0x3] 0.0
      %304 = vst [vmem:[#allocation2 + $0xc0] sm:$0xff] 0.0
      %305 = vst [vmem:[#allocation2 + $0xc8] sm:$0xff] 0.0
      %306 = vst [vmem:[#allocation2 + $0xd0] sm:$0x3] 0.0
      %307 = vst [vmem:[#allocation2 + $0xd8] sm:$0xff] 0.0
      %308 = vst [vmem:[#allocation2 + $0xe0] sm:$0xff] 0.0
      %309 = vst [vmem:[#allocation2 + $0xe8] sm:$0x3] 0.0
      %310 = vst [vmem:[#allocation2 + $0xf0] sm:$0xff] 0.0
      %311 = vst [vmem:[#allocation2 + $0xf8] sm:$0xff] 0.0
      %312 = vst [vmem:[#allocation2 + $0x100] sm:$0x3] 0.0
      %313 = vst [vmem:[#allocation2 + $0x108] sm:$0xff] 0.0
      %314 = vst [vmem:[#allocation2 + $0x110] sm:$0xff] 0.0
      %315 = vst [vmem:[#allocation2 + $0x118] sm:$0x3] 0.0
      %316 = vst [vmem:[#allocation2 + $0x120] sm:$0xff] 0.0
      %317 = vst [vmem:[#allocation2 + $0x128] sm:$0xff] 0.0
      %318 = vst [vmem:[#allocation2 + $0x130] sm:$0x3] 0.0
      %319 = vst [vmem:[#allocation2 + $0x138] sm:$0xff] 0.0
      %320 = vst [vmem:[#allocation2 + $0x140] sm:$0xff] 0.0
      %321 = vst [vmem:[#allocation2 + $0x148] sm:$0x3] 0.0
      %322 = vst [vmem:[#allocation2 + $0x150] sm:$0xff] 0.0
      %323 = vst [vmem:[#allocation2 + $0x158] sm:$0xff] 0.0
      %324 = vst [vmem:[#allocation2 + $0x160] sm:$0x3] 0.0
      %325 = vst [vmem:[#allocation2 + $0x168] sm:$0xff] 0.0
      %326 = vst [vmem:[#allocation2 + $0x170] sm:$0xff] 0.0
      %327 = vst [vmem:[#allocation2 + $0x178] sm:$0x3] 0.0
      %328 = vst [vmem:[#allocation2 + $0x180] sm:$0xff] 0.0
      %329 = vst [vmem:[#allocation2 + $0x188] sm:$0xff] 0.0
      %330 = vst [vmem:[#allocation2 + $0x190] sm:$0x3] 0.0
      %331 = vst [vmem:[#allocation2 + $0x198] sm:$0xff] 0.0
      %332 = vst [vmem:[#allocation2 + $0x1a0] sm:$0xff] 0.0
      %333 = vst [vmem:[#allocation2 + $0x1a8] sm:$0x3] 0.0
      %s334 = scalar_lea.vmem [#allocation2], 24
      %335 = vst [vmem:[%s334 + $0x1] sm:$0xff] %v248
      %336 = vst [vmem:[%s334 + $0x9] sm:$0xff] %v249
      %337 = vst [vmem:[%s334 + $0x19] sm:$0xff] %v250
      %338 = vst [vmem:[%s334 + $0x21] sm:$0xff] %v251
      %339 = vst [vmem:[%s334 + $0x31] sm:$0xff] %v252
      %340 = vst [vmem:[%s334 + $0x39] sm:$0xff] %v253
      %341 = vst [vmem:[%s334 + $0x49] sm:$0xff] %v254
      %342 = vst [vmem:[%s334 + $0x51] sm:$0xff] %v255
      %343 = vst [vmem:[%s334 + $0x61] sm:$0xff] %v256
      %344 = vst [vmem:[%s334 + $0x69] sm:$0xff] %v257
      %345 = vst [vmem:[%s334 + $0x79] sm:$0xff] %v258
      %346 = vst [vmem:[%s334 + $0x81] sm:$0xff] %v259
      %347 = vst [vmem:[%s334 + $0x91] sm:$0xff] %v260
      %348 = vst [vmem:[%s334 + $0x99] sm:$0xff] %v261
      %349 = vst [vmem:[%s334 + $0xa9] sm:$0xff] %v262
      %350 = vst [vmem:[%s334 + $0xb1] sm:$0xff] %v263
      %351 = vst [vmem:[%s334 + $0xc1] sm:$0xff] %v264
      %352 = vst [vmem:[%s334 + $0xc9] sm:$0xff] %v265
      %353 = vst [vmem:[%s334 + $0xd9] sm:$0xff] %v266
      %354 = vst [vmem:[%s334 + $0xe1] sm:$0xff] %v267
      %355 = vst [vmem:[%s334 + $0xf1] sm:$0xff] %v268
      %356 = vst [vmem:[%s334 + $0xf9] sm:$0xff] %v269
      %357 = vst [vmem:[%s334 + $0x109] sm:$0xff] %v270
      %358 = vst [vmem:[%s334 + $0x111] sm:$0xff] %v271
      %359 = vst [vmem:[%s334 + $0x121] sm:$0xff] %v272
      %360 = vst [vmem:[%s334 + $0x129] sm:$0xff] %v273
      %361 = vst [vmem:[%s334 + $0x139] sm:$0xff] %v274
      %362 = vst [vmem:[%s334 + $0x141] sm:$0xff] %v275
      %363 = vst [vmem:[%s334 + $0x151] sm:$0xff] %v276
      %364 = vst [vmem:[%s334 + $0x159] sm:$0xff] %v277
      %365 = vst [vmem:[%s334 + $0x169] sm:$0xff] %v278
      %366 = vst [vmem:[%s334 + $0x171] sm:$0xff] %v279
      %v367 = vld [vmem:[#allocation2] sm:$0xff]
      %v368 = vld [vmem:[#allocation2 + $0x8] sm:$0xff]
      %v369 = vld [vmem:[#allocation2 + $0x18] sm:$0xff]
      %v370 = vld [vmem:[#allocation2 + $0x20] sm:$0xff]
      %v371 = vld [vmem:[#allocation2 + $0x30] sm:$0xff]
      %v372 = vld [vmem:[#allocation2 + $0x38] sm:$0xff]
      %v373 = vld [vmem:[#allocation2 + $0x48] sm:$0xff]
      %v374 = vld [vmem:[#allocation2 + $0x50] sm:$0xff]
      %v375 = vld [vmem:[#allocation2 + $0x60] sm:$0xff]
      %v376 = vld [vmem:[#allocation2 + $0x68] sm:$0xff]
      %v377 = vld [vmem:[#allocation2 + $0x78] sm:$0xff]
      %v378 = vld [vmem:[#allocation2 + $0x80] sm:$0xff]
      %v379 = vld [vmem:[#allocation2 + $0x90] sm:$0xff]
      %v380 = vld [vmem:[#allocation2 + $0x98] sm:$0xff]
      %v381 = vld [vmem:[#allocation2 + $0xa8] sm:$0xff]
      %v382 = vld [vmem:[#allocation2 + $0xb0] sm:$0xff]
      %v383 = vld [vmem:[#allocation2 + $0xc0] sm:$0xff]
      %v384 = vld [vmem:[#allocation2 + $0xc8] sm:$0xff]
      %v385 = vld [vmem:[#allocation2 + $0xd8] sm:$0xff]
      %v386 = vld [vmem:[#allocation2 + $0xe0] sm:$0xff]
      %v387 = vld [vmem:[#allocation2 + $0xf0] sm:$0xff]
      %v388 = vld [vmem:[#allocation2 + $0xf8] sm:$0xff]
      %v389 = vld [vmem:[#allocation2 + $0x108] sm:$0xff]
      %v390 = vld [vmem:[#allocation2 + $0x110] sm:$0xff]
      %v391 = vld [vmem:[#allocation2 + $0x120] sm:$0xff]
      %v392 = vld [vmem:[#allocation2 + $0x128] sm:$0xff]
      %v393 = vld [vmem:[#allocation2 + $0x138] sm:$0xff]
      %v394 = vld [vmem:[#allocation2 + $0x140] sm:$0xff]
      %v395 = vld [vmem:[#allocation2 + $0x150] sm:$0xff]
      %v396 = vld [vmem:[#allocation2 + $0x158] sm:$0xff]
      %v397 = vld [vmem:[#allocation2 + $0x168] sm:$0xff]
      %v398 = vld [vmem:[#allocation2 + $0x170] sm:$0xff]
      %v399 = vpack.c.bf16 %v368, %v367
      %v400 = vpack.c.bf16 %v370, %v369
      %v401 = vpack.c.bf16 %v372, %v371
      %v402 = vpack.c.bf16 %v374, %v373
      %v403 = vpack.c.bf16 %v376, %v375
      %v404 = vpack.c.bf16 %v378, %v377
      %v405 = vpack.c.bf16 %v380, %v379
      %v406 = vpack.c.bf16 %v382, %v381
      %v407 = vpack.c.bf16 %v384, %v383
      %v408 = vpack.c.bf16 %v386, %v385
      %v409 = vpack.c.bf16 %v388, %v387
      %v410 = vpack.c.bf16 %v390, %v389
      %v411 = vpack.c.bf16 %v392, %v391
      %v412 = vpack.c.bf16 %v394, %v393
      %v413 = vpack.c.bf16 %v396, %v395
      %v414 = vpack.c.bf16 %v398, %v397
      %v415 = vld [vmem:[%s3] sm:$0xf]
      %v416 = vld [vmem:[%s3 + $0x4] sm:$0xf]
      %v417 = vld [vmem:[%s3 + $0x8] sm:$0xf]
      %v418 = vld [vmem:[%s3 + $0xc] sm:$0xf]
      %v419 = vld [vmem:[%s3 + $0x10] sm:$0xf]
      %v420 = vld [vmem:[%s3 + $0x14] sm:$0xf]
      %v421 = vld [vmem:[%s3 + $0x18] sm:$0xf]
      %v422 = vld [vmem:[%s3 + $0x1c] sm:$0xf]
      %v423 = vld [vmem:[%s3 + $0x20] sm:$0xf]
      %v424 = vld [vmem:[%s3 + $0x24] sm:$0xf]
      %v425 = vld [vmem:[%s3 + $0x28] sm:$0xf]
      %v426 = vld [vmem:[%s3 + $0x2c] sm:$0xf]
      %v427 = vld [vmem:[%s3 + $0x30] sm:$0xf]
      %v428 = vld [vmem:[%s3 + $0x34] sm:$0xf]
      %v429 = vld [vmem:[%s3 + $0x38] sm:$0xf]
      %v430 = vld [vmem:[%s3 + $0x3c] sm:$0xf]
      %v431 = vld [vmem:[#allocation2 + $0x1] sm:$0xff]
      %v432 = vld [vmem:[#allocation2 + $0x9] sm:$0xff]
      %v433 = vld [vmem:[#allocation2 + $0x19] sm:$0xff]
      %v434 = vld [vmem:[#allocation2 + $0x21] sm:$0xff]
      %v435 = vld [vmem:[#allocation2 + $0x31] sm:$0xff]
      %v436 = vld [vmem:[#allocation2 + $0x39] sm:$0xff]
      %v437 = vld [vmem:[#allocation2 + $0x49] sm:$0xff]
      %v438 = vld [vmem:[#allocation2 + $0x51] sm:$0xff]
      %v439 = vld [vmem:[#allocation2 + $0x61] sm:$0xff]
      %v440 = vld [vmem:[#allocation2 + $0x69] sm:$0xff]
      %v441 = vld [vmem:[#allocation2 + $0x79] sm:$0xff]
      %v442 = vld [vmem:[#allocation2 + $0x81] sm:$0xff]
      %v443 = vld [vmem:[#allocation2 + $0x91] sm:$0xff]
      %v444 = vld [vmem:[#allocation2 + $0x99] sm:$0xff]
      %v445 = vld [vmem:[#allocation2 + $0xa9] sm:$0xff]
      %v446 = vld [vmem:[#allocation2 + $0xb1] sm:$0xff]
      %v447 = vld [vmem:[#allocation2 + $0xc1] sm:$0xff]
      %v448 = vld [vmem:[#allocation2 + $0xc9] sm:$0xff]
      %v449 = vld [vmem:[#allocation2 + $0xd9] sm:$0xff]
      %v450 = vld [vmem:[#allocation2 + $0xe1] sm:$0xff]
      %v451 = vld [vmem:[#allocation2 + $0xf1] sm:$0xff]
      %v452 = vld [vmem:[#allocation2 + $0xf9] sm:$0xff]
      %v453 = vld [vmem:[#allocation2 + $0x109] sm:$0xff]
      %v454 = vld [vmem:[#allocation2 + $0x111] sm:$0xff]
      %v455 = vld [vmem:[#allocation2 + $0x121] sm:$0xff]
      %v456 = vld [vmem:[#allocation2 + $0x129] sm:$0xff]
      %v457 = vld [vmem:[#allocation2 + $0x139] sm:$0xff]
      %v458 = vld [vmem:[#allocation2 + $0x141] sm:$0xff]
      %v459 = vld [vmem:[#allocation2 + $0x151] sm:$0xff]
      %v460 = vld [vmem:[#allocation2 + $0x159] sm:$0xff]
      %v461 = vld [vmem:[#allocation2 + $0x169] sm:$0xff]
      %v462 = vld [vmem:[#allocation2 + $0x171] sm:$0xff]
      %v463 = vpack.c.bf16 %v432, %v431
      %v464 = vpack.c.bf16 %v434, %v433
      %v465 = vpack.c.bf16 %v436, %v435
      %v466 = vpack.c.bf16 %v438, %v437
      %v467 = vpack.c.bf16 %v440, %v439
      %v468 = vpack.c.bf16 %v442, %v441
      %v469 = vpack.c.bf16 %v444, %v443
      %v470 = vpack.c.bf16 %v446, %v445
      %v471 = vpack.c.bf16 %v448, %v447
      %v472 = vpack.c.bf16 %v450, %v449
      %v473 = vpack.c.bf16 %v452, %v451
      %v474 = vpack.c.bf16 %v454, %v453
      %v475 = vpack.c.bf16 %v456, %v455
      %v476 = vpack.c.bf16 %v458, %v457
      %v477 = vpack.c.bf16 %v460, %v459
      %v478 = vpack.c.bf16 %v462, %v461
      %s479 = scalar_lea.vmem %s3, 64
      %v480 = vld [vmem:[%s479] sm:$0xf]
      %v481 = vld [vmem:[%s479 + $0x4] sm:$0xf]
      %v482 = vld [vmem:[%s479 + $0x8] sm:$0xf]
      %v483 = vld [vmem:[%s479 + $0xc] sm:$0xf]
      %v484 = vld [vmem:[%s479 + $0x10] sm:$0xf]
      %v485 = vld [vmem:[%s479 + $0x14] sm:$0xf]
      %v486 = vld [vmem:[%s479 + $0x18] sm:$0xf]
      %v487 = vld [vmem:[%s479 + $0x1c] sm:$0xf]
      %v488 = vld [vmem:[%s479 + $0x20] sm:$0xf]
      %v489 = vld [vmem:[%s479 + $0x24] sm:$0xf]
      %v490 = vld [vmem:[%s479 + $0x28] sm:$0xf]
      %v491 = vld [vmem:[%s479 + $0x2c] sm:$0xf]
      %v492 = vld [vmem:[%s479 + $0x30] sm:$0xf]
      %v493 = vld [vmem:[%s479 + $0x34] sm:$0xf]
      %v494 = vld [vmem:[%s479 + $0x38] sm:$0xf]
      %v495 = vld [vmem:[%s479 + $0x3c] sm:$0xf]
      %v512 = vunpack.c.l.b16 %v480
      %v513 = vunpack.c.l.b16 %v481
      %v514 = vunpack.c.l.b16 %v482
      %v515 = vunpack.c.l.b16 %v483
      %v516 = vunpack.c.l.b16 %v484
      %v517 = vunpack.c.l.b16 %v485
      %v518 = vunpack.c.l.b16 %v486
      %v519 = vunpack.c.l.b16 %v487
      %v520 = vunpack.c.l.b16 %v488
      %v521 = vunpack.c.l.b16 %v489
      %v522 = vunpack.c.l.b16 %v490
      %v523 = vunpack.c.l.b16 %v491
      %v524 = vunpack.c.l.b16 %v492
      %v525 = vunpack.c.l.b16 %v493
      %v526 = vunpack.c.l.b16 %v494
      %v527 = vunpack.c.l.b16 %v495
      %v528 = vpack.c.b16 %v513, %v512
      %v529 = vpack.c.b16 %v515, %v514
      %v530 = vpack.c.b16 %v517, %v516
      %v531 = vpack.c.b16 %v519, %v518
      %v532 = vpack.c.b16 %v521, %v520
      %v533 = vpack.c.b16 %v523, %v522
      %v534 = vpack.c.b16 %v525, %v524
      %v535 = vpack.c.b16 %v527, %v526
      %544 = vmatprep.subr.bf16.mxu0 0
      %545 = vmatpush1.bf16.msra.mxu0 %v535
      %546 = vmatprep.subr.bf16.mxu0 0
      %547 = vmatpush1.bf16.msra.mxu0 %v534
      %548 = vmatprep.subr.bf16.mxu0 0
      %549 = vmatpush1.bf16.msra.mxu0 %v533
      %550 = vmatprep.subr.bf16.mxu0 0
      %551 = vmatpush1.bf16.msra.mxu0 %v532
      %552 = vmatprep.subr.bf16.mxu0 0
      %553 = vmatpush1.bf16.msra.mxu0 %v531
      %554 = vmatprep.subr.bf16.mxu0 0
      %555 = vmatpush1.bf16.msra.mxu0 %v530
      %556 = vmatprep.subr.bf16.mxu0 0
      %557 = vmatpush1.bf16.msra.mxu0 %v529
      %558 = vmatprep.subr.bf16.mxu0 0
      %559 = vmatpush1.bf16.msra.mxu0 %v528
      %560 = vmatprep.subr.bf16.mxu0 0
      %561 = vmatpush2.bf16.msra.mxu0 0
      %562 = vmatprep.subr.bf16.mxu0 0
      %563 = vmatpush2.bf16.msra.mxu0 0
      %564 = vmatprep.subr.bf16.mxu0 0
      %565 = vmatpush2.bf16.msra.mxu0 0
      %566 = vmatprep.subr.bf16.mxu0 0
      %567 = vmatpush2.bf16.msra.mxu0 0
      %568 = vmatprep.subr.bf16.mxu0 0
      %569 = vmatpush2.bf16.msra.mxu0 0
      %570 = vmatprep.subr.bf16.mxu0 0
      %571 = vmatpush2.bf16.msra.mxu0 0
      %572 = vmatprep.subr.bf16.mxu0 0
      %573 = vmatpush2.bf16.msra.mxu0 0
      %574 = vmatprep.subr.bf16.mxu0 0
      %575 = vmatpush2.bf16.msra.mxu0 0
      %576 = vmatprep.mubr.bf16.mxu0 0
      %577 = vmatmul.mubr.bf16.gmra.mxu0 %v463
      %v578 = vpop.f32.mrf.mxu0
      %v579 = vadd.f32 0.0, %v578
      %v580 = vpop.f32.mrf.mxu0
      %v581 = vpop.f32.mrf.mxu0
      %v582 = vadd.f32 0.0, %v581
      %v583 = vpop.f32.mrf.mxu0
      %584 = vmatprep.mubr.bf16.mxu0 0
      %585 = vmatmul.mubr.bf16.gmra.mxu0 %v464
      %v586 = vpop.f32.mrf.mxu0
      %v587 = vadd.f32 0.0, %v586
      %v588 = vpop.f32.mrf.mxu0
      %v589 = vpop.f32.mrf.mxu0
      %v590 = vadd.f32 0.0, %v589
      %v591 = vpop.f32.mrf.mxu0
      %592 = vmatprep.mubr.bf16.mxu0 0
      %593 = vmatmul.mubr.bf16.gmra.mxu0 %v465
      %v594 = vpop.f32.mrf.mxu0
      %v595 = vadd.f32 0.0, %v594
      %v596 = vpop.f32.mrf.mxu0
      %v597 = vpop.f32.mrf.mxu0
      %v598 = vadd.f32 0.0, %v597
      %v599 = vpop.f32.mrf.mxu0
      %600 = vmatprep.mubr.bf16.mxu0 0
      %601 = vmatmul.mubr.bf16.gmra.mxu0 %v466
      %v602 = vpop.f32.mrf.mxu0
      %v603 = vadd.f32 0.0, %v602
      %v604 = vpop.f32.mrf.mxu0
      %v605 = vpop.f32.mrf.mxu0
      %v606 = vadd.f32 0.0, %v605
      %v607 = vpop.f32.mrf.mxu0
      %608 = vmatprep.mubr.bf16.mxu0 0
      %609 = vmatmul.mubr.bf16.gmra.mxu0 %v467
      %v610 = vpop.f32.mrf.mxu0
      %v611 = vadd.f32 0.0, %v610
      %v612 = vpop.f32.mrf.mxu0
      %v613 = vpop.f32.mrf.mxu0
      %v614 = vadd.f32 0.0, %v613
      %v615 = vpop.f32.mrf.mxu0
      %616 = vmatprep.mubr.bf16.mxu0 0
      %617 = vmatmul.mubr.bf16.gmra.mxu0 %v468
      %v618 = vpop.f32.mrf.mxu0
      %v619 = vadd.f32 0.0, %v618
      %v620 = vpop.f32.mrf.mxu0
      %v621 = vpop.f32.mrf.mxu0
      %v622 = vadd.f32 0.0, %v621
      %v623 = vpop.f32.mrf.mxu0
      %624 = vmatprep.mubr.bf16.mxu0 0
      %625 = vmatmul.mubr.bf16.gmra.mxu0 %v469
      %v626 = vpop.f32.mrf.mxu0
      %v627 = vadd.f32 0.0, %v626
      %v628 = vpop.f32.mrf.mxu0
      %v629 = vpop.f32.mrf.mxu0
      %v630 = vadd.f32 0.0, %v629
      %v631 = vpop.f32.mrf.mxu0
      %632 = vmatprep.mubr.bf16.mxu0 0
      %633 = vmatmul.mubr.bf16.gmra.mxu0 %v470
      %v634 = vpop.f32.mrf.mxu0
      %v635 = vadd.f32 0.0, %v634
      %v636 = vpop.f32.mrf.mxu0
      %v637 = vpop.f32.mrf.mxu0
      %v638 = vadd.f32 0.0, %v637
      %v639 = vpop.f32.mrf.mxu0
      %640 = vmatprep.mubr.bf16.mxu0 0
      %641 = vmatmul.mubr.bf16.gmra.mxu0 %v471
      %v642 = vpop.f32.mrf.mxu0
      %v643 = vadd.f32 0.0, %v642
      %v644 = vpop.f32.mrf.mxu0
      %v645 = vpop.f32.mrf.mxu0
      %v646 = vadd.f32 0.0, %v645
      %v647 = vpop.f32.mrf.mxu0
      %648 = vmatprep.mubr.bf16.mxu0 0
      %649 = vmatmul.mubr.bf16.gmra.mxu0 %v472
      %v650 = vpop.f32.mrf.mxu0
      %v651 = vadd.f32 0.0, %v650
      %v652 = vpop.f32.mrf.mxu0
      %v653 = vpop.f32.mrf.mxu0
      %v654 = vadd.f32 0.0, %v653
      %v655 = vpop.f32.mrf.mxu0
      %656 = vmatprep.mubr.bf16.mxu0 0
      %657 = vmatmul.mubr.bf16.gmra.mxu0 %v473
      %v658 = vpop.f32.mrf.mxu0
      %v659 = vadd.f32 0.0, %v658
      %v660 = vpop.f32.mrf.mxu0
      %v661 = vpop.f32.mrf.mxu0
      %v662 = vadd.f32 0.0, %v661
      %v663 = vpop.f32.mrf.mxu0
      %664 = vmatprep.mubr.bf16.mxu0 0
      %665 = vmatmul.mubr.bf16.gmra.mxu0 %v474
      %v666 = vpop.f32.mrf.mxu0
      %v667 = vadd.f32 0.0, %v666
      %v668 = vpop.f32.mrf.mxu0
      %v669 = vpop.f32.mrf.mxu0
      %v670 = vadd.f32 0.0, %v669
      %v671 = vpop.f32.mrf.mxu0
      %672 = vmatprep.mubr.bf16.mxu0 0
      %673 = vmatmul.mubr.bf16.gmra.mxu0 %v475
      %v674 = vpop.f32.mrf.mxu0
      %v675 = vadd.f32 0.0, %v674
      %v676 = vpop.f32.mrf.mxu0
      %v677 = vpop.f32.mrf.mxu0
      %v678 = vadd.f32 0.0, %v677
      %v679 = vpop.f32.mrf.mxu0
      %680 = vmatprep.mubr.bf16.mxu0 0
      %681 = vmatmul.mubr.bf16.gmra.mxu0 %v476
      %v682 = vpop.f32.mrf.mxu0
      %v683 = vadd.f32 0.0, %v682
      %v684 = vpop.f32.mrf.mxu0
      %v685 = vpop.f32.mrf.mxu0
      %v686 = vadd.f32 0.0, %v685
      %v687 = vpop.f32.mrf.mxu0
      %688 = vmatprep.mubr.bf16.mxu0 0
      %689 = vmatmul.mubr.bf16.gmra.mxu0 %v477
      %v690 = vpop.f32.mrf.mxu0
      %v691 = vadd.f32 0.0, %v690
      %v692 = vpop.f32.mrf.mxu0
      %v693 = vpop.f32.mrf.mxu0
      %v694 = vadd.f32 0.0, %v693
      %v695 = vpop.f32.mrf.mxu0
      %696 = vmatprep.mubr.bf16.mxu0 0
      %697 = vmatmul.mubr.bf16.gmra.mxu0 %v478
      %v698 = vpop.f32.mrf.mxu0
      %v699 = vadd.f32 0.0, %v698
      %v700 = vpop.f32.mrf.mxu0
      %v701 = vpop.f32.mrf.mxu0
      %v702 = vadd.f32 0.0, %v701
      %v703 = vpop.f32.mrf.mxu0
      %704 = vdwg.mxu0
      %v721 = vunpack.c.l.b16 %v415
      %v722 = vunpack.c.l.b16 %v416
      %v723 = vunpack.c.l.b16 %v417
      %v724 = vunpack.c.l.b16 %v418
      %v725 = vunpack.c.l.b16 %v419
      %v726 = vunpack.c.l.b16 %v420
      %v727 = vunpack.c.l.b16 %v421
      %v728 = vunpack.c.l.b16 %v422
      %v729 = vunpack.c.l.b16 %v423
      %v730 = vunpack.c.l.b16 %v424
      %v731 = vunpack.c.l.b16 %v425
      %v732 = vunpack.c.l.b16 %v426
      %v733 = vunpack.c.l.b16 %v427
      %v734 = vunpack.c.l.b16 %v428
      %v735 = vunpack.c.l.b16 %v429
      %v736 = vunpack.c.l.b16 %v430
      %v737 = vpack.c.b16 %v722, %v721
      %v738 = vpack.c.b16 %v724, %v723
      %v739 = vpack.c.b16 %v726, %v725
      %v740 = vpack.c.b16 %v728, %v727
      %v741 = vpack.c.b16 %v730, %v729
      %v742 = vpack.c.b16 %v732, %v731
      %v743 = vpack.c.b16 %v734, %v733
      %v744 = vpack.c.b16 %v736, %v735
      %753 = vmatprep.subr.bf16.mxu0 0
      %754 = vmatpush1.bf16.msra.mxu0 %v744
      %755 = vmatprep.subr.bf16.mxu0 0
      %756 = vmatpush1.bf16.msra.mxu0 %v743
      %757 = vmatprep.subr.bf16.mxu0 0
      %758 = vmatpush1.bf16.msra.mxu0 %v742
      %759 = vmatprep.subr.bf16.mxu0 0
      %760 = vmatpush1.bf16.msra.mxu0 %v741
      %761 = vmatprep.subr.bf16.mxu0 0
      %762 = vmatpush1.bf16.msra.mxu0 %v740
      %763 = vmatprep.subr.bf16.mxu0 0
      %764 = vmatpush1.bf16.msra.mxu0 %v739
      %765 = vmatprep.subr.bf16.mxu0 0
      %766 = vmatpush1.bf16.msra.mxu0 %v738
      %767 = vmatprep.subr.bf16.mxu0 0
      %768 = vmatpush1.bf16.msra.mxu0 %v737
      %769 = vmatprep.subr.bf16.mxu0 0
      %770 = vmatpush2.bf16.msra.mxu0 0
      %771 = vmatprep.subr.bf16.mxu0 0
      %772 = vmatpush2.bf16.msra.mxu0 0
      %773 = vmatprep.subr.bf16.mxu0 0
      %774 = vmatpush2.bf16.msra.mxu0 0
      %775 = vmatprep.subr.bf16.mxu0 0
      %776 = vmatpush2.bf16.msra.mxu0 0
      %777 = vmatprep.subr.bf16.mxu0 0
      %778 = vmatpush2.bf16.msra.mxu0 0
      %779 = vmatprep.subr.bf16.mxu0 0
      %780 = vmatpush2.bf16.msra.mxu0 0
      %781 = vmatprep.subr.bf16.mxu0 0
      %782 = vmatpush2.bf16.msra.mxu0 0
      %783 = vmatprep.subr.bf16.mxu0 0
      %784 = vmatpush2.bf16.msra.mxu0 0
      %785 = vmatprep.mubr.bf16.mxu0 0
      %786 = vmatmul.mubr.bf16.gmra.mxu0 %v399
      %v787 = vpop.f32.mrf.mxu0
      %v788 = vadd.f32 %v579, %v787
      %v789 = vpop.f32.mrf.mxu0
      %v790 = vpop.f32.mrf.mxu0
      %v791 = vadd.f32 %v582, %v790
      %v792 = vpop.f32.mrf.mxu0
      %793 = vmatprep.mubr.bf16.mxu0 0
      %794 = vmatmul.mubr.bf16.gmra.mxu0 %v400
      %v795 = vpop.f32.mrf.mxu0
      %v796 = vadd.f32 %v587, %v795
      %v797 = vpop.f32.mrf.mxu0
      %v798 = vpop.f32.mrf.mxu0
      %v799 = vadd.f32 %v590, %v798
      %v800 = vpop.f32.mrf.mxu0
      %801 = vmatprep.mubr.bf16.mxu0 0
      %802 = vmatmul.mubr.bf16.gmra.mxu0 %v401
      %v803 = vpop.f32.mrf.mxu0
      %v804 = vadd.f32 %v595, %v803
      %v805 = vpop.f32.mrf.mxu0
      %v806 = vpop.f32.mrf.mxu0
      %v807 = vadd.f32 %v598, %v806
      %v808 = vpop.f32.mrf.mxu0
      %809 = vmatprep.mubr.bf16.mxu0 0
      %810 = vmatmul.mubr.bf16.gmra.mxu0 %v402
      %v811 = vpop.f32.mrf.mxu0
      %v812 = vadd.f32 %v603, %v811
      %v813 = vpop.f32.mrf.mxu0
      %v814 = vpop.f32.mrf.mxu0
      %v815 = vadd.f32 %v606, %v814
      %v816 = vpop.f32.mrf.mxu0
      %817 = vmatprep.mubr.bf16.mxu0 0
      %818 = vmatmul.mubr.bf16.gmra.mxu0 %v403
      %v819 = vpop.f32.mrf.mxu0
      %v820 = vadd.f32 %v611, %v819
      %v821 = vpop.f32.mrf.mxu0
      %v822 = vpop.f32.mrf.mxu0
      %v823 = vadd.f32 %v614, %v822
      %v824 = vpop.f32.mrf.mxu0
      %825 = vmatprep.mubr.bf16.mxu0 0
      %826 = vmatmul.mubr.bf16.gmra.mxu0 %v404
      %v827 = vpop.f32.mrf.mxu0
      %v828 = vadd.f32 %v619, %v827
      %v829 = vpop.f32.mrf.mxu0
      %v830 = vpop.f32.mrf.mxu0
      %v831 = vadd.f32 %v622, %v830
      %v832 = vpop.f32.mrf.mxu0
      %833 = vmatprep.mubr.bf16.mxu0 0
      %834 = vmatmul.mubr.bf16.gmra.mxu0 %v405
      %v835 = vpop.f32.mrf.mxu0
      %v836 = vadd.f32 %v627, %v835
      %v837 = vpop.f32.mrf.mxu0
      %v838 = vpop.f32.mrf.mxu0
      %v839 = vadd.f32 %v630, %v838
      %v840 = vpop.f32.mrf.mxu0
      %841 = vmatprep.mubr.bf16.mxu0 0
      %842 = vmatmul.mubr.bf16.gmra.mxu0 %v406
      %v843 = vpop.f32.mrf.mxu0
      %v844 = vadd.f32 %v635, %v843
      %v845 = vpop.f32.mrf.mxu0
      %v846 = vpop.f32.mrf.mxu0
      %v847 = vadd.f32 %v638, %v846
      %v848 = vpop.f32.mrf.mxu0
      %849 = vmatprep.mubr.bf16.mxu0 0
      %850 = vmatmul.mubr.bf16.gmra.mxu0 %v407
      %v851 = vpop.f32.mrf.mxu0
      %v852 = vadd.f32 %v643, %v851
      %v853 = vpop.f32.mrf.mxu0
      %v854 = vpop.f32.mrf.mxu0
      %v855 = vadd.f32 %v646, %v854
      %v856 = vpop.f32.mrf.mxu0
      %857 = vmatprep.mubr.bf16.mxu0 0
      %858 = vmatmul.mubr.bf16.gmra.mxu0 %v408
      %v859 = vpop.f32.mrf.mxu0
      %v860 = vadd.f32 %v651, %v859
      %v861 = vpop.f32.mrf.mxu0
      %v862 = vpop.f32.mrf.mxu0
      %v863 = vadd.f32 %v654, %v862
      %v864 = vpop.f32.mrf.mxu0
      %865 = vmatprep.mubr.bf16.mxu0 0
      %866 = vmatmul.mubr.bf16.gmra.mxu0 %v409
      %v867 = vpop.f32.mrf.mxu0
      %v868 = vadd.f32 %v659, %v867
      %v869 = vpop.f32.mrf.mxu0
      %v870 = vpop.f32.mrf.mxu0
      %v871 = vadd.f32 %v662, %v870
      %v872 = vpop.f32.mrf.mxu0
      %873 = vmatprep.mubr.bf16.mxu0 0
      %874 = vmatmul.mubr.bf16.gmra.mxu0 %v410
      %v875 = vpop.f32.mrf.mxu0
      %v876 = vadd.f32 %v667, %v875
      %v877 = vpop.f32.mrf.mxu0
      %v878 = vpop.f32.mrf.mxu0
      %v879 = vadd.f32 %v670, %v878
      %v880 = vpop.f32.mrf.mxu0
      %881 = vmatprep.mubr.bf16.mxu0 0
      %882 = vmatmul.mubr.bf16.gmra.mxu0 %v411
      %v883 = vpop.f32.mrf.mxu0
      %v884 = vadd.f32 %v675, %v883
      %v885 = vpop.f32.mrf.mxu0
      %v886 = vpop.f32.mrf.mxu0
      %v887 = vadd.f32 %v678, %v886
      %v888 = vpop.f32.mrf.mxu0
      %889 = vmatprep.mubr.bf16.mxu0 0
      %890 = vmatmul.mubr.bf16.gmra.mxu0 %v412
      %v891 = vpop.f32.mrf.mxu0
      %v892 = vadd.f32 %v683, %v891
      %v893 = vpop.f32.mrf.mxu0
      %v894 = vpop.f32.mrf.mxu0
      %v895 = vadd.f32 %v686, %v894
      %v896 = vpop.f32.mrf.mxu0
      %897 = vmatprep.mubr.bf16.mxu0 0
      %898 = vmatmul.mubr.bf16.gmra.mxu0 %v413
      %v899 = vpop.f32.mrf.mxu0
      %v900 = vadd.f32 %v691, %v899
      %v901 = vpop.f32.mrf.mxu0
      %v902 = vpop.f32.mrf.mxu0
      %v903 = vadd.f32 %v694, %v902
      %v904 = vpop.f32.mrf.mxu0
      %905 = vmatprep.mubr.bf16.mxu0 0
      %906 = vmatmul.mubr.bf16.gmra.mxu0 %v414
      %v907 = vpop.f32.mrf.mxu0
      %v908 = vadd.f32 %v699, %v907
      %v909 = vpop.f32.mrf.mxu0
      %v910 = vpop.f32.mrf.mxu0
      %v911 = vadd.f32 %v702, %v910
      %v912 = vpop.f32.mrf.mxu0
      %913 = vdwg.mxu0
      %v914 = vld [vmem:[#allocation2 + $0x2] sm:$0xff]
      %v915 = vld [vmem:[#allocation2 + $0xa] sm:$0xff]
      %v916 = vld [vmem:[#allocation2 + $0x1a] sm:$0xff]
      %v917 = vld [vmem:[#allocation2 + $0x22] sm:$0xff]
      %v918 = vld [vmem:[#allocation2 + $0x32] sm:$0xff]
      %v919 = vld [vmem:[#allocation2 + $0x3a] sm:$0xff]
      %v920 = vld [vmem:[#allocation2 + $0x4a] sm:$0xff]
      %v921 = vld [vmem:[#allocation2 + $0x52] sm:$0xff]
      %v922 = vld [vmem:[#allocation2 + $0x62] sm:$0xff]
      %v923 = vld [vmem:[#allocation2 + $0x6a] sm:$0xff]
      %v924 = vld [vmem:[#allocation2 + $0x7a] sm:$0xff]
      %v925 = vld [vmem:[#allocation2 + $0x82] sm:$0xff]
      %v926 = vld [vmem:[#allocation2 + $0x92] sm:$0xff]
      %v927 = vld [vmem:[#allocation2 + $0x9a] sm:$0xff]
      %v928 = vld [vmem:[#allocation2 + $0xaa] sm:$0xff]
      %v929 = vld [vmem:[#allocation2 + $0xb2] sm:$0xff]
      %v930 = vld [vmem:[#allocation2 + $0xc2] sm:$0xff]
      %v931 = vld [vmem:[#allocation2 + $0xca] sm:$0xff]
      %v932 = vld [vmem:[#allocation2 + $0xda] sm:$0xff]
      %v933 = vld [vmem:[#allocation2 + $0xe2] sm:$0xff]
      %v934 = vld [vmem:[#allocation2 + $0xf2] sm:$0xff]
      %v935 = vld [vmem:[#allocation2 + $0xfa] sm:$0xff]
      %v936 = vld [vmem:[#allocation2 + $0x10a] sm:$0xff]
      %v937 = vld [vmem:[#allocation2 + $0x112] sm:$0xff]
      %v938 = vld [vmem:[#allocation2 + $0x122] sm:$0xff]
      %v939 = vld [vmem:[#allocation2 + $0x12a] sm:$0xff]
      %v940 = vld [vmem:[#allocation2 + $0x13a] sm:$0xff]
      %v941 = vld [vmem:[#allocation2 + $0x142] sm:$0xff]
      %v942 = vld [vmem:[#allocation2 + $0x152] sm:$0xff]
      %v943 = vld [vmem:[#allocation2 + $0x15a] sm:$0xff]
      %v944 = vld [vmem:[#allocation2 + $0x16a] sm:$0xff]
      %v945 = vld [vmem:[#allocation2 + $0x172] sm:$0xff]
      %v946 = vpack.c.bf16 %v915, %v914
      %v947 = vpack.c.bf16 %v917, %v916
      %v948 = vpack.c.bf16 %v919, %v918
      %v949 = vpack.c.bf16 %v921, %v920
      %v950 = vpack.c.bf16 %v923, %v922
      %v951 = vpack.c.bf16 %v925, %v924
      %v952 = vpack.c.bf16 %v927, %v926
      %v953 = vpack.c.bf16 %v929, %v928
      %v954 = vpack.c.bf16 %v931, %v930
      %v955 = vpack.c.bf16 %v933, %v932
      %v956 = vpack.c.bf16 %v935, %v934
      %v957 = vpack.c.bf16 %v937, %v936
      %v958 = vpack.c.bf16 %v939, %v938
      %v959 = vpack.c.bf16 %v941, %v940
      %v960 = vpack.c.bf16 %v943, %v942
      %v961 = vpack.c.bf16 %v945, %v944
      %s962 = scalar_lea.vmem %s3, 128
      %v963 = vld [vmem:[%s962] sm:$0xf]
      %v964 = vld [vmem:[%s962 + $0x4] sm:$0xf]
      %v965 = vld [vmem:[%s962 + $0x8] sm:$0xf]
      %v966 = vld [vmem:[%s962 + $0xc] sm:$0xf]
      %v967 = vld [vmem:[%s962 + $0x10] sm:$0xf]
      %v968 = vld [vmem:[%s962 + $0x14] sm:$0xf]
      %v969 = vld [vmem:[%s962 + $0x18] sm:$0xf]
      %v970 = vld [vmem:[%s962 + $0x1c] sm:$0xf]
      %v971 = vld [vmem:[%s962 + $0x20] sm:$0xf]
      %v972 = vld [vmem:[%s962 + $0x24] sm:$0xf]
      %v973 = vld [vmem:[%s962 + $0x28] sm:$0xf]
      %v974 = vld [vmem:[%s962 + $0x2c] sm:$0xf]
      %v975 = vld [vmem:[%s962 + $0x30] sm:$0xf]
      %v976 = vld [vmem:[%s962 + $0x34] sm:$0xf]
      %v977 = vld [vmem:[%s962 + $0x38] sm:$0xf]
      %v978 = vld [vmem:[%s962 + $0x3c] sm:$0xf]
      %v995 = vunpack.c.l.b16 %v963
      %v996 = vunpack.c.l.b16 %v964
      %v997 = vunpack.c.l.b16 %v965
      %v998 = vunpack.c.l.b16 %v966
      %v999 = vunpack.c.l.b16 %v967
      %v1000 = vunpack.c.l.b16 %v968
      %v1001 = vunpack.c.l.b16 %v969
      %v1002 = vunpack.c.l.b16 %v970
      %v1003 = vunpack.c.l.b16 %v971
      %v1004 = vunpack.c.l.b16 %v972
      %v1005 = vunpack.c.l.b16 %v973
      %v1006 = vunpack.c.l.b16 %v974
      %v1007 = vunpack.c.l.b16 %v975
      %v1008 = vunpack.c.l.b16 %v976
      %v1009 = vunpack.c.l.b16 %v977
      %v1010 = vunpack.c.l.b16 %v978
      %v1011 = vpack.c.b16 %v996, %v995
      %v1012 = vpack.c.b16 %v998, %v997
      %v1013 = vpack.c.b16 %v1000, %v999
      %v1014 = vpack.c.b16 %v1002, %v1001
      %v1015 = vpack.c.b16 %v1004, %v1003
      %v1016 = vpack.c.b16 %v1006, %v1005
      %v1017 = vpack.c.b16 %v1008, %v1007
      %v1018 = vpack.c.b16 %v1010, %v1009
      %1027 = vmatprep.subr.bf16.mxu0 0
      %1028 = vmatpush1.bf16.msra.mxu0 %v1018
      %1029 = vmatprep.subr.bf16.mxu0 0
      %1030 = vmatpush1.bf16.msra.mxu0 %v1017
      %1031 = vmatprep.subr.bf16.mxu0 0
      %1032 = vmatpush1.bf16.msra.mxu0 %v1016
      %1033 = vmatprep.subr.bf16.mxu0 0
      %1034 = vmatpush1.bf16.msra.mxu0 %v1015
      %1035 = vmatprep.subr.bf16.mxu0 0
      %1036 = vmatpush1.bf16.msra.mxu0 %v1014
      %1037 = vmatprep.subr.bf16.mxu0 0
      %1038 = vmatpush1.bf16.msra.mxu0 %v1013
      %1039 = vmatprep.subr.bf16.mxu0 0
      %1040 = vmatpush1.bf16.msra.mxu0 %v1012
      %1041 = vmatprep.subr.bf16.mxu0 0
      %1042 = vmatpush1.bf16.msra.mxu0 %v1011
      %1043 = vmatprep.subr.bf16.mxu0 0
      %1044 = vmatpush2.bf16.msra.mxu0 0
      %1045 = vmatprep.subr.bf16.mxu0 0
      %1046 = vmatpush2.bf16.msra.mxu0 0
      %1047 = vmatprep.subr.bf16.mxu0 0
      %1048 = vmatpush2.bf16.msra.mxu0 0
      %1049 = vmatprep.subr.bf16.mxu0 0
      %1050 = vmatpush2.bf16.msra.mxu0 0
      %1051 = vmatprep.subr.bf16.mxu0 0
      %1052 = vmatpush2.bf16.msra.mxu0 0
      %1053 = vmatprep.subr.bf16.mxu0 0
      %1054 = vmatpush2.bf16.msra.mxu0 0
      %1055 = vmatprep.subr.bf16.mxu0 0
      %1056 = vmatpush2.bf16.msra.mxu0 0
      %1057 = vmatprep.subr.bf16.mxu0 0
      %1058 = vmatpush2.bf16.msra.mxu0 0
      %1059 = vmatprep.mubr.bf16.mxu0 0
      %1060 = vmatmul.mubr.bf16.gmra.mxu0 %v946
      %v1061 = vpop.f32.mrf.mxu0
      %v1062 = vadd.f32 0.0, %v1061
      %v1063 = vpop.f32.mrf.mxu0
      %v1064 = vpop.f32.mrf.mxu0
      %v1065 = vadd.f32 0.0, %v1064
      %v1066 = vpop.f32.mrf.mxu0
      %1067 = vmatprep.mubr.bf16.mxu0 0
      %1068 = vmatmul.mubr.bf16.gmra.mxu0 %v947
      %v1069 = vpop.f32.mrf.mxu0
      %v1070 = vadd.f32 0.0, %v1069
      %v1071 = vpop.f32.mrf.mxu0
      %v1072 = vpop.f32.mrf.mxu0
      %v1073 = vadd.f32 0.0, %v1072
      %v1074 = vpop.f32.mrf.mxu0
      %1075 = vmatprep.mubr.bf16.mxu0 0
      %1076 = vmatmul.mubr.bf16.gmra.mxu0 %v948
      %v1077 = vpop.f32.mrf.mxu0
      %v1078 = vadd.f32 0.0, %v1077
      %v1079 = vpop.f32.mrf.mxu0
      %v1080 = vpop.f32.mrf.mxu0
      %v1081 = vadd.f32 0.0, %v1080
      %v1082 = vpop.f32.mrf.mxu0
      %1083 = vmatprep.mubr.bf16.mxu0 0
      %1084 = vmatmul.mubr.bf16.gmra.mxu0 %v949
      %v1085 = vpop.f32.mrf.mxu0
      %v1086 = vadd.f32 0.0, %v1085
      %v1087 = vpop.f32.mrf.mxu0
      %v1088 = vpop.f32.mrf.mxu0
      %v1089 = vadd.f32 0.0, %v1088
      %v1090 = vpop.f32.mrf.mxu0
      %1091 = vmatprep.mubr.bf16.mxu0 0
      %1092 = vmatmul.mubr.bf16.gmra.mxu0 %v950
      %v1093 = vpop.f32.mrf.mxu0
      %v1094 = vadd.f32 0.0, %v1093
      %v1095 = vpop.f32.mrf.mxu0
      %v1096 = vpop.f32.mrf.mxu0
      %v1097 = vadd.f32 0.0, %v1096
      %v1098 = vpop.f32.mrf.mxu0
      %1099 = vmatprep.mubr.bf16.mxu0 0
      %1100 = vmatmul.mubr.bf16.gmra.mxu0 %v951
      %v1101 = vpop.f32.mrf.mxu0
      %v1102 = vadd.f32 0.0, %v1101
      %v1103 = vpop.f32.mrf.mxu0
      %v1104 = vpop.f32.mrf.mxu0
      %v1105 = vadd.f32 0.0, %v1104
      %v1106 = vpop.f32.mrf.mxu0
      %1107 = vmatprep.mubr.bf16.mxu0 0
      %1108 = vmatmul.mubr.bf16.gmra.mxu0 %v952
      %v1109 = vpop.f32.mrf.mxu0
      %v1110 = vadd.f32 0.0, %v1109
      %v1111 = vpop.f32.mrf.mxu0
      %v1112 = vpop.f32.mrf.mxu0
      %v1113 = vadd.f32 0.0, %v1112
      %v1114 = vpop.f32.mrf.mxu0
      %1115 = vmatprep.mubr.bf16.mxu0 0
      %1116 = vmatmul.mubr.bf16.gmra.mxu0 %v953
      %v1117 = vpop.f32.mrf.mxu0
      %v1118 = vadd.f32 0.0, %v1117
      %v1119 = vpop.f32.mrf.mxu0
      %v1120 = vpop.f32.mrf.mxu0
      %v1121 = vadd.f32 0.0, %v1120
      %v1122 = vpop.f32.mrf.mxu0
      %1123 = vmatprep.mubr.bf16.mxu0 0
      %1124 = vmatmul.mubr.bf16.gmra.mxu0 %v954
      %v1125 = vpop.f32.mrf.mxu0
      %v1126 = vadd.f32 0.0, %v1125
      %v1127 = vpop.f32.mrf.mxu0
      %v1128 = vpop.f32.mrf.mxu0
      %v1129 = vadd.f32 0.0, %v1128
      %v1130 = vpop.f32.mrf.mxu0
      %1131 = vmatprep.mubr.bf16.mxu0 0
      %1132 = vmatmul.mubr.bf16.gmra.mxu0 %v955
      %v1133 = vpop.f32.mrf.mxu0
      %v1134 = vadd.f32 0.0, %v1133
      %v1135 = vpop.f32.mrf.mxu0
      %v1136 = vpop.f32.mrf.mxu0
      %v1137 = vadd.f32 0.0, %v1136
      %v1138 = vpop.f32.mrf.mxu0
      %1139 = vmatprep.mubr.bf16.mxu0 0
      %1140 = vmatmul.mubr.bf16.gmra.mxu0 %v956
      %v1141 = vpop.f32.mrf.mxu0
      %v1142 = vadd.f32 0.0, %v1141
      %v1143 = vpop.f32.mrf.mxu0
      %v1144 = vpop.f32.mrf.mxu0
      %v1145 = vadd.f32 0.0, %v1144
      %v1146 = vpop.f32.mrf.mxu0
      %1147 = vmatprep.mubr.bf16.mxu0 0
      %1148 = vmatmul.mubr.bf16.gmra.mxu0 %v957
      %v1149 = vpop.f32.mrf.mxu0
      %v1150 = vadd.f32 0.0, %v1149
      %v1151 = vpop.f32.mrf.mxu0
      %v1152 = vpop.f32.mrf.mxu0
      %v1153 = vadd.f32 0.0, %v1152
      %v1154 = vpop.f32.mrf.mxu0
      %1155 = vmatprep.mubr.bf16.mxu0 0
      %1156 = vmatmul.mubr.bf16.gmra.mxu0 %v958
      %v1157 = vpop.f32.mrf.mxu0
      %v1158 = vadd.f32 0.0, %v1157
      %v1159 = vpop.f32.mrf.mxu0
      %v1160 = vpop.f32.mrf.mxu0
      %v1161 = vadd.f32 0.0, %v1160
      %v1162 = vpop.f32.mrf.mxu0
      %1163 = vmatprep.mubr.bf16.mxu0 0
      %1164 = vmatmul.mubr.bf16.gmra.mxu0 %v959
      %v1165 = vpop.f32.mrf.mxu0
      %v1166 = vadd.f32 0.0, %v1165
      %v1167 = vpop.f32.mrf.mxu0
      %v1168 = vpop.f32.mrf.mxu0
      %v1169 = vadd.f32 0.0, %v1168
      %v1170 = vpop.f32.mrf.mxu0
      %1171 = vmatprep.mubr.bf16.mxu0 0
      %1172 = vmatmul.mubr.bf16.gmra.mxu0 %v960
      %v1173 = vpop.f32.mrf.mxu0
      %v1174 = vadd.f32 0.0, %v1173
      %v1175 = vpop.f32.mrf.mxu0
      %v1176 = vpop.f32.mrf.mxu0
      %v1177 = vadd.f32 0.0, %v1176
      %v1178 = vpop.f32.mrf.mxu0
      %1179 = vmatprep.mubr.bf16.mxu0 0
      %1180 = vmatmul.mubr.bf16.gmra.mxu0 %v961
      %v1181 = vpop.f32.mrf.mxu0
      %v1182 = vadd.f32 0.0, %v1181
      %v1183 = vpop.f32.mrf.mxu0
      %v1184 = vpop.f32.mrf.mxu0
      %v1185 = vadd.f32 0.0, %v1184
      %v1186 = vpop.f32.mrf.mxu0
      %1187 = vdwg.mxu0
      %v1188 = vadd.f32 %v788, %v1062
      %v1189 = vadd.f32 %v791, %v1065
      %v1190 = vadd.f32 %v796, %v1070
      %v1191 = vadd.f32 %v799, %v1073
      %v1192 = vadd.f32 %v804, %v1078
      %v1193 = vadd.f32 %v807, %v1081
      %v1194 = vadd.f32 %v812, %v1086
      %v1195 = vadd.f32 %v815, %v1089
      %v1196 = vadd.f32 %v820, %v1094
      %v1197 = vadd.f32 %v823, %v1097
      %v1198 = vadd.f32 %v828, %v1102
      %v1199 = vadd.f32 %v831, %v1105
      %v1200 = vadd.f32 %v836, %v1110
      %v1201 = vadd.f32 %v839, %v1113
      %v1202 = vadd.f32 %v844, %v1118
      %v1203 = vadd.f32 %v847, %v1121
      %v1204 = vadd.f32 %v852, %v1126
      %v1205 = vadd.f32 %v855, %v1129
      %v1206 = vadd.f32 %v860, %v1134
      %v1207 = vadd.f32 %v863, %v1137
      %v1208 = vadd.f32 %v868, %v1142
      %v1209 = vadd.f32 %v871, %v1145
      %v1210 = vadd.f32 %v876, %v1150
      %v1211 = vadd.f32 %v879, %v1153
      %v1212 = vadd.f32 %v884, %v1158
      %v1213 = vadd.f32 %v887, %v1161
      %v1214 = vadd.f32 %v892, %v1166
      %v1215 = vadd.f32 %v895, %v1169
      %v1216 = vadd.f32 %v900, %v1174
      %v1217 = vadd.f32 %v903, %v1177
      %v1218 = vadd.f32 %v908, %v1182
      %v1219 = vadd.f32 %v911, %v1185
      %v1220 = vld [vmem:[%s334] sm:$0xff]
      %v1221 = vld [vmem:[%s334 + $0x8] sm:$0xff]
      %v1222 = vld [vmem:[%s334 + $0x18] sm:$0xff]
      %v1223 = vld [vmem:[%s334 + $0x20] sm:$0xff]
      %v1224 = vld [vmem:[%s334 + $0x30] sm:$0xff]
      %v1225 = vld [vmem:[%s334 + $0x38] sm:$0xff]
      %v1226 = vld [vmem:[%s334 + $0x48] sm:$0xff]
      %v1227 = vld [vmem:[%s334 + $0x50] sm:$0xff]
      %v1228 = vld [vmem:[%s334 + $0x60] sm:$0xff]
      %v1229 = vld [vmem:[%s334 + $0x68] sm:$0xff]
      %v1230 = vld [vmem:[%s334 + $0x78] sm:$0xff]
      %v1231 = vld [vmem:[%s334 + $0x80] sm:$0xff]
      %v1232 = vld [vmem:[%s334 + $0x90] sm:$0xff]
      %v1233 = vld [vmem:[%s334 + $0x98] sm:$0xff]
      %v1234 = vld [vmem:[%s334 + $0xa8] sm:$0xff]
      %v1235 = vld [vmem:[%s334 + $0xb0] sm:$0xff]
      %v1236 = vld [vmem:[%s334 + $0xc0] sm:$0xff]
      %v1237 = vld [vmem:[%s334 + $0xc8] sm:$0xff]
      %v1238 = vld [vmem:[%s334 + $0xd8] sm:$0xff]
      %v1239 = vld [vmem:[%s334 + $0xe0] sm:$0xff]
      %v1240 = vld [vmem:[%s334 + $0xf0] sm:$0xff]
      %v1241 = vld [vmem:[%s334 + $0xf8] sm:$0xff]
      %v1242 = vld [vmem:[%s334 + $0x108] sm:$0xff]
      %v1243 = vld [vmem:[%s334 + $0x110] sm:$0xff]
      %v1244 = vld [vmem:[%s334 + $0x120] sm:$0xff]
      %v1245 = vld [vmem:[%s334 + $0x128] sm:$0xff]
      %v1246 = vld [vmem:[%s334 + $0x138] sm:$0xff]
      %v1247 = vld [vmem:[%s334 + $0x140] sm:$0xff]
      %v1248 = vld [vmem:[%s334 + $0x150] sm:$0xff]
      %v1249 = vld [vmem:[%s334 + $0x158] sm:$0xff]
      %v1250 = vld [vmem:[%s334 + $0x168] sm:$0xff]
      %v1251 = vld [vmem:[%s334 + $0x170] sm:$0xff]
      %v1252 = vpack.c.bf16 %v1221, %v1220
      %v1253 = vpack.c.bf16 %v1223, %v1222
      %v1254 = vpack.c.bf16 %v1225, %v1224
      %v1255 = vpack.c.bf16 %v1227, %v1226
      %v1256 = vpack.c.bf16 %v1229, %v1228
      %v1257 = vpack.c.bf16 %v1231, %v1230
      %v1258 = vpack.c.bf16 %v1233, %v1232
      %v1259 = vpack.c.bf16 %v1235, %v1234
      %v1260 = vpack.c.bf16 %v1237, %v1236
      %v1261 = vpack.c.bf16 %v1239, %v1238
      %v1262 = vpack.c.bf16 %v1241, %v1240
      %v1263 = vpack.c.bf16 %v1243, %v1242
      %v1264 = vpack.c.bf16 %v1245, %v1244
      %v1265 = vpack.c.bf16 %v1247, %v1246
      %v1266 = vpack.c.bf16 %v1249, %v1248
      %v1267 = vpack.c.bf16 %v1251, %v1250
      %s1268 = scalar_lea.vmem %s3, 192
      %v1269 = vld [vmem:[%s1268] sm:$0xf]
      %v1270 = vld [vmem:[%s1268 + $0x4] sm:$0xf]
      %v1271 = vld [vmem:[%s1268 + $0x8] sm:$0xf]
      %v1272 = vld [vmem:[%s1268 + $0xc] sm:$0xf]
      %v1273 = vld [vmem:[%s1268 + $0x10] sm:$0xf]
      %v1274 = vld [vmem:[%s1268 + $0x14] sm:$0xf]
      %v1275 = vld [vmem:[%s1268 + $0x18] sm:$0xf]
      %v1276 = vld [vmem:[%s1268 + $0x1c] sm:$0xf]
      %v1277 = vld [vmem:[%s1268 + $0x20] sm:$0xf]
      %v1278 = vld [vmem:[%s1268 + $0x24] sm:$0xf]
      %v1279 = vld [vmem:[%s1268 + $0x28] sm:$0xf]
      %v1280 = vld [vmem:[%s1268 + $0x2c] sm:$0xf]
      %v1281 = vld [vmem:[%s1268 + $0x30] sm:$0xf]
      %v1282 = vld [vmem:[%s1268 + $0x34] sm:$0xf]
      %v1283 = vld [vmem:[%s1268 + $0x38] sm:$0xf]
      %v1284 = vld [vmem:[%s1268 + $0x3c] sm:$0xf]
      %v1301 = vunpack.c.l.b16 %v1269
      %v1302 = vunpack.c.l.b16 %v1270
      %v1303 = vunpack.c.l.b16 %v1271
      %v1304 = vunpack.c.l.b16 %v1272
      %v1305 = vunpack.c.l.b16 %v1273
      %v1306 = vunpack.c.l.b16 %v1274
      %v1307 = vunpack.c.l.b16 %v1275
      %v1308 = vunpack.c.l.b16 %v1276
      %v1309 = vunpack.c.l.b16 %v1277
      %v1310 = vunpack.c.l.b16 %v1278
      %v1311 = vunpack.c.l.b16 %v1279
      %v1312 = vunpack.c.l.b16 %v1280
      %v1313 = vunpack.c.l.b16 %v1281
      %v1314 = vunpack.c.l.b16 %v1282
      %v1315 = vunpack.c.l.b16 %v1283
      %v1316 = vunpack.c.l.b16 %v1284
      %v1317 = vpack.c.b16 %v1302, %v1301
      %v1318 = vpack.c.b16 %v1304, %v1303
      %v1319 = vpack.c.b16 %v1306, %v1305
      %v1320 = vpack.c.b16 %v1308, %v1307
      %v1321 = vpack.c.b16 %v1310, %v1309
      %v1322 = vpack.c.b16 %v1312, %v1311
      %v1323 = vpack.c.b16 %v1314, %v1313
      %v1324 = vpack.c.b16 %v1316, %v1315
      %1333 = vmatprep.subr.bf16.mxu0 0
      %1334 = vmatpush1.bf16.msra.mxu0 %v1324
      %1335 = vmatprep.subr.bf16.mxu0 0
      %1336 = vmatpush1.bf16.msra.mxu0 %v1323
      %1337 = vmatprep.subr.bf16.mxu0 0
      %1338 = vmatpush1.bf16.msra.mxu0 %v1322
      %1339 = vmatprep.subr.bf16.mxu0 0
      %1340 = vmatpush1.bf16.msra.mxu0 %v1321
      %1341 = vmatprep.subr.bf16.mxu0 0
      %1342 = vmatpush1.bf16.msra.mxu0 %v1320
      %1343 = vmatprep.subr.bf16.mxu0 0
      %1344 = vmatpush1.bf16.msra.mxu0 %v1319
      %1345 = vmatprep.subr.bf16.mxu0 0
      %1346 = vmatpush1.bf16.msra.mxu0 %v1318
      %1347 = vmatprep.subr.bf16.mxu0 0
      %1348 = vmatpush1.bf16.msra.mxu0 %v1317
      %1349 = vmatprep.subr.bf16.mxu0 0
      %1350 = vmatpush2.bf16.msra.mxu0 0
      %1351 = vmatprep.subr.bf16.mxu0 0
      %1352 = vmatpush2.bf16.msra.mxu0 0
      %1353 = vmatprep.subr.bf16.mxu0 0
      %1354 = vmatpush2.bf16.msra.mxu0 0
      %1355 = vmatprep.subr.bf16.mxu0 0
      %1356 = vmatpush2.bf16.msra.mxu0 0
      %1357 = vmatprep.subr.bf16.mxu0 0
      %1358 = vmatpush2.bf16.msra.mxu0 0
      %1359 = vmatprep.subr.bf16.mxu0 0
      %1360 = vmatpush2.bf16.msra.mxu0 0
      %1361 = vmatprep.subr.bf16.mxu0 0
      %1362 = vmatpush2.bf16.msra.mxu0 0
      %1363 = vmatprep.subr.bf16.mxu0 0
      %1364 = vmatpush2.bf16.msra.mxu0 0
      %1365 = vmatprep.mubr.bf16.mxu0 0
      %1366 = vmatmul.mubr.bf16.gmra.mxu0 %v1252
      %v1367 = vpop.f32.mrf.mxu0
      %v1368 = vadd.f32 0.0, %v1367
      %v1369 = vpop.f32.mrf.mxu0
      %v1370 = vpop.f32.mrf.mxu0
      %v1371 = vadd.f32 0.0, %v1370
      %v1372 = vpop.f32.mrf.mxu0
      %1373 = vmatprep.mubr.bf16.mxu0 0
      %1374 = vmatmul.mubr.bf16.gmra.mxu0 %v1253
      %v1375 = vpop.f32.mrf.mxu0
      %v1376 = vadd.f32 0.0, %v1375
      %v1377 = vpop.f32.mrf.mxu0
      %v1378 = vpop.f32.mrf.mxu0
      %v1379 = vadd.f32 0.0, %v1378
      %v1380 = vpop.f32.mrf.mxu0
      %1381 = vmatprep.mubr.bf16.mxu0 0
      %1382 = vmatmul.mubr.bf16.gmra.mxu0 %v1254
      %v1383 = vpop.f32.mrf.mxu0
      %v1384 = vadd.f32 0.0, %v1383
      %v1385 = vpop.f32.mrf.mxu0
      %v1386 = vpop.f32.mrf.mxu0
      %v1387 = vadd.f32 0.0, %v1386
      %v1388 = vpop.f32.mrf.mxu0
      %1389 = vmatprep.mubr.bf16.mxu0 0
      %1390 = vmatmul.mubr.bf16.gmra.mxu0 %v1255
      %v1391 = vpop.f32.mrf.mxu0
      %v1392 = vadd.f32 0.0, %v1391
      %v1393 = vpop.f32.mrf.mxu0
      %v1394 = vpop.f32.mrf.mxu0
      %v1395 = vadd.f32 0.0, %v1394
      %v1396 = vpop.f32.mrf.mxu0
      %1397 = vmatprep.mubr.bf16.mxu0 0
      %1398 = vmatmul.mubr.bf16.gmra.mxu0 %v1256
      %v1399 = vpop.f32.mrf.mxu0
      %v1400 = vadd.f32 0.0, %v1399
      %v1401 = vpop.f32.mrf.mxu0
      %v1402 = vpop.f32.mrf.mxu0
      %v1403 = vadd.f32 0.0, %v1402
      %v1404 = vpop.f32.mrf.mxu0
      %1405 = vmatprep.mubr.bf16.mxu0 0
      %1406 = vmatmul.mubr.bf16.gmra.mxu0 %v1257
      %v1407 = vpop.f32.mrf.mxu0
      %v1408 = vadd.f32 0.0, %v1407
      %v1409 = vpop.f32.mrf.mxu0
      %v1410 = vpop.f32.mrf.mxu0
      %v1411 = vadd.f32 0.0, %v1410
      %v1412 = vpop.f32.mrf.mxu0
      %1413 = vmatprep.mubr.bf16.mxu0 0
      %1414 = vmatmul.mubr.bf16.gmra.mxu0 %v1258
      %v1415 = vpop.f32.mrf.mxu0
      %v1416 = vadd.f32 0.0, %v1415
      %v1417 = vpop.f32.mrf.mxu0
      %v1418 = vpop.f32.mrf.mxu0
      %v1419 = vadd.f32 0.0, %v1418
      %v1420 = vpop.f32.mrf.mxu0
      %1421 = vmatprep.mubr.bf16.mxu0 0
      %1422 = vmatmul.mubr.bf16.gmra.mxu0 %v1259
      %v1423 = vpop.f32.mrf.mxu0
      %v1424 = vadd.f32 0.0, %v1423
      %v1425 = vpop.f32.mrf.mxu0
      %v1426 = vpop.f32.mrf.mxu0
      %v1427 = vadd.f32 0.0, %v1426
      %v1428 = vpop.f32.mrf.mxu0
      %1429 = vmatprep.mubr.bf16.mxu0 0
      %1430 = vmatmul.mubr.bf16.gmra.mxu0 %v1260
      %v1431 = vpop.f32.mrf.mxu0
      %v1432 = vadd.f32 0.0, %v1431
      %v1433 = vpop.f32.mrf.mxu0
      %v1434 = vpop.f32.mrf.mxu0
      %v1435 = vadd.f32 0.0, %v1434
      %v1436 = vpop.f32.mrf.mxu0
      %1437 = vmatprep.mubr.bf16.mxu0 0
      %1438 = vmatmul.mubr.bf16.gmra.mxu0 %v1261
      %v1439 = vpop.f32.mrf.mxu0
      %v1440 = vadd.f32 0.0, %v1439
      %v1441 = vpop.f32.mrf.mxu0
      %v1442 = vpop.f32.mrf.mxu0
      %v1443 = vadd.f32 0.0, %v1442
      %v1444 = vpop.f32.mrf.mxu0
      %1445 = vmatprep.mubr.bf16.mxu0 0
      %1446 = vmatmul.mubr.bf16.gmra.mxu0 %v1262
      %v1447 = vpop.f32.mrf.mxu0
      %v1448 = vadd.f32 0.0, %v1447
      %v1449 = vpop.f32.mrf.mxu0
      %v1450 = vpop.f32.mrf.mxu0
      %v1451 = vadd.f32 0.0, %v1450
      %v1452 = vpop.f32.mrf.mxu0
      %1453 = vmatprep.mubr.bf16.mxu0 0
      %1454 = vmatmul.mubr.bf16.gmra.mxu0 %v1263
      %v1455 = vpop.f32.mrf.mxu0
      %v1456 = vadd.f32 0.0, %v1455
      %v1457 = vpop.f32.mrf.mxu0
      %v1458 = vpop.f32.mrf.mxu0
      %v1459 = vadd.f32 0.0, %v1458
      %v1460 = vpop.f32.mrf.mxu0
      %1461 = vmatprep.mubr.bf16.mxu0 0
      %1462 = vmatmul.mubr.bf16.gmra.mxu0 %v1264
      %v1463 = vpop.f32.mrf.mxu0
      %v1464 = vadd.f32 0.0, %v1463
      %v1465 = vpop.f32.mrf.mxu0
      %v1466 = vpop.f32.mrf.mxu0
      %v1467 = vadd.f32 0.0, %v1466
      %v1468 = vpop.f32.mrf.mxu0
      %1469 = vmatprep.mubr.bf16.mxu0 0
      %1470 = vmatmul.mubr.bf16.gmra.mxu0 %v1265
      %v1471 = vpop.f32.mrf.mxu0
      %v1472 = vadd.f32 0.0, %v1471
      %v1473 = vpop.f32.mrf.mxu0
      %v1474 = vpop.f32.mrf.mxu0
      %v1475 = vadd.f32 0.0, %v1474
      %v1476 = vpop.f32.mrf.mxu0
      %1477 = vmatprep.mubr.bf16.mxu0 0
      %1478 = vmatmul.mubr.bf16.gmra.mxu0 %v1266
      %v1479 = vpop.f32.mrf.mxu0
      %v1480 = vadd.f32 0.0, %v1479
      %v1481 = vpop.f32.mrf.mxu0
      %v1482 = vpop.f32.mrf.mxu0
      %v1483 = vadd.f32 0.0, %v1482
      %v1484 = vpop.f32.mrf.mxu0
      %1485 = vmatprep.mubr.bf16.mxu0 0
      %1486 = vmatmul.mubr.bf16.gmra.mxu0 %v1267
      %v1487 = vpop.f32.mrf.mxu0
      %v1488 = vadd.f32 0.0, %v1487
      %v1489 = vpop.f32.mrf.mxu0
      %v1490 = vpop.f32.mrf.mxu0
      %v1491 = vadd.f32 0.0, %v1490
      %v1492 = vpop.f32.mrf.mxu0
      %1493 = vdwg.mxu0
      %v1494 = vadd.f32 %v1188, %v1368
      %v1495 = vadd.f32 %v1189, %v1371
      %v1496 = vadd.f32 %v1190, %v1376
      %v1497 = vadd.f32 %v1191, %v1379
      %v1498 = vadd.f32 %v1192, %v1384
      %v1499 = vadd.f32 %v1193, %v1387
      %v1500 = vadd.f32 %v1194, %v1392
      %v1501 = vadd.f32 %v1195, %v1395
      %v1502 = vadd.f32 %v1196, %v1400
      %v1503 = vadd.f32 %v1197, %v1403
      %v1504 = vadd.f32 %v1198, %v1408
      %v1505 = vadd.f32 %v1199, %v1411
      %v1506 = vadd.f32 %v1200, %v1416
      %v1507 = vadd.f32 %v1201, %v1419
      %v1508 = vadd.f32 %v1202, %v1424
      %v1509 = vadd.f32 %v1203, %v1427
      %v1510 = vadd.f32 %v1204, %v1432
      %v1511 = vadd.f32 %v1205, %v1435
      %v1512 = vadd.f32 %v1206, %v1440
      %v1513 = vadd.f32 %v1207, %v1443
      %v1514 = vadd.f32 %v1208, %v1448
      %v1515 = vadd.f32 %v1209, %v1451
      %v1516 = vadd.f32 %v1210, %v1456
      %v1517 = vadd.f32 %v1211, %v1459
      %v1518 = vadd.f32 %v1212, %v1464
      %v1519 = vadd.f32 %v1213, %v1467
      %v1520 = vadd.f32 %v1214, %v1472
      %v1521 = vadd.f32 %v1215, %v1475
      %v1522 = vadd.f32 %v1216, %v1480
      %v1523 = vadd.f32 %v1217, %v1483
      %v1524 = vadd.f32 %v1218, %v1488
      %v1525 = vadd.f32 %v1219, %v1491
      %v1526 = vld [vmem:[%s334 + $0x1] sm:$0xff]
      %v1527 = vld [vmem:[%s334 + $0x9] sm:$0xff]
      %v1528 = vld [vmem:[%s334 + $0x19] sm:$0xff]
      %v1529 = vld [vmem:[%s334 + $0x21] sm:$0xff]
      %v1530 = vld [vmem:[%s334 + $0x31] sm:$0xff]
      %v1531 = vld [vmem:[%s334 + $0x39] sm:$0xff]
      %v1532 = vld [vmem:[%s334 + $0x49] sm:$0xff]
      %v1533 = vld [vmem:[%s334 + $0x51] sm:$0xff]
      %v1534 = vld [vmem:[%s334 + $0x61] sm:$0xff]
      %v1535 = vld [vmem:[%s334 + $0x69] sm:$0xff]
      %v1536 = vld [vmem:[%s334 + $0x79] sm:$0xff]
      %v1537 = vld [vmem:[%s334 + $0x81] sm:$0xff]
      %v1538 = vld [vmem:[%s334 + $0x91] sm:$0xff]
      %v1539 = vld [vmem:[%s334 + $0x99] sm:$0xff]
      %v1540 = vld [vmem:[%s334 + $0xa9] sm:$0xff]
      %v1541 = vld [vmem:[%s334 + $0xb1] sm:$0xff]
      %v1542 = vld [vmem:[%s334 + $0xc1] sm:$0xff]
      %v1543 = vld [vmem:[%s334 + $0xc9] sm:$0xff]
      %v1544 = vld [vmem:[%s334 + $0xd9] sm:$0xff]
      %v1545 = vld [vmem:[%s334 + $0xe1] sm:$0xff]
      %v1546 = vld [vmem:[%s334 + $0xf1] sm:$0xff]
      %v1547 = vld [vmem:[%s334 + $0xf9] sm:$0xff]
      %v1548 = vld [vmem:[%s334 + $0x109] sm:$0xff]
      %v1549 = vld [vmem:[%s334 + $0x111] sm:$0xff]
      %v1550 = vld [vmem:[%s334 + $0x121] sm:$0xff]
      %v1551 = vld [vmem:[%s334 + $0x129] sm:$0xff]
      %v1552 = vld [vmem:[%s334 + $0x139] sm:$0xff]
      %v1553 = vld [vmem:[%s334 + $0x141] sm:$0xff]
      %v1554 = vld [vmem:[%s334 + $0x151] sm:$0xff]
      %v1555 = vld [vmem:[%s334 + $0x159] sm:$0xff]
      %v1556 = vld [vmem:[%s334 + $0x169] sm:$0xff]
      %v1557 = vld [vmem:[%s334 + $0x171] sm:$0xff]
      %v1558 = vpack.c.bf16 %v1527, %v1526
      %v1559 = vpack.c.bf16 %v1529, %v1528
      %v1560 = vpack.c.bf16 %v1531, %v1530
      %v1561 = vpack.c.bf16 %v1533, %v1532
      %v1562 = vpack.c.bf16 %v1535, %v1534
      %v1563 = vpack.c.bf16 %v1537, %v1536
      %v1564 = vpack.c.bf16 %v1539, %v1538
      %v1565 = vpack.c.bf16 %v1541, %v1540
      %v1566 = vpack.c.bf16 %v1543, %v1542
      %v1567 = vpack.c.bf16 %v1545, %v1544
      %v1568 = vpack.c.bf16 %v1547, %v1546
      %v1569 = vpack.c.bf16 %v1549, %v1548
      %v1570 = vpack.c.bf16 %v1551, %v1550
      %v1571 = vpack.c.bf16 %v1553, %v1552
      %v1572 = vpack.c.bf16 %v1555, %v1554
      %v1573 = vpack.c.bf16 %v1557, %v1556
      %s1574 = scalar_lea.vmem %s3, 256
      %v1575 = vld [vmem:[%s1574] sm:$0xf]
      %v1576 = vld [vmem:[%s1574 + $0x4] sm:$0xf]
      %v1577 = vld [vmem:[%s1574 + $0x8] sm:$0xf]
      %v1578 = vld [vmem:[%s1574 + $0xc] sm:$0xf]
      %v1579 = vld [vmem:[%s1574 + $0x10] sm:$0xf]
      %v1580 = vld [vmem:[%s1574 + $0x14] sm:$0xf]
      %v1581 = vld [vmem:[%s1574 + $0x18] sm:$0xf]
      %v1582 = vld [vmem:[%s1574 + $0x1c] sm:$0xf]
      %v1583 = vld [vmem:[%s1574 + $0x20] sm:$0xf]
      %v1584 = vld [vmem:[%s1574 + $0x24] sm:$0xf]
      %v1585 = vld [vmem:[%s1574 + $0x28] sm:$0xf]
      %v1586 = vld [vmem:[%s1574 + $0x2c] sm:$0xf]
      %v1587 = vld [vmem:[%s1574 + $0x30] sm:$0xf]
      %v1588 = vld [vmem:[%s1574 + $0x34] sm:$0xf]
      %v1589 = vld [vmem:[%s1574 + $0x38] sm:$0xf]
      %v1590 = vld [vmem:[%s1574 + $0x3c] sm:$0xf]
      %v1607 = vunpack.c.l.b16 %v1575
      %v1608 = vunpack.c.l.b16 %v1576
      %v1609 = vunpack.c.l.b16 %v1577
      %v1610 = vunpack.c.l.b16 %v1578
      %v1611 = vunpack.c.l.b16 %v1579
      %v1612 = vunpack.c.l.b16 %v1580
      %v1613 = vunpack.c.l.b16 %v1581
      %v1614 = vunpack.c.l.b16 %v1582
      %v1615 = vunpack.c.l.b16 %v1583
      %v1616 = vunpack.c.l.b16 %v1584
      %v1617 = vunpack.c.l.b16 %v1585
      %v1618 = vunpack.c.l.b16 %v1586
      %v1619 = vunpack.c.l.b16 %v1587
      %v1620 = vunpack.c.l.b16 %v1588
      %v1621 = vunpack.c.l.b16 %v1589
      %v1622 = vunpack.c.l.b16 %v1590
      %v1623 = vpack.c.b16 %v1608, %v1607
      %v1624 = vpack.c.b16 %v1610, %v1609
      %v1625 = vpack.c.b16 %v1612, %v1611
      %v1626 = vpack.c.b16 %v1614, %v1613
      %v1627 = vpack.c.b16 %v1616, %v1615
      %v1628 = vpack.c.b16 %v1618, %v1617
      %v1629 = vpack.c.b16 %v1620, %v1619
      %v1630 = vpack.c.b16 %v1622, %v1621
      %1639 = vmatprep.subr.bf16.mxu0 0
      %1640 = vmatpush1.bf16.msra.mxu0 %v1630
      %1641 = vmatprep.subr.bf16.mxu0 0
      %1642 = vmatpush1.bf16.msra.mxu0 %v1629
      %1643 = vmatprep.subr.bf16.mxu0 0
      %1644 = vmatpush1.bf16.msra.mxu0 %v1628
      %1645 = vmatprep.subr.bf16.mxu0 0
      %1646 = vmatpush1.bf16.msra.mxu0 %v1627
      %1647 = vmatprep.subr.bf16.mxu0 0
      %1648 = vmatpush1.bf16.msra.mxu0 %v1626
      %1649 = vmatprep.subr.bf16.mxu0 0
      %1650 = vmatpush1.bf16.msra.mxu0 %v1625
      %1651 = vmatprep.subr.bf16.mxu0 0
      %1652 = vmatpush1.bf16.msra.mxu0 %v1624
      %1653 = vmatprep.subr.bf16.mxu0 0
      %1654 = vmatpush1.bf16.msra.mxu0 %v1623
      %1655 = vmatprep.subr.bf16.mxu0 0
      %1656 = vmatpush2.bf16.msra.mxu0 0
      %1657 = vmatprep.subr.bf16.mxu0 0
      %1658 = vmatpush2.bf16.msra.mxu0 0
      %1659 = vmatprep.subr.bf16.mxu0 0
      %1660 = vmatpush2.bf16.msra.mxu0 0
      %1661 = vmatprep.subr.bf16.mxu0 0
      %1662 = vmatpush2.bf16.msra.mxu0 0
      %1663 = vmatprep.subr.bf16.mxu0 0
      %1664 = vmatpush2.bf16.msra.mxu0 0
      %1665 = vmatprep.subr.bf16.mxu0 0
      %1666 = vmatpush2.bf16.msra.mxu0 0
      %1667 = vmatprep.subr.bf16.mxu0 0
      %1668 = vmatpush2.bf16.msra.mxu0 0
      %1669 = vmatprep.subr.bf16.mxu0 0
      %1670 = vmatpush2.bf16.msra.mxu0 0
      %1671 = vmatprep.mubr.bf16.mxu0 0
      %1672 = vmatmul.mubr.bf16.gmra.mxu0 %v1558
      %v1673 = vpop.f32.mrf.mxu0
      %v1674 = vadd.f32 0.0, %v1673
      %v1675 = vpop.f32.mrf.mxu0
      %v1676 = vpop.f32.mrf.mxu0
      %v1677 = vadd.f32 0.0, %v1676
      %v1678 = vpop.f32.mrf.mxu0
      %1679 = vmatprep.mubr.bf16.mxu0 0
      %1680 = vmatmul.mubr.bf16.gmra.mxu0 %v1559
      %v1681 = vpop.f32.mrf.mxu0
      %v1682 = vadd.f32 0.0, %v1681
      %v1683 = vpop.f32.mrf.mxu0
      %v1684 = vpop.f32.mrf.mxu0
      %v1685 = vadd.f32 0.0, %v1684
      %v1686 = vpop.f32.mrf.mxu0
      %1687 = vmatprep.mubr.bf16.mxu0 0
      %1688 = vmatmul.mubr.bf16.gmra.mxu0 %v1560
      %v1689 = vpop.f32.mrf.mxu0
      %v1690 = vadd.f32 0.0, %v1689
      %v1691 = vpop.f32.mrf.mxu0
      %v1692 = vpop.f32.mrf.mxu0
      %v1693 = vadd.f32 0.0, %v1692
      %v1694 = vpop.f32.mrf.mxu0
      %1695 = vmatprep.mubr.bf16.mxu0 0
      %1696 = vmatmul.mubr.bf16.gmra.mxu0 %v1561
      %v1697 = vpop.f32.mrf.mxu0
      %v1698 = vadd.f32 0.0, %v1697
      %v1699 = vpop.f32.mrf.mxu0
      %v1700 = vpop.f32.mrf.mxu0
      %v1701 = vadd.f32 0.0, %v1700
      %v1702 = vpop.f32.mrf.mxu0
      %1703 = vmatprep.mubr.bf16.mxu0 0
      %1704 = vmatmul.mubr.bf16.gmra.mxu0 %v1562
      %v1705 = vpop.f32.mrf.mxu0
      %v1706 = vadd.f32 0.0, %v1705
      %v1707 = vpop.f32.mrf.mxu0
      %v1708 = vpop.f32.mrf.mxu0
      %v1709 = vadd.f32 0.0, %v1708
      %v1710 = vpop.f32.mrf.mxu0
      %1711 = vmatprep.mubr.bf16.mxu0 0
      %1712 = vmatmul.mubr.bf16.gmra.mxu0 %v1563
      %v1713 = vpop.f32.mrf.mxu0
      %v1714 = vadd.f32 0.0, %v1713
      %v1715 = vpop.f32.mrf.mxu0
      %v1716 = vpop.f32.mrf.mxu0
      %v1717 = vadd.f32 0.0, %v1716
      %v1718 = vpop.f32.mrf.mxu0
      %1719 = vmatprep.mubr.bf16.mxu0 0
      %1720 = vmatmul.mubr.bf16.gmra.mxu0 %v1564
      %v1721 = vpop.f32.mrf.mxu0
      %v1722 = vadd.f32 0.0, %v1721
      %v1723 = vpop.f32.mrf.mxu0
      %v1724 = vpop.f32.mrf.mxu0
      %v1725 = vadd.f32 0.0, %v1724
      %v1726 = vpop.f32.mrf.mxu0
      %1727 = vmatprep.mubr.bf16.mxu0 0
      %1728 = vmatmul.mubr.bf16.gmra.mxu0 %v1565
      %v1729 = vpop.f32.mrf.mxu0
      %v1730 = vadd.f32 0.0, %v1729
      %v1731 = vpop.f32.mrf.mxu0
      %v1732 = vpop.f32.mrf.mxu0
      %v1733 = vadd.f32 0.0, %v1732
      %v1734 = vpop.f32.mrf.mxu0
      %1735 = vmatprep.mubr.bf16.mxu0 0
      %1736 = vmatmul.mubr.bf16.gmra.mxu0 %v1566
      %v1737 = vpop.f32.mrf.mxu0
      %v1738 = vadd.f32 0.0, %v1737
      %v1739 = vpop.f32.mrf.mxu0
      %v1740 = vpop.f32.mrf.mxu0
      %v1741 = vadd.f32 0.0, %v1740
      %v1742 = vpop.f32.mrf.mxu0
      %1743 = vmatprep.mubr.bf16.mxu0 0
      %1744 = vmatmul.mubr.bf16.gmra.mxu0 %v1567
      %v1745 = vpop.f32.mrf.mxu0
      %v1746 = vadd.f32 0.0, %v1745
      %v1747 = vpop.f32.mrf.mxu0
      %v1748 = vpop.f32.mrf.mxu0
      %v1749 = vadd.f32 0.0, %v1748
      %v1750 = vpop.f32.mrf.mxu0
      %1751 = vmatprep.mubr.bf16.mxu0 0
      %1752 = vmatmul.mubr.bf16.gmra.mxu0 %v1568
      %v1753 = vpop.f32.mrf.mxu0
      %v1754 = vadd.f32 0.0, %v1753
      %v1755 = vpop.f32.mrf.mxu0
      %v1756 = vpop.f32.mrf.mxu0
      %v1757 = vadd.f32 0.0, %v1756
      %v1758 = vpop.f32.mrf.mxu0
      %1759 = vmatprep.mubr.bf16.mxu0 0
      %1760 = vmatmul.mubr.bf16.gmra.mxu0 %v1569
      %v1761 = vpop.f32.mrf.mxu0
      %v1762 = vadd.f32 0.0, %v1761
      %v1763 = vpop.f32.mrf.mxu0
      %v1764 = vpop.f32.mrf.mxu0
      %v1765 = vadd.f32 0.0, %v1764
      %v1766 = vpop.f32.mrf.mxu0
      %1767 = vmatprep.mubr.bf16.mxu0 0
      %1768 = vmatmul.mubr.bf16.gmra.mxu0 %v1570
      %v1769 = vpop.f32.mrf.mxu0
      %v1770 = vadd.f32 0.0, %v1769
      %v1771 = vpop.f32.mrf.mxu0
      %v1772 = vpop.f32.mrf.mxu0
      %v1773 = vadd.f32 0.0, %v1772
      %v1774 = vpop.f32.mrf.mxu0
      %1775 = vmatprep.mubr.bf16.mxu0 0
      %1776 = vmatmul.mubr.bf16.gmra.mxu0 %v1571
      %v1777 = vpop.f32.mrf.mxu0
      %v1778 = vadd.f32 0.0, %v1777
      %v1779 = vpop.f32.mrf.mxu0
      %v1780 = vpop.f32.mrf.mxu0
      %v1781 = vadd.f32 0.0, %v1780
      %v1782 = vpop.f32.mrf.mxu0
      %1783 = vmatprep.mubr.bf16.mxu0 0
      %1784 = vmatmul.mubr.bf16.gmra.mxu0 %v1572
      %v1785 = vpop.f32.mrf.mxu0
      %v1786 = vadd.f32 0.0, %v1785
      %v1787 = vpop.f32.mrf.mxu0
      %v1788 = vpop.f32.mrf.mxu0
      %v1789 = vadd.f32 0.0, %v1788
      %v1790 = vpop.f32.mrf.mxu0
      %1791 = vmatprep.mubr.bf16.mxu0 0
      %1792 = vmatmul.mubr.bf16.gmra.mxu0 %v1573
      %v1793 = vpop.f32.mrf.mxu0
      %v1794 = vadd.f32 0.0, %v1793
      %v1795 = vpop.f32.mrf.mxu0
      %v1796 = vpop.f32.mrf.mxu0
      %v1797 = vadd.f32 0.0, %v1796
      %v1798 = vpop.f32.mrf.mxu0
      %1799 = vdwg.mxu0
      %v1800 = vadd.f32 %v1494, %v1674
      %v1801 = vadd.f32 %v1495, %v1677
      %v1802 = vadd.f32 %v1496, %v1682
      %v1803 = vadd.f32 %v1497, %v1685
      %v1804 = vadd.f32 %v1498, %v1690
      %v1805 = vadd.f32 %v1499, %v1693
      %v1806 = vadd.f32 %v1500, %v1698
      %v1807 = vadd.f32 %v1501, %v1701
      %v1808 = vadd.f32 %v1502, %v1706
      %v1809 = vadd.f32 %v1503, %v1709
      %v1810 = vadd.f32 %v1504, %v1714
      %v1811 = vadd.f32 %v1505, %v1717
      %v1812 = vadd.f32 %v1506, %v1722
      %v1813 = vadd.f32 %v1507, %v1725
      %v1814 = vadd.f32 %v1508, %v1730
      %v1815 = vadd.f32 %v1509, %v1733
      %v1816 = vadd.f32 %v1510, %v1738
      %v1817 = vadd.f32 %v1511, %v1741
      %v1818 = vadd.f32 %v1512, %v1746
      %v1819 = vadd.f32 %v1513, %v1749
      %v1820 = vadd.f32 %v1514, %v1754
      %v1821 = vadd.f32 %v1515, %v1757
      %v1822 = vadd.f32 %v1516, %v1762
      %v1823 = vadd.f32 %v1517, %v1765
      %v1824 = vadd.f32 %v1518, %v1770
      %v1825 = vadd.f32 %v1519, %v1773
      %v1826 = vadd.f32 %v1520, %v1778
      %v1827 = vadd.f32 %v1521, %v1781
      %v1828 = vadd.f32 %v1522, %v1786
      %v1829 = vadd.f32 %v1523, %v1789
      %v1830 = vadd.f32 %v1524, %v1794
      %v1831 = vadd.f32 %v1525, %v1797
      %v1832 = vld [vmem:[%s334 + $0x2] sm:$0xff]
      %v1833 = vld [vmem:[%s334 + $0xa] sm:$0xff]
      %v1834 = vld [vmem:[%s334 + $0x1a] sm:$0xff]
      %v1835 = vld [vmem:[%s334 + $0x22] sm:$0xff]
      %v1836 = vld [vmem:[%s334 + $0x32] sm:$0xff]
      %v1837 = vld [vmem:[%s334 + $0x3a] sm:$0xff]
      %v1838 = vld [vmem:[%s334 + $0x4a] sm:$0xff]
      %v1839 = vld [vmem:[%s334 + $0x52] sm:$0xff]
      %v1840 = vld [vmem:[%s334 + $0x62] sm:$0xff]
      %v1841 = vld [vmem:[%s334 + $0x6a] sm:$0xff]
      %v1842 = vld [vmem:[%s334 + $0x7a] sm:$0xff]
      %v1843 = vld [vmem:[%s334 + $0x82] sm:$0xff]
      %v1844 = vld [vmem:[%s334 + $0x92] sm:$0xff]
      %v1845 = vld [vmem:[%s334 + $0x9a] sm:$0xff]
      %v1846 = vld [vmem:[%s334 + $0xaa] sm:$0xff]
      %v1847 = vld [vmem:[%s334 + $0xb2] sm:$0xff]
      %v1848 = vld [vmem:[%s334 + $0xc2] sm:$0xff]
      %v1849 = vld [vmem:[%s334 + $0xca] sm:$0xff]
      %v1850 = vld [vmem:[%s334 + $0xda] sm:$0xff]
      %v1851 = vld [vmem:[%s334 + $0xe2] sm:$0xff]
      %v1852 = vld [vmem:[%s334 + $0xf2] sm:$0xff]
      %v1853 = vld [vmem:[%s334 + $0xfa] sm:$0xff]
      %v1854 = vld [vmem:[%s334 + $0x10a] sm:$0xff]
      %v1855 = vld [vmem:[%s334 + $0x112] sm:$0xff]
      %v1856 = vld [vmem:[%s334 + $0x122] sm:$0xff]
      %v1857 = vld [vmem:[%s334 + $0x12a] sm:$0xff]
      %v1858 = vld [vmem:[%s334 + $0x13a] sm:$0xff]
      %v1859 = vld [vmem:[%s334 + $0x142] sm:$0xff]
      %v1860 = vld [vmem:[%s334 + $0x152] sm:$0xff]
      %v1861 = vld [vmem:[%s334 + $0x15a] sm:$0xff]
      %v1862 = vld [vmem:[%s334 + $0x16a] sm:$0xff]
      %v1863 = vld [vmem:[%s334 + $0x172] sm:$0xff]
      %v1864 = vpack.c.bf16 %v1833, %v1832
      %v1865 = vpack.c.bf16 %v1835, %v1834
      %v1866 = vpack.c.bf16 %v1837, %v1836
      %v1867 = vpack.c.bf16 %v1839, %v1838
      %v1868 = vpack.c.bf16 %v1841, %v1840
      %v1869 = vpack.c.bf16 %v1843, %v1842
      %v1870 = vpack.c.bf16 %v1845, %v1844
      %v1871 = vpack.c.bf16 %v1847, %v1846
      %v1872 = vpack.c.bf16 %v1849, %v1848
      %v1873 = vpack.c.bf16 %v1851, %v1850
      %v1874 = vpack.c.bf16 %v1853, %v1852
      %v1875 = vpack.c.bf16 %v1855, %v1854
      %v1876 = vpack.c.bf16 %v1857, %v1856
      %v1877 = vpack.c.bf16 %v1859, %v1858
      %v1878 = vpack.c.bf16 %v1861, %v1860
      %v1879 = vpack.c.bf16 %v1863, %v1862
      %s1880 = scalar_lea.vmem %s3, 320
      %v1881 = vld [vmem:[%s1880] sm:$0xf]
      %v1882 = vld [vmem:[%s1880 + $0x4] sm:$0xf]
      %v1883 = vld [vmem:[%s1880 + $0x8] sm:$0xf]
      %v1884 = vld [vmem:[%s1880 + $0xc] sm:$0xf]
      %v1885 = vld [vmem:[%s1880 + $0x10] sm:$0xf]
      %v1886 = vld [vmem:[%s1880 + $0x14] sm:$0xf]
      %v1887 = vld [vmem:[%s1880 + $0x18] sm:$0xf]
      %v1888 = vld [vmem:[%s1880 + $0x1c] sm:$0xf]
      %v1889 = vld [vmem:[%s1880 + $0x20] sm:$0xf]
      %v1890 = vld [vmem:[%s1880 + $0x24] sm:$0xf]
      %v1891 = vld [vmem:[%s1880 + $0x28] sm:$0xf]
      %v1892 = vld [vmem:[%s1880 + $0x2c] sm:$0xf]
      %v1893 = vld [vmem:[%s1880 + $0x30] sm:$0xf]
      %v1894 = vld [vmem:[%s1880 + $0x34] sm:$0xf]
      %v1895 = vld [vmem:[%s1880 + $0x38] sm:$0xf]
      %v1896 = vld [vmem:[%s1880 + $0x3c] sm:$0xf]
      %v1913 = vunpack.c.l.b16 %v1881
      %v1914 = vunpack.c.l.b16 %v1882
      %v1915 = vunpack.c.l.b16 %v1883
      %v1916 = vunpack.c.l.b16 %v1884
      %v1917 = vunpack.c.l.b16 %v1885
      %v1918 = vunpack.c.l.b16 %v1886
      %v1919 = vunpack.c.l.b16 %v1887
      %v1920 = vunpack.c.l.b16 %v1888
      %v1921 = vunpack.c.l.b16 %v1889
      %v1922 = vunpack.c.l.b16 %v1890
      %v1923 = vunpack.c.l.b16 %v1891
      %v1924 = vunpack.c.l.b16 %v1892
      %v1925 = vunpack.c.l.b16 %v1893
      %v1926 = vunpack.c.l.b16 %v1894
      %v1927 = vunpack.c.l.b16 %v1895
      %v1928 = vunpack.c.l.b16 %v1896
      %v1929 = vpack.c.b16 %v1914, %v1913
      %v1930 = vpack.c.b16 %v1916, %v1915
      %v1931 = vpack.c.b16 %v1918, %v1917
      %v1932 = vpack.c.b16 %v1920, %v1919
      %v1933 = vpack.c.b16 %v1922, %v1921
      %v1934 = vpack.c.b16 %v1924, %v1923
      %v1935 = vpack.c.b16 %v1926, %v1925
      %v1936 = vpack.c.b16 %v1928, %v1927
      %1945 = vmatprep.subr.bf16.mxu0 0
      %1946 = vmatpush1.bf16.msra.mxu0 %v1936
      %1947 = vmatprep.subr.bf16.mxu0 0
      %1948 = vmatpush1.bf16.msra.mxu0 %v1935
      %1949 = vmatprep.subr.bf16.mxu0 0
      %1950 = vmatpush1.bf16.msra.mxu0 %v1934
      %1951 = vmatprep.subr.bf16.mxu0 0
      %1952 = vmatpush1.bf16.msra.mxu0 %v1933
      %1953 = vmatprep.subr.bf16.mxu0 0
      %1954 = vmatpush1.bf16.msra.mxu0 %v1932
      %1955 = vmatprep.subr.bf16.mxu0 0
      %1956 = vmatpush1.bf16.msra.mxu0 %v1931
      %1957 = vmatprep.subr.bf16.mxu0 0
      %1958 = vmatpush1.bf16.msra.mxu0 %v1930
      %1959 = vmatprep.subr.bf16.mxu0 0
      %1960 = vmatpush1.bf16.msra.mxu0 %v1929
      %1961 = vmatprep.subr.bf16.mxu0 0
      %1962 = vmatpush2.bf16.msra.mxu0 0
      %1963 = vmatprep.subr.bf16.mxu0 0
      %1964 = vmatpush2.bf16.msra.mxu0 0
      %1965 = vmatprep.subr.bf16.mxu0 0
      %1966 = vmatpush2.bf16.msra.mxu0 0
      %1967 = vmatprep.subr.bf16.mxu0 0
      %1968 = vmatpush2.bf16.msra.mxu0 0
      %1969 = vmatprep.subr.bf16.mxu0 0
      %1970 = vmatpush2.bf16.msra.mxu0 0
      %1971 = vmatprep.subr.bf16.mxu0 0
      %1972 = vmatpush2.bf16.msra.mxu0 0
      %1973 = vmatprep.subr.bf16.mxu0 0
      %1974 = vmatpush2.bf16.msra.mxu0 0
      %1975 = vmatprep.subr.bf16.mxu0 0
      %1976 = vmatpush2.bf16.msra.mxu0 0
      %1977 = vmatprep.mubr.bf16.mxu0 0
      %1978 = vmatmul.mubr.bf16.gmra.mxu0 %v1864
      %v1979 = vpop.f32.mrf.mxu0
      %v1980 = vadd.f32 0.0, %v1979
      %v1981 = vpop.f32.mrf.mxu0
      %v1982 = vpop.f32.mrf.mxu0
      %v1983 = vadd.f32 0.0, %v1982
      %v1984 = vpop.f32.mrf.mxu0
      %1985 = vmatprep.mubr.bf16.mxu0 0
      %1986 = vmatmul.mubr.bf16.gmra.mxu0 %v1865
      %v1987 = vpop.f32.mrf.mxu0
      %v1988 = vadd.f32 0.0, %v1987
      %v1989 = vpop.f32.mrf.mxu0
      %v1990 = vpop.f32.mrf.mxu0
      %v1991 = vadd.f32 0.0, %v1990
      %v1992 = vpop.f32.mrf.mxu0
      %1993 = vmatprep.mubr.bf16.mxu0 0
      %1994 = vmatmul.mubr.bf16.gmra.mxu0 %v1866
      %v1995 = vpop.f32.mrf.mxu0
      %v1996 = vadd.f32 0.0, %v1995
      %v1997 = vpop.f32.mrf.mxu0
      %v1998 = vpop.f32.mrf.mxu0
      %v1999 = vadd.f32 0.0, %v1998
      %v2000 = vpop.f32.mrf.mxu0
      %2001 = vmatprep.mubr.bf16.mxu0 0
      %2002 = vmatmul.mubr.bf16.gmra.mxu0 %v1867
      %v2003 = vpop.f32.mrf.mxu0
      %v2004 = vadd.f32 0.0, %v2003
      %v2005 = vpop.f32.mrf.mxu0
      %v2006 = vpop.f32.mrf.mxu0
      %v2007 = vadd.f32 0.0, %v2006
      %v2008 = vpop.f32.mrf.mxu0
      %2009 = vmatprep.mubr.bf16.mxu0 0
      %2010 = vmatmul.mubr.bf16.gmra.mxu0 %v1868
      %v2011 = vpop.f32.mrf.mxu0
      %v2012 = vadd.f32 0.0, %v2011
      %v2013 = vpop.f32.mrf.mxu0
      %v2014 = vpop.f32.mrf.mxu0
      %v2015 = vadd.f32 0.0, %v2014
      %v2016 = vpop.f32.mrf.mxu0
      %2017 = vmatprep.mubr.bf16.mxu0 0
      %2018 = vmatmul.mubr.bf16.gmra.mxu0 %v1869
      %v2019 = vpop.f32.mrf.mxu0
      %v2020 = vadd.f32 0.0, %v2019
      %v2021 = vpop.f32.mrf.mxu0
      %v2022 = vpop.f32.mrf.mxu0
      %v2023 = vadd.f32 0.0, %v2022
      %v2024 = vpop.f32.mrf.mxu0
      %2025 = vmatprep.mubr.bf16.mxu0 0
      %2026 = vmatmul.mubr.bf16.gmra.mxu0 %v1870
      %v2027 = vpop.f32.mrf.mxu0
      %v2028 = vadd.f32 0.0, %v2027
      %v2029 = vpop.f32.mrf.mxu0
      %v2030 = vpop.f32.mrf.mxu0
      %v2031 = vadd.f32 0.0, %v2030
      %v2032 = vpop.f32.mrf.mxu0
      %2033 = vmatprep.mubr.bf16.mxu0 0
      %2034 = vmatmul.mubr.bf16.gmra.mxu0 %v1871
      %v2035 = vpop.f32.mrf.mxu0
      %v2036 = vadd.f32 0.0, %v2035
      %v2037 = vpop.f32.mrf.mxu0
      %v2038 = vpop.f32.mrf.mxu0
      %v2039 = vadd.f32 0.0, %v2038
      %v2040 = vpop.f32.mrf.mxu0
      %2041 = vmatprep.mubr.bf16.mxu0 0
      %2042 = vmatmul.mubr.bf16.gmra.mxu0 %v1872
      %v2043 = vpop.f32.mrf.mxu0
      %v2044 = vadd.f32 0.0, %v2043
      %v2045 = vpop.f32.mrf.mxu0
      %v2046 = vpop.f32.mrf.mxu0
      %v2047 = vadd.f32 0.0, %v2046
      %v2048 = vpop.f32.mrf.mxu0
      %2049 = vmatprep.mubr.bf16.mxu0 0
      %2050 = vmatmul.mubr.bf16.gmra.mxu0 %v1873
      %v2051 = vpop.f32.mrf.mxu0
      %v2052 = vadd.f32 0.0, %v2051
      %v2053 = vpop.f32.mrf.mxu0
      %v2054 = vpop.f32.mrf.mxu0
      %v2055 = vadd.f32 0.0, %v2054
      %v2056 = vpop.f32.mrf.mxu0
      %2057 = vmatprep.mubr.bf16.mxu0 0
      %2058 = vmatmul.mubr.bf16.gmra.mxu0 %v1874
      %v2059 = vpop.f32.mrf.mxu0
      %v2060 = vadd.f32 0.0, %v2059
      %v2061 = vpop.f32.mrf.mxu0
      %v2062 = vpop.f32.mrf.mxu0
      %v2063 = vadd.f32 0.0, %v2062
      %v2064 = vpop.f32.mrf.mxu0
      %2065 = vmatprep.mubr.bf16.mxu0 0
      %2066 = vmatmul.mubr.bf16.gmra.mxu0 %v1875
      %v2067 = vpop.f32.mrf.mxu0
      %v2068 = vadd.f32 0.0, %v2067
      %v2069 = vpop.f32.mrf.mxu0
      %v2070 = vpop.f32.mrf.mxu0
      %v2071 = vadd.f32 0.0, %v2070
      %v2072 = vpop.f32.mrf.mxu0
      %2073 = vmatprep.mubr.bf16.mxu0 0
      %2074 = vmatmul.mubr.bf16.gmra.mxu0 %v1876
      %v2075 = vpop.f32.mrf.mxu0
      %v2076 = vadd.f32 0.0, %v2075
      %v2077 = vpop.f32.mrf.mxu0
      %v2078 = vpop.f32.mrf.mxu0
      %v2079 = vadd.f32 0.0, %v2078
      %v2080 = vpop.f32.mrf.mxu0
      %2081 = vmatprep.mubr.bf16.mxu0 0
      %2082 = vmatmul.mubr.bf16.gmra.mxu0 %v1877
      %v2083 = vpop.f32.mrf.mxu0
      %v2084 = vadd.f32 0.0, %v2083
      %v2085 = vpop.f32.mrf.mxu0
      %v2086 = vpop.f32.mrf.mxu0
      %v2087 = vadd.f32 0.0, %v2086
      %v2088 = vpop.f32.mrf.mxu0
      %2089 = vmatprep.mubr.bf16.mxu0 0
      %2090 = vmatmul.mubr.bf16.gmra.mxu0 %v1878
      %v2091 = vpop.f32.mrf.mxu0
      %v2092 = vadd.f32 0.0, %v2091
      %v2093 = vpop.f32.mrf.mxu0
      %v2094 = vpop.f32.mrf.mxu0
      %v2095 = vadd.f32 0.0, %v2094
      %v2096 = vpop.f32.mrf.mxu0
      %2097 = vmatprep.mubr.bf16.mxu0 0
      %2098 = vmatmul.mubr.bf16.gmra.mxu0 %v1879
      %v2099 = vpop.f32.mrf.mxu0
      %v2100 = vadd.f32 0.0, %v2099
      %v2101 = vpop.f32.mrf.mxu0
      %v2102 = vpop.f32.mrf.mxu0
      %v2103 = vadd.f32 0.0, %v2102
      %v2104 = vpop.f32.mrf.mxu0
      %2105 = vdwg.mxu0
      %v2106 = vadd.f32 %v1800, %v1980
      %v2107 = vadd.f32 %v1801, %v1983
      %v2108 = vadd.f32 %v1802, %v1988
      %v2109 = vadd.f32 %v1803, %v1991
      %v2110 = vadd.f32 %v1804, %v1996
      %v2111 = vadd.f32 %v1805, %v1999
      %v2112 = vadd.f32 %v1806, %v2004
      %v2113 = vadd.f32 %v1807, %v2007
      %v2114 = vadd.f32 %v1808, %v2012
      %v2115 = vadd.f32 %v1809, %v2015
      %v2116 = vadd.f32 %v1810, %v2020
      %v2117 = vadd.f32 %v1811, %v2023
      %v2118 = vadd.f32 %v1812, %v2028
      %v2119 = vadd.f32 %v1813, %v2031
      %v2120 = vadd.f32 %v1814, %v2036
      %v2121 = vadd.f32 %v1815, %v2039
      %v2122 = vadd.f32 %v1816, %v2044
      %v2123 = vadd.f32 %v1817, %v2047
      %v2124 = vadd.f32 %v1818, %v2052
      %v2125 = vadd.f32 %v1819, %v2055
      %v2126 = vadd.f32 %v1820, %v2060
      %v2127 = vadd.f32 %v1821, %v2063
      %v2128 = vadd.f32 %v1822, %v2068
      %v2129 = vadd.f32 %v1823, %v2071
      %v2130 = vadd.f32 %v1824, %v2076
      %v2131 = vadd.f32 %v1825, %v2079
      %v2132 = vadd.f32 %v1826, %v2084
      %v2133 = vadd.f32 %v1827, %v2087
      %v2134 = vadd.f32 %v1828, %v2092
      %v2135 = vadd.f32 %v1829, %v2095
      %v2136 = vadd.f32 %v1830, %v2100
      %v2137 = vadd.f32 %v1831, %v2103
      %s2138 = scalar_lea.vmem [#allocation2], 48
      %v2139 = vld [vmem:[%s2138] sm:$0xff]
      %v2140 = vld [vmem:[%s2138 + $0x8] sm:$0xff]
      %v2141 = vld [vmem:[%s2138 + $0x18] sm:$0xff]
      %v2142 = vld [vmem:[%s2138 + $0x20] sm:$0xff]
      %v2143 = vld [vmem:[%s2138 + $0x30] sm:$0xff]
      %v2144 = vld [vmem:[%s2138 + $0x38] sm:$0xff]
      %v2145 = vld [vmem:[%s2138 + $0x48] sm:$0xff]
      %v2146 = vld [vmem:[%s2138 + $0x50] sm:$0xff]
      %v2147 = vld [vmem:[%s2138 + $0x60] sm:$0xff]
      %v2148 = vld [vmem:[%s2138 + $0x68] sm:$0xff]
      %v2149 = vld [vmem:[%s2138 + $0x78] sm:$0xff]
      %v2150 = vld [vmem:[%s2138 + $0x80] sm:$0xff]
      %v2151 = vld [vmem:[%s2138 + $0x90] sm:$0xff]
      %v2152 = vld [vmem:[%s2138 + $0x98] sm:$0xff]
      %v2153 = vld [vmem:[%s2138 + $0xa8] sm:$0xff]
      %v2154 = vld [vmem:[%s2138 + $0xb0] sm:$0xff]
      %v2155 = vld [vmem:[%s2138 + $0xc0] sm:$0xff]
      %v2156 = vld [vmem:[%s2138 + $0xc8] sm:$0xff]
      %v2157 = vld [vmem:[%s2138 + $0xd8] sm:$0xff]
      %v2158 = vld [vmem:[%s2138 + $0xe0] sm:$0xff]
      %v2159 = vld [vmem:[%s2138 + $0xf0] sm:$0xff]
      %v2160 = vld [vmem:[%s2138 + $0xf8] sm:$0xff]
      %v2161 = vld [vmem:[%s2138 + $0x108] sm:$0xff]
      %v2162 = vld [vmem:[%s2138 + $0x110] sm:$0xff]
      %v2163 = vld [vmem:[%s2138 + $0x120] sm:$0xff]
      %v2164 = vld [vmem:[%s2138 + $0x128] sm:$0xff]
      %v2165 = vld [vmem:[%s2138 + $0x138] sm:$0xff]
      %v2166 = vld [vmem:[%s2138 + $0x140] sm:$0xff]
      %v2167 = vld [vmem:[%s2138 + $0x150] sm:$0xff]
      %v2168 = vld [vmem:[%s2138 + $0x158] sm:$0xff]
      %v2169 = vld [vmem:[%s2138 + $0x168] sm:$0xff]
      %v2170 = vld [vmem:[%s2138 + $0x170] sm:$0xff]
      %v2171 = vpack.c.bf16 %v2140, %v2139
      %v2172 = vpack.c.bf16 %v2142, %v2141
      %v2173 = vpack.c.bf16 %v2144, %v2143
      %v2174 = vpack.c.bf16 %v2146, %v2145
      %v2175 = vpack.c.bf16 %v2148, %v2147
      %v2176 = vpack.c.bf16 %v2150, %v2149
      %v2177 = vpack.c.bf16 %v2152, %v2151
      %v2178 = vpack.c.bf16 %v2154, %v2153
      %v2179 = vpack.c.bf16 %v2156, %v2155
      %v2180 = vpack.c.bf16 %v2158, %v2157
      %v2181 = vpack.c.bf16 %v2160, %v2159
      %v2182 = vpack.c.bf16 %v2162, %v2161
      %v2183 = vpack.c.bf16 %v2164, %v2163
      %v2184 = vpack.c.bf16 %v2166, %v2165
      %v2185 = vpack.c.bf16 %v2168, %v2167
      %v2186 = vpack.c.bf16 %v2170, %v2169
      %s2187 = scalar_lea.vmem %s3, 384
      %v2188 = vld [vmem:[%s2187] sm:$0xf]
      %v2189 = vld [vmem:[%s2187 + $0x4] sm:$0xf]
      %v2190 = vld [vmem:[%s2187 + $0x8] sm:$0xf]
      %v2191 = vld [vmem:[%s2187 + $0xc] sm:$0xf]
      %v2192 = vld [vmem:[%s2187 + $0x10] sm:$0xf]
      %v2193 = vld [vmem:[%s2187 + $0x14] sm:$0xf]
      %v2194 = vld [vmem:[%s2187 + $0x18] sm:$0xf]
      %v2195 = vld [vmem:[%s2187 + $0x1c] sm:$0xf]
      %v2196 = vld [vmem:[%s2187 + $0x20] sm:$0xf]
      %v2197 = vld [vmem:[%s2187 + $0x24] sm:$0xf]
      %v2198 = vld [vmem:[%s2187 + $0x28] sm:$0xf]
      %v2199 = vld [vmem:[%s2187 + $0x2c] sm:$0xf]
      %v2200 = vld [vmem:[%s2187 + $0x30] sm:$0xf]
      %v2201 = vld [vmem:[%s2187 + $0x34] sm:$0xf]
      %v2202 = vld [vmem:[%s2187 + $0x38] sm:$0xf]
      %v2203 = vld [vmem:[%s2187 + $0x3c] sm:$0xf]
      %v2220 = vunpack.c.l.b16 %v2188
      %v2221 = vunpack.c.l.b16 %v2189
      %v2222 = vunpack.c.l.b16 %v2190
      %v2223 = vunpack.c.l.b16 %v2191
      %v2224 = vunpack.c.l.b16 %v2192
      %v2225 = vunpack.c.l.b16 %v2193
      %v2226 = vunpack.c.l.b16 %v2194
      %v2227 = vunpack.c.l.b16 %v2195
      %v2228 = vunpack.c.l.b16 %v2196
      %v2229 = vunpack.c.l.b16 %v2197
      %v2230 = vunpack.c.l.b16 %v2198
      %v2231 = vunpack.c.l.b16 %v2199
      %v2232 = vunpack.c.l.b16 %v2200
      %v2233 = vunpack.c.l.b16 %v2201
      %v2234 = vunpack.c.l.b16 %v2202
      %v2235 = vunpack.c.l.b16 %v2203
      %v2236 = vpack.c.b16 %v2221, %v2220
      %v2237 = vpack.c.b16 %v2223, %v2222
      %v2238 = vpack.c.b16 %v2225, %v2224
      %v2239 = vpack.c.b16 %v2227, %v2226
      %v2240 = vpack.c.b16 %v2229, %v2228
      %v2241 = vpack.c.b16 %v2231, %v2230
      %v2242 = vpack.c.b16 %v2233, %v2232
      %v2243 = vpack.c.b16 %v2235, %v2234
      %2252 = vmatprep.subr.bf16.mxu0 0
      %2253 = vmatpush1.bf16.msra.mxu0 %v2243
      %2254 = vmatprep.subr.bf16.mxu0 0
      %2255 = vmatpush1.bf16.msra.mxu0 %v2242
      %2256 = vmatprep.subr.bf16.mxu0 0
      %2257 = vmatpush1.bf16.msra.mxu0 %v2241
      %2258 = vmatprep.subr.bf16.mxu0 0
      %2259 = vmatpush1.bf16.msra.mxu0 %v2240
      %2260 = vmatprep.subr.bf16.mxu0 0
      %2261 = vmatpush1.bf16.msra.mxu0 %v2239
      %2262 = vmatprep.subr.bf16.mxu0 0
      %2263 = vmatpush1.bf16.msra.mxu0 %v2238
      %2264 = vmatprep.subr.bf16.mxu0 0
      %2265 = vmatpush1.bf16.msra.mxu0 %v2237
      %2266 = vmatprep.subr.bf16.mxu0 0
      %2267 = vmatpush1.bf16.msra.mxu0 %v2236
      %2268 = vmatprep.subr.bf16.mxu0 0
      %2269 = vmatpush2.bf16.msra.mxu0 0
      %2270 = vmatprep.subr.bf16.mxu0 0
      %2271 = vmatpush2.bf16.msra.mxu0 0
      %2272 = vmatprep.subr.bf16.mxu0 0
      %2273 = vmatpush2.bf16.msra.mxu0 0
      %2274 = vmatprep.subr.bf16.mxu0 0
      %2275 = vmatpush2.bf16.msra.mxu0 0
      %2276 = vmatprep.subr.bf16.mxu0 0
      %2277 = vmatpush2.bf16.msra.mxu0 0
      %2278 = vmatprep.subr.bf16.mxu0 0
      %2279 = vmatpush2.bf16.msra.mxu0 0
      %2280 = vmatprep.subr.bf16.mxu0 0
      %2281 = vmatpush2.bf16.msra.mxu0 0
      %2282 = vmatprep.subr.bf16.mxu0 0
      %2283 = vmatpush2.bf16.msra.mxu0 0
      %2284 = vmatprep.mubr.bf16.mxu0 0
      %2285 = vmatmul.mubr.bf16.gmra.mxu0 %v2171
      %v2286 = vpop.f32.mrf.mxu0
      %v2287 = vadd.f32 0.0, %v2286
      %v2288 = vpop.f32.mrf.mxu0
      %v2289 = vpop.f32.mrf.mxu0
      %v2290 = vadd.f32 0.0, %v2289
      %v2291 = vpop.f32.mrf.mxu0
      %2292 = vmatprep.mubr.bf16.mxu0 0
      %2293 = vmatmul.mubr.bf16.gmra.mxu0 %v2172
      %v2294 = vpop.f32.mrf.mxu0
      %v2295 = vadd.f32 0.0, %v2294
      %v2296 = vpop.f32.mrf.mxu0
      %v2297 = vpop.f32.mrf.mxu0
      %v2298 = vadd.f32 0.0, %v2297
      %v2299 = vpop.f32.mrf.mxu0
      %2300 = vmatprep.mubr.bf16.mxu0 0
      %2301 = vmatmul.mubr.bf16.gmra.mxu0 %v2173
      %v2302 = vpop.f32.mrf.mxu0
      %v2303 = vadd.f32 0.0, %v2302
      %v2304 = vpop.f32.mrf.mxu0
      %v2305 = vpop.f32.mrf.mxu0
      %v2306 = vadd.f32 0.0, %v2305
      %v2307 = vpop.f32.mrf.mxu0
      %2308 = vmatprep.mubr.bf16.mxu0 0
      %2309 = vmatmul.mubr.bf16.gmra.mxu0 %v2174
      %v2310 = vpop.f32.mrf.mxu0
      %v2311 = vadd.f32 0.0, %v2310
      %v2312 = vpop.f32.mrf.mxu0
      %v2313 = vpop.f32.mrf.mxu0
      %v2314 = vadd.f32 0.0, %v2313
      %v2315 = vpop.f32.mrf.mxu0
      %2316 = vmatprep.mubr.bf16.mxu0 0
      %2317 = vmatmul.mubr.bf16.gmra.mxu0 %v2175
      %v2318 = vpop.f32.mrf.mxu0
      %v2319 = vadd.f32 0.0, %v2318
      %v2320 = vpop.f32.mrf.mxu0
      %v2321 = vpop.f32.mrf.mxu0
      %v2322 = vadd.f32 0.0, %v2321
      %v2323 = vpop.f32.mrf.mxu0
      %2324 = vmatprep.mubr.bf16.mxu0 0
      %2325 = vmatmul.mubr.bf16.gmra.mxu0 %v2176
      %v2326 = vpop.f32.mrf.mxu0
      %v2327 = vadd.f32 0.0, %v2326
      %v2328 = vpop.f32.mrf.mxu0
      %v2329 = vpop.f32.mrf.mxu0
      %v2330 = vadd.f32 0.0, %v2329
      %v2331 = vpop.f32.mrf.mxu0
      %2332 = vmatprep.mubr.bf16.mxu0 0
      %2333 = vmatmul.mubr.bf16.gmra.mxu0 %v2177
      %v2334 = vpop.f32.mrf.mxu0
      %v2335 = vadd.f32 0.0, %v2334
      %v2336 = vpop.f32.mrf.mxu0
      %v2337 = vpop.f32.mrf.mxu0
      %v2338 = vadd.f32 0.0, %v2337
      %v2339 = vpop.f32.mrf.mxu0
      %2340 = vmatprep.mubr.bf16.mxu0 0
      %2341 = vmatmul.mubr.bf16.gmra.mxu0 %v2178
      %v2342 = vpop.f32.mrf.mxu0
      %v2343 = vadd.f32 0.0, %v2342
      %v2344 = vpop.f32.mrf.mxu0
      %v2345 = vpop.f32.mrf.mxu0
      %v2346 = vadd.f32 0.0, %v2345
      %v2347 = vpop.f32.mrf.mxu0
      %2348 = vmatprep.mubr.bf16.mxu0 0
      %2349 = vmatmul.mubr.bf16.gmra.mxu0 %v2179
      %v2350 = vpop.f32.mrf.mxu0
      %v2351 = vadd.f32 0.0, %v2350
      %v2352 = vpop.f32.mrf.mxu0
      %v2353 = vpop.f32.mrf.mxu0
      %v2354 = vadd.f32 0.0, %v2353
      %v2355 = vpop.f32.mrf.mxu0
      %2356 = vmatprep.mubr.bf16.mxu0 0
      %2357 = vmatmul.mubr.bf16.gmra.mxu0 %v2180
      %v2358 = vpop.f32.mrf.mxu0
      %v2359 = vadd.f32 0.0, %v2358
      %v2360 = vpop.f32.mrf.mxu0
      %v2361 = vpop.f32.mrf.mxu0
      %v2362 = vadd.f32 0.0, %v2361
      %v2363 = vpop.f32.mrf.mxu0
      %2364 = vmatprep.mubr.bf16.mxu0 0
      %2365 = vmatmul.mubr.bf16.gmra.mxu0 %v2181
      %v2366 = vpop.f32.mrf.mxu0
      %v2367 = vadd.f32 0.0, %v2366
      %v2368 = vpop.f32.mrf.mxu0
      %v2369 = vpop.f32.mrf.mxu0
      %v2370 = vadd.f32 0.0, %v2369
      %v2371 = vpop.f32.mrf.mxu0
      %2372 = vmatprep.mubr.bf16.mxu0 0
      %2373 = vmatmul.mubr.bf16.gmra.mxu0 %v2182
      %v2374 = vpop.f32.mrf.mxu0
      %v2375 = vadd.f32 0.0, %v2374
      %v2376 = vpop.f32.mrf.mxu0
      %v2377 = vpop.f32.mrf.mxu0
      %v2378 = vadd.f32 0.0, %v2377
      %v2379 = vpop.f32.mrf.mxu0
      %2380 = vmatprep.mubr.bf16.mxu0 0
      %2381 = vmatmul.mubr.bf16.gmra.mxu0 %v2183
      %v2382 = vpop.f32.mrf.mxu0
      %v2383 = vadd.f32 0.0, %v2382
      %v2384 = vpop.f32.mrf.mxu0
      %v2385 = vpop.f32.mrf.mxu0
      %v2386 = vadd.f32 0.0, %v2385
      %v2387 = vpop.f32.mrf.mxu0
      %2388 = vmatprep.mubr.bf16.mxu0 0
      %2389 = vmatmul.mubr.bf16.gmra.mxu0 %v2184
      %v2390 = vpop.f32.mrf.mxu0
      %v2391 = vadd.f32 0.0, %v2390
      %v2392 = vpop.f32.mrf.mxu0
      %v2393 = vpop.f32.mrf.mxu0
      %v2394 = vadd.f32 0.0, %v2393
      %v2395 = vpop.f32.mrf.mxu0
      %2396 = vmatprep.mubr.bf16.mxu0 0
      %2397 = vmatmul.mubr.bf16.gmra.mxu0 %v2185
      %v2398 = vpop.f32.mrf.mxu0
      %v2399 = vadd.f32 0.0, %v2398
      %v2400 = vpop.f32.mrf.mxu0
      %v2401 = vpop.f32.mrf.mxu0
      %v2402 = vadd.f32 0.0, %v2401
      %v2403 = vpop.f32.mrf.mxu0
      %2404 = vmatprep.mubr.bf16.mxu0 0
      %2405 = vmatmul.mubr.bf16.gmra.mxu0 %v2186
      %v2406 = vpop.f32.mrf.mxu0
      %v2407 = vadd.f32 0.0, %v2406
      %v2408 = vpop.f32.mrf.mxu0
      %v2409 = vpop.f32.mrf.mxu0
      %v2410 = vadd.f32 0.0, %v2409
      %v2411 = vpop.f32.mrf.mxu0
      %2412 = vdwg.mxu0
      %v2413 = vadd.f32 %v2106, %v2287
      %v2414 = vadd.f32 %v2107, %v2290
      %v2415 = vadd.f32 %v2108, %v2295
      %v2416 = vadd.f32 %v2109, %v2298
      %v2417 = vadd.f32 %v2110, %v2303
      %v2418 = vadd.f32 %v2111, %v2306
      %v2419 = vadd.f32 %v2112, %v2311
      %v2420 = vadd.f32 %v2113, %v2314
      %v2421 = vadd.f32 %v2114, %v2319
      %v2422 = vadd.f32 %v2115, %v2322
      %v2423 = vadd.f32 %v2116, %v2327
      %v2424 = vadd.f32 %v2117, %v2330
      %v2425 = vadd.f32 %v2118, %v2335
      %v2426 = vadd.f32 %v2119, %v2338
      %v2427 = vadd.f32 %v2120, %v2343
      %v2428 = vadd.f32 %v2121, %v2346
      %v2429 = vadd.f32 %v2122, %v2351
      %v2430 = vadd.f32 %v2123, %v2354
      %v2431 = vadd.f32 %v2124, %v2359
      %v2432 = vadd.f32 %v2125, %v2362
      %v2433 = vadd.f32 %v2126, %v2367
      %v2434 = vadd.f32 %v2127, %v2370
      %v2435 = vadd.f32 %v2128, %v2375
      %v2436 = vadd.f32 %v2129, %v2378
      %v2437 = vadd.f32 %v2130, %v2383
      %v2438 = vadd.f32 %v2131, %v2386
      %v2439 = vadd.f32 %v2132, %v2391
      %v2440 = vadd.f32 %v2133, %v2394
      %v2441 = vadd.f32 %v2134, %v2399
      %v2442 = vadd.f32 %v2135, %v2402
      %v2443 = vadd.f32 %v2136, %v2407
      %v2444 = vadd.f32 %v2137, %v2410
      %v2445 = vld [vmem:[%s2138 + $0x1] sm:$0xff]
      %v2446 = vld [vmem:[%s2138 + $0x9] sm:$0xff]
      %v2447 = vld [vmem:[%s2138 + $0x19] sm:$0xff]
      %v2448 = vld [vmem:[%s2138 + $0x21] sm:$0xff]
      %v2449 = vld [vmem:[%s2138 + $0x31] sm:$0xff]
      %v2450 = vld [vmem:[%s2138 + $0x39] sm:$0xff]
      %v2451 = vld [vmem:[%s2138 + $0x49] sm:$0xff]
      %v2452 = vld [vmem:[%s2138 + $0x51] sm:$0xff]
      %v2453 = vld [vmem:[%s2138 + $0x61] sm:$0xff]
      %v2454 = vld [vmem:[%s2138 + $0x69] sm:$0xff]
      %v2455 = vld [vmem:[%s2138 + $0x79] sm:$0xff]
      %v2456 = vld [vmem:[%s2138 + $0x81] sm:$0xff]
      %v2457 = vld [vmem:[%s2138 + $0x91] sm:$0xff]
      %v2458 = vld [vmem:[%s2138 + $0x99] sm:$0xff]
      %v2459 = vld [vmem:[%s2138 + $0xa9] sm:$0xff]
      %v2460 = vld [vmem:[%s2138 + $0xb1] sm:$0xff]
      %v2461 = vld [vmem:[%s2138 + $0xc1] sm:$0xff]
      %v2462 = vld [vmem:[%s2138 + $0xc9] sm:$0xff]
      %v2463 = vld [vmem:[%s2138 + $0xd9] sm:$0xff]
      %v2464 = vld [vmem:[%s2138 + $0xe1] sm:$0xff]
      %v2465 = vld [vmem:[%s2138 + $0xf1] sm:$0xff]
      %v2466 = vld [vmem:[%s2138 + $0xf9] sm:$0xff]
      %v2467 = vld [vmem:[%s2138 + $0x109] sm:$0xff]
      %v2468 = vld [vmem:[%s2138 + $0x111] sm:$0xff]
      %v2469 = vld [vmem:[%s2138 + $0x121] sm:$0xff]
      %v2470 = vld [vmem:[%s2138 + $0x129] sm:$0xff]
      %v2471 = vld [vmem:[%s2138 + $0x139] sm:$0xff]
      %v2472 = vld [vmem:[%s2138 + $0x141] sm:$0xff]
      %v2473 = vld [vmem:[%s2138 + $0x151] sm:$0xff]
      %v2474 = vld [vmem:[%s2138 + $0x159] sm:$0xff]
      %v2475 = vld [vmem:[%s2138 + $0x169] sm:$0xff]
      %v2476 = vld [vmem:[%s2138 + $0x171] sm:$0xff]
      %v2477 = vpack.c.bf16 %v2446, %v2445
      %v2478 = vpack.c.bf16 %v2448, %v2447
      %v2479 = vpack.c.bf16 %v2450, %v2449
      %v2480 = vpack.c.bf16 %v2452, %v2451
      %v2481 = vpack.c.bf16 %v2454, %v2453
      %v2482 = vpack.c.bf16 %v2456, %v2455
      %v2483 = vpack.c.bf16 %v2458, %v2457
      %v2484 = vpack.c.bf16 %v2460, %v2459
      %v2485 = vpack.c.bf16 %v2462, %v2461
      %v2486 = vpack.c.bf16 %v2464, %v2463
      %v2487 = vpack.c.bf16 %v2466, %v2465
      %v2488 = vpack.c.bf16 %v2468, %v2467
      %v2489 = vpack.c.bf16 %v2470, %v2469
      %v2490 = vpack.c.bf16 %v2472, %v2471
      %v2491 = vpack.c.bf16 %v2474, %v2473
      %v2492 = vpack.c.bf16 %v2476, %v2475
      %s2493 = scalar_lea.vmem %s3, 448
      %v2494 = vld [vmem:[%s2493] sm:$0xf]
      %v2495 = vld [vmem:[%s2493 + $0x4] sm:$0xf]
      %v2496 = vld [vmem:[%s2493 + $0x8] sm:$0xf]
      %v2497 = vld [vmem:[%s2493 + $0xc] sm:$0xf]
      %v2498 = vld [vmem:[%s2493 + $0x10] sm:$0xf]
      %v2499 = vld [vmem:[%s2493 + $0x14] sm:$0xf]
      %v2500 = vld [vmem:[%s2493 + $0x18] sm:$0xf]
      %v2501 = vld [vmem:[%s2493 + $0x1c] sm:$0xf]
      %v2502 = vld [vmem:[%s2493 + $0x20] sm:$0xf]
      %v2503 = vld [vmem:[%s2493 + $0x24] sm:$0xf]
      %v2504 = vld [vmem:[%s2493 + $0x28] sm:$0xf]
      %v2505 = vld [vmem:[%s2493 + $0x2c] sm:$0xf]
      %v2506 = vld [vmem:[%s2493 + $0x30] sm:$0xf]
      %v2507 = vld [vmem:[%s2493 + $0x34] sm:$0xf]
      %v2508 = vld [vmem:[%s2493 + $0x38] sm:$0xf]
      %v2509 = vld [vmem:[%s2493 + $0x3c] sm:$0xf]
      %v2526 = vunpack.c.l.b16 %v2494
      %v2527 = vunpack.c.l.b16 %v2495
      %v2528 = vunpack.c.l.b16 %v2496
      %v2529 = vunpack.c.l.b16 %v2497
      %v2530 = vunpack.c.l.b16 %v2498
      %v2531 = vunpack.c.l.b16 %v2499
      %v2532 = vunpack.c.l.b16 %v2500
      %v2533 = vunpack.c.l.b16 %v2501
      %v2534 = vunpack.c.l.b16 %v2502
      %v2535 = vunpack.c.l.b16 %v2503
      %v2536 = vunpack.c.l.b16 %v2504
      %v2537 = vunpack.c.l.b16 %v2505
      %v2538 = vunpack.c.l.b16 %v2506
      %v2539 = vunpack.c.l.b16 %v2507
      %v2540 = vunpack.c.l.b16 %v2508
      %v2541 = vunpack.c.l.b16 %v2509
      %v2542 = vpack.c.b16 %v2527, %v2526
      %v2543 = vpack.c.b16 %v2529, %v2528
      %v2544 = vpack.c.b16 %v2531, %v2530
      %v2545 = vpack.c.b16 %v2533, %v2532
      %v2546 = vpack.c.b16 %v2535, %v2534
      %v2547 = vpack.c.b16 %v2537, %v2536
      %v2548 = vpack.c.b16 %v2539, %v2538
      %v2549 = vpack.c.b16 %v2541, %v2540
      %2558 = vmatprep.subr.bf16.mxu0 0
      %2559 = vmatpush1.bf16.msra.mxu0 %v2549
      %2560 = vmatprep.subr.bf16.mxu0 0
      %2561 = vmatpush1.bf16.msra.mxu0 %v2548
      %2562 = vmatprep.subr.bf16.mxu0 0
      %2563 = vmatpush1.bf16.msra.mxu0 %v2547
      %2564 = vmatprep.subr.bf16.mxu0 0
      %2565 = vmatpush1.bf16.msra.mxu0 %v2546
      %2566 = vmatprep.subr.bf16.mxu0 0
      %2567 = vmatpush1.bf16.msra.mxu0 %v2545
      %2568 = vmatprep.subr.bf16.mxu0 0
      %2569 = vmatpush1.bf16.msra.mxu0 %v2544
      %2570 = vmatprep.subr.bf16.mxu0 0
      %2571 = vmatpush1.bf16.msra.mxu0 %v2543
      %2572 = vmatprep.subr.bf16.mxu0 0
      %2573 = vmatpush1.bf16.msra.mxu0 %v2542
      %2574 = vmatprep.subr.bf16.mxu0 0
      %2575 = vmatpush2.bf16.msra.mxu0 0
      %2576 = vmatprep.subr.bf16.mxu0 0
      %2577 = vmatpush2.bf16.msra.mxu0 0
      %2578 = vmatprep.subr.bf16.mxu0 0
      %2579 = vmatpush2.bf16.msra.mxu0 0
      %2580 = vmatprep.subr.bf16.mxu0 0
      %2581 = vmatpush2.bf16.msra.mxu0 0
      %2582 = vmatprep.subr.bf16.mxu0 0
      %2583 = vmatpush2.bf16.msra.mxu0 0
      %2584 = vmatprep.subr.bf16.mxu0 0
      %2585 = vmatpush2.bf16.msra.mxu0 0
      %2586 = vmatprep.subr.bf16.mxu0 0
      %2587 = vmatpush2.bf16.msra.mxu0 0
      %2588 = vmatprep.subr.bf16.mxu0 0
      %2589 = vmatpush2.bf16.msra.mxu0 0
      %2590 = vmatprep.mubr.bf16.mxu0 0
      %2591 = vmatmul.mubr.bf16.gmra.mxu0 %v2477
      %v2592 = vpop.f32.mrf.mxu0
      %v2593 = vadd.f32 0.0, %v2592
      %v2594 = vpop.f32.mrf.mxu0
      %v2595 = vpop.f32.mrf.mxu0
      %v2596 = vadd.f32 0.0, %v2595
      %v2597 = vpop.f32.mrf.mxu0
      %2598 = vmatprep.mubr.bf16.mxu0 0
      %2599 = vmatmul.mubr.bf16.gmra.mxu0 %v2478
      %v2600 = vpop.f32.mrf.mxu0
      %v2601 = vadd.f32 0.0, %v2600
      %v2602 = vpop.f32.mrf.mxu0
      %v2603 = vpop.f32.mrf.mxu0
      %v2604 = vadd.f32 0.0, %v2603
      %v2605 = vpop.f32.mrf.mxu0
      %2606 = vmatprep.mubr.bf16.mxu0 0
      %2607 = vmatmul.mubr.bf16.gmra.mxu0 %v2479
      %v2608 = vpop.f32.mrf.mxu0
      %v2609 = vadd.f32 0.0, %v2608
      %v2610 = vpop.f32.mrf.mxu0
      %v2611 = vpop.f32.mrf.mxu0
      %v2612 = vadd.f32 0.0, %v2611
      %v2613 = vpop.f32.mrf.mxu0
      %2614 = vmatprep.mubr.bf16.mxu0 0
      %2615 = vmatmul.mubr.bf16.gmra.mxu0 %v2480
      %v2616 = vpop.f32.mrf.mxu0
      %v2617 = vadd.f32 0.0, %v2616
      %v2618 = vpop.f32.mrf.mxu0
      %v2619 = vpop.f32.mrf.mxu0
      %v2620 = vadd.f32 0.0, %v2619
      %v2621 = vpop.f32.mrf.mxu0
      %2622 = vmatprep.mubr.bf16.mxu0 0
      %2623 = vmatmul.mubr.bf16.gmra.mxu0 %v2481
      %v2624 = vpop.f32.mrf.mxu0
      %v2625 = vadd.f32 0.0, %v2624
      %v2626 = vpop.f32.mrf.mxu0
      %v2627 = vpop.f32.mrf.mxu0
      %v2628 = vadd.f32 0.0, %v2627
      %v2629 = vpop.f32.mrf.mxu0
      %2630 = vmatprep.mubr.bf16.mxu0 0
      %2631 = vmatmul.mubr.bf16.gmra.mxu0 %v2482
      %v2632 = vpop.f32.mrf.mxu0
      %v2633 = vadd.f32 0.0, %v2632
      %v2634 = vpop.f32.mrf.mxu0
      %v2635 = vpop.f32.mrf.mxu0
      %v2636 = vadd.f32 0.0, %v2635
      %v2637 = vpop.f32.mrf.mxu0
      %2638 = vmatprep.mubr.bf16.mxu0 0
      %2639 = vmatmul.mubr.bf16.gmra.mxu0 %v2483
      %v2640 = vpop.f32.mrf.mxu0
      %v2641 = vadd.f32 0.0, %v2640
      %v2642 = vpop.f32.mrf.mxu0
      %v2643 = vpop.f32.mrf.mxu0
      %v2644 = vadd.f32 0.0, %v2643
      %v2645 = vpop.f32.mrf.mxu0
      %2646 = vmatprep.mubr.bf16.mxu0 0
      %2647 = vmatmul.mubr.bf16.gmra.mxu0 %v2484
      %v2648 = vpop.f32.mrf.mxu0
      %v2649 = vadd.f32 0.0, %v2648
      %v2650 = vpop.f32.mrf.mxu0
      %v2651 = vpop.f32.mrf.mxu0
      %v2652 = vadd.f32 0.0, %v2651
      %v2653 = vpop.f32.mrf.mxu0
      %2654 = vmatprep.mubr.bf16.mxu0 0
      %2655 = vmatmul.mubr.bf16.gmra.mxu0 %v2485
      %v2656 = vpop.f32.mrf.mxu0
      %v2657 = vadd.f32 0.0, %v2656
      %v2658 = vpop.f32.mrf.mxu0
      %v2659 = vpop.f32.mrf.mxu0
      %v2660 = vadd.f32 0.0, %v2659
      %v2661 = vpop.f32.mrf.mxu0
      %2662 = vmatprep.mubr.bf16.mxu0 0
      %2663 = vmatmul.mubr.bf16.gmra.mxu0 %v2486
      %v2664 = vpop.f32.mrf.mxu0
      %v2665 = vadd.f32 0.0, %v2664
      %v2666 = vpop.f32.mrf.mxu0
      %v2667 = vpop.f32.mrf.mxu0
      %v2668 = vadd.f32 0.0, %v2667
      %v2669 = vpop.f32.mrf.mxu0
      %2670 = vmatprep.mubr.bf16.mxu0 0
      %2671 = vmatmul.mubr.bf16.gmra.mxu0 %v2487
      %v2672 = vpop.f32.mrf.mxu0
      %v2673 = vadd.f32 0.0, %v2672
      %v2674 = vpop.f32.mrf.mxu0
      %v2675 = vpop.f32.mrf.mxu0
      %v2676 = vadd.f32 0.0, %v2675
      %v2677 = vpop.f32.mrf.mxu0
      %2678 = vmatprep.mubr.bf16.mxu0 0
      %2679 = vmatmul.mubr.bf16.gmra.mxu0 %v2488
      %v2680 = vpop.f32.mrf.mxu0
      %v2681 = vadd.f32 0.0, %v2680
      %v2682 = vpop.f32.mrf.mxu0
      %v2683 = vpop.f32.mrf.mxu0
      %v2684 = vadd.f32 0.0, %v2683
      %v2685 = vpop.f32.mrf.mxu0
      %2686 = vmatprep.mubr.bf16.mxu0 0
      %2687 = vmatmul.mubr.bf16.gmra.mxu0 %v2489
      %v2688 = vpop.f32.mrf.mxu0
      %v2689 = vadd.f32 0.0, %v2688
      %v2690 = vpop.f32.mrf.mxu0
      %v2691 = vpop.f32.mrf.mxu0
      %v2692 = vadd.f32 0.0, %v2691
      %v2693 = vpop.f32.mrf.mxu0
      %2694 = vmatprep.mubr.bf16.mxu0 0
      %2695 = vmatmul.mubr.bf16.gmra.mxu0 %v2490
      %v2696 = vpop.f32.mrf.mxu0
      %v2697 = vadd.f32 0.0, %v2696
      %v2698 = vpop.f32.mrf.mxu0
      %v2699 = vpop.f32.mrf.mxu0
      %v2700 = vadd.f32 0.0, %v2699
      %v2701 = vpop.f32.mrf.mxu0
      %2702 = vmatprep.mubr.bf16.mxu0 0
      %2703 = vmatmul.mubr.bf16.gmra.mxu0 %v2491
      %v2704 = vpop.f32.mrf.mxu0
      %v2705 = vadd.f32 0.0, %v2704
      %v2706 = vpop.f32.mrf.mxu0
      %v2707 = vpop.f32.mrf.mxu0
      %v2708 = vadd.f32 0.0, %v2707
      %v2709 = vpop.f32.mrf.mxu0
      %2710 = vmatprep.mubr.bf16.mxu0 0
      %2711 = vmatmul.mubr.bf16.gmra.mxu0 %v2492
      %v2712 = vpop.f32.mrf.mxu0
      %v2713 = vadd.f32 0.0, %v2712
      %v2714 = vpop.f32.mrf.mxu0
      %v2715 = vpop.f32.mrf.mxu0
      %v2716 = vadd.f32 0.0, %v2715
      %v2717 = vpop.f32.mrf.mxu0
      %2718 = vdwg.mxu0
      %v2719 = vadd.f32 %v2413, %v2593
      %v2720 = vadd.f32 %v2414, %v2596
      %v2721 = vadd.f32 %v2415, %v2601
      %v2722 = vadd.f32 %v2416, %v2604
      %v2723 = vadd.f32 %v2417, %v2609
      %v2724 = vadd.f32 %v2418, %v2612
      %v2725 = vadd.f32 %v2419, %v2617
      %v2726 = vadd.f32 %v2420, %v2620
      %v2727 = vadd.f32 %v2421, %v2625
      %v2728 = vadd.f32 %v2422, %v2628
      %v2729 = vadd.f32 %v2423, %v2633
      %v2730 = vadd.f32 %v2424, %v2636
      %v2731 = vadd.f32 %v2425, %v2641
      %v2732 = vadd.f32 %v2426, %v2644
      %v2733 = vadd.f32 %v2427, %v2649
      %v2734 = vadd.f32 %v2428, %v2652
      %v2735 = vadd.f32 %v2429, %v2657
      %v2736 = vadd.f32 %v2430, %v2660
      %v2737 = vadd.f32 %v2431, %v2665
      %v2738 = vadd.f32 %v2432, %v2668
      %v2739 = vadd.f32 %v2433, %v2673
      %v2740 = vadd.f32 %v2434, %v2676
      %v2741 = vadd.f32 %v2435, %v2681
      %v2742 = vadd.f32 %v2436, %v2684
      %v2743 = vadd.f32 %v2437, %v2689
      %v2744 = vadd.f32 %v2438, %v2692
      %v2745 = vadd.f32 %v2439, %v2697
      %v2746 = vadd.f32 %v2440, %v2700
      %v2747 = vadd.f32 %v2441, %v2705
      %v2748 = vadd.f32 %v2442, %v2708
      %v2749 = vadd.f32 %v2443, %v2713
      %v2750 = vadd.f32 %v2444, %v2716
      %v2751 = vld [vmem:[%s2138 + $0x2] sm:$0xff]
      %v2752 = vld [vmem:[%s2138 + $0xa] sm:$0xff]
      %v2753 = vld [vmem:[%s2138 + $0x1a] sm:$0xff]
      %v2754 = vld [vmem:[%s2138 + $0x22] sm:$0xff]
      %v2755 = vld [vmem:[%s2138 + $0x32] sm:$0xff]
      %v2756 = vld [vmem:[%s2138 + $0x3a] sm:$0xff]
      %v2757 = vld [vmem:[%s2138 + $0x4a] sm:$0xff]
      %v2758 = vld [vmem:[%s2138 + $0x52] sm:$0xff]
      %v2759 = vld [vmem:[%s2138 + $0x62] sm:$0xff]
      %v2760 = vld [vmem:[%s2138 + $0x6a] sm:$0xff]
      %v2761 = vld [vmem:[%s2138 + $0x7a] sm:$0xff]
      %v2762 = vld [vmem:[%s2138 + $0x82] sm:$0xff]
      %v2763 = vld [vmem:[%s2138 + $0x92] sm:$0xff]
      %v2764 = vld [vmem:[%s2138 + $0x9a] sm:$0xff]
      %v2765 = vld [vmem:[%s2138 + $0xaa] sm:$0xff]
      %v2766 = vld [vmem:[%s2138 + $0xb2] sm:$0xff]
      %v2767 = vld [vmem:[%s2138 + $0xc2] sm:$0xff]
      %v2768 = vld [vmem:[%s2138 + $0xca] sm:$0xff]
      %v2769 = vld [vmem:[%s2138 + $0xda] sm:$0xff]
      %v2770 = vld [vmem:[%s2138 + $0xe2] sm:$0xff]
      %v2771 = vld [vmem:[%s2138 + $0xf2] sm:$0xff]
      %v2772 = vld [vmem:[%s2138 + $0xfa] sm:$0xff]
      %v2773 = vld [vmem:[%s2138 + $0x10a] sm:$0xff]
      %v2774 = vld [vmem:[%s2138 + $0x112] sm:$0xff]
      %v2775 = vld [vmem:[%s2138 + $0x122] sm:$0xff]
      %v2776 = vld [vmem:[%s2138 + $0x12a] sm:$0xff]
      %v2777 = vld [vmem:[%s2138 + $0x13a] sm:$0xff]
      %v2778 = vld [vmem:[%s2138 + $0x142] sm:$0xff]
      %v2779 = vld [vmem:[%s2138 + $0x152] sm:$0xff]
      %v2780 = vld [vmem:[%s2138 + $0x15a] sm:$0xff]
      %v2781 = vld [vmem:[%s2138 + $0x16a] sm:$0xff]
      %v2782 = vld [vmem:[%s2138 + $0x172] sm:$0xff]
      %v2783 = vpack.c.bf16 %v2752, %v2751
      %v2784 = vpack.c.bf16 %v2754, %v2753
      %v2785 = vpack.c.bf16 %v2756, %v2755
      %v2786 = vpack.c.bf16 %v2758, %v2757
      %v2787 = vpack.c.bf16 %v2760, %v2759
      %v2788 = vpack.c.bf16 %v2762, %v2761
      %v2789 = vpack.c.bf16 %v2764, %v2763
      %v2790 = vpack.c.bf16 %v2766, %v2765
      %v2791 = vpack.c.bf16 %v2768, %v2767
      %v2792 = vpack.c.bf16 %v2770, %v2769
      %v2793 = vpack.c.bf16 %v2772, %v2771
      %v2794 = vpack.c.bf16 %v2774, %v2773
      %v2795 = vpack.c.bf16 %v2776, %v2775
      %v2796 = vpack.c.bf16 %v2778, %v2777
      %v2797 = vpack.c.bf16 %v2780, %v2779
      %v2798 = vpack.c.bf16 %v2782, %v2781
      %s2799 = scalar_lea.vmem %s3, 512
      %v2800 = vld [vmem:[%s2799] sm:$0xf]
      %v2801 = vld [vmem:[%s2799 + $0x4] sm:$0xf]
      %v2802 = vld [vmem:[%s2799 + $0x8] sm:$0xf]
      %v2803 = vld [vmem:[%s2799 + $0xc] sm:$0xf]
      %v2804 = vld [vmem:[%s2799 + $0x10] sm:$0xf]
      %v2805 = vld [vmem:[%s2799 + $0x14] sm:$0xf]
      %v2806 = vld [vmem:[%s2799 + $0x18] sm:$0xf]
      %v2807 = vld [vmem:[%s2799 + $0x1c] sm:$0xf]
      %v2808 = vld [vmem:[%s2799 + $0x20] sm:$0xf]
      %v2809 = vld [vmem:[%s2799 + $0x24] sm:$0xf]
      %v2810 = vld [vmem:[%s2799 + $0x28] sm:$0xf]
      %v2811 = vld [vmem:[%s2799 + $0x2c] sm:$0xf]
      %v2812 = vld [vmem:[%s2799 + $0x30] sm:$0xf]
      %v2813 = vld [vmem:[%s2799 + $0x34] sm:$0xf]
      %v2814 = vld [vmem:[%s2799 + $0x38] sm:$0xf]
      %v2815 = vld [vmem:[%s2799 + $0x3c] sm:$0xf]
      %v2832 = vunpack.c.l.b16 %v2800
      %v2833 = vunpack.c.l.b16 %v2801
      %v2834 = vunpack.c.l.b16 %v2802
      %v2835 = vunpack.c.l.b16 %v2803
      %v2836 = vunpack.c.l.b16 %v2804
      %v2837 = vunpack.c.l.b16 %v2805
      %v2838 = vunpack.c.l.b16 %v2806
      %v2839 = vunpack.c.l.b16 %v2807
      %v2840 = vunpack.c.l.b16 %v2808
      %v2841 = vunpack.c.l.b16 %v2809
      %v2842 = vunpack.c.l.b16 %v2810
      %v2843 = vunpack.c.l.b16 %v2811
      %v2844 = vunpack.c.l.b16 %v2812
      %v2845 = vunpack.c.l.b16 %v2813
      %v2846 = vunpack.c.l.b16 %v2814
      %v2847 = vunpack.c.l.b16 %v2815
      %v2848 = vpack.c.b16 %v2833, %v2832
      %v2849 = vpack.c.b16 %v2835, %v2834
      %v2850 = vpack.c.b16 %v2837, %v2836
      %v2851 = vpack.c.b16 %v2839, %v2838
      %v2852 = vpack.c.b16 %v2841, %v2840
      %v2853 = vpack.c.b16 %v2843, %v2842
      %v2854 = vpack.c.b16 %v2845, %v2844
      %v2855 = vpack.c.b16 %v2847, %v2846
      %2864 = vmatprep.subr.bf16.mxu0 0
      %2865 = vmatpush1.bf16.msra.mxu0 %v2855
      %2866 = vmatprep.subr.bf16.mxu0 0
      %2867 = vmatpush1.bf16.msra.mxu0 %v2854
      %2868 = vmatprep.subr.bf16.mxu0 0
      %2869 = vmatpush1.bf16.msra.mxu0 %v2853
      %2870 = vmatprep.subr.bf16.mxu0 0
      %2871 = vmatpush1.bf16.msra.mxu0 %v2852
      %2872 = vmatprep.subr.bf16.mxu0 0
      %2873 = vmatpush1.bf16.msra.mxu0 %v2851
      %2874 = vmatprep.subr.bf16.mxu0 0
      %2875 = vmatpush1.bf16.msra.mxu0 %v2850
      %2876 = vmatprep.subr.bf16.mxu0 0
      %2877 = vmatpush1.bf16.msra.mxu0 %v2849
      %2878 = vmatprep.subr.bf16.mxu0 0
      %2879 = vmatpush1.bf16.msra.mxu0 %v2848
      %2880 = vmatprep.subr.bf16.mxu0 0
      %2881 = vmatpush2.bf16.msra.mxu0 0
      %2882 = vmatprep.subr.bf16.mxu0 0
      %2883 = vmatpush2.bf16.msra.mxu0 0
      %2884 = vmatprep.subr.bf16.mxu0 0
      %2885 = vmatpush2.bf16.msra.mxu0 0
      %2886 = vmatprep.subr.bf16.mxu0 0
      %2887 = vmatpush2.bf16.msra.mxu0 0
      %2888 = vmatprep.subr.bf16.mxu0 0
      %2889 = vmatpush2.bf16.msra.mxu0 0
      %2890 = vmatprep.subr.bf16.mxu0 0
      %2891 = vmatpush2.bf16.msra.mxu0 0
      %2892 = vmatprep.subr.bf16.mxu0 0
      %2893 = vmatpush2.bf16.msra.mxu0 0
      %2894 = vmatprep.subr.bf16.mxu0 0
      %2895 = vmatpush2.bf16.msra.mxu0 0
      %2896 = vmatprep.mubr.bf16.mxu0 0
      %2897 = vmatmul.mubr.bf16.gmra.mxu0 %v2783
      %v2898 = vpop.f32.mrf.mxu0
      %v2899 = vadd.f32 0.0, %v2898
      %v2900 = vpop.f32.mrf.mxu0
      %v2901 = vpop.f32.mrf.mxu0
      %v2902 = vadd.f32 0.0, %v2901
      %v2903 = vpop.f32.mrf.mxu0
      %2904 = vmatprep.mubr.bf16.mxu0 0
      %2905 = vmatmul.mubr.bf16.gmra.mxu0 %v2784
      %v2906 = vpop.f32.mrf.mxu0
      %v2907 = vadd.f32 0.0, %v2906
      %v2908 = vpop.f32.mrf.mxu0
      %v2909 = vpop.f32.mrf.mxu0
      %v2910 = vadd.f32 0.0, %v2909
      %v2911 = vpop.f32.mrf.mxu0
      %2912 = vmatprep.mubr.bf16.mxu0 0
      %2913 = vmatmul.mubr.bf16.gmra.mxu0 %v2785
      %v2914 = vpop.f32.mrf.mxu0
      %v2915 = vadd.f32 0.0, %v2914
      %v2916 = vpop.f32.mrf.mxu0
      %v2917 = vpop.f32.mrf.mxu0
      %v2918 = vadd.f32 0.0, %v2917
      %v2919 = vpop.f32.mrf.mxu0
      %2920 = vmatprep.mubr.bf16.mxu0 0
      %2921 = vmatmul.mubr.bf16.gmra.mxu0 %v2786
      %v2922 = vpop.f32.mrf.mxu0
      %v2923 = vadd.f32 0.0, %v2922
      %v2924 = vpop.f32.mrf.mxu0
      %v2925 = vpop.f32.mrf.mxu0
      %v2926 = vadd.f32 0.0, %v2925
      %v2927 = vpop.f32.mrf.mxu0
      %2928 = vmatprep.mubr.bf16.mxu0 0
      %2929 = vmatmul.mubr.bf16.gmra.mxu0 %v2787
      %v2930 = vpop.f32.mrf.mxu0
      %v2931 = vadd.f32 0.0, %v2930
      %v2932 = vpop.f32.mrf.mxu0
      %v2933 = vpop.f32.mrf.mxu0
      %v2934 = vadd.f32 0.0, %v2933
      %v2935 = vpop.f32.mrf.mxu0
      %2936 = vmatprep.mubr.bf16.mxu0 0
      %2937 = vmatmul.mubr.bf16.gmra.mxu0 %v2788
      %v2938 = vpop.f32.mrf.mxu0
      %v2939 = vadd.f32 0.0, %v2938
      %v2940 = vpop.f32.mrf.mxu0
      %v2941 = vpop.f32.mrf.mxu0
      %v2942 = vadd.f32 0.0, %v2941
      %v2943 = vpop.f32.mrf.mxu0
      %2944 = vmatprep.mubr.bf16.mxu0 0
      %2945 = vmatmul.mubr.bf16.gmra.mxu0 %v2789
      %v2946 = vpop.f32.mrf.mxu0
      %v2947 = vadd.f32 0.0, %v2946
      %v2948 = vpop.f32.mrf.mxu0
      %v2949 = vpop.f32.mrf.mxu0
      %v2950 = vadd.f32 0.0, %v2949
      %v2951 = vpop.f32.mrf.mxu0
      %2952 = vmatprep.mubr.bf16.mxu0 0
      %2953 = vmatmul.mubr.bf16.gmra.mxu0 %v2790
      %v2954 = vpop.f32.mrf.mxu0
      %v2955 = vadd.f32 0.0, %v2954
      %v2956 = vpop.f32.mrf.mxu0
      %v2957 = vpop.f32.mrf.mxu0
      %v2958 = vadd.f32 0.0, %v2957
      %v2959 = vpop.f32.mrf.mxu0
      %2960 = vmatprep.mubr.bf16.mxu0 0
      %2961 = vmatmul.mubr.bf16.gmra.mxu0 %v2791
      %v2962 = vpop.f32.mrf.mxu0
      %v2963 = vadd.f32 0.0, %v2962
      %v2964 = vpop.f32.mrf.mxu0
      %v2965 = vpop.f32.mrf.mxu0
      %v2966 = vadd.f32 0.0, %v2965
      %v2967 = vpop.f32.mrf.mxu0
      %2968 = vmatprep.mubr.bf16.mxu0 0
      %2969 = vmatmul.mubr.bf16.gmra.mxu0 %v2792
      %v2970 = vpop.f32.mrf.mxu0
      %v2971 = vadd.f32 0.0, %v2970
      %v2972 = vpop.f32.mrf.mxu0
      %v2973 = vpop.f32.mrf.mxu0
      %v2974 = vadd.f32 0.0, %v2973
      %v2975 = vpop.f32.mrf.mxu0
      %2976 = vmatprep.mubr.bf16.mxu0 0
      %2977 = vmatmul.mubr.bf16.gmra.mxu0 %v2793
      %v2978 = vpop.f32.mrf.mxu0
      %v2979 = vadd.f32 0.0, %v2978
      %v2980 = vpop.f32.mrf.mxu0
      %v2981 = vpop.f32.mrf.mxu0
      %v2982 = vadd.f32 0.0, %v2981
      %v2983 = vpop.f32.mrf.mxu0
      %2984 = vmatprep.mubr.bf16.mxu0 0
      %2985 = vmatmul.mubr.bf16.gmra.mxu0 %v2794
      %v2986 = vpop.f32.mrf.mxu0
      %v2987 = vadd.f32 0.0, %v2986
      %v2988 = vpop.f32.mrf.mxu0
      %v2989 = vpop.f32.mrf.mxu0
      %v2990 = vadd.f32 0.0, %v2989
      %v2991 = vpop.f32.mrf.mxu0
      %2992 = vmatprep.mubr.bf16.mxu0 0
      %2993 = vmatmul.mubr.bf16.gmra.mxu0 %v2795
      %v2994 = vpop.f32.mrf.mxu0
      %v2995 = vadd.f32 0.0, %v2994
      %v2996 = vpop.f32.mrf.mxu0
      %v2997 = vpop.f32.mrf.mxu0
      %v2998 = vadd.f32 0.0, %v2997
      %v2999 = vpop.f32.mrf.mxu0
      %3000 = vmatprep.mubr.bf16.mxu0 0
      %3001 = vmatmul.mubr.bf16.gmra.mxu0 %v2796
      %v3002 = vpop.f32.mrf.mxu0
      %v3003 = vadd.f32 0.0, %v3002
      %v3004 = vpop.f32.mrf.mxu0
      %v3005 = vpop.f32.mrf.mxu0
      %v3006 = vadd.f32 0.0, %v3005
      %v3007 = vpop.f32.mrf.mxu0
      %3008 = vmatprep.mubr.bf16.mxu0 0
      %3009 = vmatmul.mubr.bf16.gmra.mxu0 %v2797
      %v3010 = vpop.f32.mrf.mxu0
      %v3011 = vadd.f32 0.0, %v3010
      %v3012 = vpop.f32.mrf.mxu0
      %v3013 = vpop.f32.mrf.mxu0
      %v3014 = vadd.f32 0.0, %v3013
      %v3015 = vpop.f32.mrf.mxu0
      %3016 = vmatprep.mubr.bf16.mxu0 0
      %3017 = vmatmul.mubr.bf16.gmra.mxu0 %v2798
      %v3018 = vpop.f32.mrf.mxu0
      %v3019 = vadd.f32 0.0, %v3018
      %v3020 = vpop.f32.mrf.mxu0
      %v3021 = vpop.f32.mrf.mxu0
      %v3022 = vadd.f32 0.0, %v3021
      %v3023 = vpop.f32.mrf.mxu0
      %3024 = vdwg.mxu0
      %v3025 = vadd.f32 %v2719, %v2899
      %v3026 = vadd.f32 %v2720, %v2902
      %v3027 = vadd.f32 %v2721, %v2907
      %v3028 = vadd.f32 %v2722, %v2910
      %v3029 = vadd.f32 %v2723, %v2915
      %v3030 = vadd.f32 %v2724, %v2918
      %v3031 = vadd.f32 %v2725, %v2923
      %v3032 = vadd.f32 %v2726, %v2926
      %v3033 = vadd.f32 %v2727, %v2931
      %v3034 = vadd.f32 %v2728, %v2934
      %v3035 = vadd.f32 %v2729, %v2939
      %v3036 = vadd.f32 %v2730, %v2942
      %v3037 = vadd.f32 %v2731, %v2947
      %v3038 = vadd.f32 %v2732, %v2950
      %v3039 = vadd.f32 %v2733, %v2955
      %v3040 = vadd.f32 %v2734, %v2958
      %v3041 = vadd.f32 %v2735, %v2963
      %v3042 = vadd.f32 %v2736, %v2966
      %v3043 = vadd.f32 %v2737, %v2971
      %v3044 = vadd.f32 %v2738, %v2974
      %v3045 = vadd.f32 %v2739, %v2979
      %v3046 = vadd.f32 %v2740, %v2982
      %v3047 = vadd.f32 %v2741, %v2987
      %v3048 = vadd.f32 %v2742, %v2990
      %v3049 = vadd.f32 %v2743, %v2995
      %v3050 = vadd.f32 %v2744, %v2998
      %v3051 = vadd.f32 %v2745, %v3003
      %v3052 = vadd.f32 %v2746, %v3006
      %v3053 = vadd.f32 %v2747, %v3011
      %v3054 = vadd.f32 %v2748, %v3014
      %v3055 = vadd.f32 %v2749, %v3019
      %v3056 = vadd.f32 %v2750, %v3022
      %3057 = vst [vmem:[%s246] sm:$0xff] %v3025
      %3058 = vst [vmem:[%s246 + $0x8] sm:$0xff] %v3026
      %3059 = vst [vmem:[%s246 + $0x10] sm:$0xff] %v3027
      %3060 = vst [vmem:[%s246 + $0x18] sm:$0xff] %v3028
      %3061 = vst [vmem:[%s246 + $0x20] sm:$0xff] %v3029
      %3062 = vst [vmem:[%s246 + $0x28] sm:$0xff] %v3030
      %3063 = vst [vmem:[%s246 + $0x30] sm:$0xff] %v3031
      %3064 = vst [vmem:[%s246 + $0x38] sm:$0xff] %v3032
      %3065 = vst [vmem:[%s246 + $0x40] sm:$0xff] %v3033
      %3066 = vst [vmem:[%s246 + $0x48] sm:$0xff] %v3034
      %3067 = vst [vmem:[%s246 + $0x50] sm:$0xff] %v3035
      %3068 = vst [vmem:[%s246 + $0x58] sm:$0xff] %v3036
      %3069 = vst [vmem:[%s246 + $0x60] sm:$0xff] %v3037
      %3070 = vst [vmem:[%s246 + $0x68] sm:$0xff] %v3038
      %3071 = vst [vmem:[%s246 + $0x70] sm:$0xff] %v3039
      %3072 = vst [vmem:[%s246 + $0x78] sm:$0xff] %v3040
      %3073 = vst [vmem:[%s246 + $0x80] sm:$0xff] %v3041
      %3074 = vst [vmem:[%s246 + $0x88] sm:$0xff] %v3042
      %3075 = vst [vmem:[%s246 + $0x90] sm:$0xff] %v3043
      %3076 = vst [vmem:[%s246 + $0x98] sm:$0xff] %v3044
      %3077 = vst [vmem:[%s246 + $0xa0] sm:$0xff] %v3045
      %3078 = vst [vmem:[%s246 + $0xa8] sm:$0xff] %v3046
      %3079 = vst [vmem:[%s246 + $0xb0] sm:$0xff] %v3047
      %3080 = vst [vmem:[%s246 + $0xb8] sm:$0xff] %v3048
      %3081 = vst [vmem:[%s246 + $0xc0] sm:$0xff] %v3049
      %3082 = vst [vmem:[%s246 + $0xc8] sm:$0xff] %v3050
      %3083 = vst [vmem:[%s246 + $0xd0] sm:$0xff] %v3051
      %3084 = vst [vmem:[%s246 + $0xd8] sm:$0xff] %v3052
      %3085 = vst [vmem:[%s246 + $0xe0] sm:$0xff] %v3053
      %3086 = vst [vmem:[%s246 + $0xe8] sm:$0xff] %v3054
      %3087 = vst [vmem:[%s246 + $0xf0] sm:$0xff] %v3055
      %3088 = vst [vmem:[%s246 + $0xf8] sm:$0xff] %v3056
      %p3089 = scmp.eq.s32.totalorder %s18, 0
      // Predicated region
      $region37: #{unet_conv2_forward.3} parent=35 // pred_check
        %p3090 = pneg %p3089
      $region38: #{unet_conv2_forward.3} parent=35 // pred_check_branch
        %3092 = sbr.rel (%p3090) target = $region40
      $region39: #{unet_conv2_forward.3} parent=35 // pred_region
        %3093 = vst [vmem:[%s5] sm:$0x1] 0.0
        %3094 = vst [vmem:[%s6] sm:$0x1] 0.0
      $region40: #{unet_conv2_forward.3} parent=35 // pred_fallthru
        _
      %v3095 = vld [vmem:[%s5] sm:$0x1]
      %v3096 = vadd.f32 %v3025, %v3026
      %v3097 = vadd.f32 %v3096, %v3027
      %v3098 = vadd.f32 %v3097, %v3028
      %v3099 = vadd.f32 %v3098, %v3029
      %v3100 = vadd.f32 %v3099, %v3030
      %v3101 = vadd.f32 %v3100, %v3031
      %v3102 = vadd.f32 %v3101, %v3032
      %v3103 = vadd.f32 %v3102, %v3033
      %v3104 = vadd.f32 %v3103, %v3034
      %v3105 = vadd.f32 %v3104, %v3035
      %v3106 = vadd.f32 %v3105, %v3036
      %v3107 = vadd.f32 %v3106, %v3037
      %v3108 = vadd.f32 %v3107, %v3038
      %v3109 = vadd.f32 %v3108, %v3039
      %v3110 = vadd.f32 %v3109, %v3040
      %v3111 = vadd.f32 %v3110, %v3041
      %v3112 = vadd.f32 %v3111, %v3042
      %v3113 = vadd.f32 %v3112, %v3043
      %v3114 = vadd.f32 %v3113, %v3044
      %v3115 = vadd.f32 %v3114, %v3045
      %v3116 = vadd.f32 %v3115, %v3046
      %v3117 = vadd.f32 %v3116, %v3047
      %v3118 = vadd.f32 %v3117, %v3048
      %v3119 = vadd.f32 %v3118, %v3049
      %v3120 = vadd.f32 %v3119, %v3050
      %v3121 = vadd.f32 %v3120, %v3051
      %v3122 = vadd.f32 %v3121, %v3052
      %v3123 = vadd.f32 %v3122, %v3053
      %v3124 = vadd.f32 %v3123, %v3054
      %v3125 = vadd.f32 %v3124, %v3055
      %v3126 = vadd.f32 %v3125, %v3056
      %v3127 = vrot.slane %v3126, 4
      %v3128 = vadd.f32 %v3126, %v3127
      %v3129 = vrot.slane %v3128, 2
      %v3130 = vadd.f32 %v3128, %v3129
      %v3131 = vrot.slane %v3130, 1
      %v3132 = vadd.f32 %v3130, %v3131
      %v3133 = vadd.f32 %v3095, %v3132
      %3134 = vst [vmem:[%s5] sm:$0x1] %v3133
      %v3135 = vld [vmem:[%s6] sm:$0x1]
      %v3136 = vmul.f32 %v3025, %v3025
      %v3137 = vmul.f32 %v3026, %v3026
      %v3138 = vmul.f32 %v3027, %v3027
      %v3139 = vmul.f32 %v3028, %v3028
      %v3140 = vmul.f32 %v3029, %v3029
      %v3141 = vmul.f32 %v3030, %v3030
      %v3142 = vmul.f32 %v3031, %v3031
      %v3143 = vmul.f32 %v3032, %v3032
      %v3144 = vmul.f32 %v3033, %v3033
      %v3145 = vmul.f32 %v3034, %v3034
      %v3146 = vmul.f32 %v3035, %v3035
      %v3147 = vmul.f32 %v3036, %v3036
      %v3148 = vmul.f32 %v3037, %v3037
      %v3149 = vmul.f32 %v3038, %v3038
      %v3150 = vmul.f32 %v3039, %v3039
      %v3151 = vmul.f32 %v3040, %v3040
      %v3152 = vmul.f32 %v3041, %v3041
      %v3153 = vmul.f32 %v3042, %v3042
      %v3154 = vmul.f32 %v3043, %v3043
      %v3155 = vmul.f32 %v3044, %v3044
      %v3156 = vmul.f32 %v3045, %v3045
      %v3157 = vmul.f32 %v3046, %v3046
      %v3158 = vmul.f32 %v3047, %v3047
      %v3159 = vmul.f32 %v3048, %v3048
      %v3160 = vmul.f32 %v3049, %v3049
      %v3161 = vmul.f32 %v3050, %v3050
      %v3162 = vmul.f32 %v3051, %v3051
      %v3163 = vmul.f32 %v3052, %v3052
      %v3164 = vmul.f32 %v3053, %v3053
      %v3165 = vmul.f32 %v3054, %v3054
      %v3166 = vmul.f32 %v3055, %v3055
      %v3167 = vmul.f32 %v3056, %v3056
      %v3168 = vadd.f32 %v3136, %v3137
      %v3169 = vadd.f32 %v3168, %v3138
      %v3170 = vadd.f32 %v3169, %v3139
      %v3171 = vadd.f32 %v3170, %v3140
      %v3172 = vadd.f32 %v3171, %v3141
      %v3173 = vadd.f32 %v3172, %v3142
      %v3174 = vadd.f32 %v3173, %v3143
      %v3175 = vadd.f32 %v3174, %v3144
      %v3176 = vadd.f32 %v3175, %v3145
      %v3177 = vadd.f32 %v3176, %v3146
      %v3178 = vadd.f32 %v3177, %v3147
      %v3179 = vadd.f32 %v3178, %v3148
      %v3180 = vadd.f32 %v3179, %v3149
      %v3181 = vadd.f32 %v3180, %v3150
      %v3182 = vadd.f32 %v3181, %v3151
      %v3183 = vadd.f32 %v3182, %v3152
      %v3184 = vadd.f32 %v3183, %v3153
      %v3185 = vadd.f32 %v3184, %v3154
      %v3186 = vadd.f32 %v3185, %v3155
      %v3187 = vadd.f32 %v3186, %v3156
      %v3188 = vadd.f32 %v3187, %v3157
      %v3189 = vadd.f32 %v3188, %v3158
      %v3190 = vadd.f32 %v3189, %v3159
      %v3191 = vadd.f32 %v3190, %v3160
      %v3192 = vadd.f32 %v3191, %v3161
      %v3193 = vadd.f32 %v3192, %v3162
      %v3194 = vadd.f32 %v3193, %v3163
      %v3195 = vadd.f32 %v3194, %v3164
      %v3196 = vadd.f32 %v3195, %v3165
      %v3197 = vadd.f32 %v3196, %v3166
      %v3198 = vadd.f32 %v3197, %v3167
      %v3199 = vrot.slane %v3198, 4
      %v3200 = vadd.f32 %v3198, %v3199
      %v3201 = vrot.slane %v3200, 2
      %v3202 = vadd.f32 %v3200, %v3201
      %v3203 = vrot.slane %v3202, 1
      %v3204 = vadd.f32 %v3202, %v3203
      %v3205 = vadd.f32 %v3135, %v3204
      %3206 = vst [vmem:[%s6] sm:$0x1] %v3205
      %p3207 = scmp.lt.s32.totalorder %s18, 1
      %s3208 = scalar_select %p3207, %s18, 1
      %s3209 = smul.addr %s3208, 32
      %s3210 = smul.addr %s3209, 8
      %s3211 = scalar_lea.vmem %s4, %s3210
      // Predicated region
      $region41: #{unet_conv2_forward.3} parent=35 // pred_check
        %p3212 = pneg %p125
      $region42: #{unet_conv2_forward.3} parent=35 // pred_check_branch
        %3214 = sbr.rel (%p3212) target = $region44
      $region43: #{unet_conv2_forward.3} parent=35 // pred_region
        _
      $region44: #{unet_conv2_forward.3} parent=35 // pred_fallthru
        _
      // Predicated region
      $region45: #{unet_conv2_forward.3} parent=35 // pred_check
        %p3215 = pneg %p146
      $region46: #{unet_conv2_forward.3} parent=35 // pred_check_branch
        %3217 = sbr.rel (%p3215) target = $region48
      $region47: #{unet_conv2_forward.3} parent=35 // pred_region
        _
      $region48: #{unet_conv2_forward.3} parent=35 // pred_fallthru
        _
      // Predicated region
      $region49: #{unet_conv2_forward.3} parent=35 // pred_check
        %p3218 = pneg %p167
      $region50: #{unet_conv2_forward.3} parent=35 // pred_check_branch
        %3220 = sbr.rel (%p3218) target = $region52
      $region51: #{unet_conv2_forward.3} parent=35 // pred_region
        _
      $region52: #{unet_conv2_forward.3} parent=35 // pred_fallthru
        _
      // Predicated region
      $region53: #{unet_conv2_forward.3} parent=35 // pred_check
        %p3221 = pneg %p146
      $region54: #{unet_conv2_forward.3} parent=35 // pred_check_branch
        %3223 = sbr.rel (%p3221) target = $region56
      $region55: #{unet_conv2_forward.3} parent=35 // pred_region
        _
      $region56: #{unet_conv2_forward.3} parent=35 // pred_fallthru
        _
      // Predicated region
      $region57: #{unet_conv2_forward.3} parent=35 // pred_check
        %p3224 = pneg %p167
      $region58: #{unet_conv2_forward.3} parent=35 // pred_check_branch
        %3226 = sbr.rel (%p3224) target = $region60
      $region59: #{unet_conv2_forward.3} parent=35 // pred_region
        _
      $region60: #{unet_conv2_forward.3} parent=35 // pred_fallthru
        _
    $region36: #{unet_conv2_forward.3} parent=5 // pred_fallthru
      _
    %p3227 = scmp.le.s32.totalorder 2, %s13
    // Predicated region
    $region61: #{unet_conv2_forward.3} parent=5 // pred_check
      %p3228 = pneg %p3227
    $region62: #{unet_conv2_forward.3} parent=5 // pred_check_branch
      %3230 = sbr.rel (%p3228) target = $region64
    $region63: #{unet_conv2_forward.3} parent=5 // pred_region
      %s3231 = ssub.s32 %s13, 2
      // Predicated region
      $region65: #{unet_conv2_forward.3} parent=63 // pred_check
        %p3232 = pneg %p131
      $region66: #{unet_conv2_forward.3} parent=63 // pred_check_branch
        %3234 = sbr.rel (%p3232) target = $region68
      $region67: #{unet_conv2_forward.3} parent=63 // pred_region
        %p3235 = scmp.lt.s32.totalorder %s19, 1
        %s3236 = scalar_select %p3235, %s19, 1
        %s3237 = smul.addr %s3236, 32
        %s3238 = smul.addr %s3237, 8
        %s3239 = scalar_lea.vmem %s4, %s3238
      $region68: #{unet_conv2_forward.3} parent=63 // pred_fallthru
        _
    $region64: #{unet_conv2_forward.3} parent=5 // pred_fallthru
      _
  $region6: #{unet_conv2_forward.3} parent=0 // loop_footer
    %s17 = sadd.s32 1, %s13
  $region7: #{unet_conv2_forward.3} parent=0 // loop_footer_branch
    %12 = sbr.rel target = $region3
  $region8: #{unet_conv2_forward.3} parent=0 // loop_exit
    _

// kernel: unet_conv2_forward.4
$region0: #{unet_conv2_forward.4}
  #allocation0 [shape = 'u32[]', space=smem, size = 0x4, offset = 0x4, fixed_abs, tag = 'smem constant byte address 0x4 - core index']
  #allocation1 [shape = 'u32[144,128]{1,0:T(1,128)}', space=vmem, size = 0x12000, scoped, tag = 'internal scratch']
  #allocation2 [shape = 'f32[18,18,128]{2,1,0:T(8,128)}', space=vmem, size = 0x36000, scoped, tag = 'scratch operand']
  %s0 = inlined_call_operand.vmem [shape: f32[2,16,16,128], index: 0, kind: input, shape index: {}]
  %s1 = inlined_call_operand.vmem [shape: f32[1,128], index: 1, kind: input, shape index: {}]
  %s2 = inlined_call_operand.vmem [shape: f32[1,128], index: 2, kind: input, shape index: {}]
  %s3 = inlined_call_operand.vmem [shape: bf16[9,128,128], index: 3, kind: input, shape index: {}]
  %s4 = inlined_call_operand.vmem [shape: f32[2,16,16,128], index: 4, kind: output, shape index: {0}]
  %s5 = inlined_call_operand.vmem [shape: f32[1,128], index: 5, kind: output, shape index: {1}]
  %s6 = inlined_call_operand.vmem [shape: f32[1,128], index: 6, kind: output, shape index: {2}]
  %7 = xla_tuple %s4, %s5, %s6
  %s8 = sld [smem:[#allocation0]]
  $region69: #{unet_conv2_forward.4} parent=0
    _
  %s10 = ssub.s32 1, %s8
  %s11 = scalar_select 0, %s10, %s8
  loop: start=0, step=1, limit=4
  $region2: #{unet_conv2_forward.4} parent=0 // loop_pre_header
    _
  $region3: #{unet_conv2_forward.4} parent=0 // loop_header
    %s13 = sphi 0, %s17
    %p14 = scmp.ge.s32.totalorder %s13, 4
    %s23 = sphi 0, %s25
    %s26 = sphi 0, %s23
    %s27 = sphi 0, %s26
    %s43 = sphi 0, %s27
    %s47 = sphi 0, %s47
    %s49 = sphi 0, %s47
    %s50 = sphi 0, %s49
    %s64 = sphi 0, %s50
    %s68 = sphi 0, %s68
    %s70 = sphi 0, %s68
    %s71 = sphi 0, %s70
    %s85 = sphi 0, %s71
    %s89 = sphi 0, %s89
    %s91 = sphi 0, %s89
    %s92 = sphi 0, %s91
    %s106 = sphi 0, %s92
    %s112 = sphi 0, %s114
    %s115 = sphi 0, %s112
    %s116 = sphi 0, %s115
    %s132 = sphi 0, %s116
    %s136 = sphi 0, %s136
    %s138 = sphi 0, %s136
    %s139 = sphi 0, %s138
    %s153 = sphi 0, %s139
    %s157 = sphi 0, %s157
    %s159 = sphi 0, %s157
    %s160 = sphi 0, %s159
    %s174 = sphi 0, %s160
  $region4: #{unet_conv2_forward.4} parent=0 // loop_header_branch
    %16 = sbr.rel (%p14) target = $region8
  $region5: #{unet_conv2_forward.4} parent=0 // loop_body
    %s18 = ssub.s32 %s13, 1
    %s19 = ssub.s32 %s13, 2
    %s20 = sadd.s32 %s13, 1
    %s21 = ssub.s32 %s13, %s20
    %p22 = scmp.eq.s32.totalorder %s21, 0
    %s24 = sadd.s32 %s23, 1
    %s25 = scalar_select %p22, %s23, %s24
    %p28 = pneg %p22
    %p29 = scmp.eq.s32.totalorder %s13, 1
    %p30 = por %p28, %p29
    %p31 = scmp.ne.s32.totalorder %s23, %s26
    %p32 = scmp.eq.s32.totalorder %s13, 0
    %p33 = por %p31, %p32
    %p34 = scmp.ne.s32.totalorder %s23, %s26
    %p35 = scmp.eq.s32.totalorder %s18, 1
    %p36 = por %p34, %p35
    %p37 = scmp.ne.s32.totalorder %s26, %s27
    %p38 = scmp.eq.s32.totalorder %s18, 0
    %p39 = por %p37, %p38
    %p40 = scmp.ne.s32.totalorder %s26, %s27
    %p41 = scmp.eq.s32.totalorder %s19, 1
    %p42 = por %p40, %p41
    %p44 = scmp.ne.s32.totalorder %s27, %s43
    %p45 = scmp.eq.s32.totalorder %s19, 0
    %p46 = por %p44, %p45
    %s48 = sadd.s32 %s47, 1
    %p51 = scmp.eq.s32.totalorder %s13, 1
    %p52 = scmp.ne.s32.totalorder %s47, %s49
    %p53 = scmp.eq.s32.totalorder %s13, 0
    %p54 = por %p52, %p53
    %p55 = scmp.ne.s32.totalorder %s47, %s49
    %p56 = scmp.eq.s32.totalorder %s18, 1
    %p57 = por %p55, %p56
    %p58 = scmp.ne.s32.totalorder %s49, %s50
    %p59 = scmp.eq.s32.totalorder %s18, 0
    %p60 = por %p58, %p59
    %p61 = scmp.ne.s32.totalorder %s49, %s50
    %p62 = scmp.eq.s32.totalorder %s19, 1
    %p63 = por %p61, %p62
    %p65 = scmp.ne.s32.totalorder %s50, %s64
    %p66 = scmp.eq.s32.totalorder %s19, 0
    %p67 = por %p65, %p66
    %s69 = sadd.s32 %s68, 1
    %p72 = scmp.eq.s32.totalorder %s13, 1
    %p73 = scmp.ne.s32.totalorder %s68, %s70
    %p74 = scmp.eq.s32.totalorder %s13, 0
    %p75 = por %p73, %p74
    %p76 = scmp.ne.s32.totalorder %s68, %s70
    %p77 = scmp.eq.s32.totalorder %s18, 1
    %p78 = por %p76, %p77
    %p79 = scmp.ne.s32.totalorder %s70, %s71
    %p80 = scmp.eq.s32.totalorder %s18, 0
    %p81 = por %p79, %p80
    %p82 = scmp.ne.s32.totalorder %s70, %s71
    %p83 = scmp.eq.s32.totalorder %s19, 1
    %p84 = por %p82, %p83
    %p86 = scmp.ne.s32.totalorder %s71, %s85
    %p87 = scmp.eq.s32.totalorder %s19, 0
    %p88 = por %p86, %p87
    %s90 = sadd.s32 %s89, 1
    %p93 = scmp.eq.s32.totalorder %s13, 1
    %p94 = scmp.ne.s32.totalorder %s89, %s91
    %p95 = scmp.eq.s32.totalorder %s13, 0
    %p96 = por %p94, %p95
    %p97 = scmp.ne.s32.totalorder %s89, %s91
    %p98 = scmp.eq.s32.totalorder %s18, 1
    %p99 = por %p97, %p98
    %p100 = scmp.ne.s32.totalorder %s91, %s92
    %p101 = scmp.eq.s32.totalorder %s18, 0
    %p102 = por %p100, %p101
    %p103 = scmp.ne.s32.totalorder %s91, %s92
    %p104 = scmp.eq.s32.totalorder %s19, 1
    %p105 = por %p103, %p104
    %p107 = scmp.ne.s32.totalorder %s92, %s106
    %p108 = scmp.eq.s32.totalorder %s19, 0
    %p109 = por %p107, %p108
    %s110 = ssub.s32 %s13, %s20
    %p111 = scmp.eq.s32.totalorder %s110, 0
    %s113 = sadd.s32 %s112, 1
    %s114 = scalar_select %p111, %s112, %s113
    %p117 = pneg %p111
    %p118 = scmp.eq.s32.totalorder %s13, 1
    %p119 = por %p117, %p118
    %p120 = scmp.ne.s32.totalorder %s112, %s115
    %p121 = scmp.eq.s32.totalorder %s13, 0
    %p122 = por %p120, %p121
    %p123 = scmp.ne.s32.totalorder %s112, %s115
    %p124 = scmp.eq.s32.totalorder %s18, 1
    %p125 = por %p123, %p124
    %p126 = scmp.ne.s32.totalorder %s115, %s116
    %p127 = scmp.eq.s32.totalorder %s18, 0
    %p128 = por %p126, %p127
    %p129 = scmp.ne.s32.totalorder %s115, %s116
    %p130 = scmp.eq.s32.totalorder %s19, 1
    %p131 = por %p129, %p130
    %p133 = scmp.ne.s32.totalorder %s116, %s132
    %p134 = scmp.eq.s32.totalorder %s19, 0
    %p135 = por %p133, %p134
    %s137 = sadd.s32 %s136, 1
    %p140 = scmp.eq.s32.totalorder %s13, 1
    %p141 = scmp.ne.s32.totalorder %s136, %s138
    %p142 = scmp.eq.s32.totalorder %s13, 0
    %p143 = por %p141, %p142
    %p144 = scmp.ne.s32.totalorder %s136, %s138
    %p145 = scmp.eq.s32.totalorder %s18, 1
    %p146 = por %p144, %p145
    %p147 = scmp.ne.s32.totalorder %s138, %s139
    %p148 = scmp.eq.s32.totalorder %s18, 0
    %p149 = por %p147, %p148
    %p150 = scmp.ne.s32.totalorder %s138, %s139
    %p151 = scmp.eq.s32.totalorder %s19, 1
    %p152 = por %p150, %p151
    %p154 = scmp.ne.s32.totalorder %s139, %s153
    %p155 = scmp.eq.s32.totalorder %s19, 0
    %p156 = por %p154, %p155
    %s158 = sadd.s32 %s157, 1
    %p161 = scmp.eq.s32.totalorder %s13, 1
    %p162 = scmp.ne.s32.totalorder %s157, %s159
    %p163 = scmp.eq.s32.totalorder %s13, 0
    %p164 = por %p162, %p163
    %p165 = scmp.ne.s32.totalorder %s157, %s159
    %p166 = scmp.eq.s32.totalorder %s18, 1
    %p167 = por %p165, %p166
    %p168 = scmp.ne.s32.totalorder %s159, %s160
    %p169 = scmp.eq.s32.totalorder %s18, 0
    %p170 = por %p168, %p169
    %p171 = scmp.ne.s32.totalorder %s159, %s160
    %p172 = scmp.eq.s32.totalorder %s19, 1
    %p173 = por %p171, %p172
    %p175 = scmp.ne.s32.totalorder %s160, %s174
    %p176 = scmp.eq.s32.totalorder %s19, 0
    %p177 = por %p175, %p176
    %p178 = scmp.le.s32.totalorder 1, %s13
    %p179 = scmp.lt.s32.totalorder %s13, 3
    %p180 = pnand %p178, %p179
    %p181 = pneg %p180
    // Predicated region
    $region9: #{unet_conv2_forward.4} parent=5 // pred_check
      _
    $region10: #{unet_conv2_forward.4} parent=5 // pred_check_branch
      %183 = sbr.rel (%p180) target = $region12
    $region11: #{unet_conv2_forward.4} parent=5 // pred_region
      %s184 = ssub.s32 %s13, 1
      // Predicated region
      $region13: #{unet_conv2_forward.4} parent=11 // pred_check
        %p185 = pneg %p60
      $region14: #{unet_conv2_forward.4} parent=11 // pred_check_branch
        %187 = sbr.rel (%p185) target = $region16
      $region15: #{unet_conv2_forward.4} parent=11 // pred_region
        _
      $region16: #{unet_conv2_forward.4} parent=11 // pred_fallthru
        _
      // Predicated region
      $region17: #{unet_conv2_forward.4} parent=11 // pred_check
        %p188 = pneg %p81
      $region18: #{unet_conv2_forward.4} parent=11 // pred_check_branch
        %190 = sbr.rel (%p188) target = $region20
      $region19: #{unet_conv2_forward.4} parent=11 // pred_region
        _
      $region20: #{unet_conv2_forward.4} parent=11 // pred_fallthru
        _
      // Predicated region
      $region21: #{unet_conv2_forward.4} parent=11 // pred_check
        %p191 = pneg %p102
      $region22: #{unet_conv2_forward.4} parent=11 // pred_check_branch
        %193 = sbr.rel (%p191) target = $region24
      $region23: #{unet_conv2_forward.4} parent=11 // pred_region
        _
      $region24: #{unet_conv2_forward.4} parent=11 // pred_fallthru
        _
    $region12: #{unet_conv2_forward.4} parent=5 // pred_fallthru
      _
    %p194 = scmp.lt.s32.totalorder %s13, 2
    // Predicated region
    $region25: #{unet_conv2_forward.4} parent=5 // pred_check
      %p195 = pneg %p194
    $region26: #{unet_conv2_forward.4} parent=5 // pred_check_branch
      %197 = sbr.rel (%p195) target = $region28
    $region27: #{unet_conv2_forward.4} parent=5 // pred_region
      // Predicated region
      $region29: #{unet_conv2_forward.4} parent=27 // pred_check
        %p198 = pneg %p33
      $region30: #{unet_conv2_forward.4} parent=27 // pred_check_branch
        %200 = sbr.rel (%p198) target = $region32
      $region31: #{unet_conv2_forward.4} parent=27 // pred_region
        %p201 = scmp.lt.s32.totalorder %s13, 1
        %s202 = scalar_select %p201, %s13, 1
        %s203 = smul.addr %s202, 32
        %s204 = smul.addr %s203, 8
        %s205 = scalar_lea.vmem %s0, %s204
      $region32: #{unet_conv2_forward.4} parent=27 // pred_fallthru
        _
    $region28: #{unet_conv2_forward.4} parent=5 // pred_fallthru
      _
    %p206 = scmp.le.s32.totalorder 1, %s13
    %p207 = scmp.lt.s32.totalorder %s13, 3
    %p208 = pnand %p206, %p207
    %p209 = pneg %p208
    // Predicated region
    $region33: #{unet_conv2_forward.4} parent=5 // pred_check
      _
    $region34: #{unet_conv2_forward.4} parent=5 // pred_check_branch
      %211 = sbr.rel (%p208) target = $region36
    $region35: #{unet_conv2_forward.4} parent=5 // pred_region
      %s212 = ssub.s32 %s13, 1
      %p213 = scmp.lt.s32.totalorder %s18, 1
      %s214 = scalar_select %p213, %s18, 1
      %s215 = smul.addr %s214, 32
      %s216 = smul.addr %s215, 8
      %s217 = scalar_lea.vmem %s0, %s216
      %p218 = pneg %p39
      %p219 = pneg %p36
      %p220 = pneg %p60
      %p221 = pneg %p57
      %p222 = pneg %p81
      %p223 = pneg %p78
      %p224 = pneg %p102
      %p225 = pneg %p99
      %p226 = pneg %p128
      %p227 = pneg %p125
      %p228 = scmp.lt.s32.totalorder %s18, 1
      %s229 = scalar_select %p228, %s18, 1
      %s230 = smul.addr %s229, 32
      %s231 = smul.addr %s230, 8
      %s232 = scalar_lea.vmem %s4, %s231
      %p233 = pneg %p149
      %p234 = pneg %p146
      %p235 = pneg %p170
      %p236 = pneg %p167
      %p237 = scmp.lt.s32.totalorder %s18, 1
      %s238 = scalar_select %p237, %s18, 1
      %s239 = smul.addr %s238, 32
      %s240 = smul.addr %s239, 8
      %s241 = scalar_lea.vmem %s0, %s240
      %p242 = scmp.lt.s32.totalorder %s18, 1
      %s243 = scalar_select %p242, %s18, 1
      %s244 = smul.addr %s243, 32
      %s245 = smul.addr %s244, 8
      %s246 = scalar_lea.vmem %s4, %s245
      %v248 = vld [vmem:[%s241] sm:$0xff]
      %v249 = vld [vmem:[%s241 + $0x8] sm:$0xff]
      %v250 = vld [vmem:[%s241 + $0x10] sm:$0xff]
      %v251 = vld [vmem:[%s241 + $0x18] sm:$0xff]
      %v252 = vld [vmem:[%s241 + $0x20] sm:$0xff]
      %v253 = vld [vmem:[%s241 + $0x28] sm:$0xff]
      %v254 = vld [vmem:[%s241 + $0x30] sm:$0xff]
      %v255 = vld [vmem:[%s241 + $0x38] sm:$0xff]
      %v256 = vld [vmem:[%s241 + $0x40] sm:$0xff]
      %v257 = vld [vmem:[%s241 + $0x48] sm:$0xff]
      %v258 = vld [vmem:[%s241 + $0x50] sm:$0xff]
      %v259 = vld [vmem:[%s241 + $0x58] sm:$0xff]
      %v260 = vld [vmem:[%s241 + $0x60] sm:$0xff]
      %v261 = vld [vmem:[%s241 + $0x68] sm:$0xff]
      %v262 = vld [vmem:[%s241 + $0x70] sm:$0xff]
      %v263 = vld [vmem:[%s241 + $0x78] sm:$0xff]
      %v264 = vld [vmem:[%s241 + $0x80] sm:$0xff]
      %v265 = vld [vmem:[%s241 + $0x88] sm:$0xff]
      %v266 = vld [vmem:[%s241 + $0x90] sm:$0xff]
      %v267 = vld [vmem:[%s241 + $0x98] sm:$0xff]
      %v268 = vld [vmem:[%s241 + $0xa0] sm:$0xff]
      %v269 = vld [vmem:[%s241 + $0xa8] sm:$0xff]
      %v270 = vld [vmem:[%s241 + $0xb0] sm:$0xff]
      %v271 = vld [vmem:[%s241 + $0xb8] sm:$0xff]
      %v272 = vld [vmem:[%s241 + $0xc0] sm:$0xff]
      %v273 = vld [vmem:[%s241 + $0xc8] sm:$0xff]
      %v274 = vld [vmem:[%s241 + $0xd0] sm:$0xff]
      %v275 = vld [vmem:[%s241 + $0xd8] sm:$0xff]
      %v276 = vld [vmem:[%s241 + $0xe0] sm:$0xff]
      %v277 = vld [vmem:[%s241 + $0xe8] sm:$0xff]
      %v278 = vld [vmem:[%s241 + $0xf0] sm:$0xff]
      %v279 = vld [vmem:[%s241 + $0xf8] sm:$0xff]
      %v280 = vld [vmem:[%s1] sm:$0x1]
      %v281 = vld [vmem:[%s2] sm:$0x1]
      %v283 = vlaneseq
      %v284 = vshrl.u32 %v283, 7
      %v285 = vsub.s32 0, %v284
      %v286 = vrot.slane %v280, %v285
      %v288 = vmul.f32 %v248, %v286
      %v289 = vmul.f32 %v249, %v286
      %v290 = vmul.f32 %v250, %v286
      %v291 = vmul.f32 %v251, %v286
      %v292 = vmul.f32 %v252, %v286
      %v293 = vmul.f32 %v253, %v286
      %v294 = vmul.f32 %v254, %v286
      %v295 = vmul.f32 %v255, %v286
      %v296 = vmul.f32 %v256, %v286
      %v297 = vmul.f32 %v257, %v286
      %v298 = vmul.f32 %v258, %v286
      %v299 = vmul.f32 %v259, %v286
      %v300 = vmul.f32 %v260, %v286
      %v301 = vmul.f32 %v261, %v286
      %v302 = vmul.f32 %v262, %v286
      %v303 = vmul.f32 %v263, %v286
      %v304 = vmul.f32 %v264, %v286
      %v305 = vmul.f32 %v265, %v286
      %v306 = vmul.f32 %v266, %v286
      %v307 = vmul.f32 %v267, %v286
      %v308 = vmul.f32 %v268, %v286
      %v309 = vmul.f32 %v269, %v286
      %v310 = vmul.f32 %v270, %v286
      %v311 = vmul.f32 %v271, %v286
      %v312 = vmul.f32 %v272, %v286
      %v313 = vmul.f32 %v273, %v286
      %v314 = vmul.f32 %v274, %v286
      %v315 = vmul.f32 %v275, %v286
      %v316 = vmul.f32 %v276, %v286
      %v317 = vmul.f32 %v277, %v286
      %v318 = vmul.f32 %v278, %v286
      %v319 = vmul.f32 %v279, %v286
      %v321 = vlaneseq
      %v322 = vshrl.u32 %v321, 7
      %v323 = vsub.s32 0, %v322
      %v324 = vrot.slane %v281, %v323
      %v326 = vadd.f32 %v288, %v324
      %v327 = vadd.f32 %v289, %v324
      %v328 = vadd.f32 %v290, %v324
      %v329 = vadd.f32 %v291, %v324
      %v330 = vadd.f32 %v292, %v324
      %v331 = vadd.f32 %v293, %v324
      %v332 = vadd.f32 %v294, %v324
      %v333 = vadd.f32 %v295, %v324
      %v334 = vadd.f32 %v296, %v324
      %v335 = vadd.f32 %v297, %v324
      %v336 = vadd.f32 %v298, %v324
      %v337 = vadd.f32 %v299, %v324
      %v338 = vadd.f32 %v300, %v324
      %v339 = vadd.f32 %v301, %v324
      %v340 = vadd.f32 %v302, %v324
      %v341 = vadd.f32 %v303, %v324
      %v342 = vadd.f32 %v304, %v324
      %v343 = vadd.f32 %v305, %v324
      %v344 = vadd.f32 %v306, %v324
      %v345 = vadd.f32 %v307, %v324
      %v346 = vadd.f32 %v308, %v324
      %v347 = vadd.f32 %v309, %v324
      %v348 = vadd.f32 %v310, %v324
      %v349 = vadd.f32 %v311, %v324
      %v350 = vadd.f32 %v312, %v324
      %v351 = vadd.f32 %v313, %v324
      %v352 = vadd.f32 %v314, %v324
      %v353 = vadd.f32 %v315, %v324
      %v354 = vadd.f32 %v316, %v324
      %v355 = vadd.f32 %v317, %v324
      %v356 = vadd.f32 %v318, %v324
      %v357 = vadd.f32 %v319, %v324
      %v358 = vmax.f32 %v326, 0.0
      %v359 = vmax.f32 %v327, 0.0
      %v360 = vmax.f32 %v328, 0.0
      %v361 = vmax.f32 %v329, 0.0
      %v362 = vmax.f32 %v330, 0.0
      %v363 = vmax.f32 %v331, 0.0
      %v364 = vmax.f32 %v332, 0.0
      %v365 = vmax.f32 %v333, 0.0
      %v366 = vmax.f32 %v334, 0.0
      %v367 = vmax.f32 %v335, 0.0
      %v368 = vmax.f32 %v336, 0.0
      %v369 = vmax.f32 %v337, 0.0
      %v370 = vmax.f32 %v338, 0.0
      %v371 = vmax.f32 %v339, 0.0
      %v372 = vmax.f32 %v340, 0.0
      %v373 = vmax.f32 %v341, 0.0
      %v374 = vmax.f32 %v342, 0.0
      %v375 = vmax.f32 %v343, 0.0
      %v376 = vmax.f32 %v344, 0.0
      %v377 = vmax.f32 %v345, 0.0
      %v378 = vmax.f32 %v346, 0.0
      %v379 = vmax.f32 %v347, 0.0
      %v380 = vmax.f32 %v348, 0.0
      %v381 = vmax.f32 %v349, 0.0
      %v382 = vmax.f32 %v350, 0.0
      %v383 = vmax.f32 %v351, 0.0
      %v384 = vmax.f32 %v352, 0.0
      %v385 = vmax.f32 %v353, 0.0
      %v386 = vmax.f32 %v354, 0.0
      %v387 = vmax.f32 %v355, 0.0
      %v388 = vmax.f32 %v356, 0.0
      %v389 = vmax.f32 %v357, 0.0
      %390 = vst [vmem:[#allocation2] sm:$0xff] 0.0
      %391 = vst [vmem:[#allocation2 + $0x8] sm:$0xff] 0.0
      %392 = vst [vmem:[#allocation2 + $0x10] sm:$0x3] 0.0
      %393 = vst [vmem:[#allocation2 + $0x18] sm:$0xff] 0.0
      %394 = vst [vmem:[#allocation2 + $0x20] sm:$0xff] 0.0
      %395 = vst [vmem:[#allocation2 + $0x28] sm:$0x3] 0.0
      %396 = vst [vmem:[#allocation2 + $0x30] sm:$0xff] 0.0
      %397 = vst [vmem:[#allocation2 + $0x38] sm:$0xff] 0.0
      %398 = vst [vmem:[#allocation2 + $0x40] sm:$0x3] 0.0
      %399 = vst [vmem:[#allocation2 + $0x48] sm:$0xff] 0.0
      %400 = vst [vmem:[#allocation2 + $0x50] sm:$0xff] 0.0
      %401 = vst [vmem:[#allocation2 + $0x58] sm:$0x3] 0.0
      %402 = vst [vmem:[#allocation2 + $0x60] sm:$0xff] 0.0
      %403 = vst [vmem:[#allocation2 + $0x68] sm:$0xff] 0.0
      %404 = vst [vmem:[#allocation2 + $0x70] sm:$0x3] 0.0
      %405 = vst [vmem:[#allocation2 + $0x78] sm:$0xff] 0.0
      %406 = vst [vmem:[#allocation2 + $0x80] sm:$0xff] 0.0
      %407 = vst [vmem:[#allocation2 + $0x88] sm:$0x3] 0.0
      %408 = vst [vmem:[#allocation2 + $0x90] sm:$0xff] 0.0
      %409 = vst [vmem:[#allocation2 + $0x98] sm:$0xff] 0.0
      %410 = vst [vmem:[#allocation2 + $0xa0] sm:$0x3] 0.0
      %411 = vst [vmem:[#allocation2 + $0xa8] sm:$0xff] 0.0
      %412 = vst [vmem:[#allocation2 + $0xb0] sm:$0xff] 0.0
      %413 = vst [vmem:[#allocation2 + $0xb8] sm:$0x3] 0.0
      %414 = vst [vmem:[#allocation2 + $0xc0] sm:$0xff] 0.0
      %415 = vst [vmem:[#allocation2 + $0xc8] sm:$0xff] 0.0
      %416 = vst [vmem:[#allocation2 + $0xd0] sm:$0x3] 0.0
      %417 = vst [vmem:[#allocation2 + $0xd8] sm:$0xff] 0.0
      %418 = vst [vmem:[#allocation2 + $0xe0] sm:$0xff] 0.0
      %419 = vst [vmem:[#allocation2 + $0xe8] sm:$0x3] 0.0
      %420 = vst [vmem:[#allocation2 + $0xf0] sm:$0xff] 0.0
      %421 = vst [vmem:[#allocation2 + $0xf8] sm:$0xff] 0.0
      %422 = vst [vmem:[#allocation2 + $0x100] sm:$0x3] 0.0
      %423 = vst [vmem:[#allocation2 + $0x108] sm:$0xff] 0.0
      %424 = vst [vmem:[#allocation2 + $0x110] sm:$0xff] 0.0
      %425 = vst [vmem:[#allocation2 + $0x118] sm:$0x3] 0.0
      %426 = vst [vmem:[#allocation2 + $0x120] sm:$0xff] 0.0
      %427 = vst [vmem:[#allocation2 + $0x128] sm:$0xff] 0.0
      %428 = vst [vmem:[#allocation2 + $0x130] sm:$0x3] 0.0
      %429 = vst [vmem:[#allocation2 + $0x138] sm:$0xff] 0.0
      %430 = vst [vmem:[#allocation2 + $0x140] sm:$0xff] 0.0
      %431 = vst [vmem:[#allocation2 + $0x148] sm:$0x3] 0.0
      %432 = vst [vmem:[#allocation2 + $0x150] sm:$0xff] 0.0
      %433 = vst [vmem:[#allocation2 + $0x158] sm:$0xff] 0.0
      %434 = vst [vmem:[#allocation2 + $0x160] sm:$0x3] 0.0
      %435 = vst [vmem:[#allocation2 + $0x168] sm:$0xff] 0.0
      %436 = vst [vmem:[#allocation2 + $0x170] sm:$0xff] 0.0
      %437 = vst [vmem:[#allocation2 + $0x178] sm:$0x3] 0.0
      %438 = vst [vmem:[#allocation2 + $0x180] sm:$0xff] 0.0
      %439 = vst [vmem:[#allocation2 + $0x188] sm:$0xff] 0.0
      %440 = vst [vmem:[#allocation2 + $0x190] sm:$0x3] 0.0
      %441 = vst [vmem:[#allocation2 + $0x198] sm:$0xff] 0.0
      %442 = vst [vmem:[#allocation2 + $0x1a0] sm:$0xff] 0.0
      %443 = vst [vmem:[#allocation2 + $0x1a8] sm:$0x3] 0.0
      %s444 = scalar_lea.vmem [#allocation2], 24
      %445 = vst [vmem:[%s444 + $0x1] sm:$0xff] %v358
      %446 = vst [vmem:[%s444 + $0x9] sm:$0xff] %v359
      %447 = vst [vmem:[%s444 + $0x19] sm:$0xff] %v360
      %448 = vst [vmem:[%s444 + $0x21] sm:$0xff] %v361
      %449 = vst [vmem:[%s444 + $0x31] sm:$0xff] %v362
      %450 = vst [vmem:[%s444 + $0x39] sm:$0xff] %v363
      %451 = vst [vmem:[%s444 + $0x49] sm:$0xff] %v364
      %452 = vst [vmem:[%s444 + $0x51] sm:$0xff] %v365
      %453 = vst [vmem:[%s444 + $0x61] sm:$0xff] %v366
      %454 = vst [vmem:[%s444 + $0x69] sm:$0xff] %v367
      %455 = vst [vmem:[%s444 + $0x79] sm:$0xff] %v368
      %456 = vst [vmem:[%s444 + $0x81] sm:$0xff] %v369
      %457 = vst [vmem:[%s444 + $0x91] sm:$0xff] %v370
      %458 = vst [vmem:[%s444 + $0x99] sm:$0xff] %v371
      %459 = vst [vmem:[%s444 + $0xa9] sm:$0xff] %v372
      %460 = vst [vmem:[%s444 + $0xb1] sm:$0xff] %v373
      %461 = vst [vmem:[%s444 + $0xc1] sm:$0xff] %v374
      %462 = vst [vmem:[%s444 + $0xc9] sm:$0xff] %v375
      %463 = vst [vmem:[%s444 + $0xd9] sm:$0xff] %v376
      %464 = vst [vmem:[%s444 + $0xe1] sm:$0xff] %v377
      %465 = vst [vmem:[%s444 + $0xf1] sm:$0xff] %v378
      %466 = vst [vmem:[%s444 + $0xf9] sm:$0xff] %v379
      %467 = vst [vmem:[%s444 + $0x109] sm:$0xff] %v380
      %468 = vst [vmem:[%s444 + $0x111] sm:$0xff] %v381
      %469 = vst [vmem:[%s444 + $0x121] sm:$0xff] %v382
      %470 = vst [vmem:[%s444 + $0x129] sm:$0xff] %v383
      %471 = vst [vmem:[%s444 + $0x139] sm:$0xff] %v384
      %472 = vst [vmem:[%s444 + $0x141] sm:$0xff] %v385
      %473 = vst [vmem:[%s444 + $0x151] sm:$0xff] %v386
      %474 = vst [vmem:[%s444 + $0x159] sm:$0xff] %v387
      %475 = vst [vmem:[%s444 + $0x169] sm:$0xff] %v388
      %476 = vst [vmem:[%s444 + $0x171] sm:$0xff] %v389
      %v477 = vld [vmem:[#allocation2] sm:$0xff]
      %v478 = vld [vmem:[#allocation2 + $0x8] sm:$0xff]
      %v479 = vld [vmem:[#allocation2 + $0x18] sm:$0xff]
      %v480 = vld [vmem:[#allocation2 + $0x20] sm:$0xff]
      %v481 = vld [vmem:[#allocation2 + $0x30] sm:$0xff]
      %v482 = vld [vmem:[#allocation2 + $0x38] sm:$0xff]
      %v483 = vld [vmem:[#allocation2 + $0x48] sm:$0xff]
      %v484 = vld [vmem:[#allocation2 + $0x50] sm:$0xff]
      %v485 = vld [vmem:[#allocation2 + $0x60] sm:$0xff]
      %v486 = vld [vmem:[#allocation2 + $0x68] sm:$0xff]
      %v487 = vld [vmem:[#allocation2 + $0x78] sm:$0xff]
      %v488 = vld [vmem:[#allocation2 + $0x80] sm:$0xff]
      %v489 = vld [vmem:[#allocation2 + $0x90] sm:$0xff]
      %v490 = vld [vmem:[#allocation2 + $0x98] sm:$0xff]
      %v491 = vld [vmem:[#allocation2 + $0xa8] sm:$0xff]
      %v492 = vld [vmem:[#allocation2 + $0xb0] sm:$0xff]
      %v493 = vld [vmem:[#allocation2 + $0xc0] sm:$0xff]
      %v494 = vld [vmem:[#allocation2 + $0xc8] sm:$0xff]
      %v495 = vld [vmem:[#allocation2 + $0xd8] sm:$0xff]
      %v496 = vld [vmem:[#allocation2 + $0xe0] sm:$0xff]
      %v497 = vld [vmem:[#allocation2 + $0xf0] sm:$0xff]
      %v498 = vld [vmem:[#allocation2 + $0xf8] sm:$0xff]
      %v499 = vld [vmem:[#allocation2 + $0x108] sm:$0xff]
      %v500 = vld [vmem:[#allocation2 + $0x110] sm:$0xff]
      %v501 = vld [vmem:[#allocation2 + $0x120] sm:$0xff]
      %v502 = vld [vmem:[#allocation2 + $0x128] sm:$0xff]
      %v503 = vld [vmem:[#allocation2 + $0x138] sm:$0xff]
      %v504 = vld [vmem:[#allocation2 + $0x140] sm:$0xff]
      %v505 = vld [vmem:[#allocation2 + $0x150] sm:$0xff]
      %v506 = vld [vmem:[#allocation2 + $0x158] sm:$0xff]
      %v507 = vld [vmem:[#allocation2 + $0x168] sm:$0xff]
      %v508 = vld [vmem:[#allocation2 + $0x170] sm:$0xff]
      %v509 = vpack.c.bf16 %v478, %v477
      %v510 = vpack.c.bf16 %v480, %v479
      %v511 = vpack.c.bf16 %v482, %v481
      %v512 = vpack.c.bf16 %v484, %v483
      %v513 = vpack.c.bf16 %v486, %v485
      %v514 = vpack.c.bf16 %v488, %v487
      %v515 = vpack.c.bf16 %v490, %v489
      %v516 = vpack.c.bf16 %v492, %v491
      %v517 = vpack.c.bf16 %v494, %v493
      %v518 = vpack.c.bf16 %v496, %v495
      %v519 = vpack.c.bf16 %v498, %v497
      %v520 = vpack.c.bf16 %v500, %v499
      %v521 = vpack.c.bf16 %v502, %v501
      %v522 = vpack.c.bf16 %v504, %v503
      %v523 = vpack.c.bf16 %v506, %v505
      %v524 = vpack.c.bf16 %v508, %v507
      %v525 = vld [vmem:[%s3] sm:$0xf]
      %v526 = vld [vmem:[%s3 + $0x4] sm:$0xf]
      %v527 = vld [vmem:[%s3 + $0x8] sm:$0xf]
      %v528 = vld [vmem:[%s3 + $0xc] sm:$0xf]
      %v529 = vld [vmem:[%s3 + $0x10] sm:$0xf]
      %v530 = vld [vmem:[%s3 + $0x14] sm:$0xf]
      %v531 = vld [vmem:[%s3 + $0x18] sm:$0xf]
      %v532 = vld [vmem:[%s3 + $0x1c] sm:$0xf]
      %v533 = vld [vmem:[%s3 + $0x20] sm:$0xf]
      %v534 = vld [vmem:[%s3 + $0x24] sm:$0xf]
      %v535 = vld [vmem:[%s3 + $0x28] sm:$0xf]
      %v536 = vld [vmem:[%s3 + $0x2c] sm:$0xf]
      %v537 = vld [vmem:[%s3 + $0x30] sm:$0xf]
      %v538 = vld [vmem:[%s3 + $0x34] sm:$0xf]
      %v539 = vld [vmem:[%s3 + $0x38] sm:$0xf]
      %v540 = vld [vmem:[%s3 + $0x3c] sm:$0xf]
      %v541 = vld [vmem:[#allocation2 + $0x1] sm:$0xff]
      %v542 = vld [vmem:[#allocation2 + $0x9] sm:$0xff]
      %v543 = vld [vmem:[#allocation2 + $0x19] sm:$0xff]
      %v544 = vld [vmem:[#allocation2 + $0x21] sm:$0xff]
      %v545 = vld [vmem:[#allocation2 + $0x31] sm:$0xff]
      %v546 = vld [vmem:[#allocation2 + $0x39] sm:$0xff]
      %v547 = vld [vmem:[#allocation2 + $0x49] sm:$0xff]
      %v548 = vld [vmem:[#allocation2 + $0x51] sm:$0xff]
      %v549 = vld [vmem:[#allocation2 + $0x61] sm:$0xff]
      %v550 = vld [vmem:[#allocation2 + $0x69] sm:$0xff]
      %v551 = vld [vmem:[#allocation2 + $0x79] sm:$0xff]
      %v552 = vld [vmem:[#allocation2 + $0x81] sm:$0xff]
      %v553 = vld [vmem:[#allocation2 + $0x91] sm:$0xff]
      %v554 = vld [vmem:[#allocation2 + $0x99] sm:$0xff]
      %v555 = vld [vmem:[#allocation2 + $0xa9] sm:$0xff]
      %v556 = vld [vmem:[#allocation2 + $0xb1] sm:$0xff]
      %v557 = vld [vmem:[#allocation2 + $0xc1] sm:$0xff]
      %v558 = vld [vmem:[#allocation2 + $0xc9] sm:$0xff]
      %v559 = vld [vmem:[#allocation2 + $0xd9] sm:$0xff]
      %v560 = vld [vmem:[#allocation2 + $0xe1] sm:$0xff]
      %v561 = vld [vmem:[#allocation2 + $0xf1] sm:$0xff]
      %v562 = vld [vmem:[#allocation2 + $0xf9] sm:$0xff]
      %v563 = vld [vmem:[#allocation2 + $0x109] sm:$0xff]
      %v564 = vld [vmem:[#allocation2 + $0x111] sm:$0xff]
      %v565 = vld [vmem:[#allocation2 + $0x121] sm:$0xff]
      %v566 = vld [vmem:[#allocation2 + $0x129] sm:$0xff]
      %v567 = vld [vmem:[#allocation2 + $0x139] sm:$0xff]
      %v568 = vld [vmem:[#allocation2 + $0x141] sm:$0xff]
      %v569 = vld [vmem:[#allocation2 + $0x151] sm:$0xff]
      %v570 = vld [vmem:[#allocation2 + $0x159] sm:$0xff]
      %v571 = vld [vmem:[#allocation2 + $0x169] sm:$0xff]
      %v572 = vld [vmem:[#allocation2 + $0x171] sm:$0xff]
      %v573 = vpack.c.bf16 %v542, %v541
      %v574 = vpack.c.bf16 %v544, %v543
      %v575 = vpack.c.bf16 %v546, %v545
      %v576 = vpack.c.bf16 %v548, %v547
      %v577 = vpack.c.bf16 %v550, %v549
      %v578 = vpack.c.bf16 %v552, %v551
      %v579 = vpack.c.bf16 %v554, %v553
      %v580 = vpack.c.bf16 %v556, %v555
      %v581 = vpack.c.bf16 %v558, %v557
      %v582 = vpack.c.bf16 %v560, %v559
      %v583 = vpack.c.bf16 %v562, %v561
      %v584 = vpack.c.bf16 %v564, %v563
      %v585 = vpack.c.bf16 %v566, %v565
      %v586 = vpack.c.bf16 %v568, %v567
      %v587 = vpack.c.bf16 %v570, %v569
      %v588 = vpack.c.bf16 %v572, %v571
      %s589 = scalar_lea.vmem %s3, 64
      %v590 = vld [vmem:[%s589] sm:$0xf]
      %v591 = vld [vmem:[%s589 + $0x4] sm:$0xf]
      %v592 = vld [vmem:[%s589 + $0x8] sm:$0xf]
      %v593 = vld [vmem:[%s589 + $0xc] sm:$0xf]
      %v594 = vld [vmem:[%s589 + $0x10] sm:$0xf]
      %v595 = vld [vmem:[%s589 + $0x14] sm:$0xf]
      %v596 = vld [vmem:[%s589 + $0x18] sm:$0xf]
      %v597 = vld [vmem:[%s589 + $0x1c] sm:$0xf]
      %v598 = vld [vmem:[%s589 + $0x20] sm:$0xf]
      %v599 = vld [vmem:[%s589 + $0x24] sm:$0xf]
      %v600 = vld [vmem:[%s589 + $0x28] sm:$0xf]
      %v601 = vld [vmem:[%s589 + $0x2c] sm:$0xf]
      %v602 = vld [vmem:[%s589 + $0x30] sm:$0xf]
      %v603 = vld [vmem:[%s589 + $0x34] sm:$0xf]
      %v604 = vld [vmem:[%s589 + $0x38] sm:$0xf]
      %v605 = vld [vmem:[%s589 + $0x3c] sm:$0xf]
      %v622 = vunpack.c.l.b16 %v590
      %v623 = vunpack.c.l.b16 %v591
      %v624 = vunpack.c.l.b16 %v592
      %v625 = vunpack.c.l.b16 %v593
      %v626 = vunpack.c.l.b16 %v594
      %v627 = vunpack.c.l.b16 %v595
      %v628 = vunpack.c.l.b16 %v596
      %v629 = vunpack.c.l.b16 %v597
      %v630 = vunpack.c.l.b16 %v598
      %v631 = vunpack.c.l.b16 %v599
      %v632 = vunpack.c.l.b16 %v600
      %v633 = vunpack.c.l.b16 %v601
      %v634 = vunpack.c.l.b16 %v602
      %v635 = vunpack.c.l.b16 %v603
      %v636 = vunpack.c.l.b16 %v604
      %v637 = vunpack.c.l.b16 %v605
      %v638 = vpack.c.b16 %v623, %v622
      %v639 = vpack.c.b16 %v625, %v624
      %v640 = vpack.c.b16 %v627, %v626
      %v641 = vpack.c.b16 %v629, %v628
      %v642 = vpack.c.b16 %v631, %v630
      %v643 = vpack.c.b16 %v633, %v632
      %v644 = vpack.c.b16 %v635, %v634
      %v645 = vpack.c.b16 %v637, %v636
      %654 = vmatprep.subr.bf16.mxu0 0
      %655 = vmatpush1.bf16.msra.mxu0 %v645
      %656 = vmatprep.subr.bf16.mxu0 0
      %657 = vmatpush1.bf16.msra.mxu0 %v644
      %658 = vmatprep.subr.bf16.mxu0 0
      %659 = vmatpush1.bf16.msra.mxu0 %v643
      %660 = vmatprep.subr.bf16.mxu0 0
      %661 = vmatpush1.bf16.msra.mxu0 %v642
      %662 = vmatprep.subr.bf16.mxu0 0
      %663 = vmatpush1.bf16.msra.mxu0 %v641
      %664 = vmatprep.subr.bf16.mxu0 0
      %665 = vmatpush1.bf16.msra.mxu0 %v640
      %666 = vmatprep.subr.bf16.mxu0 0
      %667 = vmatpush1.bf16.msra.mxu0 %v639
      %668 = vmatprep.subr.bf16.mxu0 0
      %669 = vmatpush1.bf16.msra.mxu0 %v638
      %670 = vmatprep.subr.bf16.mxu0 0
      %671 = vmatpush2.bf16.msra.mxu0 0
      %672 = vmatprep.subr.bf16.mxu0 0
      %673 = vmatpush2.bf16.msra.mxu0 0
      %674 = vmatprep.subr.bf16.mxu0 0
      %675 = vmatpush2.bf16.msra.mxu0 0
      %676 = vmatprep.subr.bf16.mxu0 0
      %677 = vmatpush2.bf16.msra.mxu0 0
      %678 = vmatprep.subr.bf16.mxu0 0
      %679 = vmatpush2.bf16.msra.mxu0 0
      %680 = vmatprep.subr.bf16.mxu0 0
      %681 = vmatpush2.bf16.msra.mxu0 0
      %682 = vmatprep.subr.bf16.mxu0 0
      %683 = vmatpush2.bf16.msra.mxu0 0
      %684 = vmatprep.subr.bf16.mxu0 0
      %685 = vmatpush2.bf16.msra.mxu0 0
      %686 = vmatprep.mubr.bf16.mxu0 0
      %687 = vmatmul.mubr.bf16.gmra.mxu0 %v573
      %v688 = vpop.f32.mrf.mxu0
      %v689 = vadd.f32 0.0, %v688
      %v690 = vpop.f32.mrf.mxu0
      %v691 = vpop.f32.mrf.mxu0
      %v692 = vadd.f32 0.0, %v691
      %v693 = vpop.f32.mrf.mxu0
      %694 = vmatprep.mubr.bf16.mxu0 0
      %695 = vmatmul.mubr.bf16.gmra.mxu0 %v574
      %v696 = vpop.f32.mrf.mxu0
      %v697 = vadd.f32 0.0, %v696
      %v698 = vpop.f32.mrf.mxu0
      %v699 = vpop.f32.mrf.mxu0
      %v700 = vadd.f32 0.0, %v699
      %v701 = vpop.f32.mrf.mxu0
      %702 = vmatprep.mubr.bf16.mxu0 0
      %703 = vmatmul.mubr.bf16.gmra.mxu0 %v575
      %v704 = vpop.f32.mrf.mxu0
      %v705 = vadd.f32 0.0, %v704
      %v706 = vpop.f32.mrf.mxu0
      %v707 = vpop.f32.mrf.mxu0
      %v708 = vadd.f32 0.0, %v707
      %v709 = vpop.f32.mrf.mxu0
      %710 = vmatprep.mubr.bf16.mxu0 0
      %711 = vmatmul.mubr.bf16.gmra.mxu0 %v576
      %v712 = vpop.f32.mrf.mxu0
      %v713 = vadd.f32 0.0, %v712
      %v714 = vpop.f32.mrf.mxu0
      %v715 = vpop.f32.mrf.mxu0
      %v716 = vadd.f32 0.0, %v715
      %v717 = vpop.f32.mrf.mxu0
      %718 = vmatprep.mubr.bf16.mxu0 0
      %719 = vmatmul.mubr.bf16.gmra.mxu0 %v577
      %v720 = vpop.f32.mrf.mxu0
      %v721 = vadd.f32 0.0, %v720
      %v722 = vpop.f32.mrf.mxu0
      %v723 = vpop.f32.mrf.mxu0
      %v724 = vadd.f32 0.0, %v723
      %v725 = vpop.f32.mrf.mxu0
      %726 = vmatprep.mubr.bf16.mxu0 0
      %727 = vmatmul.mubr.bf16.gmra.mxu0 %v578
      %v728 = vpop.f32.mrf.mxu0
      %v729 = vadd.f32 0.0, %v728
      %v730 = vpop.f32.mrf.mxu0
      %v731 = vpop.f32.mrf.mxu0
      %v732 = vadd.f32 0.0, %v731
      %v733 = vpop.f32.mrf.mxu0
      %734 = vmatprep.mubr.bf16.mxu0 0
      %735 = vmatmul.mubr.bf16.gmra.mxu0 %v579
      %v736 = vpop.f32.mrf.mxu0
      %v737 = vadd.f32 0.0, %v736
      %v738 = vpop.f32.mrf.mxu0
      %v739 = vpop.f32.mrf.mxu0
      %v740 = vadd.f32 0.0, %v739
      %v741 = vpop.f32.mrf.mxu0
      %742 = vmatprep.mubr.bf16.mxu0 0
      %743 = vmatmul.mubr.bf16.gmra.mxu0 %v580
      %v744 = vpop.f32.mrf.mxu0
      %v745 = vadd.f32 0.0, %v744
      %v746 = vpop.f32.mrf.mxu0
      %v747 = vpop.f32.mrf.mxu0
      %v748 = vadd.f32 0.0, %v747
      %v749 = vpop.f32.mrf.mxu0
      %750 = vmatprep.mubr.bf16.mxu0 0
      %751 = vmatmul.mubr.bf16.gmra.mxu0 %v581
      %v752 = vpop.f32.mrf.mxu0
      %v753 = vadd.f32 0.0, %v752
      %v754 = vpop.f32.mrf.mxu0
      %v755 = vpop.f32.mrf.mxu0
      %v756 = vadd.f32 0.0, %v755
      %v757 = vpop.f32.mrf.mxu0
      %758 = vmatprep.mubr.bf16.mxu0 0
      %759 = vmatmul.mubr.bf16.gmra.mxu0 %v582
      %v760 = vpop.f32.mrf.mxu0
      %v761 = vadd.f32 0.0, %v760
      %v762 = vpop.f32.mrf.mxu0
      %v763 = vpop.f32.mrf.mxu0
      %v764 = vadd.f32 0.0, %v763
      %v765 = vpop.f32.mrf.mxu0
      %766 = vmatprep.mubr.bf16.mxu0 0
      %767 = vmatmul.mubr.bf16.gmra.mxu0 %v583
      %v768 = vpop.f32.mrf.mxu0
      %v769 = vadd.f32 0.0, %v768
      %v770 = vpop.f32.mrf.mxu0
      %v771 = vpop.f32.mrf.mxu0
      %v772 = vadd.f32 0.0, %v771
      %v773 = vpop.f32.mrf.mxu0
      %774 = vmatprep.mubr.bf16.mxu0 0
      %775 = vmatmul.mubr.bf16.gmra.mxu0 %v584
      %v776 = vpop.f32.mrf.mxu0
      %v777 = vadd.f32 0.0, %v776
      %v778 = vpop.f32.mrf.mxu0
      %v779 = vpop.f32.mrf.mxu0
      %v780 = vadd.f32 0.0, %v779
      %v781 = vpop.f32.mrf.mxu0
      %782 = vmatprep.mubr.bf16.mxu0 0
      %783 = vmatmul.mubr.bf16.gmra.mxu0 %v585
      %v784 = vpop.f32.mrf.mxu0
      %v785 = vadd.f32 0.0, %v784
      %v786 = vpop.f32.mrf.mxu0
      %v787 = vpop.f32.mrf.mxu0
      %v788 = vadd.f32 0.0, %v787
      %v789 = vpop.f32.mrf.mxu0
      %790 = vmatprep.mubr.bf16.mxu0 0
      %791 = vmatmul.mubr.bf16.gmra.mxu0 %v586
      %v792 = vpop.f32.mrf.mxu0
      %v793 = vadd.f32 0.0, %v792
      %v794 = vpop.f32.mrf.mxu0
      %v795 = vpop.f32.mrf.mxu0
      %v796 = vadd.f32 0.0, %v795
      %v797 = vpop.f32.mrf.mxu0
      %798 = vmatprep.mubr.bf16.mxu0 0
      %799 = vmatmul.mubr.bf16.gmra.mxu0 %v587
      %v800 = vpop.f32.mrf.mxu0
      %v801 = vadd.f32 0.0, %v800
      %v802 = vpop.f32.mrf.mxu0
      %v803 = vpop.f32.mrf.mxu0
      %v804 = vadd.f32 0.0, %v803
      %v805 = vpop.f32.mrf.mxu0
      %806 = vmatprep.mubr.bf16.mxu0 0
      %807 = vmatmul.mubr.bf16.gmra.mxu0 %v588
      %v808 = vpop.f32.mrf.mxu0
      %v809 = vadd.f32 0.0, %v808
      %v810 = vpop.f32.mrf.mxu0
      %v811 = vpop.f32.mrf.mxu0
      %v812 = vadd.f32 0.0, %v811
      %v813 = vpop.f32.mrf.mxu0
      %814 = vdwg.mxu0
      %v831 = vunpack.c.l.b16 %v525
      %v832 = vunpack.c.l.b16 %v526
      %v833 = vunpack.c.l.b16 %v527
      %v834 = vunpack.c.l.b16 %v528
      %v835 = vunpack.c.l.b16 %v529
      %v836 = vunpack.c.l.b16 %v530
      %v837 = vunpack.c.l.b16 %v531
      %v838 = vunpack.c.l.b16 %v532
      %v839 = vunpack.c.l.b16 %v533
      %v840 = vunpack.c.l.b16 %v534
      %v841 = vunpack.c.l.b16 %v535
      %v842 = vunpack.c.l.b16 %v536
      %v843 = vunpack.c.l.b16 %v537
      %v844 = vunpack.c.l.b16 %v538
      %v845 = vunpack.c.l.b16 %v539
      %v846 = vunpack.c.l.b16 %v540
      %v847 = vpack.c.b16 %v832, %v831
      %v848 = vpack.c.b16 %v834, %v833
      %v849 = vpack.c.b16 %v836, %v835
      %v850 = vpack.c.b16 %v838, %v837
      %v851 = vpack.c.b16 %v840, %v839
      %v852 = vpack.c.b16 %v842, %v841
      %v853 = vpack.c.b16 %v844, %v843
      %v854 = vpack.c.b16 %v846, %v845
      %863 = vmatprep.subr.bf16.mxu0 0
      %864 = vmatpush1.bf16.msra.mxu0 %v854
      %865 = vmatprep.subr.bf16.mxu0 0
      %866 = vmatpush1.bf16.msra.mxu0 %v853
      %867 = vmatprep.subr.bf16.mxu0 0
      %868 = vmatpush1.bf16.msra.mxu0 %v852
      %869 = vmatprep.subr.bf16.mxu0 0
      %870 = vmatpush1.bf16.msra.mxu0 %v851
      %871 = vmatprep.subr.bf16.mxu0 0
      %872 = vmatpush1.bf16.msra.mxu0 %v850
      %873 = vmatprep.subr.bf16.mxu0 0
      %874 = vmatpush1.bf16.msra.mxu0 %v849
      %875 = vmatprep.subr.bf16.mxu0 0
      %876 = vmatpush1.bf16.msra.mxu0 %v848
      %877 = vmatprep.subr.bf16.mxu0 0
      %878 = vmatpush1.bf16.msra.mxu0 %v847
      %879 = vmatprep.subr.bf16.mxu0 0
      %880 = vmatpush2.bf16.msra.mxu0 0
      %881 = vmatprep.subr.bf16.mxu0 0
      %882 = vmatpush2.bf16.msra.mxu0 0
      %883 = vmatprep.subr.bf16.mxu0 0
      %884 = vmatpush2.bf16.msra.mxu0 0
      %885 = vmatprep.subr.bf16.mxu0 0
      %886 = vmatpush2.bf16.msra.mxu0 0
      %887 = vmatprep.subr.bf16.mxu0 0
      %888 = vmatpush2.bf16.msra.mxu0 0
      %889 = vmatprep.subr.bf16.mxu0 0
      %890 = vmatpush2.bf16.msra.mxu0 0
      %891 = vmatprep.subr.bf16.mxu0 0
      %892 = vmatpush2.bf16.msra.mxu0 0
      %893 = vmatprep.subr.bf16.mxu0 0
      %894 = vmatpush2.bf16.msra.mxu0 0
      %895 = vmatprep.mubr.bf16.mxu0 0
      %896 = vmatmul.mubr.bf16.gmra.mxu0 %v509
      %v897 = vpop.f32.mrf.mxu0
      %v898 = vadd.f32 %v689, %v897
      %v899 = vpop.f32.mrf.mxu0
      %v900 = vpop.f32.mrf.mxu0
      %v901 = vadd.f32 %v692, %v900
      %v902 = vpop.f32.mrf.mxu0
      %903 = vmatprep.mubr.bf16.mxu0 0
      %904 = vmatmul.mubr.bf16.gmra.mxu0 %v510
      %v905 = vpop.f32.mrf.mxu0
      %v906 = vadd.f32 %v697, %v905
      %v907 = vpop.f32.mrf.mxu0
      %v908 = vpop.f32.mrf.mxu0
      %v909 = vadd.f32 %v700, %v908
      %v910 = vpop.f32.mrf.mxu0
      %911 = vmatprep.mubr.bf16.mxu0 0
      %912 = vmatmul.mubr.bf16.gmra.mxu0 %v511
      %v913 = vpop.f32.mrf.mxu0
      %v914 = vadd.f32 %v705, %v913
      %v915 = vpop.f32.mrf.mxu0
      %v916 = vpop.f32.mrf.mxu0
      %v917 = vadd.f32 %v708, %v916
      %v918 = vpop.f32.mrf.mxu0
      %919 = vmatprep.mubr.bf16.mxu0 0
      %920 = vmatmul.mubr.bf16.gmra.mxu0 %v512
      %v921 = vpop.f32.mrf.mxu0
      %v922 = vadd.f32 %v713, %v921
      %v923 = vpop.f32.mrf.mxu0
      %v924 = vpop.f32.mrf.mxu0
      %v925 = vadd.f32 %v716, %v924
      %v926 = vpop.f32.mrf.mxu0
      %927 = vmatprep.mubr.bf16.mxu0 0
      %928 = vmatmul.mubr.bf16.gmra.mxu0 %v513
      %v929 = vpop.f32.mrf.mxu0
      %v930 = vadd.f32 %v721, %v929
      %v931 = vpop.f32.mrf.mxu0
      %v932 = vpop.f32.mrf.mxu0
      %v933 = vadd.f32 %v724, %v932
      %v934 = vpop.f32.mrf.mxu0
      %935 = vmatprep.mubr.bf16.mxu0 0
      %936 = vmatmul.mubr.bf16.gmra.mxu0 %v514
      %v937 = vpop.f32.mrf.mxu0
      %v938 = vadd.f32 %v729, %v937
      %v939 = vpop.f32.mrf.mxu0
      %v940 = vpop.f32.mrf.mxu0
      %v941 = vadd.f32 %v732, %v940
      %v942 = vpop.f32.mrf.mxu0
      %943 = vmatprep.mubr.bf16.mxu0 0
      %944 = vmatmul.mubr.bf16.gmra.mxu0 %v515
      %v945 = vpop.f32.mrf.mxu0
      %v946 = vadd.f32 %v737, %v945
      %v947 = vpop.f32.mrf.mxu0
      %v948 = vpop.f32.mrf.mxu0
      %v949 = vadd.f32 %v740, %v948
      %v950 = vpop.f32.mrf.mxu0
      %951 = vmatprep.mubr.bf16.mxu0 0
      %952 = vmatmul.mubr.bf16.gmra.mxu0 %v516
      %v953 = vpop.f32.mrf.mxu0
      %v954 = vadd.f32 %v745, %v953
      %v955 = vpop.f32.mrf.mxu0
      %v956 = vpop.f32.mrf.mxu0
      %v957 = vadd.f32 %v748, %v956
      %v958 = vpop.f32.mrf.mxu0
      %959 = vmatprep.mubr.bf16.mxu0 0
      %960 = vmatmul.mubr.bf16.gmra.mxu0 %v517
      %v961 = vpop.f32.mrf.mxu0
      %v962 = vadd.f32 %v753, %v961
      %v963 = vpop.f32.mrf.mxu0
      %v964 = vpop.f32.mrf.mxu0
      %v965 = vadd.f32 %v756, %v964
      %v966 = vpop.f32.mrf.mxu0
      %967 = vmatprep.mubr.bf16.mxu0 0
      %968 = vmatmul.mubr.bf16.gmra.mxu0 %v518
      %v969 = vpop.f32.mrf.mxu0
      %v970 = vadd.f32 %v761, %v969
      %v971 = vpop.f32.mrf.mxu0
      %v972 = vpop.f32.mrf.mxu0
      %v973 = vadd.f32 %v764, %v972
      %v974 = vpop.f32.mrf.mxu0
      %975 = vmatprep.mubr.bf16.mxu0 0
      %976 = vmatmul.mubr.bf16.gmra.mxu0 %v519
      %v977 = vpop.f32.mrf.mxu0
      %v978 = vadd.f32 %v769, %v977
      %v979 = vpop.f32.mrf.mxu0
      %v980 = vpop.f32.mrf.mxu0
      %v981 = vadd.f32 %v772, %v980
      %v982 = vpop.f32.mrf.mxu0
      %983 = vmatprep.mubr.bf16.mxu0 0
      %984 = vmatmul.mubr.bf16.gmra.mxu0 %v520
      %v985 = vpop.f32.mrf.mxu0
      %v986 = vadd.f32 %v777, %v985
      %v987 = vpop.f32.mrf.mxu0
      %v988 = vpop.f32.mrf.mxu0
      %v989 = vadd.f32 %v780, %v988
      %v990 = vpop.f32.mrf.mxu0
      %991 = vmatprep.mubr.bf16.mxu0 0
      %992 = vmatmul.mubr.bf16.gmra.mxu0 %v521
      %v993 = vpop.f32.mrf.mxu0
      %v994 = vadd.f32 %v785, %v993
      %v995 = vpop.f32.mrf.mxu0
      %v996 = vpop.f32.mrf.mxu0
      %v997 = vadd.f32 %v788, %v996
      %v998 = vpop.f32.mrf.mxu0
      %999 = vmatprep.mubr.bf16.mxu0 0
      %1000 = vmatmul.mubr.bf16.gmra.mxu0 %v522
      %v1001 = vpop.f32.mrf.mxu0
      %v1002 = vadd.f32 %v793, %v1001
      %v1003 = vpop.f32.mrf.mxu0
      %v1004 = vpop.f32.mrf.mxu0
      %v1005 = vadd.f32 %v796, %v1004
      %v1006 = vpop.f32.mrf.mxu0
      %1007 = vmatprep.mubr.bf16.mxu0 0
      %1008 = vmatmul.mubr.bf16.gmra.mxu0 %v523
      %v1009 = vpop.f32.mrf.mxu0
      %v1010 = vadd.f32 %v801, %v1009
      %v1011 = vpop.f32.mrf.mxu0
      %v1012 = vpop.f32.mrf.mxu0
      %v1013 = vadd.f32 %v804, %v1012
      %v1014 = vpop.f32.mrf.mxu0
      %1015 = vmatprep.mubr.bf16.mxu0 0
      %1016 = vmatmul.mubr.bf16.gmra.mxu0 %v524
      %v1017 = vpop.f32.mrf.mxu0
      %v1018 = vadd.f32 %v809, %v1017
      %v1019 = vpop.f32.mrf.mxu0
      %v1020 = vpop.f32.mrf.mxu0
      %v1021 = vadd.f32 %v812, %v1020
      %v1022 = vpop.f32.mrf.mxu0
      %1023 = vdwg.mxu0
      %v1024 = vld [vmem:[#allocation2 + $0x2] sm:$0xff]
      %v1025 = vld [vmem:[#allocation2 + $0xa] sm:$0xff]
      %v1026 = vld [vmem:[#allocation2 + $0x1a] sm:$0xff]
      %v1027 = vld [vmem:[#allocation2 + $0x22] sm:$0xff]
      %v1028 = vld [vmem:[#allocation2 + $0x32] sm:$0xff]
      %v1029 = vld [vmem:[#allocation2 + $0x3a] sm:$0xff]
      %v1030 = vld [vmem:[#allocation2 + $0x4a] sm:$0xff]
      %v1031 = vld [vmem:[#allocation2 + $0x52] sm:$0xff]
      %v1032 = vld [vmem:[#allocation2 + $0x62] sm:$0xff]
      %v1033 = vld [vmem:[#allocation2 + $0x6a] sm:$0xff]
      %v1034 = vld [vmem:[#allocation2 + $0x7a] sm:$0xff]
      %v1035 = vld [vmem:[#allocation2 + $0x82] sm:$0xff]
      %v1036 = vld [vmem:[#allocation2 + $0x92] sm:$0xff]
      %v1037 = vld [vmem:[#allocation2 + $0x9a] sm:$0xff]
      %v1038 = vld [vmem:[#allocation2 + $0xaa] sm:$0xff]
      %v1039 = vld [vmem:[#allocation2 + $0xb2] sm:$0xff]
      %v1040 = vld [vmem:[#allocation2 + $0xc2] sm:$0xff]
      %v1041 = vld [vmem:[#allocation2 + $0xca] sm:$0xff]
      %v1042 = vld [vmem:[#allocation2 + $0xda] sm:$0xff]
      %v1043 = vld [vmem:[#allocation2 + $0xe2] sm:$0xff]
      %v1044 = vld [vmem:[#allocation2 + $0xf2] sm:$0xff]
      %v1045 = vld [vmem:[#allocation2 + $0xfa] sm:$0xff]
      %v1046 = vld [vmem:[#allocation2 + $0x10a] sm:$0xff]
      %v1047 = vld [vmem:[#allocation2 + $0x112] sm:$0xff]
      %v1048 = vld [vmem:[#allocation2 + $0x122] sm:$0xff]
      %v1049 = vld [vmem:[#allocation2 + $0x12a] sm:$0xff]
      %v1050 = vld [vmem:[#allocation2 + $0x13a] sm:$0xff]
      %v1051 = vld [vmem:[#allocation2 + $0x142] sm:$0xff]
      %v1052 = vld [vmem:[#allocation2 + $0x152] sm:$0xff]
      %v1053 = vld [vmem:[#allocation2 + $0x15a] sm:$0xff]
      %v1054 = vld [vmem:[#allocation2 + $0x16a] sm:$0xff]
      %v1055 = vld [vmem:[#allocation2 + $0x172] sm:$0xff]
      %v1056 = vpack.c.bf16 %v1025, %v1024
      %v1057 = vpack.c.bf16 %v1027, %v1026
      %v1058 = vpack.c.bf16 %v1029, %v1028
      %v1059 = vpack.c.bf16 %v1031, %v1030
      %v1060 = vpack.c.bf16 %v1033, %v1032
      %v1061 = vpack.c.bf16 %v1035, %v1034
      %v1062 = vpack.c.bf16 %v1037, %v1036
      %v1063 = vpack.c.bf16 %v1039, %v1038
      %v1064 = vpack.c.bf16 %v1041, %v1040
      %v1065 = vpack.c.bf16 %v1043, %v1042
      %v1066 = vpack.c.bf16 %v1045, %v1044
      %v1067 = vpack.c.bf16 %v1047, %v1046
      %v1068 = vpack.c.bf16 %v1049, %v1048
      %v1069 = vpack.c.bf16 %v1051, %v1050
      %v1070 = vpack.c.bf16 %v1053, %v1052
      %v1071 = vpack.c.bf16 %v1055, %v1054
      %s1072 = scalar_lea.vmem %s3, 128
      %v1073 = vld [vmem:[%s1072] sm:$0xf]
      %v1074 = vld [vmem:[%s1072 + $0x4] sm:$0xf]
      %v1075 = vld [vmem:[%s1072 + $0x8] sm:$0xf]
      %v1076 = vld [vmem:[%s1072 + $0xc] sm:$0xf]
      %v1077 = vld [vmem:[%s1072 + $0x10] sm:$0xf]
      %v1078 = vld [vmem:[%s1072 + $0x14] sm:$0xf]
      %v1079 = vld [vmem:[%s1072 + $0x18] sm:$0xf]
      %v1080 = vld [vmem:[%s1072 + $0x1c] sm:$0xf]
      %v1081 = vld [vmem:[%s1072 + $0x20] sm:$0xf]
      %v1082 = vld [vmem:[%s1072 + $0x24] sm:$0xf]
      %v1083 = vld [vmem:[%s1072 + $0x28] sm:$0xf]
      %v1084 = vld [vmem:[%s1072 + $0x2c] sm:$0xf]
      %v1085 = vld [vmem:[%s1072 + $0x30] sm:$0xf]
      %v1086 = vld [vmem:[%s1072 + $0x34] sm:$0xf]
      %v1087 = vld [vmem:[%s1072 + $0x38] sm:$0xf]
      %v1088 = vld [vmem:[%s1072 + $0x3c] sm:$0xf]
      %v1105 = vunpack.c.l.b16 %v1073
      %v1106 = vunpack.c.l.b16 %v1074
      %v1107 = vunpack.c.l.b16 %v1075
      %v1108 = vunpack.c.l.b16 %v1076
      %v1109 = vunpack.c.l.b16 %v1077
      %v1110 = vunpack.c.l.b16 %v1078
      %v1111 = vunpack.c.l.b16 %v1079
      %v1112 = vunpack.c.l.b16 %v1080
      %v1113 = vunpack.c.l.b16 %v1081
      %v1114 = vunpack.c.l.b16 %v1082
      %v1115 = vunpack.c.l.b16 %v1083
      %v1116 = vunpack.c.l.b16 %v1084
      %v1117 = vunpack.c.l.b16 %v1085
      %v1118 = vunpack.c.l.b16 %v1086
      %v1119 = vunpack.c.l.b16 %v1087
      %v1120 = vunpack.c.l.b16 %v1088
      %v1121 = vpack.c.b16 %v1106, %v1105
      %v1122 = vpack.c.b16 %v1108, %v1107
      %v1123 = vpack.c.b16 %v1110, %v1109
      %v1124 = vpack.c.b16 %v1112, %v1111
      %v1125 = vpack.c.b16 %v1114, %v1113
      %v1126 = vpack.c.b16 %v1116, %v1115
      %v1127 = vpack.c.b16 %v1118, %v1117
      %v1128 = vpack.c.b16 %v1120, %v1119
      %1137 = vmatprep.subr.bf16.mxu0 0
      %1138 = vmatpush1.bf16.msra.mxu0 %v1128
      %1139 = vmatprep.subr.bf16.mxu0 0
      %1140 = vmatpush1.bf16.msra.mxu0 %v1127
      %1141 = vmatprep.subr.bf16.mxu0 0
      %1142 = vmatpush1.bf16.msra.mxu0 %v1126
      %1143 = vmatprep.subr.bf16.mxu0 0
      %1144 = vmatpush1.bf16.msra.mxu0 %v1125
      %1145 = vmatprep.subr.bf16.mxu0 0
      %1146 = vmatpush1.bf16.msra.mxu0 %v1124
      %1147 = vmatprep.subr.bf16.mxu0 0
      %1148 = vmatpush1.bf16.msra.mxu0 %v1123
      %1149 = vmatprep.subr.bf16.mxu0 0
      %1150 = vmatpush1.bf16.msra.mxu0 %v1122
      %1151 = vmatprep.subr.bf16.mxu0 0
      %1152 = vmatpush1.bf16.msra.mxu0 %v1121
      %1153 = vmatprep.subr.bf16.mxu0 0
      %1154 = vmatpush2.bf16.msra.mxu0 0
      %1155 = vmatprep.subr.bf16.mxu0 0
      %1156 = vmatpush2.bf16.msra.mxu0 0
      %1157 = vmatprep.subr.bf16.mxu0 0
      %1158 = vmatpush2.bf16.msra.mxu0 0
      %1159 = vmatprep.subr.bf16.mxu0 0
      %1160 = vmatpush2.bf16.msra.mxu0 0
      %1161 = vmatprep.subr.bf16.mxu0 0
      %1162 = vmatpush2.bf16.msra.mxu0 0
      %1163 = vmatprep.subr.bf16.mxu0 0
      %1164 = vmatpush2.bf16.msra.mxu0 0
      %1165 = vmatprep.subr.bf16.mxu0 0
      %1166 = vmatpush2.bf16.msra.mxu0 0
      %1167 = vmatprep.subr.bf16.mxu0 0
      %1168 = vmatpush2.bf16.msra.mxu0 0
      %1169 = vmatprep.mubr.bf16.mxu0 0
      %1170 = vmatmul.mubr.bf16.gmra.mxu0 %v1056
      %v1171 = vpop.f32.mrf.mxu0
      %v1172 = vadd.f32 0.0, %v1171
      %v1173 = vpop.f32.mrf.mxu0
      %v1174 = vpop.f32.mrf.mxu0
      %v1175 = vadd.f32 0.0, %v1174
      %v1176 = vpop.f32.mrf.mxu0
      %1177 = vmatprep.mubr.bf16.mxu0 0
      %1178 = vmatmul.mubr.bf16.gmra.mxu0 %v1057
      %v1179 = vpop.f32.mrf.mxu0
      %v1180 = vadd.f32 0.0, %v1179
      %v1181 = vpop.f32.mrf.mxu0
      %v1182 = vpop.f32.mrf.mxu0
      %v1183 = vadd.f32 0.0, %v1182
      %v1184 = vpop.f32.mrf.mxu0
      %1185 = vmatprep.mubr.bf16.mxu0 0
      %1186 = vmatmul.mubr.bf16.gmra.mxu0 %v1058
      %v1187 = vpop.f32.mrf.mxu0
      %v1188 = vadd.f32 0.0, %v1187
      %v1189 = vpop.f32.mrf.mxu0
      %v1190 = vpop.f32.mrf.mxu0
      %v1191 = vadd.f32 0.0, %v1190
      %v1192 = vpop.f32.mrf.mxu0
      %1193 = vmatprep.mubr.bf16.mxu0 0
      %1194 = vmatmul.mubr.bf16.gmra.mxu0 %v1059
      %v1195 = vpop.f32.mrf.mxu0
      %v1196 = vadd.f32 0.0, %v1195
      %v1197 = vpop.f32.mrf.mxu0
      %v1198 = vpop.f32.mrf.mxu0
      %v1199 = vadd.f32 0.0, %v1198
      %v1200 = vpop.f32.mrf.mxu0
      %1201 = vmatprep.mubr.bf16.mxu0 0
      %1202 = vmatmul.mubr.bf16.gmra.mxu0 %v1060
      %v1203 = vpop.f32.mrf.mxu0
      %v1204 = vadd.f32 0.0, %v1203
      %v1205 = vpop.f32.mrf.mxu0
      %v1206 = vpop.f32.mrf.mxu0
      %v1207 = vadd.f32 0.0, %v1206
      %v1208 = vpop.f32.mrf.mxu0
      %1209 = vmatprep.mubr.bf16.mxu0 0
      %1210 = vmatmul.mubr.bf16.gmra.mxu0 %v1061
      %v1211 = vpop.f32.mrf.mxu0
      %v1212 = vadd.f32 0.0, %v1211
      %v1213 = vpop.f32.mrf.mxu0
      %v1214 = vpop.f32.mrf.mxu0
      %v1215 = vadd.f32 0.0, %v1214
      %v1216 = vpop.f32.mrf.mxu0
      %1217 = vmatprep.mubr.bf16.mxu0 0
      %1218 = vmatmul.mubr.bf16.gmra.mxu0 %v1062
      %v1219 = vpop.f32.mrf.mxu0
      %v1220 = vadd.f32 0.0, %v1219
      %v1221 = vpop.f32.mrf.mxu0
      %v1222 = vpop.f32.mrf.mxu0
      %v1223 = vadd.f32 0.0, %v1222
      %v1224 = vpop.f32.mrf.mxu0
      %1225 = vmatprep.mubr.bf16.mxu0 0
      %1226 = vmatmul.mubr.bf16.gmra.mxu0 %v1063
      %v1227 = vpop.f32.mrf.mxu0
      %v1228 = vadd.f32 0.0, %v1227
      %v1229 = vpop.f32.mrf.mxu0
      %v1230 = vpop.f32.mrf.mxu0
      %v1231 = vadd.f32 0.0, %v1230
      %v1232 = vpop.f32.mrf.mxu0
      %1233 = vmatprep.mubr.bf16.mxu0 0
      %1234 = vmatmul.mubr.bf16.gmra.mxu0 %v1064
      %v1235 = vpop.f32.mrf.mxu0
      %v1236 = vadd.f32 0.0, %v1235
      %v1237 = vpop.f32.mrf.mxu0
      %v1238 = vpop.f32.mrf.mxu0
      %v1239 = vadd.f32 0.0, %v1238
      %v1240 = vpop.f32.mrf.mxu0
      %1241 = vmatprep.mubr.bf16.mxu0 0
      %1242 = vmatmul.mubr.bf16.gmra.mxu0 %v1065
      %v1243 = vpop.f32.mrf.mxu0
      %v1244 = vadd.f32 0.0, %v1243
      %v1245 = vpop.f32.mrf.mxu0
      %v1246 = vpop.f32.mrf.mxu0
      %v1247 = vadd.f32 0.0, %v1246
      %v1248 = vpop.f32.mrf.mxu0
      %1249 = vmatprep.mubr.bf16.mxu0 0
      %1250 = vmatmul.mubr.bf16.gmra.mxu0 %v1066
      %v1251 = vpop.f32.mrf.mxu0
      %v1252 = vadd.f32 0.0, %v1251
      %v1253 = vpop.f32.mrf.mxu0
      %v1254 = vpop.f32.mrf.mxu0
      %v1255 = vadd.f32 0.0, %v1254
      %v1256 = vpop.f32.mrf.mxu0
      %1257 = vmatprep.mubr.bf16.mxu0 0
      %1258 = vmatmul.mubr.bf16.gmra.mxu0 %v1067
      %v1259 = vpop.f32.mrf.mxu0
      %v1260 = vadd.f32 0.0, %v1259
      %v1261 = vpop.f32.mrf.mxu0
      %v1262 = vpop.f32.mrf.mxu0
      %v1263 = vadd.f32 0.0, %v1262
      %v1264 = vpop.f32.mrf.mxu0
      %1265 = vmatprep.mubr.bf16.mxu0 0
      %1266 = vmatmul.mubr.bf16.gmra.mxu0 %v1068
      %v1267 = vpop.f32.mrf.mxu0
      %v1268 = vadd.f32 0.0, %v1267
      %v1269 = vpop.f32.mrf.mxu0
      %v1270 = vpop.f32.mrf.mxu0
      %v1271 = vadd.f32 0.0, %v1270
      %v1272 = vpop.f32.mrf.mxu0
      %1273 = vmatprep.mubr.bf16.mxu0 0
      %1274 = vmatmul.mubr.bf16.gmra.mxu0 %v1069
      %v1275 = vpop.f32.mrf.mxu0
      %v1276 = vadd.f32 0.0, %v1275
      %v1277 = vpop.f32.mrf.mxu0
      %v1278 = vpop.f32.mrf.mxu0
      %v1279 = vadd.f32 0.0, %v1278
      %v1280 = vpop.f32.mrf.mxu0
      %1281 = vmatprep.mubr.bf16.mxu0 0
      %1282 = vmatmul.mubr.bf16.gmra.mxu0 %v1070
      %v1283 = vpop.f32.mrf.mxu0
      %v1284 = vadd.f32 0.0, %v1283
      %v1285 = vpop.f32.mrf.mxu0
      %v1286 = vpop.f32.mrf.mxu0
      %v1287 = vadd.f32 0.0, %v1286
      %v1288 = vpop.f32.mrf.mxu0
      %1289 = vmatprep.mubr.bf16.mxu0 0
      %1290 = vmatmul.mubr.bf16.gmra.mxu0 %v1071
      %v1291 = vpop.f32.mrf.mxu0
      %v1292 = vadd.f32 0.0, %v1291
      %v1293 = vpop.f32.mrf.mxu0
      %v1294 = vpop.f32.mrf.mxu0
      %v1295 = vadd.f32 0.0, %v1294
      %v1296 = vpop.f32.mrf.mxu0
      %1297 = vdwg.mxu0
      %v1298 = vadd.f32 %v898, %v1172
      %v1299 = vadd.f32 %v901, %v1175
      %v1300 = vadd.f32 %v906, %v1180
      %v1301 = vadd.f32 %v909, %v1183
      %v1302 = vadd.f32 %v914, %v1188
      %v1303 = vadd.f32 %v917, %v1191
      %v1304 = vadd.f32 %v922, %v1196
      %v1305 = vadd.f32 %v925, %v1199
      %v1306 = vadd.f32 %v930, %v1204
      %v1307 = vadd.f32 %v933, %v1207
      %v1308 = vadd.f32 %v938, %v1212
      %v1309 = vadd.f32 %v941, %v1215
      %v1310 = vadd.f32 %v946, %v1220
      %v1311 = vadd.f32 %v949, %v1223
      %v1312 = vadd.f32 %v954, %v1228
      %v1313 = vadd.f32 %v957, %v1231
      %v1314 = vadd.f32 %v962, %v1236
      %v1315 = vadd.f32 %v965, %v1239
      %v1316 = vadd.f32 %v970, %v1244
      %v1317 = vadd.f32 %v973, %v1247
      %v1318 = vadd.f32 %v978, %v1252
      %v1319 = vadd.f32 %v981, %v1255
      %v1320 = vadd.f32 %v986, %v1260
      %v1321 = vadd.f32 %v989, %v1263
      %v1322 = vadd.f32 %v994, %v1268
      %v1323 = vadd.f32 %v997, %v1271
      %v1324 = vadd.f32 %v1002, %v1276
      %v1325 = vadd.f32 %v1005, %v1279
      %v1326 = vadd.f32 %v1010, %v1284
      %v1327 = vadd.f32 %v1013, %v1287
      %v1328 = vadd.f32 %v1018, %v1292
      %v1329 = vadd.f32 %v1021, %v1295
      %v1330 = vld [vmem:[%s444] sm:$0xff]
      %v1331 = vld [vmem:[%s444 + $0x8] sm:$0xff]
      %v1332 = vld [vmem:[%s444 + $0x18] sm:$0xff]
      %v1333 = vld [vmem:[%s444 + $0x20] sm:$0xff]
      %v1334 = vld [vmem:[%s444 + $0x30] sm:$0xff]
      %v1335 = vld [vmem:[%s444 + $0x38] sm:$0xff]
      %v1336 = vld [vmem:[%s444 + $0x48] sm:$0xff]
      %v1337 = vld [vmem:[%s444 + $0x50] sm:$0xff]
      %v1338 = vld [vmem:[%s444 + $0x60] sm:$0xff]
      %v1339 = vld [vmem:[%s444 + $0x68] sm:$0xff]
      %v1340 = vld [vmem:[%s444 + $0x78] sm:$0xff]
      %v1341 = vld [vmem:[%s444 + $0x80] sm:$0xff]
      %v1342 = vld [vmem:[%s444 + $0x90] sm:$0xff]
      %v1343 = vld [vmem:[%s444 + $0x98] sm:$0xff]
      %v1344 = vld [vmem:[%s444 + $0xa8] sm:$0xff]
      %v1345 = vld [vmem:[%s444 + $0xb0] sm:$0xff]
      %v1346 = vld [vmem:[%s444 + $0xc0] sm:$0xff]
      %v1347 = vld [vmem:[%s444 + $0xc8] sm:$0xff]
      %v1348 = vld [vmem:[%s444 + $0xd8] sm:$0xff]
      %v1349 = vld [vmem:[%s444 + $0xe0] sm:$0xff]
      %v1350 = vld [vmem:[%s444 + $0xf0] sm:$0xff]
      %v1351 = vld [vmem:[%s444 + $0xf8] sm:$0xff]
      %v1352 = vld [vmem:[%s444 + $0x108] sm:$0xff]
      %v1353 = vld [vmem:[%s444 + $0x110] sm:$0xff]
      %v1354 = vld [vmem:[%s444 + $0x120] sm:$0xff]
      %v1355 = vld [vmem:[%s444 + $0x128] sm:$0xff]
      %v1356 = vld [vmem:[%s444 + $0x138] sm:$0xff]
      %v1357 = vld [vmem:[%s444 + $0x140] sm:$0xff]
      %v1358 = vld [vmem:[%s444 + $0x150] sm:$0xff]
      %v1359 = vld [vmem:[%s444 + $0x158] sm:$0xff]
      %v1360 = vld [vmem:[%s444 + $0x168] sm:$0xff]
      %v1361 = vld [vmem:[%s444 + $0x170] sm:$0xff]
      %v1362 = vpack.c.bf16 %v1331, %v1330
      %v1363 = vpack.c.bf16 %v1333, %v1332
      %v1364 = vpack.c.bf16 %v1335, %v1334
      %v1365 = vpack.c.bf16 %v1337, %v1336
      %v1366 = vpack.c.bf16 %v1339, %v1338
      %v1367 = vpack.c.bf16 %v1341, %v1340
      %v1368 = vpack.c.bf16 %v1343, %v1342
      %v1369 = vpack.c.bf16 %v1345, %v1344
      %v1370 = vpack.c.bf16 %v1347, %v1346
      %v1371 = vpack.c.bf16 %v1349, %v1348
      %v1372 = vpack.c.bf16 %v1351, %v1350
      %v1373 = vpack.c.bf16 %v1353, %v1352
      %v1374 = vpack.c.bf16 %v1355, %v1354
      %v1375 = vpack.c.bf16 %v1357, %v1356
      %v1376 = vpack.c.bf16 %v1359, %v1358
      %v1377 = vpack.c.bf16 %v1361, %v1360
      %s1378 = scalar_lea.vmem %s3, 192
      %v1379 = vld [vmem:[%s1378] sm:$0xf]
      %v1380 = vld [vmem:[%s1378 + $0x4] sm:$0xf]
      %v1381 = vld [vmem:[%s1378 + $0x8] sm:$0xf]
      %v1382 = vld [vmem:[%s1378 + $0xc] sm:$0xf]
      %v1383 = vld [vmem:[%s1378 + $0x10] sm:$0xf]
      %v1384 = vld [vmem:[%s1378 + $0x14] sm:$0xf]
      %v1385 = vld [vmem:[%s1378 + $0x18] sm:$0xf]
      %v1386 = vld [vmem:[%s1378 + $0x1c] sm:$0xf]
      %v1387 = vld [vmem:[%s1378 + $0x20] sm:$0xf]
      %v1388 = vld [vmem:[%s1378 + $0x24] sm:$0xf]
      %v1389 = vld [vmem:[%s1378 + $0x28] sm:$0xf]
      %v1390 = vld [vmem:[%s1378 + $0x2c] sm:$0xf]
      %v1391 = vld [vmem:[%s1378 + $0x30] sm:$0xf]
      %v1392 = vld [vmem:[%s1378 + $0x34] sm:$0xf]
      %v1393 = vld [vmem:[%s1378 + $0x38] sm:$0xf]
      %v1394 = vld [vmem:[%s1378 + $0x3c] sm:$0xf]
      %v1411 = vunpack.c.l.b16 %v1379
      %v1412 = vunpack.c.l.b16 %v1380
      %v1413 = vunpack.c.l.b16 %v1381
      %v1414 = vunpack.c.l.b16 %v1382
      %v1415 = vunpack.c.l.b16 %v1383
      %v1416 = vunpack.c.l.b16 %v1384
      %v1417 = vunpack.c.l.b16 %v1385
      %v1418 = vunpack.c.l.b16 %v1386
      %v1419 = vunpack.c.l.b16 %v1387
      %v1420 = vunpack.c.l.b16 %v1388
      %v1421 = vunpack.c.l.b16 %v1389
      %v1422 = vunpack.c.l.b16 %v1390
      %v1423 = vunpack.c.l.b16 %v1391
      %v1424 = vunpack.c.l.b16 %v1392
      %v1425 = vunpack.c.l.b16 %v1393
      %v1426 = vunpack.c.l.b16 %v1394
      %v1427 = vpack.c.b16 %v1412, %v1411
      %v1428 = vpack.c.b16 %v1414, %v1413
      %v1429 = vpack.c.b16 %v1416, %v1415
      %v1430 = vpack.c.b16 %v1418, %v1417
      %v1431 = vpack.c.b16 %v1420, %v1419
      %v1432 = vpack.c.b16 %v1422, %v1421
      %v1433 = vpack.c.b16 %v1424, %v1423
      %v1434 = vpack.c.b16 %v1426, %v1425
      %1443 = vmatprep.subr.bf16.mxu0 0
      %1444 = vmatpush1.bf16.msra.mxu0 %v1434
      %1445 = vmatprep.subr.bf16.mxu0 0
      %1446 = vmatpush1.bf16.msra.mxu0 %v1433
      %1447 = vmatprep.subr.bf16.mxu0 0
      %1448 = vmatpush1.bf16.msra.mxu0 %v1432
      %1449 = vmatprep.subr.bf16.mxu0 0
      %1450 = vmatpush1.bf16.msra.mxu0 %v1431
      %1451 = vmatprep.subr.bf16.mxu0 0
      %1452 = vmatpush1.bf16.msra.mxu0 %v1430
      %1453 = vmatprep.subr.bf16.mxu0 0
      %1454 = vmatpush1.bf16.msra.mxu0 %v1429
      %1455 = vmatprep.subr.bf16.mxu0 0
      %1456 = vmatpush1.bf16.msra.mxu0 %v1428
      %1457 = vmatprep.subr.bf16.mxu0 0
      %1458 = vmatpush1.bf16.msra.mxu0 %v1427
      %1459 = vmatprep.subr.bf16.mxu0 0
      %1460 = vmatpush2.bf16.msra.mxu0 0
      %1461 = vmatprep.subr.bf16.mxu0 0
      %1462 = vmatpush2.bf16.msra.mxu0 0
      %1463 = vmatprep.subr.bf16.mxu0 0
      %1464 = vmatpush2.bf16.msra.mxu0 0
      %1465 = vmatprep.subr.bf16.mxu0 0
      %1466 = vmatpush2.bf16.msra.mxu0 0
      %1467 = vmatprep.subr.bf16.mxu0 0
      %1468 = vmatpush2.bf16.msra.mxu0 0
      %1469 = vmatprep.subr.bf16.mxu0 0
      %1470 = vmatpush2.bf16.msra.mxu0 0
      %1471 = vmatprep.subr.bf16.mxu0 0
      %1472 = vmatpush2.bf16.msra.mxu0 0
      %1473 = vmatprep.subr.bf16.mxu0 0
      %1474 = vmatpush2.bf16.msra.mxu0 0
      %1475 = vmatprep.mubr.bf16.mxu0 0
      %1476 = vmatmul.mubr.bf16.gmra.mxu0 %v1362
      %v1477 = vpop.f32.mrf.mxu0
      %v1478 = vadd.f32 0.0, %v1477
      %v1479 = vpop.f32.mrf.mxu0
      %v1480 = vpop.f32.mrf.mxu0
      %v1481 = vadd.f32 0.0, %v1480
      %v1482 = vpop.f32.mrf.mxu0
      %1483 = vmatprep.mubr.bf16.mxu0 0
      %1484 = vmatmul.mubr.bf16.gmra.mxu0 %v1363
      %v1485 = vpop.f32.mrf.mxu0
      %v1486 = vadd.f32 0.0, %v1485
      %v1487 = vpop.f32.mrf.mxu0
      %v1488 = vpop.f32.mrf.mxu0
      %v1489 = vadd.f32 0.0, %v1488
      %v1490 = vpop.f32.mrf.mxu0
      %1491 = vmatprep.mubr.bf16.mxu0 0
      %1492 = vmatmul.mubr.bf16.gmra.mxu0 %v1364
      %v1493 = vpop.f32.mrf.mxu0
      %v1494 = vadd.f32 0.0, %v1493
      %v1495 = vpop.f32.mrf.mxu0
      %v1496 = vpop.f32.mrf.mxu0
      %v1497 = vadd.f32 0.0, %v1496
      %v1498 = vpop.f32.mrf.mxu0
      %1499 = vmatprep.mubr.bf16.mxu0 0
      %1500 = vmatmul.mubr.bf16.gmra.mxu0 %v1365
      %v1501 = vpop.f32.mrf.mxu0
      %v1502 = vadd.f32 0.0, %v1501
      %v1503 = vpop.f32.mrf.mxu0
      %v1504 = vpop.f32.mrf.mxu0
      %v1505 = vadd.f32 0.0, %v1504
      %v1506 = vpop.f32.mrf.mxu0
      %1507 = vmatprep.mubr.bf16.mxu0 0
      %1508 = vmatmul.mubr.bf16.gmra.mxu0 %v1366
      %v1509 = vpop.f32.mrf.mxu0
      %v1510 = vadd.f32 0.0, %v1509
      %v1511 = vpop.f32.mrf.mxu0
      %v1512 = vpop.f32.mrf.mxu0
      %v1513 = vadd.f32 0.0, %v1512
      %v1514 = vpop.f32.mrf.mxu0
      %1515 = vmatprep.mubr.bf16.mxu0 0
      %1516 = vmatmul.mubr.bf16.gmra.mxu0 %v1367
      %v1517 = vpop.f32.mrf.mxu0
      %v1518 = vadd.f32 0.0, %v1517
      %v1519 = vpop.f32.mrf.mxu0
      %v1520 = vpop.f32.mrf.mxu0
      %v1521 = vadd.f32 0.0, %v1520
      %v1522 = vpop.f32.mrf.mxu0
      %1523 = vmatprep.mubr.bf16.mxu0 0
      %1524 = vmatmul.mubr.bf16.gmra.mxu0 %v1368
      %v1525 = vpop.f32.mrf.mxu0
      %v1526 = vadd.f32 0.0, %v1525
      %v1527 = vpop.f32.mrf.mxu0
      %v1528 = vpop.f32.mrf.mxu0
      %v1529 = vadd.f32 0.0, %v1528
      %v1530 = vpop.f32.mrf.mxu0
      %1531 = vmatprep.mubr.bf16.mxu0 0
      %1532 = vmatmul.mubr.bf16.gmra.mxu0 %v1369
      %v1533 = vpop.f32.mrf.mxu0
      %v1534 = vadd.f32 0.0, %v1533
      %v1535 = vpop.f32.mrf.mxu0
      %v1536 = vpop.f32.mrf.mxu0
      %v1537 = vadd.f32 0.0, %v1536
      %v1538 = vpop.f32.mrf.mxu0
      %1539 = vmatprep.mubr.bf16.mxu0 0
      %1540 = vmatmul.mubr.bf16.gmra.mxu0 %v1370
      %v1541 = vpop.f32.mrf.mxu0
      %v1542 = vadd.f32 0.0, %v1541
      %v1543 = vpop.f32.mrf.mxu0
      %v1544 = vpop.f32.mrf.mxu0
      %v1545 = vadd.f32 0.0, %v1544
      %v1546 = vpop.f32.mrf.mxu0
      %1547 = vmatprep.mubr.bf16.mxu0 0
      %1548 = vmatmul.mubr.bf16.gmra.mxu0 %v1371
      %v1549 = vpop.f32.mrf.mxu0
      %v1550 = vadd.f32 0.0, %v1549
      %v1551 = vpop.f32.mrf.mxu0
      %v1552 = vpop.f32.mrf.mxu0
      %v1553 = vadd.f32 0.0, %v1552
      %v1554 = vpop.f32.mrf.mxu0
      %1555 = vmatprep.mubr.bf16.mxu0 0
      %1556 = vmatmul.mubr.bf16.gmra.mxu0 %v1372
      %v1557 = vpop.f32.mrf.mxu0
      %v1558 = vadd.f32 0.0, %v1557
      %v1559 = vpop.f32.mrf.mxu0
      %v1560 = vpop.f32.mrf.mxu0
      %v1561 = vadd.f32 0.0, %v1560
      %v1562 = vpop.f32.mrf.mxu0
      %1563 = vmatprep.mubr.bf16.mxu0 0
      %1564 = vmatmul.mubr.bf16.gmra.mxu0 %v1373
      %v1565 = vpop.f32.mrf.mxu0
      %v1566 = vadd.f32 0.0, %v1565
      %v1567 = vpop.f32.mrf.mxu0
      %v1568 = vpop.f32.mrf.mxu0
      %v1569 = vadd.f32 0.0, %v1568
      %v1570 = vpop.f32.mrf.mxu0
      %1571 = vmatprep.mubr.bf16.mxu0 0
      %1572 = vmatmul.mubr.bf16.gmra.mxu0 %v1374
      %v1573 = vpop.f32.mrf.mxu0
      %v1574 = vadd.f32 0.0, %v1573
      %v1575 = vpop.f32.mrf.mxu0
      %v1576 = vpop.f32.mrf.mxu0
      %v1577 = vadd.f32 0.0, %v1576
      %v1578 = vpop.f32.mrf.mxu0
      %1579 = vmatprep.mubr.bf16.mxu0 0
      %1580 = vmatmul.mubr.bf16.gmra.mxu0 %v1375
      %v1581 = vpop.f32.mrf.mxu0
      %v1582 = vadd.f32 0.0, %v1581
      %v1583 = vpop.f32.mrf.mxu0
      %v1584 = vpop.f32.mrf.mxu0
      %v1585 = vadd.f32 0.0, %v1584
      %v1586 = vpop.f32.mrf.mxu0
      %1587 = vmatprep.mubr.bf16.mxu0 0
      %1588 = vmatmul.mubr.bf16.gmra.mxu0 %v1376
      %v1589 = vpop.f32.mrf.mxu0
      %v1590 = vadd.f32 0.0, %v1589
      %v1591 = vpop.f32.mrf.mxu0
      %v1592 = vpop.f32.mrf.mxu0
      %v1593 = vadd.f32 0.0, %v1592
      %v1594 = vpop.f32.mrf.mxu0
      %1595 = vmatprep.mubr.bf16.mxu0 0
      %1596 = vmatmul.mubr.bf16.gmra.mxu0 %v1377
      %v1597 = vpop.f32.mrf.mxu0
      %v1598 = vadd.f32 0.0, %v1597
      %v1599 = vpop.f32.mrf.mxu0
      %v1600 = vpop.f32.mrf.mxu0
      %v1601 = vadd.f32 0.0, %v1600
      %v1602 = vpop.f32.mrf.mxu0
      %1603 = vdwg.mxu0
      %v1604 = vadd.f32 %v1298, %v1478
      %v1605 = vadd.f32 %v1299, %v1481
      %v1606 = vadd.f32 %v1300, %v1486
      %v1607 = vadd.f32 %v1301, %v1489
      %v1608 = vadd.f32 %v1302, %v1494
      %v1609 = vadd.f32 %v1303, %v1497
      %v1610 = vadd.f32 %v1304, %v1502
      %v1611 = vadd.f32 %v1305, %v1505
      %v1612 = vadd.f32 %v1306, %v1510
      %v1613 = vadd.f32 %v1307, %v1513
      %v1614 = vadd.f32 %v1308, %v1518
      %v1615 = vadd.f32 %v1309, %v1521
      %v1616 = vadd.f32 %v1310, %v1526
      %v1617 = vadd.f32 %v1311, %v1529
      %v1618 = vadd.f32 %v1312, %v1534
      %v1619 = vadd.f32 %v1313, %v1537
      %v1620 = vadd.f32 %v1314, %v1542
      %v1621 = vadd.f32 %v1315, %v1545
      %v1622 = vadd.f32 %v1316, %v1550
      %v1623 = vadd.f32 %v1317, %v1553
      %v1624 = vadd.f32 %v1318, %v1558
      %v1625 = vadd.f32 %v1319, %v1561
      %v1626 = vadd.f32 %v1320, %v1566
      %v1627 = vadd.f32 %v1321, %v1569
      %v1628 = vadd.f32 %v1322, %v1574
      %v1629 = vadd.f32 %v1323, %v1577
      %v1630 = vadd.f32 %v1324, %v1582
      %v1631 = vadd.f32 %v1325, %v1585
      %v1632 = vadd.f32 %v1326, %v1590
      %v1633 = vadd.f32 %v1327, %v1593
      %v1634 = vadd.f32 %v1328, %v1598
      %v1635 = vadd.f32 %v1329, %v1601
      %v1636 = vld [vmem:[%s444 + $0x1] sm:$0xff]
      %v1637 = vld [vmem:[%s444 + $0x9] sm:$0xff]
      %v1638 = vld [vmem:[%s444 + $0x19] sm:$0xff]
      %v1639 = vld [vmem:[%s444 + $0x21] sm:$0xff]
      %v1640 = vld [vmem:[%s444 + $0x31] sm:$0xff]
      %v1641 = vld [vmem:[%s444 + $0x39] sm:$0xff]
      %v1642 = vld [vmem:[%s444 + $0x49] sm:$0xff]
      %v1643 = vld [vmem:[%s444 + $0x51] sm:$0xff]
      %v1644 = vld [vmem:[%s444 + $0x61] sm:$0xff]
      %v1645 = vld [vmem:[%s444 + $0x69] sm:$0xff]
      %v1646 = vld [vmem:[%s444 + $0x79] sm:$0xff]
      %v1647 = vld [vmem:[%s444 + $0x81] sm:$0xff]
      %v1648 = vld [vmem:[%s444 + $0x91] sm:$0xff]
      %v1649 = vld [vmem:[%s444 + $0x99] sm:$0xff]
      %v1650 = vld [vmem:[%s444 + $0xa9] sm:$0xff]
      %v1651 = vld [vmem:[%s444 + $0xb1] sm:$0xff]
      %v1652 = vld [vmem:[%s444 + $0xc1] sm:$0xff]
      %v1653 = vld [vmem:[%s444 + $0xc9] sm:$0xff]
      %v1654 = vld [vmem:[%s444 + $0xd9] sm:$0xff]
      %v1655 = vld [vmem:[%s444 + $0xe1] sm:$0xff]
      %v1656 = vld [vmem:[%s444 + $0xf1] sm:$0xff]
      %v1657 = vld [vmem:[%s444 + $0xf9] sm:$0xff]
      %v1658 = vld [vmem:[%s444 + $0x109] sm:$0xff]
      %v1659 = vld [vmem:[%s444 + $0x111] sm:$0xff]
      %v1660 = vld [vmem:[%s444 + $0x121] sm:$0xff]
      %v1661 = vld [vmem:[%s444 + $0x129] sm:$0xff]
      %v1662 = vld [vmem:[%s444 + $0x139] sm:$0xff]
      %v1663 = vld [vmem:[%s444 + $0x141] sm:$0xff]
      %v1664 = vld [vmem:[%s444 + $0x151] sm:$0xff]
      %v1665 = vld [vmem:[%s444 + $0x159] sm:$0xff]
      %v1666 = vld [vmem:[%s444 + $0x169] sm:$0xff]
      %v1667 = vld [vmem:[%s444 + $0x171] sm:$0xff]
      %v1668 = vpack.c.bf16 %v1637, %v1636
      %v1669 = vpack.c.bf16 %v1639, %v1638
      %v1670 = vpack.c.bf16 %v1641, %v1640
      %v1671 = vpack.c.bf16 %v1643, %v1642
      %v1672 = vpack.c.bf16 %v1645, %v1644
      %v1673 = vpack.c.bf16 %v1647, %v1646
      %v1674 = vpack.c.bf16 %v1649, %v1648
      %v1675 = vpack.c.bf16 %v1651, %v1650
      %v1676 = vpack.c.bf16 %v1653, %v1652
      %v1677 = vpack.c.bf16 %v1655, %v1654
      %v1678 = vpack.c.bf16 %v1657, %v1656
      %v1679 = vpack.c.bf16 %v1659, %v1658
      %v1680 = vpack.c.bf16 %v1661, %v1660
      %v1681 = vpack.c.bf16 %v1663, %v1662
      %v1682 = vpack.c.bf16 %v1665, %v1664
      %v1683 = vpack.c.bf16 %v1667, %v1666
      %s1684 = scalar_lea.vmem %s3, 256
      %v1685 = vld [vmem:[%s1684] sm:$0xf]
      %v1686 = vld [vmem:[%s1684 + $0x4] sm:$0xf]
      %v1687 = vld [vmem:[%s1684 + $0x8] sm:$0xf]
      %v1688 = vld [vmem:[%s1684 + $0xc] sm:$0xf]
      %v1689 = vld [vmem:[%s1684 + $0x10] sm:$0xf]
      %v1690 = vld [vmem:[%s1684 + $0x14] sm:$0xf]
      %v1691 = vld [vmem:[%s1684 + $0x18] sm:$0xf]
      %v1692 = vld [vmem:[%s1684 + $0x1c] sm:$0xf]
      %v1693 = vld [vmem:[%s1684 + $0x20] sm:$0xf]
      %v1694 = vld [vmem:[%s1684 + $0x24] sm:$0xf]
      %v1695 = vld [vmem:[%s1684 + $0x28] sm:$0xf]
      %v1696 = vld [vmem:[%s1684 + $0x2c] sm:$0xf]
      %v1697 = vld [vmem:[%s1684 + $0x30] sm:$0xf]
      %v1698 = vld [vmem:[%s1684 + $0x34] sm:$0xf]
      %v1699 = vld [vmem:[%s1684 + $0x38] sm:$0xf]
      %v1700 = vld [vmem:[%s1684 + $0x3c] sm:$0xf]
      %v1717 = vunpack.c.l.b16 %v1685
      %v1718 = vunpack.c.l.b16 %v1686
      %v1719 = vunpack.c.l.b16 %v1687
      %v1720 = vunpack.c.l.b16 %v1688
      %v1721 = vunpack.c.l.b16 %v1689
      %v1722 = vunpack.c.l.b16 %v1690
      %v1723 = vunpack.c.l.b16 %v1691
      %v1724 = vunpack.c.l.b16 %v1692
      %v1725 = vunpack.c.l.b16 %v1693
      %v1726 = vunpack.c.l.b16 %v1694
      %v1727 = vunpack.c.l.b16 %v1695
      %v1728 = vunpack.c.l.b16 %v1696
      %v1729 = vunpack.c.l.b16 %v1697
      %v1730 = vunpack.c.l.b16 %v1698
      %v1731 = vunpack.c.l.b16 %v1699
      %v1732 = vunpack.c.l.b16 %v1700
      %v1733 = vpack.c.b16 %v1718, %v1717
      %v1734 = vpack.c.b16 %v1720, %v1719
      %v1735 = vpack.c.b16 %v1722, %v1721
      %v1736 = vpack.c.b16 %v1724, %v1723
      %v1737 = vpack.c.b16 %v1726, %v1725
      %v1738 = vpack.c.b16 %v1728, %v1727
      %v1739 = vpack.c.b16 %v1730, %v1729
      %v1740 = vpack.c.b16 %v1732, %v1731
      %1749 = vmatprep.subr.bf16.mxu0 0
      %1750 = vmatpush1.bf16.msra.mxu0 %v1740
      %1751 = vmatprep.subr.bf16.mxu0 0
      %1752 = vmatpush1.bf16.msra.mxu0 %v1739
      %1753 = vmatprep.subr.bf16.mxu0 0
      %1754 = vmatpush1.bf16.msra.mxu0 %v1738
      %1755 = vmatprep.subr.bf16.mxu0 0
      %1756 = vmatpush1.bf16.msra.mxu0 %v1737
      %1757 = vmatprep.subr.bf16.mxu0 0
      %1758 = vmatpush1.bf16.msra.mxu0 %v1736
      %1759 = vmatprep.subr.bf16.mxu0 0
      %1760 = vmatpush1.bf16.msra.mxu0 %v1735
      %1761 = vmatprep.subr.bf16.mxu0 0
      %1762 = vmatpush1.bf16.msra.mxu0 %v1734
      %1763 = vmatprep.subr.bf16.mxu0 0
      %1764 = vmatpush1.bf16.msra.mxu0 %v1733
      %1765 = vmatprep.subr.bf16.mxu0 0
      %1766 = vmatpush2.bf16.msra.mxu0 0
      %1767 = vmatprep.subr.bf16.mxu0 0
      %1768 = vmatpush2.bf16.msra.mxu0 0
      %1769 = vmatprep.subr.bf16.mxu0 0
      %1770 = vmatpush2.bf16.msra.mxu0 0
      %1771 = vmatprep.subr.bf16.mxu0 0
      %1772 = vmatpush2.bf16.msra.mxu0 0
      %1773 = vmatprep.subr.bf16.mxu0 0
      %1774 = vmatpush2.bf16.msra.mxu0 0
      %1775 = vmatprep.subr.bf16.mxu0 0
      %1776 = vmatpush2.bf16.msra.mxu0 0
      %1777 = vmatprep.subr.bf16.mxu0 0
      %1778 = vmatpush2.bf16.msra.mxu0 0
      %1779 = vmatprep.subr.bf16.mxu0 0
      %1780 = vmatpush2.bf16.msra.mxu0 0
      %1781 = vmatprep.mubr.bf16.mxu0 0
      %1782 = vmatmul.mubr.bf16.gmra.mxu0 %v1668
      %v1783 = vpop.f32.mrf.mxu0
      %v1784 = vadd.f32 0.0, %v1783
      %v1785 = vpop.f32.mrf.mxu0
      %v1786 = vpop.f32.mrf.mxu0
      %v1787 = vadd.f32 0.0, %v1786
      %v1788 = vpop.f32.mrf.mxu0
      %1789 = vmatprep.mubr.bf16.mxu0 0
      %1790 = vmatmul.mubr.bf16.gmra.mxu0 %v1669
      %v1791 = vpop.f32.mrf.mxu0
      %v1792 = vadd.f32 0.0, %v1791
      %v1793 = vpop.f32.mrf.mxu0
      %v1794 = vpop.f32.mrf.mxu0
      %v1795 = vadd.f32 0.0, %v1794
      %v1796 = vpop.f32.mrf.mxu0
      %1797 = vmatprep.mubr.bf16.mxu0 0
      %1798 = vmatmul.mubr.bf16.gmra.mxu0 %v1670
      %v1799 = vpop.f32.mrf.mxu0
      %v1800 = vadd.f32 0.0, %v1799
      %v1801 = vpop.f32.mrf.mxu0
      %v1802 = vpop.f32.mrf.mxu0
      %v1803 = vadd.f32 0.0, %v1802
      %v1804 = vpop.f32.mrf.mxu0
      %1805 = vmatprep.mubr.bf16.mxu0 0
      %1806 = vmatmul.mubr.bf16.gmra.mxu0 %v1671
      %v1807 = vpop.f32.mrf.mxu0
      %v1808 = vadd.f32 0.0, %v1807
      %v1809 = vpop.f32.mrf.mxu0
      %v1810 = vpop.f32.mrf.mxu0
      %v1811 = vadd.f32 0.0, %v1810
      %v1812 = vpop.f32.mrf.mxu0
      %1813 = vmatprep.mubr.bf16.mxu0 0
      %1814 = vmatmul.mubr.bf16.gmra.mxu0 %v1672
      %v1815 = vpop.f32.mrf.mxu0
      %v1816 = vadd.f32 0.0, %v1815
      %v1817 = vpop.f32.mrf.mxu0
      %v1818 = vpop.f32.mrf.mxu0
      %v1819 = vadd.f32 0.0, %v1818
      %v1820 = vpop.f32.mrf.mxu0
      %1821 = vmatprep.mubr.bf16.mxu0 0
      %1822 = vmatmul.mubr.bf16.gmra.mxu0 %v1673
      %v1823 = vpop.f32.mrf.mxu0
      %v1824 = vadd.f32 0.0, %v1823
      %v1825 = vpop.f32.mrf.mxu0
      %v1826 = vpop.f32.mrf.mxu0
      %v1827 = vadd.f32 0.0, %v1826
      %v1828 = vpop.f32.mrf.mxu0
      %1829 = vmatprep.mubr.bf16.mxu0 0
      %1830 = vmatmul.mubr.bf16.gmra.mxu0 %v1674
      %v1831 = vpop.f32.mrf.mxu0
      %v1832 = vadd.f32 0.0, %v1831
      %v1833 = vpop.f32.mrf.mxu0
      %v1834 = vpop.f32.mrf.mxu0
      %v1835 = vadd.f32 0.0, %v1834
      %v1836 = vpop.f32.mrf.mxu0
      %1837 = vmatprep.mubr.bf16.mxu0 0
      %1838 = vmatmul.mubr.bf16.gmra.mxu0 %v1675
      %v1839 = vpop.f32.mrf.mxu0
      %v1840 = vadd.f32 0.0, %v1839
      %v1841 = vpop.f32.mrf.mxu0
      %v1842 = vpop.f32.mrf.mxu0
      %v1843 = vadd.f32 0.0, %v1842
      %v1844 = vpop.f32.mrf.mxu0
      %1845 = vmatprep.mubr.bf16.mxu0 0
      %1846 = vmatmul.mubr.bf16.gmra.mxu0 %v1676
      %v1847 = vpop.f32.mrf.mxu0
      %v1848 = vadd.f32 0.0, %v1847
      %v1849 = vpop.f32.mrf.mxu0
      %v1850 = vpop.f32.mrf.mxu0
      %v1851 = vadd.f32 0.0, %v1850
      %v1852 = vpop.f32.mrf.mxu0
      %1853 = vmatprep.mubr.bf16.mxu0 0
      %1854 = vmatmul.mubr.bf16.gmra.mxu0 %v1677
      %v1855 = vpop.f32.mrf.mxu0
      %v1856 = vadd.f32 0.0, %v1855
      %v1857 = vpop.f32.mrf.mxu0
      %v1858 = vpop.f32.mrf.mxu0
      %v1859 = vadd.f32 0.0, %v1858
      %v1860 = vpop.f32.mrf.mxu0
      %1861 = vmatprep.mubr.bf16.mxu0 0
      %1862 = vmatmul.mubr.bf16.gmra.mxu0 %v1678
      %v1863 = vpop.f32.mrf.mxu0
      %v1864 = vadd.f32 0.0, %v1863
      %v1865 = vpop.f32.mrf.mxu0
      %v1866 = vpop.f32.mrf.mxu0
      %v1867 = vadd.f32 0.0, %v1866
      %v1868 = vpop.f32.mrf.mxu0
      %1869 = vmatprep.mubr.bf16.mxu0 0
      %1870 = vmatmul.mubr.bf16.gmra.mxu0 %v1679
      %v1871 = vpop.f32.mrf.mxu0
      %v1872 = vadd.f32 0.0, %v1871
      %v1873 = vpop.f32.mrf.mxu0
      %v1874 = vpop.f32.mrf.mxu0
      %v1875 = vadd.f32 0.0, %v1874
      %v1876 = vpop.f32.mrf.mxu0
      %1877 = vmatprep.mubr.bf16.mxu0 0
      %1878 = vmatmul.mubr.bf16.gmra.mxu0 %v1680
      %v1879 = vpop.f32.mrf.mxu0
      %v1880 = vadd.f32 0.0, %v1879
      %v1881 = vpop.f32.mrf.mxu0
      %v1882 = vpop.f32.mrf.mxu0
      %v1883 = vadd.f32 0.0, %v1882
      %v1884 = vpop.f32.mrf.mxu0
      %1885 = vmatprep.mubr.bf16.mxu0 0
      %1886 = vmatmul.mubr.bf16.gmra.mxu0 %v1681
      %v1887 = vpop.f32.mrf.mxu0
      %v1888 = vadd.f32 0.0, %v1887
      %v1889 = vpop.f32.mrf.mxu0
      %v1890 = vpop.f32.mrf.mxu0
      %v1891 = vadd.f32 0.0, %v1890
      %v1892 = vpop.f32.mrf.mxu0
      %1893 = vmatprep.mubr.bf16.mxu0 0
      %1894 = vmatmul.mubr.bf16.gmra.mxu0 %v1682
      %v1895 = vpop.f32.mrf.mxu0
      %v1896 = vadd.f32 0.0, %v1895
      %v1897 = vpop.f32.mrf.mxu0
      %v1898 = vpop.f32.mrf.mxu0
      %v1899 = vadd.f32 0.0, %v1898
      %v1900 = vpop.f32.mrf.mxu0
      %1901 = vmatprep.mubr.bf16.mxu0 0
      %1902 = vmatmul.mubr.bf16.gmra.mxu0 %v1683
      %v1903 = vpop.f32.mrf.mxu0
      %v1904 = vadd.f32 0.0, %v1903
      %v1905 = vpop.f32.mrf.mxu0
      %v1906 = vpop.f32.mrf.mxu0
      %v1907 = vadd.f32 0.0, %v1906
      %v1908 = vpop.f32.mrf.mxu0
      %1909 = vdwg.mxu0
      %v1910 = vadd.f32 %v1604, %v1784
      %v1911 = vadd.f32 %v1605, %v1787
      %v1912 = vadd.f32 %v1606, %v1792
      %v1913 = vadd.f32 %v1607, %v1795
      %v1914 = vadd.f32 %v1608, %v1800
      %v1915 = vadd.f32 %v1609, %v1803
      %v1916 = vadd.f32 %v1610, %v1808
      %v1917 = vadd.f32 %v1611, %v1811
      %v1918 = vadd.f32 %v1612, %v1816
      %v1919 = vadd.f32 %v1613, %v1819
      %v1920 = vadd.f32 %v1614, %v1824
      %v1921 = vadd.f32 %v1615, %v1827
      %v1922 = vadd.f32 %v1616, %v1832
      %v1923 = vadd.f32 %v1617, %v1835
      %v1924 = vadd.f32 %v1618, %v1840
      %v1925 = vadd.f32 %v1619, %v1843
      %v1926 = vadd.f32 %v1620, %v1848
      %v1927 = vadd.f32 %v1621, %v1851
      %v1928 = vadd.f32 %v1622, %v1856
      %v1929 = vadd.f32 %v1623, %v1859
      %v1930 = vadd.f32 %v1624, %v1864
      %v1931 = vadd.f32 %v1625, %v1867
      %v1932 = vadd.f32 %v1626, %v1872
      %v1933 = vadd.f32 %v1627, %v1875
      %v1934 = vadd.f32 %v1628, %v1880
      %v1935 = vadd.f32 %v1629, %v1883
      %v1936 = vadd.f32 %v1630, %v1888
      %v1937 = vadd.f32 %v1631, %v1891
      %v1938 = vadd.f32 %v1632, %v1896
      %v1939 = vadd.f32 %v1633, %v1899
      %v1940 = vadd.f32 %v1634, %v1904
      %v1941 = vadd.f32 %v1635, %v1907
      %v1942 = vld [vmem:[%s444 + $0x2] sm:$0xff]
      %v1943 = vld [vmem:[%s444 + $0xa] sm:$0xff]
      %v1944 = vld [vmem:[%s444 + $0x1a] sm:$0xff]
      %v1945 = vld [vmem:[%s444 + $0x22] sm:$0xff]
      %v1946 = vld [vmem:[%s444 + $0x32] sm:$0xff]
      %v1947 = vld [vmem:[%s444 + $0x3a] sm:$0xff]
      %v1948 = vld [vmem:[%s444 + $0x4a] sm:$0xff]
      %v1949 = vld [vmem:[%s444 + $0x52] sm:$0xff]
      %v1950 = vld [vmem:[%s444 + $0x62] sm:$0xff]
      %v1951 = vld [vmem:[%s444 + $0x6a] sm:$0xff]
      %v1952 = vld [vmem:[%s444 + $0x7a] sm:$0xff]
      %v1953 = vld [vmem:[%s444 + $0x82] sm:$0xff]
      %v1954 = vld [vmem:[%s444 + $0x92] sm:$0xff]
      %v1955 = vld [vmem:[%s444 + $0x9a] sm:$0xff]
      %v1956 = vld [vmem:[%s444 + $0xaa] sm:$0xff]
      %v1957 = vld [vmem:[%s444 + $0xb2] sm:$0xff]
      %v1958 = vld [vmem:[%s444 + $0xc2] sm:$0xff]
      %v1959 = vld [vmem:[%s444 + $0xca] sm:$0xff]
      %v1960 = vld [vmem:[%s444 + $0xda] sm:$0xff]
      %v1961 = vld [vmem:[%s444 + $0xe2] sm:$0xff]
      %v1962 = vld [vmem:[%s444 + $0xf2] sm:$0xff]
      %v1963 = vld [vmem:[%s444 + $0xfa] sm:$0xff]
      %v1964 = vld [vmem:[%s444 + $0x10a] sm:$0xff]
      %v1965 = vld [vmem:[%s444 + $0x112] sm:$0xff]
      %v1966 = vld [vmem:[%s444 + $0x122] sm:$0xff]
      %v1967 = vld [vmem:[%s444 + $0x12a] sm:$0xff]
      %v1968 = vld [vmem:[%s444 + $0x13a] sm:$0xff]
      %v1969 = vld [vmem:[%s444 + $0x142] sm:$0xff]
      %v1970 = vld [vmem:[%s444 + $0x152] sm:$0xff]
      %v1971 = vld [vmem:[%s444 + $0x15a] sm:$0xff]
      %v1972 = vld [vmem:[%s444 + $0x16a] sm:$0xff]
      %v1973 = vld [vmem:[%s444 + $0x172] sm:$0xff]
      %v1974 = vpack.c.bf16 %v1943, %v1942
      %v1975 = vpack.c.bf16 %v1945, %v1944
      %v1976 = vpack.c.bf16 %v1947, %v1946
      %v1977 = vpack.c.bf16 %v1949, %v1948
      %v1978 = vpack.c.bf16 %v1951, %v1950
      %v1979 = vpack.c.bf16 %v1953, %v1952
      %v1980 = vpack.c.bf16 %v1955, %v1954
      %v1981 = vpack.c.bf16 %v1957, %v1956
      %v1982 = vpack.c.bf16 %v1959, %v1958
      %v1983 = vpack.c.bf16 %v1961, %v1960
      %v1984 = vpack.c.bf16 %v1963, %v1962
      %v1985 = vpack.c.bf16 %v1965, %v1964
      %v1986 = vpack.c.bf16 %v1967, %v1966
      %v1987 = vpack.c.bf16 %v1969, %v1968
      %v1988 = vpack.c.bf16 %v1971, %v1970
      %v1989 = vpack.c.bf16 %v1973, %v1972
      %s1990 = scalar_lea.vmem %s3, 320
      %v1991 = vld [vmem:[%s1990] sm:$0xf]
      %v1992 = vld [vmem:[%s1990 + $0x4] sm:$0xf]
      %v1993 = vld [vmem:[%s1990 + $0x8] sm:$0xf]
      %v1994 = vld [vmem:[%s1990 + $0xc] sm:$0xf]
      %v1995 = vld [vmem:[%s1990 + $0x10] sm:$0xf]
      %v1996 = vld [vmem:[%s1990 + $0x14] sm:$0xf]
      %v1997 = vld [vmem:[%s1990 + $0x18] sm:$0xf]
      %v1998 = vld [vmem:[%s1990 + $0x1c] sm:$0xf]
      %v1999 = vld [vmem:[%s1990 + $0x20] sm:$0xf]
      %v2000 = vld [vmem:[%s1990 + $0x24] sm:$0xf]
      %v2001 = vld [vmem:[%s1990 + $0x28] sm:$0xf]
      %v2002 = vld [vmem:[%s1990 + $0x2c] sm:$0xf]
      %v2003 = vld [vmem:[%s1990 + $0x30] sm:$0xf]
      %v2004 = vld [vmem:[%s1990 + $0x34] sm:$0xf]
      %v2005 = vld [vmem:[%s1990 + $0x38] sm:$0xf]
      %v2006 = vld [vmem:[%s1990 + $0x3c] sm:$0xf]
      %v2023 = vunpack.c.l.b16 %v1991
      %v2024 = vunpack.c.l.b16 %v1992
      %v2025 = vunpack.c.l.b16 %v1993
      %v2026 = vunpack.c.l.b16 %v1994
      %v2027 = vunpack.c.l.b16 %v1995
      %v2028 = vunpack.c.l.b16 %v1996
      %v2029 = vunpack.c.l.b16 %v1997
      %v2030 = vunpack.c.l.b16 %v1998
      %v2031 = vunpack.c.l.b16 %v1999
      %v2032 = vunpack.c.l.b16 %v2000
      %v2033 = vunpack.c.l.b16 %v2001
      %v2034 = vunpack.c.l.b16 %v2002
      %v2035 = vunpack.c.l.b16 %v2003
      %v2036 = vunpack.c.l.b16 %v2004
      %v2037 = vunpack.c.l.b16 %v2005
      %v2038 = vunpack.c.l.b16 %v2006
      %v2039 = vpack.c.b16 %v2024, %v2023
      %v2040 = vpack.c.b16 %v2026, %v2025
      %v2041 = vpack.c.b16 %v2028, %v2027
      %v2042 = vpack.c.b16 %v2030, %v2029
      %v2043 = vpack.c.b16 %v2032, %v2031
      %v2044 = vpack.c.b16 %v2034, %v2033
      %v2045 = vpack.c.b16 %v2036, %v2035
      %v2046 = vpack.c.b16 %v2038, %v2037
      %2055 = vmatprep.subr.bf16.mxu0 0
      %2056 = vmatpush1.bf16.msra.mxu0 %v2046
      %2057 = vmatprep.subr.bf16.mxu0 0
      %2058 = vmatpush1.bf16.msra.mxu0 %v2045
      %2059 = vmatprep.subr.bf16.mxu0 0
      %2060 = vmatpush1.bf16.msra.mxu0 %v2044
      %2061 = vmatprep.subr.bf16.mxu0 0
      %2062 = vmatpush1.bf16.msra.mxu0 %v2043
      %2063 = vmatprep.subr.bf16.mxu0 0
      %2064 = vmatpush1.bf16.msra.mxu0 %v2042
      %2065 = vmatprep.subr.bf16.mxu0 0
      %2066 = vmatpush1.bf16.msra.mxu0 %v2041
      %2067 = vmatprep.subr.bf16.mxu0 0
      %2068 = vmatpush1.bf16.msra.mxu0 %v2040
      %2069 = vmatprep.subr.bf16.mxu0 0
      %2070 = vmatpush1.bf16.msra.mxu0 %v2039
      %2071 = vmatprep.subr.bf16.mxu0 0
      %2072 = vmatpush2.bf16.msra.mxu0 0
      %2073 = vmatprep.subr.bf16.mxu0 0
      %2074 = vmatpush2.bf16.msra.mxu0 0
      %2075 = vmatprep.subr.bf16.mxu0 0
      %2076 = vmatpush2.bf16.msra.mxu0 0
      %2077 = vmatprep.subr.bf16.mxu0 0
      %2078 = vmatpush2.bf16.msra.mxu0 0
      %2079 = vmatprep.subr.bf16.mxu0 0
      %2080 = vmatpush2.bf16.msra.mxu0 0
      %2081 = vmatprep.subr.bf16.mxu0 0
      %2082 = vmatpush2.bf16.msra.mxu0 0
      %2083 = vmatprep.subr.bf16.mxu0 0
      %2084 = vmatpush2.bf16.msra.mxu0 0
      %2085 = vmatprep.subr.bf16.mxu0 0
      %2086 = vmatpush2.bf16.msra.mxu0 0
      %2087 = vmatprep.mubr.bf16.mxu0 0
      %2088 = vmatmul.mubr.bf16.gmra.mxu0 %v1974
      %v2089 = vpop.f32.mrf.mxu0
      %v2090 = vadd.f32 0.0, %v2089
      %v2091 = vpop.f32.mrf.mxu0
      %v2092 = vpop.f32.mrf.mxu0
      %v2093 = vadd.f32 0.0, %v2092
      %v2094 = vpop.f32.mrf.mxu0
      %2095 = vmatprep.mubr.bf16.mxu0 0
      %2096 = vmatmul.mubr.bf16.gmra.mxu0 %v1975
      %v2097 = vpop.f32.mrf.mxu0
      %v2098 = vadd.f32 0.0, %v2097
      %v2099 = vpop.f32.mrf.mxu0
      %v2100 = vpop.f32.mrf.mxu0
      %v2101 = vadd.f32 0.0, %v2100
      %v2102 = vpop.f32.mrf.mxu0
      %2103 = vmatprep.mubr.bf16.mxu0 0
      %2104 = vmatmul.mubr.bf16.gmra.mxu0 %v1976
      %v2105 = vpop.f32.mrf.mxu0
      %v2106 = vadd.f32 0.0, %v2105
      %v2107 = vpop.f32.mrf.mxu0
      %v2108 = vpop.f32.mrf.mxu0
      %v2109 = vadd.f32 0.0, %v2108
      %v2110 = vpop.f32.mrf.mxu0
      %2111 = vmatprep.mubr.bf16.mxu0 0
      %2112 = vmatmul.mubr.bf16.gmra.mxu0 %v1977
      %v2113 = vpop.f32.mrf.mxu0
      %v2114 = vadd.f32 0.0, %v2113
      %v2115 = vpop.f32.mrf.mxu0
      %v2116 = vpop.f32.mrf.mxu0
      %v2117 = vadd.f32 0.0, %v2116
      %v2118 = vpop.f32.mrf.mxu0
      %2119 = vmatprep.mubr.bf16.mxu0 0
      %2120 = vmatmul.mubr.bf16.gmra.mxu0 %v1978
      %v2121 = vpop.f32.mrf.mxu0
      %v2122 = vadd.f32 0.0, %v2121
      %v2123 = vpop.f32.mrf.mxu0
      %v2124 = vpop.f32.mrf.mxu0
      %v2125 = vadd.f32 0.0, %v2124
      %v2126 = vpop.f32.mrf.mxu0
      %2127 = vmatprep.mubr.bf16.mxu0 0
      %2128 = vmatmul.mubr.bf16.gmra.mxu0 %v1979
      %v2129 = vpop.f32.mrf.mxu0
      %v2130 = vadd.f32 0.0, %v2129
      %v2131 = vpop.f32.mrf.mxu0
      %v2132 = vpop.f32.mrf.mxu0
      %v2133 = vadd.f32 0.0, %v2132
      %v2134 = vpop.f32.mrf.mxu0
      %2135 = vmatprep.mubr.bf16.mxu0 0
      %2136 = vmatmul.mubr.bf16.gmra.mxu0 %v1980
      %v2137 = vpop.f32.mrf.mxu0
      %v2138 = vadd.f32 0.0, %v2137
      %v2139 = vpop.f32.mrf.mxu0
      %v2140 = vpop.f32.mrf.mxu0
      %v2141 = vadd.f32 0.0, %v2140
      %v2142 = vpop.f32.mrf.mxu0
      %2143 = vmatprep.mubr.bf16.mxu0 0
      %2144 = vmatmul.mubr.bf16.gmra.mxu0 %v1981
      %v2145 = vpop.f32.mrf.mxu0
      %v2146 = vadd.f32 0.0, %v2145
      %v2147 = vpop.f32.mrf.mxu0
      %v2148 = vpop.f32.mrf.mxu0
      %v2149 = vadd.f32 0.0, %v2148
      %v2150 = vpop.f32.mrf.mxu0
      %2151 = vmatprep.mubr.bf16.mxu0 0
      %2152 = vmatmul.mubr.bf16.gmra.mxu0 %v1982
      %v2153 = vpop.f32.mrf.mxu0
      %v2154 = vadd.f32 0.0, %v2153
      %v2155 = vpop.f32.mrf.mxu0
      %v2156 = vpop.f32.mrf.mxu0
      %v2157 = vadd.f32 0.0, %v2156
      %v2158 = vpop.f32.mrf.mxu0
      %2159 = vmatprep.mubr.bf16.mxu0 0
      %2160 = vmatmul.mubr.bf16.gmra.mxu0 %v1983
      %v2161 = vpop.f32.mrf.mxu0
      %v2162 = vadd.f32 0.0, %v2161
      %v2163 = vpop.f32.mrf.mxu0
      %v2164 = vpop.f32.mrf.mxu0
      %v2165 = vadd.f32 0.0, %v2164
      %v2166 = vpop.f32.mrf.mxu0
      %2167 = vmatprep.mubr.bf16.mxu0 0
      %2168 = vmatmul.mubr.bf16.gmra.mxu0 %v1984
      %v2169 = vpop.f32.mrf.mxu0
      %v2170 = vadd.f32 0.0, %v2169
      %v2171 = vpop.f32.mrf.mxu0
      %v2172 = vpop.f32.mrf.mxu0
      %v2173 = vadd.f32 0.0, %v2172
      %v2174 = vpop.f32.mrf.mxu0
      %2175 = vmatprep.mubr.bf16.mxu0 0
      %2176 = vmatmul.mubr.bf16.gmra.mxu0 %v1985
      %v2177 = vpop.f32.mrf.mxu0
      %v2178 = vadd.f32 0.0, %v2177
      %v2179 = vpop.f32.mrf.mxu0
      %v2180 = vpop.f32.mrf.mxu0
      %v2181 = vadd.f32 0.0, %v2180
      %v2182 = vpop.f32.mrf.mxu0
      %2183 = vmatprep.mubr.bf16.mxu0 0
      %2184 = vmatmul.mubr.bf16.gmra.mxu0 %v1986
      %v2185 = vpop.f32.mrf.mxu0
      %v2186 = vadd.f32 0.0, %v2185
      %v2187 = vpop.f32.mrf.mxu0
      %v2188 = vpop.f32.mrf.mxu0
      %v2189 = vadd.f32 0.0, %v2188
      %v2190 = vpop.f32.mrf.mxu0
      %2191 = vmatprep.mubr.bf16.mxu0 0
      %2192 = vmatmul.mubr.bf16.gmra.mxu0 %v1987
      %v2193 = vpop.f32.mrf.mxu0
      %v2194 = vadd.f32 0.0, %v2193
      %v2195 = vpop.f32.mrf.mxu0
      %v2196 = vpop.f32.mrf.mxu0
      %v2197 = vadd.f32 0.0, %v2196
      %v2198 = vpop.f32.mrf.mxu0
      %2199 = vmatprep.mubr.bf16.mxu0 0
      %2200 = vmatmul.mubr.bf16.gmra.mxu0 %v1988
      %v2201 = vpop.f32.mrf.mxu0
      %v2202 = vadd.f32 0.0, %v2201
      %v2203 = vpop.f32.mrf.mxu0
      %v2204 = vpop.f32.mrf.mxu0
      %v2205 = vadd.f32 0.0, %v2204
      %v2206 = vpop.f32.mrf.mxu0
      %2207 = vmatprep.mubr.bf16.mxu0 0
      %2208 = vmatmul.mubr.bf16.gmra.mxu0 %v1989
      %v2209 = vpop.f32.mrf.mxu0
      %v2210 = vadd.f32 0.0, %v2209
      %v2211 = vpop.f32.mrf.mxu0
      %v2212 = vpop.f32.mrf.mxu0
      %v2213 = vadd.f32 0.0, %v2212
      %v2214 = vpop.f32.mrf.mxu0
      %2215 = vdwg.mxu0
      %v2216 = vadd.f32 %v1910, %v2090
      %v2217 = vadd.f32 %v1911, %v2093
      %v2218 = vadd.f32 %v1912, %v2098
      %v2219 = vadd.f32 %v1913, %v2101
      %v2220 = vadd.f32 %v1914, %v2106
      %v2221 = vadd.f32 %v1915, %v2109
      %v2222 = vadd.f32 %v1916, %v2114
      %v2223 = vadd.f32 %v1917, %v2117
      %v2224 = vadd.f32 %v1918, %v2122
      %v2225 = vadd.f32 %v1919, %v2125
      %v2226 = vadd.f32 %v1920, %v2130
      %v2227 = vadd.f32 %v1921, %v2133
      %v2228 = vadd.f32 %v1922, %v2138
      %v2229 = vadd.f32 %v1923, %v2141
      %v2230 = vadd.f32 %v1924, %v2146
      %v2231 = vadd.f32 %v1925, %v2149
      %v2232 = vadd.f32 %v1926, %v2154
      %v2233 = vadd.f32 %v1927, %v2157
      %v2234 = vadd.f32 %v1928, %v2162
      %v2235 = vadd.f32 %v1929, %v2165
      %v2236 = vadd.f32 %v1930, %v2170
      %v2237 = vadd.f32 %v1931, %v2173
      %v2238 = vadd.f32 %v1932, %v2178
      %v2239 = vadd.f32 %v1933, %v2181
      %v2240 = vadd.f32 %v1934, %v2186
      %v2241 = vadd.f32 %v1935, %v2189
      %v2242 = vadd.f32 %v1936, %v2194
      %v2243 = vadd.f32 %v1937, %v2197
      %v2244 = vadd.f32 %v1938, %v2202
      %v2245 = vadd.f32 %v1939, %v2205
      %v2246 = vadd.f32 %v1940, %v2210
      %v2247 = vadd.f32 %v1941, %v2213
      %s2248 = scalar_lea.vmem [#allocation2], 48
      %v2249 = vld [vmem:[%s2248] sm:$0xff]
      %v2250 = vld [vmem:[%s2248 + $0x8] sm:$0xff]
      %v2251 = vld [vmem:[%s2248 + $0x18] sm:$0xff]
      %v2252 = vld [vmem:[%s2248 + $0x20] sm:$0xff]
      %v2253 = vld [vmem:[%s2248 + $0x30] sm:$0xff]
      %v2254 = vld [vmem:[%s2248 + $0x38] sm:$0xff]
      %v2255 = vld [vmem:[%s2248 + $0x48] sm:$0xff]
      %v2256 = vld [vmem:[%s2248 + $0x50] sm:$0xff]
      %v2257 = vld [vmem:[%s2248 + $0x60] sm:$0xff]
      %v2258 = vld [vmem:[%s2248 + $0x68] sm:$0xff]
      %v2259 = vld [vmem:[%s2248 + $0x78] sm:$0xff]
      %v2260 = vld [vmem:[%s2248 + $0x80] sm:$0xff]
      %v2261 = vld [vmem:[%s2248 + $0x90] sm:$0xff]
      %v2262 = vld [vmem:[%s2248 + $0x98] sm:$0xff]
      %v2263 = vld [vmem:[%s2248 + $0xa8] sm:$0xff]
      %v2264 = vld [vmem:[%s2248 + $0xb0] sm:$0xff]
      %v2265 = vld [vmem:[%s2248 + $0xc0] sm:$0xff]
      %v2266 = vld [vmem:[%s2248 + $0xc8] sm:$0xff]
      %v2267 = vld [vmem:[%s2248 + $0xd8] sm:$0xff]
      %v2268 = vld [vmem:[%s2248 + $0xe0] sm:$0xff]
      %v2269 = vld [vmem:[%s2248 + $0xf0] sm:$0xff]
      %v2270 = vld [vmem:[%s2248 + $0xf8] sm:$0xff]
      %v2271 = vld [vmem:[%s2248 + $0x108] sm:$0xff]
      %v2272 = vld [vmem:[%s2248 + $0x110] sm:$0xff]
      %v2273 = vld [vmem:[%s2248 + $0x120] sm:$0xff]
      %v2274 = vld [vmem:[%s2248 + $0x128] sm:$0xff]
      %v2275 = vld [vmem:[%s2248 + $0x138] sm:$0xff]
      %v2276 = vld [vmem:[%s2248 + $0x140] sm:$0xff]
      %v2277 = vld [vmem:[%s2248 + $0x150] sm:$0xff]
      %v2278 = vld [vmem:[%s2248 + $0x158] sm:$0xff]
      %v2279 = vld [vmem:[%s2248 + $0x168] sm:$0xff]
      %v2280 = vld [vmem:[%s2248 + $0x170] sm:$0xff]
      %v2281 = vpack.c.bf16 %v2250, %v2249
      %v2282 = vpack.c.bf16 %v2252, %v2251
      %v2283 = vpack.c.bf16 %v2254, %v2253
      %v2284 = vpack.c.bf16 %v2256, %v2255
      %v2285 = vpack.c.bf16 %v2258, %v2257
      %v2286 = vpack.c.bf16 %v2260, %v2259
      %v2287 = vpack.c.bf16 %v2262, %v2261
      %v2288 = vpack.c.bf16 %v2264, %v2263
      %v2289 = vpack.c.bf16 %v2266, %v2265
      %v2290 = vpack.c.bf16 %v2268, %v2267
      %v2291 = vpack.c.bf16 %v2270, %v2269
      %v2292 = vpack.c.bf16 %v2272, %v2271
      %v2293 = vpack.c.bf16 %v2274, %v2273
      %v2294 = vpack.c.bf16 %v2276, %v2275
      %v2295 = vpack.c.bf16 %v2278, %v2277
      %v2296 = vpack.c.bf16 %v2280, %v2279
      %s2297 = scalar_lea.vmem %s3, 384
      %v2298 = vld [vmem:[%s2297] sm:$0xf]
      %v2299 = vld [vmem:[%s2297 + $0x4] sm:$0xf]
      %v2300 = vld [vmem:[%s2297 + $0x8] sm:$0xf]
      %v2301 = vld [vmem:[%s2297 + $0xc] sm:$0xf]
      %v2302 = vld [vmem:[%s2297 + $0x10] sm:$0xf]
      %v2303 = vld [vmem:[%s2297 + $0x14] sm:$0xf]
      %v2304 = vld [vmem:[%s2297 + $0x18] sm:$0xf]
      %v2305 = vld [vmem:[%s2297 + $0x1c] sm:$0xf]
      %v2306 = vld [vmem:[%s2297 + $0x20] sm:$0xf]
      %v2307 = vld [vmem:[%s2297 + $0x24] sm:$0xf]
      %v2308 = vld [vmem:[%s2297 + $0x28] sm:$0xf]
      %v2309 = vld [vmem:[%s2297 + $0x2c] sm:$0xf]
      %v2310 = vld [vmem:[%s2297 + $0x30] sm:$0xf]
      %v2311 = vld [vmem:[%s2297 + $0x34] sm:$0xf]
      %v2312 = vld [vmem:[%s2297 + $0x38] sm:$0xf]
      %v2313 = vld [vmem:[%s2297 + $0x3c] sm:$0xf]
      %v2330 = vunpack.c.l.b16 %v2298
      %v2331 = vunpack.c.l.b16 %v2299
      %v2332 = vunpack.c.l.b16 %v2300
      %v2333 = vunpack.c.l.b16 %v2301
      %v2334 = vunpack.c.l.b16 %v2302
      %v2335 = vunpack.c.l.b16 %v2303
      %v2336 = vunpack.c.l.b16 %v2304
      %v2337 = vunpack.c.l.b16 %v2305
      %v2338 = vunpack.c.l.b16 %v2306
      %v2339 = vunpack.c.l.b16 %v2307
      %v2340 = vunpack.c.l.b16 %v2308
      %v2341 = vunpack.c.l.b16 %v2309
      %v2342 = vunpack.c.l.b16 %v2310
      %v2343 = vunpack.c.l.b16 %v2311
      %v2344 = vunpack.c.l.b16 %v2312
      %v2345 = vunpack.c.l.b16 %v2313
      %v2346 = vpack.c.b16 %v2331, %v2330
      %v2347 = vpack.c.b16 %v2333, %v2332
      %v2348 = vpack.c.b16 %v2335, %v2334
      %v2349 = vpack.c.b16 %v2337, %v2336
      %v2350 = vpack.c.b16 %v2339, %v2338
      %v2351 = vpack.c.b16 %v2341, %v2340
      %v2352 = vpack.c.b16 %v2343, %v2342
      %v2353 = vpack.c.b16 %v2345, %v2344
      %2362 = vmatprep.subr.bf16.mxu0 0
      %2363 = vmatpush1.bf16.msra.mxu0 %v2353
      %2364 = vmatprep.subr.bf16.mxu0 0
      %2365 = vmatpush1.bf16.msra.mxu0 %v2352
      %2366 = vmatprep.subr.bf16.mxu0 0
      %2367 = vmatpush1.bf16.msra.mxu0 %v2351
      %2368 = vmatprep.subr.bf16.mxu0 0
      %2369 = vmatpush1.bf16.msra.mxu0 %v2350
      %2370 = vmatprep.subr.bf16.mxu0 0
      %2371 = vmatpush1.bf16.msra.mxu0 %v2349
      %2372 = vmatprep.subr.bf16.mxu0 0
      %2373 = vmatpush1.bf16.msra.mxu0 %v2348
      %2374 = vmatprep.subr.bf16.mxu0 0
      %2375 = vmatpush1.bf16.msra.mxu0 %v2347
      %2376 = vmatprep.subr.bf16.mxu0 0
      %2377 = vmatpush1.bf16.msra.mxu0 %v2346
      %2378 = vmatprep.subr.bf16.mxu0 0
      %2379 = vmatpush2.bf16.msra.mxu0 0
      %2380 = vmatprep.subr.bf16.mxu0 0
      %2381 = vmatpush2.bf16.msra.mxu0 0
      %2382 = vmatprep.subr.bf16.mxu0 0
      %2383 = vmatpush2.bf16.msra.mxu0 0
      %2384 = vmatprep.subr.bf16.mxu0 0
      %2385 = vmatpush2.bf16.msra.mxu0 0
      %2386 = vmatprep.subr.bf16.mxu0 0
      %2387 = vmatpush2.bf16.msra.mxu0 0
      %2388 = vmatprep.subr.bf16.mxu0 0
      %2389 = vmatpush2.bf16.msra.mxu0 0
      %2390 = vmatprep.subr.bf16.mxu0 0
      %2391 = vmatpush2.bf16.msra.mxu0 0
      %2392 = vmatprep.subr.bf16.mxu0 0
      %2393 = vmatpush2.bf16.msra.mxu0 0
      %2394 = vmatprep.mubr.bf16.mxu0 0
      %2395 = vmatmul.mubr.bf16.gmra.mxu0 %v2281
      %v2396 = vpop.f32.mrf.mxu0
      %v2397 = vadd.f32 0.0, %v2396
      %v2398 = vpop.f32.mrf.mxu0
      %v2399 = vpop.f32.mrf.mxu0
      %v2400 = vadd.f32 0.0, %v2399
      %v2401 = vpop.f32.mrf.mxu0
      %2402 = vmatprep.mubr.bf16.mxu0 0
      %2403 = vmatmul.mubr.bf16.gmra.mxu0 %v2282
      %v2404 = vpop.f32.mrf.mxu0
      %v2405 = vadd.f32 0.0, %v2404
      %v2406 = vpop.f32.mrf.mxu0
      %v2407 = vpop.f32.mrf.mxu0
      %v2408 = vadd.f32 0.0, %v2407
      %v2409 = vpop.f32.mrf.mxu0
      %2410 = vmatprep.mubr.bf16.mxu0 0
      %2411 = vmatmul.mubr.bf16.gmra.mxu0 %v2283
      %v2412 = vpop.f32.mrf.mxu0
      %v2413 = vadd.f32 0.0, %v2412
      %v2414 = vpop.f32.mrf.mxu0
      %v2415 = vpop.f32.mrf.mxu0
      %v2416 = vadd.f32 0.0, %v2415
      %v2417 = vpop.f32.mrf.mxu0
      %2418 = vmatprep.mubr.bf16.mxu0 0
      %2419 = vmatmul.mubr.bf16.gmra.mxu0 %v2284
      %v2420 = vpop.f32.mrf.mxu0
      %v2421 = vadd.f32 0.0, %v2420
      %v2422 = vpop.f32.mrf.mxu0
      %v2423 = vpop.f32.mrf.mxu0
      %v2424 = vadd.f32 0.0, %v2423
      %v2425 = vpop.f32.mrf.mxu0
      %2426 = vmatprep.mubr.bf16.mxu0 0
      %2427 = vmatmul.mubr.bf16.gmra.mxu0 %v2285
      %v2428 = vpop.f32.mrf.mxu0
      %v2429 = vadd.f32 0.0, %v2428
      %v2430 = vpop.f32.mrf.mxu0
      %v2431 = vpop.f32.mrf.mxu0
      %v2432 = vadd.f32 0.0, %v2431
      %v2433 = vpop.f32.mrf.mxu0
      %2434 = vmatprep.mubr.bf16.mxu0 0
      %2435 = vmatmul.mubr.bf16.gmra.mxu0 %v2286
      %v2436 = vpop.f32.mrf.mxu0
      %v2437 = vadd.f32 0.0, %v2436
      %v2438 = vpop.f32.mrf.mxu0
      %v2439 = vpop.f32.mrf.mxu0
      %v2440 = vadd.f32 0.0, %v2439
      %v2441 = vpop.f32.mrf.mxu0
      %2442 = vmatprep.mubr.bf16.mxu0 0
      %2443 = vmatmul.mubr.bf16.gmra.mxu0 %v2287
      %v2444 = vpop.f32.mrf.mxu0
      %v2445 = vadd.f32 0.0, %v2444
      %v2446 = vpop.f32.mrf.mxu0
      %v2447 = vpop.f32.mrf.mxu0
      %v2448 = vadd.f32 0.0, %v2447
      %v2449 = vpop.f32.mrf.mxu0
      %2450 = vmatprep.mubr.bf16.mxu0 0
      %2451 = vmatmul.mubr.bf16.gmra.mxu0 %v2288
      %v2452 = vpop.f32.mrf.mxu0
      %v2453 = vadd.f32 0.0, %v2452
      %v2454 = vpop.f32.mrf.mxu0
      %v2455 = vpop.f32.mrf.mxu0
      %v2456 = vadd.f32 0.0, %v2455
      %v2457 = vpop.f32.mrf.mxu0
      %2458 = vmatprep.mubr.bf16.mxu0 0
      %2459 = vmatmul.mubr.bf16.gmra.mxu0 %v2289
      %v2460 = vpop.f32.mrf.mxu0
      %v2461 = vadd.f32 0.0, %v2460
      %v2462 = vpop.f32.mrf.mxu0
      %v2463 = vpop.f32.mrf.mxu0
      %v2464 = vadd.f32 0.0, %v2463
      %v2465 = vpop.f32.mrf.mxu0
      %2466 = vmatprep.mubr.bf16.mxu0 0
      %2467 = vmatmul.mubr.bf16.gmra.mxu0 %v2290
      %v2468 = vpop.f32.mrf.mxu0
      %v2469 = vadd.f32 0.0, %v2468
      %v2470 = vpop.f32.mrf.mxu0
      %v2471 = vpop.f32.mrf.mxu0
      %v2472 = vadd.f32 0.0, %v2471
      %v2473 = vpop.f32.mrf.mxu0
      %2474 = vmatprep.mubr.bf16.mxu0 0
      %2475 = vmatmul.mubr.bf16.gmra.mxu0 %v2291
      %v2476 = vpop.f32.mrf.mxu0
      %v2477 = vadd.f32 0.0, %v2476
      %v2478 = vpop.f32.mrf.mxu0
      %v2479 = vpop.f32.mrf.mxu0
      %v2480 = vadd.f32 0.0, %v2479
      %v2481 = vpop.f32.mrf.mxu0
      %2482 = vmatprep.mubr.bf16.mxu0 0
      %2483 = vmatmul.mubr.bf16.gmra.mxu0 %v2292
      %v2484 = vpop.f32.mrf.mxu0
      %v2485 = vadd.f32 0.0, %v2484
      %v2486 = vpop.f32.mrf.mxu0
      %v2487 = vpop.f32.mrf.mxu0
      %v2488 = vadd.f32 0.0, %v2487
      %v2489 = vpop.f32.mrf.mxu0
      %2490 = vmatprep.mubr.bf16.mxu0 0
      %2491 = vmatmul.mubr.bf16.gmra.mxu0 %v2293
      %v2492 = vpop.f32.mrf.mxu0
      %v2493 = vadd.f32 0.0, %v2492
      %v2494 = vpop.f32.mrf.mxu0
      %v2495 = vpop.f32.mrf.mxu0
      %v2496 = vadd.f32 0.0, %v2495
      %v2497 = vpop.f32.mrf.mxu0
      %2498 = vmatprep.mubr.bf16.mxu0 0
      %2499 = vmatmul.mubr.bf16.gmra.mxu0 %v2294
      %v2500 = vpop.f32.mrf.mxu0
      %v2501 = vadd.f32 0.0, %v2500
      %v2502 = vpop.f32.mrf.mxu0
      %v2503 = vpop.f32.mrf.mxu0
      %v2504 = vadd.f32 0.0, %v2503
      %v2505 = vpop.f32.mrf.mxu0
      %2506 = vmatprep.mubr.bf16.mxu0 0
      %2507 = vmatmul.mubr.bf16.gmra.mxu0 %v2295
      %v2508 = vpop.f32.mrf.mxu0
      %v2509 = vadd.f32 0.0, %v2508
      %v2510 = vpop.f32.mrf.mxu0
      %v2511 = vpop.f32.mrf.mxu0
      %v2512 = vadd.f32 0.0, %v2511
      %v2513 = vpop.f32.mrf.mxu0
      %2514 = vmatprep.mubr.bf16.mxu0 0
      %2515 = vmatmul.mubr.bf16.gmra.mxu0 %v2296
      %v2516 = vpop.f32.mrf.mxu0
      %v2517 = vadd.f32 0.0, %v2516
      %v2518 = vpop.f32.mrf.mxu0
      %v2519 = vpop.f32.mrf.mxu0
      %v2520 = vadd.f32 0.0, %v2519
      %v2521 = vpop.f32.mrf.mxu0
      %2522 = vdwg.mxu0
      %v2523 = vadd.f32 %v2216, %v2397
      %v2524 = vadd.f32 %v2217, %v2400
      %v2525 = vadd.f32 %v2218, %v2405
      %v2526 = vadd.f32 %v2219, %v2408
      %v2527 = vadd.f32 %v2220, %v2413
      %v2528 = vadd.f32 %v2221, %v2416
      %v2529 = vadd.f32 %v2222, %v2421
      %v2530 = vadd.f32 %v2223, %v2424
      %v2531 = vadd.f32 %v2224, %v2429
      %v2532 = vadd.f32 %v2225, %v2432
      %v2533 = vadd.f32 %v2226, %v2437
      %v2534 = vadd.f32 %v2227, %v2440
      %v2535 = vadd.f32 %v2228, %v2445
      %v2536 = vadd.f32 %v2229, %v2448
      %v2537 = vadd.f32 %v2230, %v2453
      %v2538 = vadd.f32 %v2231, %v2456
      %v2539 = vadd.f32 %v2232, %v2461
      %v2540 = vadd.f32 %v2233, %v2464
      %v2541 = vadd.f32 %v2234, %v2469
      %v2542 = vadd.f32 %v2235, %v2472
      %v2543 = vadd.f32 %v2236, %v2477
      %v2544 = vadd.f32 %v2237, %v2480
      %v2545 = vadd.f32 %v2238, %v2485
      %v2546 = vadd.f32 %v2239, %v2488
      %v2547 = vadd.f32 %v2240, %v2493
      %v2548 = vadd.f32 %v2241, %v2496
      %v2549 = vadd.f32 %v2242, %v2501
      %v2550 = vadd.f32 %v2243, %v2504
      %v2551 = vadd.f32 %v2244, %v2509
      %v2552 = vadd.f32 %v2245, %v2512
      %v2553 = vadd.f32 %v2246, %v2517
      %v2554 = vadd.f32 %v2247, %v2520
      %v2555 = vld [vmem:[%s2248 + $0x1] sm:$0xff]
      %v2556 = vld [vmem:[%s2248 + $0x9] sm:$0xff]
      %v2557 = vld [vmem:[%s2248 + $0x19] sm:$0xff]
      %v2558 = vld [vmem:[%s2248 + $0x21] sm:$0xff]
      %v2559 = vld [vmem:[%s2248 + $0x31] sm:$0xff]
      %v2560 = vld [vmem:[%s2248 + $0x39] sm:$0xff]
      %v2561 = vld [vmem:[%s2248 + $0x49] sm:$0xff]
      %v2562 = vld [vmem:[%s2248 + $0x51] sm:$0xff]
      %v2563 = vld [vmem:[%s2248 + $0x61] sm:$0xff]
      %v2564 = vld [vmem:[%s2248 + $0x69] sm:$0xff]
      %v2565 = vld [vmem:[%s2248 + $0x79] sm:$0xff]
      %v2566 = vld [vmem:[%s2248 + $0x81] sm:$0xff]
      %v2567 = vld [vmem:[%s2248 + $0x91] sm:$0xff]
      %v2568 = vld [vmem:[%s2248 + $0x99] sm:$0xff]
      %v2569 = vld [vmem:[%s2248 + $0xa9] sm:$0xff]
      %v2570 = vld [vmem:[%s2248 + $0xb1] sm:$0xff]
      %v2571 = vld [vmem:[%s2248 + $0xc1] sm:$0xff]
      %v2572 = vld [vmem:[%s2248 + $0xc9] sm:$0xff]
      %v2573 = vld [vmem:[%s2248 + $0xd9] sm:$0xff]
      %v2574 = vld [vmem:[%s2248 + $0xe1] sm:$0xff]
      %v2575 = vld [vmem:[%s2248 + $0xf1] sm:$0xff]
      %v2576 = vld [vmem:[%s2248 + $0xf9] sm:$0xff]
      %v2577 = vld [vmem:[%s2248 + $0x109] sm:$0xff]
      %v2578 = vld [vmem:[%s2248 + $0x111] sm:$0xff]
      %v2579 = vld [vmem:[%s2248 + $0x121] sm:$0xff]
      %v2580 = vld [vmem:[%s2248 + $0x129] sm:$0xff]
      %v2581 = vld [vmem:[%s2248 + $0x139] sm:$0xff]
      %v2582 = vld [vmem:[%s2248 + $0x141] sm:$0xff]
      %v2583 = vld [vmem:[%s2248 + $0x151] sm:$0xff]
      %v2584 = vld [vmem:[%s2248 + $0x159] sm:$0xff]
      %v2585 = vld [vmem:[%s2248 + $0x169] sm:$0xff]
      %v2586 = vld [vmem:[%s2248 + $0x171] sm:$0xff]
      %v2587 = vpack.c.bf16 %v2556, %v2555
      %v2588 = vpack.c.bf16 %v2558, %v2557
      %v2589 = vpack.c.bf16 %v2560, %v2559
      %v2590 = vpack.c.bf16 %v2562, %v2561
      %v2591 = vpack.c.bf16 %v2564, %v2563
      %v2592 = vpack.c.bf16 %v2566, %v2565
      %v2593 = vpack.c.bf16 %v2568, %v2567
      %v2594 = vpack.c.bf16 %v2570, %v2569
      %v2595 = vpack.c.bf16 %v2572, %v2571
      %v2596 = vpack.c.bf16 %v2574, %v2573
      %v2597 = vpack.c.bf16 %v2576, %v2575
      %v2598 = vpack.c.bf16 %v2578, %v2577
      %v2599 = vpack.c.bf16 %v2580, %v2579
      %v2600 = vpack.c.bf16 %v2582, %v2581
      %v2601 = vpack.c.bf16 %v2584, %v2583
      %v2602 = vpack.c.bf16 %v2586, %v2585
      %s2603 = scalar_lea.vmem %s3, 448
      %v2604 = vld [vmem:[%s2603] sm:$0xf]
      %v2605 = vld [vmem:[%s2603 + $0x4] sm:$0xf]
      %v2606 = vld [vmem:[%s2603 + $0x8] sm:$0xf]
      %v2607 = vld [vmem:[%s2603 + $0xc] sm:$0xf]
      %v2608 = vld [vmem:[%s2603 + $0x10] sm:$0xf]
      %v2609 = vld [vmem:[%s2603 + $0x14] sm:$0xf]
      %v2610 = vld [vmem:[%s2603 + $0x18] sm:$0xf]
      %v2611 = vld [vmem:[%s2603 + $0x1c] sm:$0xf]
      %v2612 = vld [vmem:[%s2603 + $0x20] sm:$0xf]
      %v2613 = vld [vmem:[%s2603 + $0x24] sm:$0xf]
      %v2614 = vld [vmem:[%s2603 + $0x28] sm:$0xf]
      %v2615 = vld [vmem:[%s2603 + $0x2c] sm:$0xf]
      %v2616 = vld [vmem:[%s2603 + $0x30] sm:$0xf]
      %v2617 = vld [vmem:[%s2603 + $0x34] sm:$0xf]
      %v2618 = vld [vmem:[%s2603 + $0x38] sm:$0xf]
      %v2619 = vld [vmem:[%s2603 + $0x3c] sm:$0xf]
      %v2636 = vunpack.c.l.b16 %v2604
      %v2637 = vunpack.c.l.b16 %v2605
      %v2638 = vunpack.c.l.b16 %v2606
      %v2639 = vunpack.c.l.b16 %v2607
      %v2640 = vunpack.c.l.b16 %v2608
      %v2641 = vunpack.c.l.b16 %v2609
      %v2642 = vunpack.c.l.b16 %v2610
      %v2643 = vunpack.c.l.b16 %v2611
      %v2644 = vunpack.c.l.b16 %v2612
      %v2645 = vunpack.c.l.b16 %v2613
      %v2646 = vunpack.c.l.b16 %v2614
      %v2647 = vunpack.c.l.b16 %v2615
      %v2648 = vunpack.c.l.b16 %v2616
      %v2649 = vunpack.c.l.b16 %v2617
      %v2650 = vunpack.c.l.b16 %v2618
      %v2651 = vunpack.c.l.b16 %v2619
      %v2652 = vpack.c.b16 %v2637, %v2636
      %v2653 = vpack.c.b16 %v2639, %v2638
      %v2654 = vpack.c.b16 %v2641, %v2640
      %v2655 = vpack.c.b16 %v2643, %v2642
      %v2656 = vpack.c.b16 %v2645, %v2644
      %v2657 = vpack.c.b16 %v2647, %v2646
      %v2658 = vpack.c.b16 %v2649, %v2648
      %v2659 = vpack.c.b16 %v2651, %v2650
      %2668 = vmatprep.subr.bf16.mxu0 0
      %2669 = vmatpush1.bf16.msra.mxu0 %v2659
      %2670 = vmatprep.subr.bf16.mxu0 0
      %2671 = vmatpush1.bf16.msra.mxu0 %v2658
      %2672 = vmatprep.subr.bf16.mxu0 0
      %2673 = vmatpush1.bf16.msra.mxu0 %v2657
      %2674 = vmatprep.subr.bf16.mxu0 0
      %2675 = vmatpush1.bf16.msra.mxu0 %v2656
      %2676 = vmatprep.subr.bf16.mxu0 0
      %2677 = vmatpush1.bf16.msra.mxu0 %v2655
      %2678 = vmatprep.subr.bf16.mxu0 0
      %2679 = vmatpush1.bf16.msra.mxu0 %v2654
      %2680 = vmatprep.subr.bf16.mxu0 0
      %2681 = vmatpush1.bf16.msra.mxu0 %v2653
      %2682 = vmatprep.subr.bf16.mxu0 0
      %2683 = vmatpush1.bf16.msra.mxu0 %v2652
      %2684 = vmatprep.subr.bf16.mxu0 0
      %2685 = vmatpush2.bf16.msra.mxu0 0
      %2686 = vmatprep.subr.bf16.mxu0 0
      %2687 = vmatpush2.bf16.msra.mxu0 0
      %2688 = vmatprep.subr.bf16.mxu0 0
      %2689 = vmatpush2.bf16.msra.mxu0 0
      %2690 = vmatprep.subr.bf16.mxu0 0
      %2691 = vmatpush2.bf16.msra.mxu0 0
      %2692 = vmatprep.subr.bf16.mxu0 0
      %2693 = vmatpush2.bf16.msra.mxu0 0
      %2694 = vmatprep.subr.bf16.mxu0 0
      %2695 = vmatpush2.bf16.msra.mxu0 0
      %2696 = vmatprep.subr.bf16.mxu0 0
      %2697 = vmatpush2.bf16.msra.mxu0 0
      %2698 = vmatprep.subr.bf16.mxu0 0
      %2699 = vmatpush2.bf16.msra.mxu0 0
      %2700 = vmatprep.mubr.bf16.mxu0 0
      %2701 = vmatmul.mubr.bf16.gmra.mxu0 %v2587
      %v2702 = vpop.f32.mrf.mxu0
      %v2703 = vadd.f32 0.0, %v2702
      %v2704 = vpop.f32.mrf.mxu0
      %v2705 = vpop.f32.mrf.mxu0
      %v2706 = vadd.f32 0.0, %v2705
      %v2707 = vpop.f32.mrf.mxu0
      %2708 = vmatprep.mubr.bf16.mxu0 0
      %2709 = vmatmul.mubr.bf16.gmra.mxu0 %v2588
      %v2710 = vpop.f32.mrf.mxu0
      %v2711 = vadd.f32 0.0, %v2710
      %v2712 = vpop.f32.mrf.mxu0
      %v2713 = vpop.f32.mrf.mxu0
      %v2714 = vadd.f32 0.0, %v2713
      %v2715 = vpop.f32.mrf.mxu0
      %2716 = vmatprep.mubr.bf16.mxu0 0
      %2717 = vmatmul.mubr.bf16.gmra.mxu0 %v2589
      %v2718 = vpop.f32.mrf.mxu0
      %v2719 = vadd.f32 0.0, %v2718
      %v2720 = vpop.f32.mrf.mxu0
      %v2721 = vpop.f32.mrf.mxu0
      %v2722 = vadd.f32 0.0, %v2721
      %v2723 = vpop.f32.mrf.mxu0
      %2724 = vmatprep.mubr.bf16.mxu0 0
      %2725 = vmatmul.mubr.bf16.gmra.mxu0 %v2590
      %v2726 = vpop.f32.mrf.mxu0
      %v2727 = vadd.f32 0.0, %v2726
      %v2728 = vpop.f32.mrf.mxu0
      %v2729 = vpop.f32.mrf.mxu0
      %v2730 = vadd.f32 0.0, %v2729
      %v2731 = vpop.f32.mrf.mxu0
      %2732 = vmatprep.mubr.bf16.mxu0 0
      %2733 = vmatmul.mubr.bf16.gmra.mxu0 %v2591
      %v2734 = vpop.f32.mrf.mxu0
      %v2735 = vadd.f32 0.0, %v2734
      %v2736 = vpop.f32.mrf.mxu0
      %v2737 = vpop.f32.mrf.mxu0
      %v2738 = vadd.f32 0.0, %v2737
      %v2739 = vpop.f32.mrf.mxu0
      %2740 = vmatprep.mubr.bf16.mxu0 0
      %2741 = vmatmul.mubr.bf16.gmra.mxu0 %v2592
      %v2742 = vpop.f32.mrf.mxu0
      %v2743 = vadd.f32 0.0, %v2742
      %v2744 = vpop.f32.mrf.mxu0
      %v2745 = vpop.f32.mrf.mxu0
      %v2746 = vadd.f32 0.0, %v2745
      %v2747 = vpop.f32.mrf.mxu0
      %2748 = vmatprep.mubr.bf16.mxu0 0
      %2749 = vmatmul.mubr.bf16.gmra.mxu0 %v2593
      %v2750 = vpop.f32.mrf.mxu0
      %v2751 = vadd.f32 0.0, %v2750
      %v2752 = vpop.f32.mrf.mxu0
      %v2753 = vpop.f32.mrf.mxu0
      %v2754 = vadd.f32 0.0, %v2753
      %v2755 = vpop.f32.mrf.mxu0
      %2756 = vmatprep.mubr.bf16.mxu0 0
      %2757 = vmatmul.mubr.bf16.gmra.mxu0 %v2594
      %v2758 = vpop.f32.mrf.mxu0
      %v2759 = vadd.f32 0.0, %v2758
      %v2760 = vpop.f32.mrf.mxu0
      %v2761 = vpop.f32.mrf.mxu0
      %v2762 = vadd.f32 0.0, %v2761
      %v2763 = vpop.f32.mrf.mxu0
      %2764 = vmatprep.mubr.bf16.mxu0 0
      %2765 = vmatmul.mubr.bf16.gmra.mxu0 %v2595
      %v2766 = vpop.f32.mrf.mxu0
      %v2767 = vadd.f32 0.0, %v2766
      %v2768 = vpop.f32.mrf.mxu0
      %v2769 = vpop.f32.mrf.mxu0
      %v2770 = vadd.f32 0.0, %v2769
      %v2771 = vpop.f32.mrf.mxu0
      %2772 = vmatprep.mubr.bf16.mxu0 0
      %2773 = vmatmul.mubr.bf16.gmra.mxu0 %v2596
      %v2774 = vpop.f32.mrf.mxu0
      %v2775 = vadd.f32 0.0, %v2774
      %v2776 = vpop.f32.mrf.mxu0
      %v2777 = vpop.f32.mrf.mxu0
      %v2778 = vadd.f32 0.0, %v2777
      %v2779 = vpop.f32.mrf.mxu0
      %2780 = vmatprep.mubr.bf16.mxu0 0
      %2781 = vmatmul.mubr.bf16.gmra.mxu0 %v2597
      %v2782 = vpop.f32.mrf.mxu0
      %v2783 = vadd.f32 0.0, %v2782
      %v2784 = vpop.f32.mrf.mxu0
      %v2785 = vpop.f32.mrf.mxu0
      %v2786 = vadd.f32 0.0, %v2785
      %v2787 = vpop.f32.mrf.mxu0
      %2788 = vmatprep.mubr.bf16.mxu0 0
      %2789 = vmatmul.mubr.bf16.gmra.mxu0 %v2598
      %v2790 = vpop.f32.mrf.mxu0
      %v2791 = vadd.f32 0.0, %v2790
      %v2792 = vpop.f32.mrf.mxu0
      %v2793 = vpop.f32.mrf.mxu0
      %v2794 = vadd.f32 0.0, %v2793
      %v2795 = vpop.f32.mrf.mxu0
      %2796 = vmatprep.mubr.bf16.mxu0 0
      %2797 = vmatmul.mubr.bf16.gmra.mxu0 %v2599
      %v2798 = vpop.f32.mrf.mxu0
      %v2799 = vadd.f32 0.0, %v2798
      %v2800 = vpop.f32.mrf.mxu0
      %v2801 = vpop.f32.mrf.mxu0
      %v2802 = vadd.f32 0.0, %v2801
      %v2803 = vpop.f32.mrf.mxu0
      %2804 = vmatprep.mubr.bf16.mxu0 0
      %2805 = vmatmul.mubr.bf16.gmra.mxu0 %v2600
      %v2806 = vpop.f32.mrf.mxu0
      %v2807 = vadd.f32 0.0, %v2806
      %v2808 = vpop.f32.mrf.mxu0
      %v2809 = vpop.f32.mrf.mxu0
      %v2810 = vadd.f32 0.0, %v2809
      %v2811 = vpop.f32.mrf.mxu0
      %2812 = vmatprep.mubr.bf16.mxu0 0
      %2813 = vmatmul.mubr.bf16.gmra.mxu0 %v2601
      %v2814 = vpop.f32.mrf.mxu0
      %v2815 = vadd.f32 0.0, %v2814
      %v2816 = vpop.f32.mrf.mxu0
      %v2817 = vpop.f32.mrf.mxu0
      %v2818 = vadd.f32 0.0, %v2817
      %v2819 = vpop.f32.mrf.mxu0
      %2820 = vmatprep.mubr.bf16.mxu0 0
      %2821 = vmatmul.mubr.bf16.gmra.mxu0 %v2602
      %v2822 = vpop.f32.mrf.mxu0
      %v2823 = vadd.f32 0.0, %v2822
      %v2824 = vpop.f32.mrf.mxu0
      %v2825 = vpop.f32.mrf.mxu0
      %v2826 = vadd.f32 0.0, %v2825
      %v2827 = vpop.f32.mrf.mxu0
      %2828 = vdwg.mxu0
      %v2829 = vadd.f32 %v2523, %v2703
      %v2830 = vadd.f32 %v2524, %v2706
      %v2831 = vadd.f32 %v2525, %v2711
      %v2832 = vadd.f32 %v2526, %v2714
      %v2833 = vadd.f32 %v2527, %v2719
      %v2834 = vadd.f32 %v2528, %v2722
      %v2835 = vadd.f32 %v2529, %v2727
      %v2836 = vadd.f32 %v2530, %v2730
      %v2837 = vadd.f32 %v2531, %v2735
      %v2838 = vadd.f32 %v2532, %v2738
      %v2839 = vadd.f32 %v2533, %v2743
      %v2840 = vadd.f32 %v2534, %v2746
      %v2841 = vadd.f32 %v2535, %v2751
      %v2842 = vadd.f32 %v2536, %v2754
      %v2843 = vadd.f32 %v2537, %v2759
      %v2844 = vadd.f32 %v2538, %v2762
      %v2845 = vadd.f32 %v2539, %v2767
      %v2846 = vadd.f32 %v2540, %v2770
      %v2847 = vadd.f32 %v2541, %v2775
      %v2848 = vadd.f32 %v2542, %v2778
      %v2849 = vadd.f32 %v2543, %v2783
      %v2850 = vadd.f32 %v2544, %v2786
      %v2851 = vadd.f32 %v2545, %v2791
      %v2852 = vadd.f32 %v2546, %v2794
      %v2853 = vadd.f32 %v2547, %v2799
      %v2854 = vadd.f32 %v2548, %v2802
      %v2855 = vadd.f32 %v2549, %v2807
      %v2856 = vadd.f32 %v2550, %v2810
      %v2857 = vadd.f32 %v2551, %v2815
      %v2858 = vadd.f32 %v2552, %v2818
      %v2859 = vadd.f32 %v2553, %v2823
      %v2860 = vadd.f32 %v2554, %v2826
      %v2861 = vld [vmem:[%s2248 + $0x2] sm:$0xff]
      %v2862 = vld [vmem:[%s2248 + $0xa] sm:$0xff]
      %v2863 = vld [vmem:[%s2248 + $0x1a] sm:$0xff]
      %v2864 = vld [vmem:[%s2248 + $0x22] sm:$0xff]
      %v2865 = vld [vmem:[%s2248 + $0x32] sm:$0xff]
      %v2866 = vld [vmem:[%s2248 + $0x3a] sm:$0xff]
      %v2867 = vld [vmem:[%s2248 + $0x4a] sm:$0xff]
      %v2868 = vld [vmem:[%s2248 + $0x52] sm:$0xff]
      %v2869 = vld [vmem:[%s2248 + $0x62] sm:$0xff]
      %v2870 = vld [vmem:[%s2248 + $0x6a] sm:$0xff]
      %v2871 = vld [vmem:[%s2248 + $0x7a] sm:$0xff]
      %v2872 = vld [vmem:[%s2248 + $0x82] sm:$0xff]
      %v2873 = vld [vmem:[%s2248 + $0x92] sm:$0xff]
      %v2874 = vld [vmem:[%s2248 + $0x9a] sm:$0xff]
      %v2875 = vld [vmem:[%s2248 + $0xaa] sm:$0xff]
      %v2876 = vld [vmem:[%s2248 + $0xb2] sm:$0xff]
      %v2877 = vld [vmem:[%s2248 + $0xc2] sm:$0xff]
      %v2878 = vld [vmem:[%s2248 + $0xca] sm:$0xff]
      %v2879 = vld [vmem:[%s2248 + $0xda] sm:$0xff]
      %v2880 = vld [vmem:[%s2248 + $0xe2] sm:$0xff]
      %v2881 = vld [vmem:[%s2248 + $0xf2] sm:$0xff]
      %v2882 = vld [vmem:[%s2248 + $0xfa] sm:$0xff]
      %v2883 = vld [vmem:[%s2248 + $0x10a] sm:$0xff]
      %v2884 = vld [vmem:[%s2248 + $0x112] sm:$0xff]
      %v2885 = vld [vmem:[%s2248 + $0x122] sm:$0xff]
      %v2886 = vld [vmem:[%s2248 + $0x12a] sm:$0xff]
      %v2887 = vld [vmem:[%s2248 + $0x13a] sm:$0xff]
      %v2888 = vld [vmem:[%s2248 + $0x142] sm:$0xff]
      %v2889 = vld [vmem:[%s2248 + $0x152] sm:$0xff]
      %v2890 = vld [vmem:[%s2248 + $0x15a] sm:$0xff]
      %v2891 = vld [vmem:[%s2248 + $0x16a] sm:$0xff]
      %v2892 = vld [vmem:[%s2248 + $0x172] sm:$0xff]
      %v2893 = vpack.c.bf16 %v2862, %v2861
      %v2894 = vpack.c.bf16 %v2864, %v2863
      %v2895 = vpack.c.bf16 %v2866, %v2865
      %v2896 = vpack.c.bf16 %v2868, %v2867
      %v2897 = vpack.c.bf16 %v2870, %v2869
      %v2898 = vpack.c.bf16 %v2872, %v2871
      %v2899 = vpack.c.bf16 %v2874, %v2873
      %v2900 = vpack.c.bf16 %v2876, %v2875
      %v2901 = vpack.c.bf16 %v2878, %v2877
      %v2902 = vpack.c.bf16 %v2880, %v2879
      %v2903 = vpack.c.bf16 %v2882, %v2881
      %v2904 = vpack.c.bf16 %v2884, %v2883
      %v2905 = vpack.c.bf16 %v2886, %v2885
      %v2906 = vpack.c.bf16 %v2888, %v2887
      %v2907 = vpack.c.bf16 %v2890, %v2889
      %v2908 = vpack.c.bf16 %v2892, %v2891
      %s2909 = scalar_lea.vmem %s3, 512
      %v2910 = vld [vmem:[%s2909] sm:$0xf]
      %v2911 = vld [vmem:[%s2909 + $0x4] sm:$0xf]
      %v2912 = vld [vmem:[%s2909 + $0x8] sm:$0xf]
      %v2913 = vld [vmem:[%s2909 + $0xc] sm:$0xf]
      %v2914 = vld [vmem:[%s2909 + $0x10] sm:$0xf]
      %v2915 = vld [vmem:[%s2909 + $0x14] sm:$0xf]
      %v2916 = vld [vmem:[%s2909 + $0x18] sm:$0xf]
      %v2917 = vld [vmem:[%s2909 + $0x1c] sm:$0xf]
      %v2918 = vld [vmem:[%s2909 + $0x20] sm:$0xf]
      %v2919 = vld [vmem:[%s2909 + $0x24] sm:$0xf]
      %v2920 = vld [vmem:[%s2909 + $0x28] sm:$0xf]
      %v2921 = vld [vmem:[%s2909 + $0x2c] sm:$0xf]
      %v2922 = vld [vmem:[%s2909 + $0x30] sm:$0xf]
      %v2923 = vld [vmem:[%s2909 + $0x34] sm:$0xf]
      %v2924 = vld [vmem:[%s2909 + $0x38] sm:$0xf]
      %v2925 = vld [vmem:[%s2909 + $0x3c] sm:$0xf]
      %v2942 = vunpack.c.l.b16 %v2910
      %v2943 = vunpack.c.l.b16 %v2911
      %v2944 = vunpack.c.l.b16 %v2912
      %v2945 = vunpack.c.l.b16 %v2913
      %v2946 = vunpack.c.l.b16 %v2914
      %v2947 = vunpack.c.l.b16 %v2915
      %v2948 = vunpack.c.l.b16 %v2916
      %v2949 = vunpack.c.l.b16 %v2917
      %v2950 = vunpack.c.l.b16 %v2918
      %v2951 = vunpack.c.l.b16 %v2919
      %v2952 = vunpack.c.l.b16 %v2920
      %v2953 = vunpack.c.l.b16 %v2921
      %v2954 = vunpack.c.l.b16 %v2922
      %v2955 = vunpack.c.l.b16 %v2923
      %v2956 = vunpack.c.l.b16 %v2924
      %v2957 = vunpack.c.l.b16 %v2925
      %v2958 = vpack.c.b16 %v2943, %v2942
      %v2959 = vpack.c.b16 %v2945, %v2944
      %v2960 = vpack.c.b16 %v2947, %v2946
      %v2961 = vpack.c.b16 %v2949, %v2948
      %v2962 = vpack.c.b16 %v2951, %v2950
      %v2963 = vpack.c.b16 %v2953, %v2952
      %v2964 = vpack.c.b16 %v2955, %v2954
      %v2965 = vpack.c.b16 %v2957, %v2956
      %2974 = vmatprep.subr.bf16.mxu0 0
      %2975 = vmatpush1.bf16.msra.mxu0 %v2965
      %2976 = vmatprep.subr.bf16.mxu0 0
      %2977 = vmatpush1.bf16.msra.mxu0 %v2964
      %2978 = vmatprep.subr.bf16.mxu0 0
      %2979 = vmatpush1.bf16.msra.mxu0 %v2963
      %2980 = vmatprep.subr.bf16.mxu0 0
      %2981 = vmatpush1.bf16.msra.mxu0 %v2962
      %2982 = vmatprep.subr.bf16.mxu0 0
      %2983 = vmatpush1.bf16.msra.mxu0 %v2961
      %2984 = vmatprep.subr.bf16.mxu0 0
      %2985 = vmatpush1.bf16.msra.mxu0 %v2960
      %2986 = vmatprep.subr.bf16.mxu0 0
      %2987 = vmatpush1.bf16.msra.mxu0 %v2959
      %2988 = vmatprep.subr.bf16.mxu0 0
      %2989 = vmatpush1.bf16.msra.mxu0 %v2958
      %2990 = vmatprep.subr.bf16.mxu0 0
      %2991 = vmatpush2.bf16.msra.mxu0 0
      %2992 = vmatprep.subr.bf16.mxu0 0
      %2993 = vmatpush2.bf16.msra.mxu0 0
      %2994 = vmatprep.subr.bf16.mxu0 0
      %2995 = vmatpush2.bf16.msra.mxu0 0
      %2996 = vmatprep.subr.bf16.mxu0 0
      %2997 = vmatpush2.bf16.msra.mxu0 0
      %2998 = vmatprep.subr.bf16.mxu0 0
      %2999 = vmatpush2.bf16.msra.mxu0 0
      %3000 = vmatprep.subr.bf16.mxu0 0
      %3001 = vmatpush2.bf16.msra.mxu0 0
      %3002 = vmatprep.subr.bf16.mxu0 0
      %3003 = vmatpush2.bf16.msra.mxu0 0
      %3004 = vmatprep.subr.bf16.mxu0 0
      %3005 = vmatpush2.bf16.msra.mxu0 0
      %3006 = vmatprep.mubr.bf16.mxu0 0
      %3007 = vmatmul.mubr.bf16.gmra.mxu0 %v2893
      %v3008 = vpop.f32.mrf.mxu0
      %v3009 = vadd.f32 0.0, %v3008
      %v3010 = vpop.f32.mrf.mxu0
      %v3011 = vpop.f32.mrf.mxu0
      %v3012 = vadd.f32 0.0, %v3011
      %v3013 = vpop.f32.mrf.mxu0
      %3014 = vmatprep.mubr.bf16.mxu0 0
      %3015 = vmatmul.mubr.bf16.gmra.mxu0 %v2894
      %v3016 = vpop.f32.mrf.mxu0
      %v3017 = vadd.f32 0.0, %v3016
      %v3018 = vpop.f32.mrf.mxu0
      %v3019 = vpop.f32.mrf.mxu0
      %v3020 = vadd.f32 0.0, %v3019
      %v3021 = vpop.f32.mrf.mxu0
      %3022 = vmatprep.mubr.bf16.mxu0 0
      %3023 = vmatmul.mubr.bf16.gmra.mxu0 %v2895
      %v3024 = vpop.f32.mrf.mxu0
      %v3025 = vadd.f32 0.0, %v3024
      %v3026 = vpop.f32.mrf.mxu0
      %v3027 = vpop.f32.mrf.mxu0
      %v3028 = vadd.f32 0.0, %v3027
      %v3029 = vpop.f32.mrf.mxu0
      %3030 = vmatprep.mubr.bf16.mxu0 0
      %3031 = vmatmul.mubr.bf16.gmra.mxu0 %v2896
      %v3032 = vpop.f32.mrf.mxu0
      %v3033 = vadd.f32 0.0, %v3032
      %v3034 = vpop.f32.mrf.mxu0
      %v3035 = vpop.f32.mrf.mxu0
      %v3036 = vadd.f32 0.0, %v3035
      %v3037 = vpop.f32.mrf.mxu0
      %3038 = vmatprep.mubr.bf16.mxu0 0
      %3039 = vmatmul.mubr.bf16.gmra.mxu0 %v2897
      %v3040 = vpop.f32.mrf.mxu0
      %v3041 = vadd.f32 0.0, %v3040
      %v3042 = vpop.f32.mrf.mxu0
      %v3043 = vpop.f32.mrf.mxu0
      %v3044 = vadd.f32 0.0, %v3043
      %v3045 = vpop.f32.mrf.mxu0
      %3046 = vmatprep.mubr.bf16.mxu0 0
      %3047 = vmatmul.mubr.bf16.gmra.mxu0 %v2898
      %v3048 = vpop.f32.mrf.mxu0
      %v3049 = vadd.f32 0.0, %v3048
      %v3050 = vpop.f32.mrf.mxu0
      %v3051 = vpop.f32.mrf.mxu0
      %v3052 = vadd.f32 0.0, %v3051
      %v3053 = vpop.f32.mrf.mxu0
      %3054 = vmatprep.mubr.bf16.mxu0 0
      %3055 = vmatmul.mubr.bf16.gmra.mxu0 %v2899
      %v3056 = vpop.f32.mrf.mxu0
      %v3057 = vadd.f32 0.0, %v3056
      %v3058 = vpop.f32.mrf.mxu0
      %v3059 = vpop.f32.mrf.mxu0
      %v3060 = vadd.f32 0.0, %v3059
      %v3061 = vpop.f32.mrf.mxu0
      %3062 = vmatprep.mubr.bf16.mxu0 0
      %3063 = vmatmul.mubr.bf16.gmra.mxu0 %v2900
      %v3064 = vpop.f32.mrf.mxu0
      %v3065 = vadd.f32 0.0, %v3064
      %v3066 = vpop.f32.mrf.mxu0
      %v3067 = vpop.f32.mrf.mxu0
      %v3068 = vadd.f32 0.0, %v3067
      %v3069 = vpop.f32.mrf.mxu0
      %3070 = vmatprep.mubr.bf16.mxu0 0
      %3071 = vmatmul.mubr.bf16.gmra.mxu0 %v2901
      %v3072 = vpop.f32.mrf.mxu0
      %v3073 = vadd.f32 0.0, %v3072
      %v3074 = vpop.f32.mrf.mxu0
      %v3075 = vpop.f32.mrf.mxu0
      %v3076 = vadd.f32 0.0, %v3075
      %v3077 = vpop.f32.mrf.mxu0
      %3078 = vmatprep.mubr.bf16.mxu0 0
      %3079 = vmatmul.mubr.bf16.gmra.mxu0 %v2902
      %v3080 = vpop.f32.mrf.mxu0
      %v3081 = vadd.f32 0.0, %v3080
      %v3082 = vpop.f32.mrf.mxu0
      %v3083 = vpop.f32.mrf.mxu0
      %v3084 = vadd.f32 0.0, %v3083
      %v3085 = vpop.f32.mrf.mxu0
      %3086 = vmatprep.mubr.bf16.mxu0 0
      %3087 = vmatmul.mubr.bf16.gmra.mxu0 %v2903
      %v3088 = vpop.f32.mrf.mxu0
      %v3089 = vadd.f32 0.0, %v3088
      %v3090 = vpop.f32.mrf.mxu0
      %v3091 = vpop.f32.mrf.mxu0
      %v3092 = vadd.f32 0.0, %v3091
      %v3093 = vpop.f32.mrf.mxu0
      %3094 = vmatprep.mubr.bf16.mxu0 0
      %3095 = vmatmul.mubr.bf16.gmra.mxu0 %v2904
      %v3096 = vpop.f32.mrf.mxu0
      %v3097 = vadd.f32 0.0, %v3096
      %v3098 = vpop.f32.mrf.mxu0
      %v3099 = vpop.f32.mrf.mxu0
      %v3100 = vadd.f32 0.0, %v3099
      %v3101 = vpop.f32.mrf.mxu0
      %3102 = vmatprep.mubr.bf16.mxu0 0
      %3103 = vmatmul.mubr.bf16.gmra.mxu0 %v2905
      %v3104 = vpop.f32.mrf.mxu0
      %v3105 = vadd.f32 0.0, %v3104
      %v3106 = vpop.f32.mrf.mxu0
      %v3107 = vpop.f32.mrf.mxu0
      %v3108 = vadd.f32 0.0, %v3107
      %v3109 = vpop.f32.mrf.mxu0
      %3110 = vmatprep.mubr.bf16.mxu0 0
      %3111 = vmatmul.mubr.bf16.gmra.mxu0 %v2906
      %v3112 = vpop.f32.mrf.mxu0
      %v3113 = vadd.f32 0.0, %v3112
      %v3114 = vpop.f32.mrf.mxu0
      %v3115 = vpop.f32.mrf.mxu0
      %v3116 = vadd.f32 0.0, %v3115
      %v3117 = vpop.f32.mrf.mxu0
      %3118 = vmatprep.mubr.bf16.mxu0 0
      %3119 = vmatmul.mubr.bf16.gmra.mxu0 %v2907
      %v3120 = vpop.f32.mrf.mxu0
      %v3121 = vadd.f32 0.0, %v3120
      %v3122 = vpop.f32.mrf.mxu0
      %v3123 = vpop.f32.mrf.mxu0
      %v3124 = vadd.f32 0.0, %v3123
      %v3125 = vpop.f32.mrf.mxu0
      %3126 = vmatprep.mubr.bf16.mxu0 0
      %3127 = vmatmul.mubr.bf16.gmra.mxu0 %v2908
      %v3128 = vpop.f32.mrf.mxu0
      %v3129 = vadd.f32 0.0, %v3128
      %v3130 = vpop.f32.mrf.mxu0
      %v3131 = vpop.f32.mrf.mxu0
      %v3132 = vadd.f32 0.0, %v3131
      %v3133 = vpop.f32.mrf.mxu0
      %3134 = vdwg.mxu0
      %v3135 = vadd.f32 %v2829, %v3009
      %v3136 = vadd.f32 %v2830, %v3012
      %v3137 = vadd.f32 %v2831, %v3017
      %v3138 = vadd.f32 %v2832, %v3020
      %v3139 = vadd.f32 %v2833, %v3025
      %v3140 = vadd.f32 %v2834, %v3028
      %v3141 = vadd.f32 %v2835, %v3033
      %v3142 = vadd.f32 %v2836, %v3036
      %v3143 = vadd.f32 %v2837, %v3041
      %v3144 = vadd.f32 %v2838, %v3044
      %v3145 = vadd.f32 %v2839, %v3049
      %v3146 = vadd.f32 %v2840, %v3052
      %v3147 = vadd.f32 %v2841, %v3057
      %v3148 = vadd.f32 %v2842, %v3060
      %v3149 = vadd.f32 %v2843, %v3065
      %v3150 = vadd.f32 %v2844, %v3068
      %v3151 = vadd.f32 %v2845, %v3073
      %v3152 = vadd.f32 %v2846, %v3076
      %v3153 = vadd.f32 %v2847, %v3081
      %v3154 = vadd.f32 %v2848, %v3084
      %v3155 = vadd.f32 %v2849, %v3089
      %v3156 = vadd.f32 %v2850, %v3092
      %v3157 = vadd.f32 %v2851, %v3097
      %v3158 = vadd.f32 %v2852, %v3100
      %v3159 = vadd.f32 %v2853, %v3105
      %v3160 = vadd.f32 %v2854, %v3108
      %v3161 = vadd.f32 %v2855, %v3113
      %v3162 = vadd.f32 %v2856, %v3116
      %v3163 = vadd.f32 %v2857, %v3121
      %v3164 = vadd.f32 %v2858, %v3124
      %v3165 = vadd.f32 %v2859, %v3129
      %v3166 = vadd.f32 %v2860, %v3132
      %3167 = vst [vmem:[%s246] sm:$0xff] %v3135
      %3168 = vst [vmem:[%s246 + $0x8] sm:$0xff] %v3136
      %3169 = vst [vmem:[%s246 + $0x10] sm:$0xff] %v3137
      %3170 = vst [vmem:[%s246 + $0x18] sm:$0xff] %v3138
      %3171 = vst [vmem:[%s246 + $0x20] sm:$0xff] %v3139
      %3172 = vst [vmem:[%s246 + $0x28] sm:$0xff] %v3140
      %3173 = vst [vmem:[%s246 + $0x30] sm:$0xff] %v3141
      %3174 = vst [vmem:[%s246 + $0x38] sm:$0xff] %v3142
      %3175 = vst [vmem:[%s246 + $0x40] sm:$0xff] %v3143
      %3176 = vst [vmem:[%s246 + $0x48] sm:$0xff] %v3144
      %3177 = vst [vmem:[%s246 + $0x50] sm:$0xff] %v3145
      %3178 = vst [vmem:[%s246 + $0x58] sm:$0xff] %v3146
      %3179 = vst [vmem:[%s246 + $0x60] sm:$0xff] %v3147
      %3180 = vst [vmem:[%s246 + $0x68] sm:$0xff] %v3148
      %3181 = vst [vmem:[%s246 + $0x70] sm:$0xff] %v3149
      %3182 = vst [vmem:[%s246 + $0x78] sm:$0xff] %v3150
      %3183 = vst [vmem:[%s246 + $0x80] sm:$0xff] %v3151
      %3184 = vst [vmem:[%s246 + $0x88] sm:$0xff] %v3152
      %3185 = vst [vmem:[%s246 + $0x90] sm:$0xff] %v3153
      %3186 = vst [vmem:[%s246 + $0x98] sm:$0xff] %v3154
      %3187 = vst [vmem:[%s246 + $0xa0] sm:$0xff] %v3155
      %3188 = vst [vmem:[%s246 + $0xa8] sm:$0xff] %v3156
      %3189 = vst [vmem:[%s246 + $0xb0] sm:$0xff] %v3157
      %3190 = vst [vmem:[%s246 + $0xb8] sm:$0xff] %v3158
      %3191 = vst [vmem:[%s246 + $0xc0] sm:$0xff] %v3159
      %3192 = vst [vmem:[%s246 + $0xc8] sm:$0xff] %v3160
      %3193 = vst [vmem:[%s246 + $0xd0] sm:$0xff] %v3161
      %3194 = vst [vmem:[%s246 + $0xd8] sm:$0xff] %v3162
      %3195 = vst [vmem:[%s246 + $0xe0] sm:$0xff] %v3163
      %3196 = vst [vmem:[%s246 + $0xe8] sm:$0xff] %v3164
      %3197 = vst [vmem:[%s246 + $0xf0] sm:$0xff] %v3165
      %3198 = vst [vmem:[%s246 + $0xf8] sm:$0xff] %v3166
      %p3199 = scmp.eq.s32.totalorder %s18, 0
      // Predicated region
      $region37: #{unet_conv2_forward.4} parent=35 // pred_check
        %p3200 = pneg %p3199
      $region38: #{unet_conv2_forward.4} parent=35 // pred_check_branch
        %3202 = sbr.rel (%p3200) target = $region40
      $region39: #{unet_conv2_forward.4} parent=35 // pred_region
        %3203 = vst [vmem:[%s5] sm:$0x1] 0.0
        %3204 = vst [vmem:[%s6] sm:$0x1] 0.0
      $region40: #{unet_conv2_forward.4} parent=35 // pred_fallthru
        _
      %v3205 = vld [vmem:[%s5] sm:$0x1]
      %v3206 = vadd.f32 %v3135, %v3136
      %v3207 = vadd.f32 %v3206, %v3137
      %v3208 = vadd.f32 %v3207, %v3138
      %v3209 = vadd.f32 %v3208, %v3139
      %v3210 = vadd.f32 %v3209, %v3140
      %v3211 = vadd.f32 %v3210, %v3141
      %v3212 = vadd.f32 %v3211, %v3142
      %v3213 = vadd.f32 %v3212, %v3143
      %v3214 = vadd.f32 %v3213, %v3144
      %v3215 = vadd.f32 %v3214, %v3145
      %v3216 = vadd.f32 %v3215, %v3146
      %v3217 = vadd.f32 %v3216, %v3147
      %v3218 = vadd.f32 %v3217, %v3148
      %v3219 = vadd.f32 %v3218, %v3149
      %v3220 = vadd.f32 %v3219, %v3150
      %v3221 = vadd.f32 %v3220, %v3151
      %v3222 = vadd.f32 %v3221, %v3152
      %v3223 = vadd.f32 %v3222, %v3153
      %v3224 = vadd.f32 %v3223, %v3154
      %v3225 = vadd.f32 %v3224, %v3155
      %v3226 = vadd.f32 %v3225, %v3156
      %v3227 = vadd.f32 %v3226, %v3157
      %v3228 = vadd.f32 %v3227, %v3158
      %v3229 = vadd.f32 %v3228, %v3159
      %v3230 = vadd.f32 %v3229, %v3160
      %v3231 = vadd.f32 %v3230, %v3161
      %v3232 = vadd.f32 %v3231, %v3162
      %v3233 = vadd.f32 %v3232, %v3163
      %v3234 = vadd.f32 %v3233, %v3164
      %v3235 = vadd.f32 %v3234, %v3165
      %v3236 = vadd.f32 %v3235, %v3166
      %v3237 = vrot.slane %v3236, 4
      %v3238 = vadd.f32 %v3236, %v3237
      %v3239 = vrot.slane %v3238, 2
      %v3240 = vadd.f32 %v3238, %v3239
      %v3241 = vrot.slane %v3240, 1
      %v3242 = vadd.f32 %v3240, %v3241
      %v3243 = vadd.f32 %v3205, %v3242
      %3244 = vst [vmem:[%s5] sm:$0x1] %v3243
      %v3245 = vld [vmem:[%s6] sm:$0x1]
      %v3246 = vmul.f32 %v3135, %v3135
      %v3247 = vmul.f32 %v3136, %v3136
      %v3248 = vmul.f32 %v3137, %v3137
      %v3249 = vmul.f32 %v3138, %v3138
      %v3250 = vmul.f32 %v3139, %v3139
      %v3251 = vmul.f32 %v3140, %v3140
      %v3252 = vmul.f32 %v3141, %v3141
      %v3253 = vmul.f32 %v3142, %v3142
      %v3254 = vmul.f32 %v3143, %v3143
      %v3255 = vmul.f32 %v3144, %v3144
      %v3256 = vmul.f32 %v3145, %v3145
      %v3257 = vmul.f32 %v3146, %v3146
      %v3258 = vmul.f32 %v3147, %v3147
      %v3259 = vmul.f32 %v3148, %v3148
      %v3260 = vmul.f32 %v3149, %v3149
      %v3261 = vmul.f32 %v3150, %v3150
      %v3262 = vmul.f32 %v3151, %v3151
      %v3263 = vmul.f32 %v3152, %v3152
      %v3264 = vmul.f32 %v3153, %v3153
      %v3265 = vmul.f32 %v3154, %v3154
      %v3266 = vmul.f32 %v3155, %v3155
      %v3267 = vmul.f32 %v3156, %v3156
      %v3268 = vmul.f32 %v3157, %v3157
      %v3269 = vmul.f32 %v3158, %v3158
      %v3270 = vmul.f32 %v3159, %v3159
      %v3271 = vmul.f32 %v3160, %v3160
      %v3272 = vmul.f32 %v3161, %v3161
      %v3273 = vmul.f32 %v3162, %v3162
      %v3274 = vmul.f32 %v3163, %v3163
      %v3275 = vmul.f32 %v3164, %v3164
      %v3276 = vmul.f32 %v3165, %v3165
      %v3277 = vmul.f32 %v3166, %v3166
      %v3278 = vadd.f32 %v3246, %v3247
      %v3279 = vadd.f32 %v3278, %v3248
      %v3280 = vadd.f32 %v3279, %v3249
      %v3281 = vadd.f32 %v3280, %v3250
      %v3282 = vadd.f32 %v3281, %v3251
      %v3283 = vadd.f32 %v3282, %v3252
      %v3284 = vadd.f32 %v3283, %v3253
      %v3285 = vadd.f32 %v3284, %v3254
      %v3286 = vadd.f32 %v3285, %v3255
      %v3287 = vadd.f32 %v3286, %v3256
      %v3288 = vadd.f32 %v3287, %v3257
      %v3289 = vadd.f32 %v3288, %v3258
      %v3290 = vadd.f32 %v3289, %v3259
      %v3291 = vadd.f32 %v3290, %v3260
      %v3292 = vadd.f32 %v3291, %v3261
      %v3293 = vadd.f32 %v3292, %v3262
      %v3294 = vadd.f32 %v3293, %v3263
      %v3295 = vadd.f32 %v3294, %v3264
      %v3296 = vadd.f32 %v3295, %v3265
      %v3297 = vadd.f32 %v3296, %v3266
      %v3298 = vadd.f32 %v3297, %v3267
      %v3299 = vadd.f32 %v3298, %v3268
      %v3300 = vadd.f32 %v3299, %v3269
      %v3301 = vadd.f32 %v3300, %v3270
      %v3302 = vadd.f32 %v3301, %v3271
      %v3303 = vadd.f32 %v3302, %v3272
      %v3304 = vadd.f32 %v3303, %v3273
      %v3305 = vadd.f32 %v3304, %v3274
      %v3306 = vadd.f32 %v3305, %v3275
      %v3307 = vadd.f32 %v3306, %v3276
      %v3308 = vadd.f32 %v3307, %v3277
      %v3309 = vrot.slane %v3308, 4
      %v3310 = vadd.f32 %v3308, %v3309
      %v3311 = vrot.slane %v3310, 2
      %v3312 = vadd.f32 %v3310, %v3311
      %v3313 = vrot.slane %v3312, 1
      %v3314 = vadd.f32 %v3312, %v3313
      %v3315 = vadd.f32 %v3245, %v3314
      %3316 = vst [vmem:[%s6] sm:$0x1] %v3315
      %p3317 = scmp.lt.s32.totalorder %s18, 1
      %s3318 = scalar_select %p3317, %s18, 1
      %s3319 = smul.addr %s3318, 32
      %s3320 = smul.addr %s3319, 8
      %s3321 = scalar_lea.vmem %s4, %s3320
      // Predicated region
      $region41: #{unet_conv2_forward.4} parent=35 // pred_check
        %p3322 = pneg %p125
      $region42: #{unet_conv2_forward.4} parent=35 // pred_check_branch
        %3324 = sbr.rel (%p3322) target = $region44
      $region43: #{unet_conv2_forward.4} parent=35 // pred_region
        _
      $region44: #{unet_conv2_forward.4} parent=35 // pred_fallthru
        _
      // Predicated region
      $region45: #{unet_conv2_forward.4} parent=35 // pred_check
        %p3325 = pneg %p146
      $region46: #{unet_conv2_forward.4} parent=35 // pred_check_branch
        %3327 = sbr.rel (%p3325) target = $region48
      $region47: #{unet_conv2_forward.4} parent=35 // pred_region
        _
      $region48: #{unet_conv2_forward.4} parent=35 // pred_fallthru
        _
      // Predicated region
      $region49: #{unet_conv2_forward.4} parent=35 // pred_check
        %p3328 = pneg %p167
      $region50: #{unet_conv2_forward.4} parent=35 // pred_check_branch
        %3330 = sbr.rel (%p3328) target = $region52
      $region51: #{unet_conv2_forward.4} parent=35 // pred_region
        _
      $region52: #{unet_conv2_forward.4} parent=35 // pred_fallthru
        _
      // Predicated region
      $region53: #{unet_conv2_forward.4} parent=35 // pred_check
        %p3331 = pneg %p146
      $region54: #{unet_conv2_forward.4} parent=35 // pred_check_branch
        %3333 = sbr.rel (%p3331) target = $region56
      $region55: #{unet_conv2_forward.4} parent=35 // pred_region
        _
      $region56: #{unet_conv2_forward.4} parent=35 // pred_fallthru
        _
      // Predicated region
      $region57: #{unet_conv2_forward.4} parent=35 // pred_check
        %p3334 = pneg %p167
      $region58: #{unet_conv2_forward.4} parent=35 // pred_check_branch
        %3336 = sbr.rel (%p3334) target = $region60
      $region59: #{unet_conv2_forward.4} parent=35 // pred_region
        _
      $region60: #{unet_conv2_forward.4} parent=35 // pred_fallthru
        _
    $region36: #{unet_conv2_forward.4} parent=5 // pred_fallthru
      _
    %p3337 = scmp.le.s32.totalorder 2, %s13
    // Predicated region
    $region61: #{unet_conv2_forward.4} parent=5 // pred_check
      %p3338 = pneg %p3337
    $region62: #{unet_conv2_forward.4} parent=5 // pred_check_branch
      %3340 = sbr.rel (%p3338) target = $region64
    $region63: #{unet_conv2_forward.4} parent=5 // pred_region
      %s3341 = ssub.s32 %s13, 2
      // Predicated region
      $region65: #{unet_conv2_forward.4} parent=63 // pred_check
        %p3342 = pneg %p131
      $region66: #{unet_conv2_forward.4} parent=63 // pred_check_branch
        %3344 = sbr.rel (%p3342) target = $region68
      $region67: #{unet_conv2_forward.4} parent=63 // pred_region
        %p3345 = scmp.lt.s32.totalorder %s19, 1
        %s3346 = scalar_select %p3345, %s19, 1
        %s3347 = smul.addr %s3346, 32
        %s3348 = smul.addr %s3347, 8
        %s3349 = scalar_lea.vmem %s4, %s3348
      $region68: #{unet_conv2_forward.4} parent=63 // pred_fallthru
        _
    $region64: #{unet_conv2_forward.4} parent=5 // pred_fallthru
      _
  $region6: #{unet_conv2_forward.4} parent=0 // loop_footer
    %s17 = sadd.s32 1, %s13
  $region7: #{unet_conv2_forward.4} parent=0 // loop_footer_branch
    %12 = sbr.rel target = $region3
  $region8: #{unet_conv2_forward.4} parent=0 // loop_exit
    _

</llo_original>
